<compile_context>
chip_gen: v7x
topology: tpu7x:2x2x1
jax: 0.10.0
libtpu: 0.0.40
codegen_flags: <defaults>
</compile_context>

<pallas_src>
import functools

import jax
import jax.numpy as jnp
from jax.experimental import pallas as pl
from jax.experimental.pallas import tpu as pltpu

# ---------------------------------------------------------------------------
# Model hyperparameters (match the PyTorch module)
# ---------------------------------------------------------------------------
VOCAB = ['R', 'H', 'K', 'D', 'E', 'S', 'T', 'N', 'Q', 'C', 'U',
         'G', 'P', 'A', 'I', 'L', 'M', 'F', 'W', 'Y', 'V', '_']
LEN_VOCAB = len(VOCAB)          # 22
EMBED_DIM = 128                 # self.embedding_dim
HIDDEN = 128                    # hidden_size (== lstm_size so init_state shapes agree)
OUTPUT_SIZE = LEN_VOCAB         # logits over vocab
LAYERS = 2
PAD_IDX = 21

BATCH = 2
SEQ = 8

BP = 8                          # batch padded to sublane multiple
O_PAD = 128                     # fc output padded to a full lane width


# ---------------------------------------------------------------------------
# Pallas kernel: 2-layer LSTM recurrence + FC, fully unrolled time loop
# ---------------------------------------------------------------------------
def _lstm_fc_kernel(embed_ref,                    # (T, Bp, E)  f32
                    h_init_ref, c_init_ref,       # (LAYERS, Bp, H) f32
                    wih0_ref, whh0_ref, b0_ref,   # (E,4H) bf16, (H,4H) bf16, (1,4H) f32
                    w1_ref, b1_ref,               # (2H,4H) bf16 = [W_ih1;W_hh1], (1,4H) f32
                    wfc_ref, bfc_ref,             # (H,O_PAD) bf16, (1,O_PAD) f32
                    logits_ref,                   # (T, Bp, O_PAD) f32
                    hN_ref, cN_ref,               # (LAYERS, Bp, H) f32
                    xg_scr,                       # (T, Bp, 4H) f32 scratch
                    hbuf_scr):                    # (T, Bp, H)  f32 scratch
    T, Bp, E = embed_ref.shape
    H = HIDDEN

    # ---- hoisted layer-0 input projection: one big M = T*Bp matmul, off the
    #      serial recurrence path.
    x_all = embed_ref[...].reshape(T * Bp, E).astype(jnp.bfloat16)
    xg = (jnp.dot(x_all, wih0_ref[...], preferred_element_type=jnp.float32)
          + b0_ref[...])
    xg_scr[...] = xg.reshape(T, Bp, 4 * H)

    # running state carried as SSA values through the unrolled loop
    h0 = h_init_ref[0]
    c0 = c_init_ref[0]
    h1 = h_init_ref[1]
    c1 = c_init_ref[1]

    b1 = b1_ref[...]             # loop-invariant bias: load once, reuse

    def gates_to_state(gates, c):
        i_g = jax.nn.sigmoid(gates[:, 0 * H:1 * H])
        f_g = jax.nn.sigmoid(gates[:, 1 * H:2 * H])
        g_g = jnp.tanh(gates[:, 2 * H:3 * H])
        o_g = jax.nn.sigmoid(gates[:, 3 * H:4 * H])
        c_new = f_g * c + i_g * g_g
        h_new = o_g * jnp.tanh(c_new)
        return h_new, c_new

    # T is static and small -> fully unroll so the scheduler can overlap
    # layer-0 of step t+1 with layer-1 of step t.
    for t in range(T):
        # layer 0: only the recurrent matmul remains on the per-step chain
        g0 = xg_scr[t] + jnp.dot(h0.astype(jnp.bfloat16), whh0_ref[...],
                                 preferred_element_type=jnp.float32)
        h0, c0 = gates_to_state(g0, c0)

        # layer 1: fused K=2H matmul over [h0_new, h1]
        xcat = jnp.concatenate([h0, h1], axis=-1).astype(jnp.bfloat16)   # (Bp, 2H)
        g1 = jnp.dot(xcat, w1_ref[...], preferred_element_type=jnp.float32) + b1
        h1, c1 = gates_to_state(g1, c1)

        hbuf_scr[t] = h1

    # ---- FC projection hoisted out of the loop: one M = T*Bp matmul and a
    #      single lane-dense store of all logits.
    hs = hbuf_scr[...].reshape(T * Bp, H).astype(jnp.bfloat16)
    logits = (jnp.dot(hs, wfc_ref[...], preferred_element_type=jnp.float32)
              + bfc_ref[...])
    logits_ref[...] = logits.reshape(T, Bp, O_PAD).astype(logits_ref.dtype)

    # final state written directly to the outputs (no scratch round-trip)
    hN_ref[0] = h0
    cN_ref[0] = c0
    hN_ref[1] = h1
    cN_ref[1] = c1


def _run_lstm_kernel(embed_tbm, h_init, c_init, params):
    """embed_tbm: (T, Bp, E) f32; h_init/c_init: (LAYERS, Bp, H) f32."""
    T = embed_tbm.shape[0]
    vmem = pl.BlockSpec(memory_space=pltpu.MemorySpace.VMEM)
    out_shapes = (
        jax.ShapeDtypeStruct((T, BP, O_PAD), jnp.float32),        # logits
        jax.ShapeDtypeStruct((LAYERS, BP, HIDDEN), jnp.float32),  # h_n
        jax.ShapeDtypeStruct((LAYERS, BP, HIDDEN), jnp.float32),  # c_n
    )
    return pl.pallas_call(
        _lstm_fc_kernel,
        out_shape=out_shapes,
        in_specs=[vmem] * 10,
        out_specs=(vmem, vmem, vmem),
        scratch_shapes=[pltpu.VMEM((T, BP, 4 * HIDDEN), jnp.float32),  # xg_scr
                        pltpu.VMEM((T, BP, HIDDEN), jnp.float32)],     # hbuf_scr
    )(embed_tbm, h_init, c_init,
      params["wih0"], params["whh0"], params["b0"],
      params["w1"], params["b1"],
      params["wfc"], params["bfc"])


# ---------------------------------------------------------------------------
# Parameter initialization (mirrors nn.Embedding / nn.LSTM / nn.Linear shapes).
# LSTM / FC weight matrices are stored in bf16 (activations stay f32).
# ---------------------------------------------------------------------------
def init_params(key):
    ks = jax.random.split(key, 16)
    k_lstm = 1.0 / jnp.sqrt(HIDDEN)
    k_fc = 1.0 / jnp.sqrt(HIDDEN)

    def unif(k, shape, scale):
        return jax.random.uniform(k, shape, jnp.float32, -scale, scale)

    emb = jax.random.normal(ks[0], (LEN_VOCAB, EMBED_DIM), jnp.float32)
    emb = emb.at[PAD_IDX].set(0.0)                       # padding_idx=21

    # layer 0: W_ih (4H, E) -> stored transposed (E, 4H); gate order [i,f,g,o]
    wih0 = unif(ks[1], (EMBED_DIM, 4 * HIDDEN), k_lstm)
    whh0 = unif(ks[2], (HIDDEN, 4 * HIDDEN), k_lstm)
    b0 = (unif(ks[3], (1, 4 * HIDDEN), k_lstm)
          + unif(ks[4], (1, 4 * HIDDEN), k_lstm))        # b_ih + b_hh
    # layer 1 (stacked [W_ih1; W_hh1] for the fused K=2H matmul)
    wih1 = unif(ks[5], (HIDDEN, 4 * HIDDEN), k_lstm)
    whh1 = unif(ks[6], (HIDDEN, 4 * HIDDEN), k_lstm)
    b1 = (unif(ks[7], (1, 4 * HIDDEN), k_lstm)
          + unif(ks[8], (1, 4 * HIDDEN), k_lstm))
    w1 = jnp.concatenate([wih1, whh1], axis=0)           # (2H, 4H)
    # fc: (output_size, H) -> transposed (H, output_size), zero-padded to O_PAD lanes
    wfc = unif(ks[9], (HIDDEN, OUTPUT_SIZE), k_fc)
    bfc = unif(ks[10], (1, OUTPUT_SIZE), k_fc)
    wfc_p = jnp.zeros((HIDDEN, O_PAD), jnp.float32).at[:, :OUTPUT_SIZE].set(wfc)
    bfc_p = jnp.zeros((1, O_PAD), jnp.float32).at[:, :OUTPUT_SIZE].set(bfc)

    return dict(
        emb=emb,
        wih0=wih0.astype(jnp.bfloat16),
        whh0=whh0.astype(jnp.bfloat16),
        b0=b0,
        w1=w1.astype(jnp.bfloat16),
        b1=b1,
        wfc=wfc_p.astype(jnp.bfloat16),
        bfc=bfc_p,
    )


# ---------------------------------------------------------------------------
# Forward wrapper == LSTMPeptides.forward(x, prev_state)
# ---------------------------------------------------------------------------
@functools.partial(jax.jit, static_argnums=())
def lstm_peptides_forward(x_tokens, prev_state, params):
    """x_tokens: (B, T) int32, prev_state: ((LAYERS,B,H), (LAYERS,B,H))."""
    B, T = x_tokens.shape
    h0_in, c0_in = prev_state

    # embedding gather (glue, plain JAX)
    embed = params["emb"][x_tokens]                          # (B, T, E)

    # batch-pad and go time-major for the kernel
    embed_tbm = jnp.zeros((T, BP, EMBED_DIM), jnp.float32)
    embed_tbm = embed_tbm.at[:, :B, :].set(jnp.transpose(embed, (1, 0, 2)))
    h_init = jnp.zeros((LAYERS, BP, HIDDEN), jnp.float32).at[:, :B, :].set(h0_in)
    c_init = jnp.zeros((LAYERS, BP, HIDDEN), jnp.float32).at[:, :B, :].set(c0_in)

    logits_p, h_n, c_n = _run_lstm_kernel(embed_tbm, h_init, c_init, params)

    logits = jnp.transpose(logits_p[:, :B, :OUTPUT_SIZE], (1, 0, 2))  # (B, T, output_size)
    return logits, (h_n[:, :B, :], c_n[:, :B, :])


def init_state(batch_size):
    return (jnp.zeros((LAYERS, batch_size, HIDDEN), jnp.float32),
            jnp.zeros((LAYERS, batch_size, HIDDEN), jnp.float32))


# ---------------------------------------------------------------------------
# Pure-JAX reference (same math as torch.nn.LSTM batch_first + Linear), f32,
# using the same (bf16-quantized) weight values as the kernel.
# ---------------------------------------------------------------------------
def reference_forward(x_tokens, prev_state, params):
    B, T = x_tokens.shape
    embed = params["emb"][x_tokens]                          # (B, T, E)

    wih0 = params["wih0"].astype(jnp.float32)
    whh0 = params["whh0"].astype(jnp.float32)
    w1 = params["w1"].astype(jnp.float32)
    wih1, whh1 = w1[:HIDDEN], w1[HIDDEN:]
    wfc = params["wfc"].astype(jnp.float32)[:, :OUTPUT_SIZE]
    bfc = params["bfc"][:, :OUTPUT_SIZE]

    h = [prev_state[0][l] for l in range(LAYERS)]
    c = [prev_state[1][l] for l in range(LAYERS)]
    ws = [(wih0, whh0, params["b0"]), (wih1, whh1, params["b1"])]
    outs = []
    for t in range(T):
        x_t = embed[:, t, :]
        for l in range(LAYERS):
            wih, whh, b = ws[l]
            gates = x_t @ wih + h[l] @ whh + b
            i_g = jax.nn.sigmoid(gates[:, 0 * HIDDEN:1 * HIDDEN])
            f_g = jax.nn.sigmoid(gates[:, 1 * HIDDEN:2 * HIDDEN])
            g_g = jnp.tanh(gates[:, 2 * HIDDEN:3 * HIDDEN])
            o_g = jax.nn.sigmoid(gates[:, 3 * HIDDEN:4 * HIDDEN])
            c[l] = f_g * c[l] + i_g * g_g
            h[l] = o_g * jnp.tanh(c[l])
            x_t = h[l]
        outs.append(x_t)
    out = jnp.stack(outs, axis=1)                            # (B, T, H)
    logits = out @ wfc + bfc
    return logits, (jnp.stack(h), jnp.stack(c))


# ---------------------------------------------------------------------------
if __name__ == "__main__":
    key = jax.random.PRNGKey(0)
    k_params, k_tokens = jax.random.split(key)

    params = init_params(k_params)
    x = jax.random.randint(k_tokens, (BATCH, SEQ), 0, LEN_VOCAB, dtype=jnp.int32)
    state0 = init_state(BATCH)

    logits, (h_n, c_n) = lstm_peptides_forward(x, state0, params)
    jax.block_until_ready((logits, h_n, c_n))

    # correctness check against the pure-JAX f32 reference (bf16 matmul inputs
    # in the kernel loosen the tolerance slightly vs. the all-f32 version)
    ref_logits, (ref_h, ref_c) = reference_forward(x, state0, params)
    assert logits.shape == (BATCH, SEQ, OUTPUT_SIZE)
    assert h_n.shape == (LAYERS, BATCH, HIDDEN) and c_n.shape == (LAYERS, BATCH, HIDDEN)
    assert jnp.allclose(logits, ref_logits, atol=2e-2, rtol=2e-2)
    assert jnp.allclose(h_n, ref_h, atol=2e-2, rtol=2e-2)
    assert jnp.allclose(c_n, ref_c, atol=2e-2, rtol=2e-2)

    print("KERNEL_OK")
</pallas_src>

<mosaic_0001>
module attributes {stable_mosaic.version = 11 : i64} {
  func.func @_lstm_fc_kernel(%arg0: memref<8x8x128xf32, #tpu.memory_space<vmem>>, %arg1: memref<2x8x128xf32, #tpu.memory_space<vmem>>, %arg2: memref<2x8x128xf32, #tpu.memory_space<vmem>>, %arg3: memref<128x512xbf16, #tpu.memory_space<vmem>>, %arg4: memref<128x512xbf16, #tpu.memory_space<vmem>>, %arg5: memref<1x512xf32, #tpu.memory_space<vmem>>, %arg6: memref<256x512xbf16, #tpu.memory_space<vmem>>, %arg7: memref<1x512xf32, #tpu.memory_space<vmem>>, %arg8: memref<128x128xbf16, #tpu.memory_space<vmem>>, %arg9: memref<1x128xf32, #tpu.memory_space<vmem>>, %arg10: memref<8x8x128xf32, #tpu.memory_space<vmem>>, %arg11: memref<2x8x128xf32, #tpu.memory_space<vmem>>, %arg12: memref<2x8x128xf32, #tpu.memory_space<vmem>>, %arg13: memref<8x8x512xf32, #tpu.memory_space<vmem>>, %arg14: memref<8x8x128xf32, #tpu.memory_space<vmem>>) attributes {dimension_semantics = [], scalar_prefetch = 0 : i64, scratch_operands = 2 : i64, tpu.core_type = #tpu.core_type<tc>} {
    %c0 = arith.constant 0 : index
    %c0_0 = arith.constant 0 : index
    %c0_1 = arith.constant 0 : index
    %0 = vector.load %arg0[%c0, %c0_0, %c0_1] : memref<8x8x128xf32, #tpu.memory_space<vmem>>, vector<8x8x128xf32>
    %1 = vector.shape_cast %0 : vector<8x8x128xf32> to vector<64x128xf32>
    %2 = arith.truncf %1 : vector<64x128xf32> to vector<64x128xbf16>
    %c0_2 = arith.constant 0 : index
    %c0_3 = arith.constant 0 : index
    %3 = vector.load %arg3[%c0_2, %c0_3] : memref<128x512xbf16, #tpu.memory_space<vmem>>, vector<128x512xbf16>
    %cst = arith.constant dense<0.000000e+00> : vector<64x512xf32>
    %4 = tpu.matmul %2, %3, %cst {dimension_numbers = #tpu.dot_dimension_numbers<[1], [0], [0], [1], [0, 0, 1, 1], [], []>} : vector<64x128xbf16>, vector<128x512xbf16>, vector<64x512xf32> -> vector<64x512xf32>
    %c0_4 = arith.constant 0 : index
    %c0_5 = arith.constant 0 : index
    %5 = vector.load %arg5[%c0_4, %c0_5] : memref<1x512xf32, #tpu.memory_space<vmem>>, vector<1x512xf32>
    %6 = vector.broadcast %5 : vector<1x512xf32> to vector<64x512xf32>
    %7 = arith.addf %4, %6 : vector<64x512xf32>
    %8 = vector.shape_cast %7 : vector<64x512xf32> to vector<8x8x512xf32>
    %c0_6 = arith.constant 0 : index
    %c0_7 = arith.constant 0 : index
    %c0_8 = arith.constant 0 : index
    %9 = vector.load %arg13[%c0_6, %c0_7, %c0_8] : memref<8x8x512xf32, #tpu.memory_space<vmem>>, vector<8x8x512xf32>
    tpu.vector_store %arg13[%c0_6, %c0_7, %c0_8], %8 {strides = array<i32>} : memref<8x8x512xf32, #tpu.memory_space<vmem>>, vector<8x8x512xf32>,
    %c0_9 = arith.constant 0 : index
    %c0_10 = arith.constant 0 : index
    %c0_11 = arith.constant 0 : index
    %10 = vector.load %arg1[%c0_9, %c0_10, %c0_11] : memref<2x8x128xf32, #tpu.memory_space<vmem>>, vector<1x8x128xf32>
    %11 = vector.shape_cast %10 : vector<1x8x128xf32> to vector<8x128xf32>
    %c0_12 = arith.constant 0 : index
    %c0_13 = arith.constant 0 : index
    %c0_14 = arith.constant 0 : index
    %12 = vector.load %arg2[%c0_12, %c0_13, %c0_14] : memref<2x8x128xf32, #tpu.memory_space<vmem>>, vector<1x8x128xf32>
    %13 = vector.shape_cast %12 : vector<1x8x128xf32> to vector<8x128xf32>
    %c1 = arith.constant 1 : index
    %c0_15 = arith.constant 0 : index
    %c0_16 = arith.constant 0 : index
    %14 = vector.load %arg1[%c1, %c0_15, %c0_16] : memref<2x8x128xf32, #tpu.memory_space<vmem>>, vector<1x8x128xf32>
    %15 = vector.shape_cast %14 : vector<1x8x128xf32> to vector<8x128xf32>
    %c1_17 = arith.constant 1 : index
    %c0_18 = arith.constant 0 : index
    %c0_19 = arith.constant 0 : index
    %16 = vector.load %arg2[%c1_17, %c0_18, %c0_19] : memref<2x8x128xf32, #tpu.memory_space<vmem>>, vector<1x8x128xf32>
    %17 = vector.shape_cast %16 : vector<1x8x128xf32> to vector<8x128xf32>
    %c0_20 = arith.constant 0 : index
    %c0_21 = arith.constant 0 : index
    %18 = vector.load %arg7[%c0_20, %c0_21] : memref<1x512xf32, #tpu.memory_space<vmem>>, vector<1x512xf32>
    %c0_22 = arith.constant 0 : index
    %c0_23 = arith.constant 0 : index
    %c0_24 = arith.constant 0 : index
    %19 = vector.load %arg13[%c0_22, %c0_23, %c0_24] : memref<8x8x512xf32, #tpu.memory_space<vmem>>, vector<1x8x512xf32>
    %20 = vector.shape_cast %19 : vector<1x8x512xf32> to vector<8x512xf32>
    %21 = arith.truncf %11 : vector<8x128xf32> to vector<8x128xbf16>
    %c0_25 = arith.constant 0 : index
    %c0_26 = arith.constant 0 : index
    %22 = vector.load %arg4[%c0_25, %c0_26] : memref<128x512xbf16, #tpu.memory_space<vmem>>, vector<128x512xbf16>
    %cst_27 = arith.constant dense<0.000000e+00> : vector<8x512xf32>
    %23 = tpu.matmul %21, %22, %cst_27 {dimension_numbers = #tpu.dot_dimension_numbers<[1], [0], [0], [1], [0, 0, 1, 1], [], []>} : vector<8x128xbf16>, vector<128x512xbf16>, vector<8x512xf32> -> vector<8x512xf32>
    %24 = arith.addf %20, %23 : vector<8x512xf32>
    %25 = vector.extract_strided_slice %24 {offsets = [0, 0], sizes = [8, 128], strides = [1, 1]} : vector<8x512xf32> to vector<8x128xf32>
    %26 = arith.negf %25 : vector<8x128xf32>
    %27 = math.exp %26 : vector<8x128xf32>
    %cst_28 = arith.constant 1.000000e+00 : f32
    %28 = vector.broadcast %cst_28 : f32 to vector<8x128xf32>
    %29 = arith.addf %28, %27 : vector<8x128xf32>
    %30 = arith.divf %28, %29 : vector<8x128xf32>
    %31 = vector.extract_strided_slice %24 {offsets = [0, 128], sizes = [8, 128], strides = [1, 1]} : vector<8x512xf32> to vector<8x128xf32>
    %32 = arith.negf %31 : vector<8x128xf32>
    %33 = math.exp %32 : vector<8x128xf32>
    %cst_29 = arith.constant 1.000000e+00 : f32
    %34 = vector.broadcast %cst_29 : f32 to vector<8x128xf32>
    %35 = arith.addf %34, %33 : vector<8x128xf32>
    %36 = arith.divf %34, %35 : vector<8x128xf32>
    %37 = vector.extract_strided_slice %24 {offsets = [0, 256], sizes = [8, 128], strides = [1, 1]} : vector<8x512xf32> to vector<8x128xf32>
    %38 = math.tanh %37 : vector<8x128xf32>
    %39 = vector.extract_strided_slice %24 {offsets = [0, 384], sizes = [8, 128], strides = [1, 1]} : vector<8x512xf32> to vector<8x128xf32>
    %40 = arith.negf %39 : vector<8x128xf32>
    %41 = math.exp %40 : vector<8x128xf32>
    %cst_30 = arith.constant 1.000000e+00 : f32
    %42 = vector.broadcast %cst_30 : f32 to vector<8x128xf32>
    %43 = arith.addf %42, %41 : vector<8x128xf32>
    %44 = arith.divf %42, %43 : vector<8x128xf32>
    %45 = arith.mulf %36, %13 : vector<8x128xf32>
    %46 = arith.mulf %30, %38 : vector<8x128xf32>
    %47 = arith.addf %45, %46 : vector<8x128xf32>
    %48 = math.tanh %47 : vector<8x128xf32>
    %49 = arith.mulf %44, %48 : vector<8x128xf32>
    %50 = tpu.concatenate %49, %15 in 1 : vector<8x128xf32>, vector<8x128xf32> -> vector<8x256xf32>
    %51 = arith.truncf %50 : vector<8x256xf32> to vector<8x256xbf16>
    %c0_31 = arith.constant 0 : index
    %c0_32 = arith.constant 0 : index
    %52 = vector.load %arg6[%c0_31, %c0_32] : memref<256x512xbf16, #tpu.memory_space<vmem>>, vector<256x512xbf16>
    %cst_33 = arith.constant dense<0.000000e+00> : vector<8x512xf32>
    %53 = tpu.matmul %51, %52, %cst_33 {dimension_numbers = #tpu.dot_dimension_numbers<[1], [0], [0], [1], [0, 0, 1, 1], [], []>} : vector<8x256xbf16>, vector<256x512xbf16>, vector<8x512xf32> -> vector<8x512xf32>
    %54 = vector.broadcast %18 : vector<1x512xf32> to vector<8x512xf32>
    %55 = arith.addf %53, %54 : vector<8x512xf32>
    %56 = vector.extract_strided_slice %55 {offsets = [0, 0], sizes = [8, 128], strides = [1, 1]} : vector<8x512xf32> to vector<8x128xf32>
    %57 = arith.negf %56 : vector<8x128xf32>
    %58 = math.exp %57 : vector<8x128xf32>
    %cst_34 = arith.constant 1.000000e+00 : f32
    %59 = vector.broadcast %cst_34 : f32 to vector<8x128xf32>
    %60 = arith.addf %59, %58 : vector<8x128xf32>
    %61 = arith.divf %59, %60 : vector<8x128xf32>
    %62 = vector.extract_strided_slice %55 {offsets = [0, 128], sizes = [8, 128], strides = [1, 1]} : vector<8x512xf32> to vector<8x128xf32>
    %63 = arith.negf %62 : vector<8x128xf32>
    %64 = math.exp %63 : vector<8x128xf32>
    %cst_35 = arith.constant 1.000000e+00 : f32
    %65 = vector.broadcast %cst_35 : f32 to vector<8x128xf32>
    %66 = arith.addf %65, %64 : vector<8x128xf32>
    %67 = arith.divf %65, %66 : vector<8x128xf32>
    %68 = vector.extract_strided_slice %55 {offsets = [0, 256], sizes = [8, 128], strides = [1, 1]} : vector<8x512xf32> to vector<8x128xf32>
    %69 = math.tanh %68 : vector<8x128xf32>
    %70 = vector.extract_strided_slice %55 {offsets = [0, 384], sizes = [8, 128], strides = [1, 1]} : vector<8x512xf32> to vector<8x128xf32>
    %71 = arith.negf %70 : vector<8x128xf32>
    %72 = math.exp %71 : vector<8x128xf32>
    %cst_36 = arith.constant 1.000000e+00 : f32
    %73 = vector.broadcast %cst_36 : f32 to vector<8x128xf32>
    %74 = arith.addf %73, %72 : vector<8x128xf32>
    %75 = arith.divf %73, %74 : vector<8x128xf32>
    %76 = arith.mulf %67, %17 : vector<8x128xf32>
    %77 = arith.mulf %61, %69 : vector<8x128xf32>
    %78 = arith.addf %76, %77 : vector<8x128xf32>
    %79 = math.tanh %78 : vector<8x128xf32>
    %80 = arith.mulf %75, %79 : vector<8x128xf32>
    %c0_37 = arith.constant 0 : index
    %c0_38 = arith.constant 0 : index
    %c0_39 = arith.constant 0 : index
    %81 = vector.load %arg14[%c0_37, %c0_38, %c0_39] : memref<8x8x128xf32, #tpu.memory_space<vmem>>, vector<1x8x128xf32>
    %82 = vector.shape_cast %81 : vector<1x8x128xf32> to vector<8x128xf32>
    %83 = vector.shape_cast %80 : vector<8x128xf32> to vector<1x8x128xf32>
    tpu.vector_store %arg14[%c0_37, %c0_38, %c0_39], %83 {strides = array<i32>} : memref<8x8x128xf32, #tpu.memory_space<vmem>>, vector<1x8x128xf32>,
    %c1_40 = arith.constant 1 : index
    %c0_41 = arith.constant 0 : index
    %c0_42 = arith.constant 0 : index
    %84 = vector.load %arg13[%c1_40, %c0_41, %c0_42] : memref<8x8x512xf32, #tpu.memory_space<vmem>>, vector<1x8x512xf32>
    %85 = vector.shape_cast %84 : vector<1x8x512xf32> to vector<8x512xf32>
    %86 = arith.truncf %49 : vector<8x128xf32> to vector<8x128xbf16>
    %c0_43 = arith.constant 0 : index
    %c0_44 = arith.constant 0 : index
    %87 = vector.load %arg4[%c0_43, %c0_44] : memref<128x512xbf16, #tpu.memory_space<vmem>>, vector<128x512xbf16>
    %cst_45 = arith.constant dense<0.000000e+00> : vector<8x512xf32>
    %88 = tpu.matmul %86, %87, %cst_45 {dimension_numbers = #tpu.dot_dimension_numbers<[1], [0], [0], [1], [0, 0, 1, 1], [], []>} : vector<8x128xbf16>, vector<128x512xbf16>, vector<8x512xf32> -> vector<8x512xf32>
    %89 = arith.addf %85, %88 : vector<8x512xf32>
    %90 = vector.extract_strided_slice %89 {offsets = [0, 0], sizes = [8, 128], strides = [1, 1]} : vector<8x512xf32> to vector<8x128xf32>
    %91 = arith.negf %90 : vector<8x128xf32>
    %92 = math.exp %91 : vector<8x128xf32>
    %cst_46 = arith.constant 1.000000e+00 : f32
    %93 = vector.broadcast %cst_46 : f32 to vector<8x128xf32>
    %94 = arith.addf %93, %92 : vector<8x128xf32>
    %95 = arith.divf %93, %94 : vector<8x128xf32>
    %96 = vector.extract_strided_slice %89 {offsets = [0, 128], sizes = [8, 128], strides = [1, 1]} : vector<8x512xf32> to vector<8x128xf32>
    %97 = arith.negf %96 : vector<8x128xf32>
    %98 = math.exp %97 : vector<8x128xf32>
    %cst_47 = arith.constant 1.000000e+00 : f32
    %99 = vector.broadcast %cst_47 : f32 to vector<8x128xf32>
    %100 = arith.addf %99, %98 : vector<8x128xf32>
    %101 = arith.divf %99, %100 : vector<8x128xf32>
    %102 = vector.extract_strided_slice %89 {offsets = [0, 256], sizes = [8, 128], strides = [1, 1]} : vector<8x512xf32> to vector<8x128xf32>
    %103 = math.tanh %102 : vector<8x128xf32>
    %104 = vector.extract_strided_slice %89 {offsets = [0, 384], sizes = [8, 128], strides = [1, 1]} : vector<8x512xf32> to vector<8x128xf32>
    %105 = arith.negf %104 : vector<8x128xf32>
    %106 = math.exp %105 : vector<8x128xf32>
    %cst_48 = arith.constant 1.000000e+00 : f32
    %107 = vector.broadcast %cst_48 : f32 to vector<8x128xf32>
    %108 = arith.addf %107, %106 : vector<8x128xf32>
    %109 = arith.divf %107, %108 : vector<8x128xf32>
    %110 = arith.mulf %101, %47 : vector<8x128xf32>
    %111 = arith.mulf %95, %103 : vector<8x128xf32>
    %112 = arith.addf %110, %111 : vector<8x128xf32>
    %113 = math.tanh %112 : vector<8x128xf32>
    %114 = arith.mulf %109, %113 : vector<8x128xf32>
    %115 = tpu.concatenate %114, %80 in 1 : vector<8x128xf32>, vector<8x128xf32> -> vector<8x256xf32>
    %116 = arith.truncf %115 : vector<8x256xf32> to vector<8x256xbf16>
    %c0_49 = arith.constant 0 : index
    %c0_50 = arith.constant 0 : index
    %117 = vector.load %arg6[%c0_49, %c0_50] : memref<256x512xbf16, #tpu.memory_space<vmem>>, vector<256x512xbf16>
    %cst_51 = arith.constant dense<0.000000e+00> : vector<8x512xf32>
    %118 = tpu.matmul %116, %117, %cst_51 {dimension_numbers = #tpu.dot_dimension_numbers<[1], [0], [0], [1], [0, 0, 1, 1], [], []>} : vector<8x256xbf16>, vector<256x512xbf16>, vector<8x512xf32> -> vector<8x512xf32>
    %119 = vector.broadcast %18 : vector<1x512xf32> to vector<8x512xf32>
    %120 = arith.addf %118, %119 : vector<8x512xf32>
    %121 = vector.extract_strided_slice %120 {offsets = [0, 0], sizes = [8, 128], strides = [1, 1]} : vector<8x512xf32> to vector<8x128xf32>
    %122 = arith.negf %121 : vector<8x128xf32>
    %123 = math.exp %122 : vector<8x128xf32>
    %cst_52 = arith.constant 1.000000e+00 : f32
    %124 = vector.broadcast %cst_52 : f32 to vector<8x128xf32>
    %125 = arith.addf %124, %123 : vector<8x128xf32>
    %126 = arith.divf %124, %125 : vector<8x128xf32>
    %127 = vector.extract_strided_slice %120 {offsets = [0, 128], sizes = [8, 128], strides = [1, 1]} : vector<8x512xf32> to vector<8x128xf32>
    %128 = arith.negf %127 : vector<8x128xf32>
    %129 = math.exp %128 : vector<8x128xf32>
    %cst_53 = arith.constant 1.000000e+00 : f32
    %130 = vector.broadcast %cst_53 : f32 to vector<8x128xf32>
    %131 = arith.addf %130, %129 : vector<8x128xf32>
    %132 = arith.divf %130, %131 : vector<8x128xf32>
    %133 = vector.extract_strided_slice %120 {offsets = [0, 256], sizes = [8, 128], strides = [1, 1]} : vector<8x512xf32> to vector<8x128xf32>
    %134 = math.tanh %133 : vector<8x128xf32>
    %135 = vector.extract_strided_slice %120 {offsets = [0, 384], sizes = [8, 128], strides = [1, 1]} : vector<8x512xf32> to vector<8x128xf32>
    %136 = arith.negf %135 : vector<8x128xf32>
    %137 = math.exp %136 : vector<8x128xf32>
    %cst_54 = arith.constant 1.000000e+00 : f32
    %138 = vector.broadcast %cst_54 : f32 to vector<8x128xf32>
    %139 = arith.addf %138, %137 : vector<8x128xf32>
    %140 = arith.divf %138, %139 : vector<8x128xf32>
    %141 = arith.mulf %132, %78 : vector<8x128xf32>
    %142 = arith.mulf %126, %134 : vector<8x128xf32>
    %143 = arith.addf %141, %142 : vector<8x128xf32>
    %144 = math.tanh %143 : vector<8x128xf32>
    %145 = arith.mulf %140, %144 : vector<8x128xf32>
    %c1_55 = arith.constant 1 : index
    %c0_56 = arith.constant 0 : index
    %c0_57 = arith.constant 0 : index
    %146 = vector.load %arg14[%c1_55, %c0_56, %c0_57] : memref<8x8x128xf32, #tpu.memory_space<vmem>>, vector<1x8x128xf32>
    %147 = vector.shape_cast %146 : vector<1x8x128xf32> to vector<8x128xf32>
    %148 = vector.shape_cast %145 : vector<8x128xf32> to vector<1x8x128xf32>
    tpu.vector_store %arg14[%c1_55, %c0_56, %c0_57], %148 {strides = array<i32>} : memref<8x8x128xf32, #tpu.memory_space<vmem>>, vector<1x8x128xf32>,
    %c2 = arith.constant 2 : index
    %c0_58 = arith.constant 0 : index
    %c0_59 = arith.constant 0 : index
    %149 = vector.load %arg13[%c2, %c0_58, %c0_59] : memref<8x8x512xf32, #tpu.memory_space<vmem>>, vector<1x8x512xf32>
    %150 = vector.shape_cast %149 : vector<1x8x512xf32> to vector<8x512xf32>
    %151 = arith.truncf %114 : vector<8x128xf32> to vector<8x128xbf16>
    %c0_60 = arith.constant 0 : index
    %c0_61 = arith.constant 0 : index
    %152 = vector.load %arg4[%c0_60, %c0_61] : memref<128x512xbf16, #tpu.memory_space<vmem>>, vector<128x512xbf16>
    %cst_62 = arith.constant dense<0.000000e+00> : vector<8x512xf32>
    %153 = tpu.matmul %151, %152, %cst_62 {dimension_numbers = #tpu.dot_dimension_numbers<[1], [0], [0], [1], [0, 0, 1, 1], [], []>} : vector<8x128xbf16>, vector<128x512xbf16>, vector<8x512xf32> -> vector<8x512xf32>
    %154 = arith.addf %150, %153 : vector<8x512xf32>
    %155 = vector.extract_strided_slice %154 {offsets = [0, 0], sizes = [8, 128], strides = [1, 1]} : vector<8x512xf32> to vector<8x128xf32>
    %156 = arith.negf %155 : vector<8x128xf32>
    %157 = math.exp %156 : vector<8x128xf32>
    %cst_63 = arith.constant 1.000000e+00 : f32
    %158 = vector.broadcast %cst_63 : f32 to vector<8x128xf32>
    %159 = arith.addf %158, %157 : vector<8x128xf32>
    %160 = arith.divf %158, %159 : vector<8x128xf32>
    %161 = vector.extract_strided_slice %154 {offsets = [0, 128], sizes = [8, 128], strides = [1, 1]} : vector<8x512xf32> to vector<8x128xf32>
    %162 = arith.negf %161 : vector<8x128xf32>
    %163 = math.exp %162 : vector<8x128xf32>
    %cst_64 = arith.constant 1.000000e+00 : f32
    %164 = vector.broadcast %cst_64 : f32 to vector<8x128xf32>
    %165 = arith.addf %164, %163 : vector<8x128xf32>
    %166 = arith.divf %164, %165 : vector<8x128xf32>
    %167 = vector.extract_strided_slice %154 {offsets = [0, 256], sizes = [8, 128], strides = [1, 1]} : vector<8x512xf32> to vector<8x128xf32>
    %168 = math.tanh %167 : vector<8x128xf32>
    %169 = vector.extract_strided_slice %154 {offsets = [0, 384], sizes = [8, 128], strides = [1, 1]} : vector<8x512xf32> to vector<8x128xf32>
    %170 = arith.negf %169 : vector<8x128xf32>
    %171 = math.exp %170 : vector<8x128xf32>
    %cst_65 = arith.constant 1.000000e+00 : f32
    %172 = vector.broadcast %cst_65 : f32 to vector<8x128xf32>
    %173 = arith.addf %172, %171 : vector<8x128xf32>
    %174 = arith.divf %172, %173 : vector<8x128xf32>
    %175 = arith.mulf %166, %112 : vector<8x128xf32>
    %176 = arith.mulf %160, %168 : vector<8x128xf32>
    %177 = arith.addf %175, %176 : vector<8x128xf32>
    %178 = math.tanh %177 : vector<8x128xf32>
    %179 = arith.mulf %174, %178 : vector<8x128xf32>
    %180 = tpu.concatenate %179, %145 in 1 : vector<8x128xf32>, vector<8x128xf32> -> vector<8x256xf32>
    %181 = arith.truncf %180 : vector<8x256xf32> to vector<8x256xbf16>
    %c0_66 = arith.constant 0 : index
    %c0_67 = arith.constant 0 : index
    %182 = vector.load %arg6[%c0_66, %c0_67] : memref<256x512xbf16, #tpu.memory_space<vmem>>, vector<256x512xbf16>
    %cst_68 = arith.constant dense<0.000000e+00> : vector<8x512xf32>
    %183 = tpu.matmul %181, %182, %cst_68 {dimension_numbers = #tpu.dot_dimension_numbers<[1], [0], [0], [1], [0, 0, 1, 1], [], []>} : vector<8x256xbf16>, vector<256x512xbf16>, vector<8x512xf32> -> vector<8x512xf32>
    %184 = vector.broadcast %18 : vector<1x512xf32> to vector<8x512xf32>
    %185 = arith.addf %183, %184 : vector<8x512xf32>
    %186 = vector.extract_strided_slice %185 {offsets = [0, 0], sizes = [8, 128], strides = [1, 1]} : vector<8x512xf32> to vector<8x128xf32>
    %187 = arith.negf %186 : vector<8x128xf32>
    %188 = math.exp %187 : vector<8x128xf32>
    %cst_69 = arith.constant 1.000000e+00 : f32
    %189 = vector.broadcast %cst_69 : f32 to vector<8x128xf32>
    %190 = arith.addf %189, %188 : vector<8x128xf32>
    %191 = arith.divf %189, %190 : vector<8x128xf32>
    %192 = vector.extract_strided_slice %185 {offsets = [0, 128], sizes = [8, 128], strides = [1, 1]} : vector<8x512xf32> to vector<8x128xf32>
    %193 = arith.negf %192 : vector<8x128xf32>
    %194 = math.exp %193 : vector<8x128xf32>
    %cst_70 = arith.constant 1.000000e+00 : f32
    %195 = vector.broadcast %cst_70 : f32 to vector<8x128xf32>
    %196 = arith.addf %195, %194 : vector<8x128xf32>
    %197 = arith.divf %195, %196 : vector<8x128xf32>
    %198 = vector.extract_strided_slice %185 {offsets = [0, 256], sizes = [8, 128], strides = [1, 1]} : vector<8x512xf32> to vector<8x128xf32>
    %199 = math.tanh %198 : vector<8x128xf32>
    %200 = vector.extract_strided_slice %185 {offsets = [0, 384], sizes = [8, 128], strides = [1, 1]} : vector<8x512xf32> to vector<8x128xf32>
    %201 = arith.negf %200 : vector<8x128xf32>
    %202 = math.exp %201 : vector<8x128xf32>
    %cst_71 = arith.constant 1.000000e+00 : f32
    %203 = vector.broadcast %cst_71 : f32 to vector<8x128xf32>
    %204 = arith.addf %203, %202 : vector<8x128xf32>
    %205 = arith.divf %203, %204 : vector<8x128xf32>
    %206 = arith.mulf %197, %143 : vector<8x128xf32>
    %207 = arith.mulf %191, %199 : vector<8x128xf32>
    %208 = arith.addf %206, %207 : vector<8x128xf32>
    %209 = math.tanh %208 : vector<8x128xf32>
    %210 = arith.mulf %205, %209 : vector<8x128xf32>
    %c2_72 = arith.constant 2 : index
    %c0_73 = arith.constant 0 : index
    %c0_74 = arith.constant 0 : index
    %211 = vector.load %arg14[%c2_72, %c0_73, %c0_74] : memref<8x8x128xf32, #tpu.memory_space<vmem>>, vector<1x8x128xf32>
    %212 = vector.shape_cast %211 : vector<1x8x128xf32> to vector<8x128xf32>
    %213 = vector.shape_cast %210 : vector<8x128xf32> to vector<1x8x128xf32>
    tpu.vector_store %arg14[%c2_72, %c0_73, %c0_74], %213 {strides = array<i32>} : memref<8x8x128xf32, #tpu.memory_space<vmem>>, vector<1x8x128xf32>,
    %c3 = arith.constant 3 : index
    %c0_75 = arith.constant 0 : index
    %c0_76 = arith.constant 0 : index
    %214 = vector.load %arg13[%c3, %c0_75, %c0_76] : memref<8x8x512xf32, #tpu.memory_space<vmem>>, vector<1x8x512xf32>
    %215 = vector.shape_cast %214 : vector<1x8x512xf32> to vector<8x512xf32>
    %216 = arith.truncf %179 : vector<8x128xf32> to vector<8x128xbf16>
    %c0_77 = arith.constant 0 : index
    %c0_78 = arith.constant 0 : index
    %217 = vector.load %arg4[%c0_77, %c0_78] : memref<128x512xbf16, #tpu.memory_space<vmem>>, vector<128x512xbf16>
    %cst_79 = arith.constant dense<0.000000e+00> : vector<8x512xf32>
    %218 = tpu.matmul %216, %217, %cst_79 {dimension_numbers = #tpu.dot_dimension_numbers<[1], [0], [0], [1], [0, 0, 1, 1], [], []>} : vector<8x128xbf16>, vector<128x512xbf16>, vector<8x512xf32> -> vector<8x512xf32>
    %219 = arith.addf %215, %218 : vector<8x512xf32>
    %220 = vector.extract_strided_slice %219 {offsets = [0, 0], sizes = [8, 128], strides = [1, 1]} : vector<8x512xf32> to vector<8x128xf32>
    %221 = arith.negf %220 : vector<8x128xf32>
    %222 = math.exp %221 : vector<8x128xf32>
    %cst_80 = arith.constant 1.000000e+00 : f32
    %223 = vector.broadcast %cst_80 : f32 to vector<8x128xf32>
    %224 = arith.addf %223, %222 : vector<8x128xf32>
    %225 = arith.divf %223, %224 : vector<8x128xf32>
    %226 = vector.extract_strided_slice %219 {offsets = [0, 128], sizes = [8, 128], strides = [1, 1]} : vector<8x512xf32> to vector<8x128xf32>
    %227 = arith.negf %226 : vector<8x128xf32>
    %228 = math.exp %227 : vector<8x128xf32>
    %cst_81 = arith.constant 1.000000e+00 : f32
    %229 = vector.broadcast %cst_81 : f32 to vector<8x128xf32>
    %230 = arith.addf %229, %228 : vector<8x128xf32>
    %231 = arith.divf %229, %230 : vector<8x128xf32>
    %232 = vector.extract_strided_slice %219 {offsets = [0, 256], sizes = [8, 128], strides = [1, 1]} : vector<8x512xf32> to vector<8x128xf32>
    %233 = math.tanh %232 : vector<8x128xf32>
    %234 = vector.extract_strided_slice %219 {offsets = [0, 384], sizes = [8, 128], strides = [1, 1]} : vector<8x512xf32> to vector<8x128xf32>
    %235 = arith.negf %234 : vector<8x128xf32>
    %236 = math.exp %235 : vector<8x128xf32>
    %cst_82 = arith.constant 1.000000e+00 : f32
    %237 = vector.broadcast %cst_82 : f32 to vector<8x128xf32>
    %238 = arith.addf %237, %236 : vector<8x128xf32>
    %239 = arith.divf %237, %238 : vector<8x128xf32>
    %240 = arith.mulf %231, %177 : vector<8x128xf32>
    %241 = arith.mulf %225, %233 : vector<8x128xf32>
    %242 = arith.addf %240, %241 : vector<8x128xf32>
    %243 = math.tanh %242 : vector<8x128xf32>
    %244 = arith.mulf %239, %243 : vector<8x128xf32>
    %245 = tpu.concatenate %244, %210 in 1 : vector<8x128xf32>, vector<8x128xf32> -> vector<8x256xf32>
    %246 = arith.truncf %245 : vector<8x256xf32> to vector<8x256xbf16>
    %c0_83 = arith.constant 0 : index
    %c0_84 = arith.constant 0 : index
    %247 = vector.load %arg6[%c0_83, %c0_84] : memref<256x512xbf16, #tpu.memory_space<vmem>>, vector<256x512xbf16>
    %cst_85 = arith.constant dense<0.000000e+00> : vector<8x512xf32>
    %248 = tpu.matmul %246, %247, %cst_85 {dimension_numbers = #tpu.dot_dimension_numbers<[1], [0], [0], [1], [0, 0, 1, 1], [], []>} : vector<8x256xbf16>, vector<256x512xbf16>, vector<8x512xf32> -> vector<8x512xf32>
    %249 = vector.broadcast %18 : vector<1x512xf32> to vector<8x512xf32>
    %250 = arith.addf %248, %249 : vector<8x512xf32>
    %251 = vector.extract_strided_slice %250 {offsets = [0, 0], sizes = [8, 128], strides = [1, 1]} : vector<8x512xf32> to vector<8x128xf32>
    %252 = arith.negf %251 : vector<8x128xf32>
    %253 = math.exp %252 : vector<8x128xf32>
    %cst_86 = arith.constant 1.000000e+00 : f32
    %254 = vector.broadcast %cst_86 : f32 to vector<8x128xf32>
    %255 = arith.addf %254, %253 : vector<8x128xf32>
    %256 = arith.divf %254, %255 : vector<8x128xf32>
    %257 = vector.extract_strided_slice %250 {offsets = [0, 128], sizes = [8, 128], strides = [1, 1]} : vector<8x512xf32> to vector<8x128xf32>
    %258 = arith.negf %257 : vector<8x128xf32>
    %259 = math.exp %258 : vector<8x128xf32>
    %cst_87 = arith.constant 1.000000e+00 : f32
    %260 = vector.broadcast %cst_87 : f32 to vector<8x128xf32>
    %261 = arith.addf %260, %259 : vector<8x128xf32>
    %262 = arith.divf %260, %261 : vector<8x128xf32>
    %263 = vector.extract_strided_slice %250 {offsets = [0, 256], sizes = [8, 128], strides = [1, 1]} : vector<8x512xf32> to vector<8x128xf32>
    %264 = math.tanh %263 : vector<8x128xf32>
    %265 = vector.extract_strided_slice %250 {offsets = [0, 384], sizes = [8, 128], strides = [1, 1]} : vector<8x512xf32> to vector<8x128xf32>
    %266 = arith.negf %265 : vector<8x128xf32>
    %267 = math.exp %266 : vector<8x128xf32>
    %cst_88 = arith.constant 1.000000e+00 : f32
    %268 = vector.broadcast %cst_88 : f32 to vector<8x128xf32>
    %269 = arith.addf %268, %267 : vector<8x128xf32>
    %270 = arith.divf %268, %269 : vector<8x128xf32>
    %271 = arith.mulf %262, %208 : vector<8x128xf32>
    %272 = arith.mulf %256, %264 : vector<8x128xf32>
    %273 = arith.addf %271, %272 : vector<8x128xf32>
    %274 = math.tanh %273 : vector<8x128xf32>
    %275 = arith.mulf %270, %274 : vector<8x128xf32>
    %c3_89 = arith.constant 3 : index
    %c0_90 = arith.constant 0 : index
    %c0_91 = arith.constant 0 : index
    %276 = vector.load %arg14[%c3_89, %c0_90, %c0_91] : memref<8x8x128xf32, #tpu.memory_space<vmem>>, vector<1x8x128xf32>
    %277 = vector.shape_cast %276 : vector<1x8x128xf32> to vector<8x128xf32>
    %278 = vector.shape_cast %275 : vector<8x128xf32> to vector<1x8x128xf32>
    tpu.vector_store %arg14[%c3_89, %c0_90, %c0_91], %278 {strides = array<i32>} : memref<8x8x128xf32, #tpu.memory_space<vmem>>, vector<1x8x128xf32>,
    %c4 = arith.constant 4 : index
    %c0_92 = arith.constant 0 : index
    %c0_93 = arith.constant 0 : index
    %279 = vector.load %arg13[%c4, %c0_92, %c0_93] : memref<8x8x512xf32, #tpu.memory_space<vmem>>, vector<1x8x512xf32>
    %280 = vector.shape_cast %279 : vector<1x8x512xf32> to vector<8x512xf32>
    %281 = arith.truncf %244 : vector<8x128xf32> to vector<8x128xbf16>
    %c0_94 = arith.constant 0 : index
    %c0_95 = arith.constant 0 : index
    %282 = vector.load %arg4[%c0_94, %c0_95] : memref<128x512xbf16, #tpu.memory_space<vmem>>, vector<128x512xbf16>
    %cst_96 = arith.constant dense<0.000000e+00> : vector<8x512xf32>
    %283 = tpu.matmul %281, %282, %cst_96 {dimension_numbers = #tpu.dot_dimension_numbers<[1], [0], [0], [1], [0, 0, 1, 1], [], []>} : vector<8x128xbf16>, vector<128x512xbf16>, vector<8x512xf32> -> vector<8x512xf32>
    %284 = arith.addf %280, %283 : vector<8x512xf32>
    %285 = vector.extract_strided_slice %284 {offsets = [0, 0], sizes = [8, 128], strides = [1, 1]} : vector<8x512xf32> to vector<8x128xf32>
    %286 = arith.negf %285 : vector<8x128xf32>
    %287 = math.exp %286 : vector<8x128xf32>
    %cst_97 = arith.constant 1.000000e+00 : f32
    %288 = vector.broadcast %cst_97 : f32 to vector<8x128xf32>
    %289 = arith.addf %288, %287 : vector<8x128xf32>
    %290 = arith.divf %288, %289 : vector<8x128xf32>
    %291 = vector.extract_strided_slice %284 {offsets = [0, 128], sizes = [8, 128], strides = [1, 1]} : vector<8x512xf32> to vector<8x128xf32>
    %292 = arith.negf %291 : vector<8x128xf32>
    %293 = math.exp %292 : vector<8x128xf32>
    %cst_98 = arith.constant 1.000000e+00 : f32
    %294 = vector.broadcast %cst_98 : f32 to vector<8x128xf32>
    %295 = arith.addf %294, %293 : vector<8x128xf32>
    %296 = arith.divf %294, %295 : vector<8x128xf32>
    %297 = vector.extract_strided_slice %284 {offsets = [0, 256], sizes = [8, 128], strides = [1, 1]} : vector<8x512xf32> to vector<8x128xf32>
    %298 = math.tanh %297 : vector<8x128xf32>
    %299 = vector.extract_strided_slice %284 {offsets = [0, 384], sizes = [8, 128], strides = [1, 1]} : vector<8x512xf32> to vector<8x128xf32>
    %300 = arith.negf %299 : vector<8x128xf32>
    %301 = math.exp %300 : vector<8x128xf32>
    %cst_99 = arith.constant 1.000000e+00 : f32
    %302 = vector.broadcast %cst_99 : f32 to vector<8x128xf32>
    %303 = arith.addf %302, %301 : vector<8x128xf32>
    %304 = arith.divf %302, %303 : vector<8x128xf32>
    %305 = arith.mulf %296, %242 : vector<8x128xf32>
    %306 = arith.mulf %290, %298 : vector<8x128xf32>
    %307 = arith.addf %305, %306 : vector<8x128xf32>
    %308 = math.tanh %307 : vector<8x128xf32>
    %309 = arith.mulf %304, %308 : vector<8x128xf32>
    %310 = tpu.concatenate %309, %275 in 1 : vector<8x128xf32>, vector<8x128xf32> -> vector<8x256xf32>
    %311 = arith.truncf %310 : vector<8x256xf32> to vector<8x256xbf16>
    %c0_100 = arith.constant 0 : index
    %c0_101 = arith.constant 0 : index
    %312 = vector.load %arg6[%c0_100, %c0_101] : memref<256x512xbf16, #tpu.memory_space<vmem>>, vector<256x512xbf16>
    %cst_102 = arith.constant dense<0.000000e+00> : vector<8x512xf32>
    %313 = tpu.matmul %311, %312, %cst_102 {dimension_numbers = #tpu.dot_dimension_numbers<[1], [0], [0], [1], [0, 0, 1, 1], [], []>} : vector<8x256xbf16>, vector<256x512xbf16>, vector<8x512xf32> -> vector<8x512xf32>
    %314 = vector.broadcast %18 : vector<1x512xf32> to vector<8x512xf32>
    %315 = arith.addf %313, %314 : vector<8x512xf32>
    %316 = vector.extract_strided_slice %315 {offsets = [0, 0], sizes = [8, 128], strides = [1, 1]} : vector<8x512xf32> to vector<8x128xf32>
    %317 = arith.negf %316 : vector<8x128xf32>
    %318 = math.exp %317 : vector<8x128xf32>
    %cst_103 = arith.constant 1.000000e+00 : f32
    %319 = vector.broadcast %cst_103 : f32 to vector<8x128xf32>
    %320 = arith.addf %319, %318 : vector<8x128xf32>
    %321 = arith.divf %319, %320 : vector<8x128xf32>
    %322 = vector.extract_strided_slice %315 {offsets = [0, 128], sizes = [8, 128], strides = [1, 1]} : vector<8x512xf32> to vector<8x128xf32>
    %323 = arith.negf %322 : vector<8x128xf32>
    %324 = math.exp %323 : vector<8x128xf32>
    %cst_104 = arith.constant 1.000000e+00 : f32
    %325 = vector.broadcast %cst_104 : f32 to vector<8x128xf32>
    %326 = arith.addf %325, %324 : vector<8x128xf32>
    %327 = arith.divf %325, %326 : vector<8x128xf32>
    %328 = vector.extract_strided_slice %315 {offsets = [0, 256], sizes = [8, 128], strides = [1, 1]} : vector<8x512xf32> to vector<8x128xf32>
    %329 = math.tanh %328 : vector<8x128xf32>
    %330 = vector.extract_strided_slice %315 {offsets = [0, 384], sizes = [8, 128], strides = [1, 1]} : vector<8x512xf32> to vector<8x128xf32>
    %331 = arith.negf %330 : vector<8x128xf32>
    %332 = math.exp %331 : vector<8x128xf32>
    %cst_105 = arith.constant 1.000000e+00 : f32
    %333 = vector.broadcast %cst_105 : f32 to vector<8x128xf32>
    %334 = arith.addf %333, %332 : vector<8x128xf32>
    %335 = arith.divf %333, %334 : vector<8x128xf32>
    %336 = arith.mulf %327, %273 : vector<8x128xf32>
    %337 = arith.mulf %321, %329 : vector<8x128xf32>
    %338 = arith.addf %336, %337 : vector<8x128xf32>
    %339 = math.tanh %338 : vector<8x128xf32>
    %340 = arith.mulf %335, %339 : vector<8x128xf32>
    %c4_106 = arith.constant 4 : index
    %c0_107 = arith.constant 0 : index
    %c0_108 = arith.constant 0 : index
    %341 = vector.load %arg14[%c4_106, %c0_107, %c0_108] : memref<8x8x128xf32, #tpu.memory_space<vmem>>, vector<1x8x128xf32>
    %342 = vector.shape_cast %341 : vector<1x8x128xf32> to vector<8x128xf32>
    %343 = vector.shape_cast %340 : vector<8x128xf32> to vector<1x8x128xf32>
    tpu.vector_store %arg14[%c4_106, %c0_107, %c0_108], %343 {strides = array<i32>} : memref<8x8x128xf32, #tpu.memory_space<vmem>>, vector<1x8x128xf32>,
    %c5 = arith.constant 5 : index
    %c0_109 = arith.constant 0 : index
    %c0_110 = arith.constant 0 : index
    %344 = vector.load %arg13[%c5, %c0_109, %c0_110] : memref<8x8x512xf32, #tpu.memory_space<vmem>>, vector<1x8x512xf32>
    %345 = vector.shape_cast %344 : vector<1x8x512xf32> to vector<8x512xf32>
    %346 = arith.truncf %309 : vector<8x128xf32> to vector<8x128xbf16>
    %c0_111 = arith.constant 0 : index
    %c0_112 = arith.constant 0 : index
    %347 = vector.load %arg4[%c0_111, %c0_112] : memref<128x512xbf16, #tpu.memory_space<vmem>>, vector<128x512xbf16>
    %cst_113 = arith.constant dense<0.000000e+00> : vector<8x512xf32>
    %348 = tpu.matmul %346, %347, %cst_113 {dimension_numbers = #tpu.dot_dimension_numbers<[1], [0], [0], [1], [0, 0, 1, 1], [], []>} : vector<8x128xbf16>, vector<128x512xbf16>, vector<8x512xf32> -> vector<8x512xf32>
    %349 = arith.addf %345, %348 : vector<8x512xf32>
    %350 = vector.extract_strided_slice %349 {offsets = [0, 0], sizes = [8, 128], strides = [1, 1]} : vector<8x512xf32> to vector<8x128xf32>
    %351 = arith.negf %350 : vector<8x128xf32>
    %352 = math.exp %351 : vector<8x128xf32>
    %cst_114 = arith.constant 1.000000e+00 : f32
    %353 = vector.broadcast %cst_114 : f32 to vector<8x128xf32>
    %354 = arith.addf %353, %352 : vector<8x128xf32>
    %355 = arith.divf %353, %354 : vector<8x128xf32>
    %356 = vector.extract_strided_slice %349 {offsets = [0, 128], sizes = [8, 128], strides = [1, 1]} : vector<8x512xf32> to vector<8x128xf32>
    %357 = arith.negf %356 : vector<8x128xf32>
    %358 = math.exp %357 : vector<8x128xf32>
    %cst_115 = arith.constant 1.000000e+00 : f32
    %359 = vector.broadcast %cst_115 : f32 to vector<8x128xf32>
    %360 = arith.addf %359, %358 : vector<8x128xf32>
    %361 = arith.divf %359, %360 : vector<8x128xf32>
    %362 = vector.extract_strided_slice %349 {offsets = [0, 256], sizes = [8, 128], strides = [1, 1]} : vector<8x512xf32> to vector<8x128xf32>
    %363 = math.tanh %362 : vector<8x128xf32>
    %364 = vector.extract_strided_slice %349 {offsets = [0, 384], sizes = [8, 128], strides = [1, 1]} : vector<8x512xf32> to vector<8x128xf32>
    %365 = arith.negf %364 : vector<8x128xf32>
    %366 = math.exp %365 : vector<8x128xf32>
    %cst_116 = arith.constant 1.000000e+00 : f32
    %367 = vector.broadcast %cst_116 : f32 to vector<8x128xf32>
    %368 = arith.addf %367, %366 : vector<8x128xf32>
    %369 = arith.divf %367, %368 : vector<8x128xf32>
    %370 = arith.mulf %361, %307 : vector<8x128xf32>
    %371 = arith.mulf %355, %363 : vector<8x128xf32>
    %372 = arith.addf %370, %371 : vector<8x128xf32>
    %373 = math.tanh %372 : vector<8x128xf32>
    %374 = arith.mulf %369, %373 : vector<8x128xf32>
    %375 = tpu.concatenate %374, %340 in 1 : vector<8x128xf32>, vector<8x128xf32> -> vector<8x256xf32>
    %376 = arith.truncf %375 : vector<8x256xf32> to vector<8x256xbf16>
    %c0_117 = arith.constant 0 : index
    %c0_118 = arith.constant 0 : index
    %377 = vector.load %arg6[%c0_117, %c0_118] : memref<256x512xbf16, #tpu.memory_space<vmem>>, vector<256x512xbf16>
    %cst_119 = arith.constant dense<0.000000e+00> : vector<8x512xf32>
    %378 = tpu.matmul %376, %377, %cst_119 {dimension_numbers = #tpu.dot_dimension_numbers<[1], [0], [0], [1], [0, 0, 1, 1], [], []>} : vector<8x256xbf16>, vector<256x512xbf16>, vector<8x512xf32> -> vector<8x512xf32>
    %379 = vector.broadcast %18 : vector<1x512xf32> to vector<8x512xf32>
    %380 = arith.addf %378, %379 : vector<8x512xf32>
    %381 = vector.extract_strided_slice %380 {offsets = [0, 0], sizes = [8, 128], strides = [1, 1]} : vector<8x512xf32> to vector<8x128xf32>
    %382 = arith.negf %381 : vector<8x128xf32>
    %383 = math.exp %382 : vector<8x128xf32>
    %cst_120 = arith.constant 1.000000e+00 : f32
    %384 = vector.broadcast %cst_120 : f32 to vector<8x128xf32>
    %385 = arith.addf %384, %383 : vector<8x128xf32>
    %386 = arith.divf %384, %385 : vector<8x128xf32>
    %387 = vector.extract_strided_slice %380 {offsets = [0, 128], sizes = [8, 128], strides = [1, 1]} : vector<8x512xf32> to vector<8x128xf32>
    %388 = arith.negf %387 : vector<8x128xf32>
    %389 = math.exp %388 : vector<8x128xf32>
    %cst_121 = arith.constant 1.000000e+00 : f32
    %390 = vector.broadcast %cst_121 : f32 to vector<8x128xf32>
    %391 = arith.addf %390, %389 : vector<8x128xf32>
    %392 = arith.divf %390, %391 : vector<8x128xf32>
    %393 = vector.extract_strided_slice %380 {offsets = [0, 256], sizes = [8, 128], strides = [1, 1]} : vector<8x512xf32> to vector<8x128xf32>
    %394 = math.tanh %393 : vector<8x128xf32>
    %395 = vector.extract_strided_slice %380 {offsets = [0, 384], sizes = [8, 128], strides = [1, 1]} : vector<8x512xf32> to vector<8x128xf32>
    %396 = arith.negf %395 : vector<8x128xf32>
    %397 = math.exp %396 : vector<8x128xf32>
    %cst_122 = arith.constant 1.000000e+00 : f32
    %398 = vector.broadcast %cst_122 : f32 to vector<8x128xf32>
    %399 = arith.addf %398, %397 : vector<8x128xf32>
    %400 = arith.divf %398, %399 : vector<8x128xf32>
    %401 = arith.mulf %392, %338 : vector<8x128xf32>
    %402 = arith.mulf %386, %394 : vector<8x128xf32>
    %403 = arith.addf %401, %402 : vector<8x128xf32>
    %404 = math.tanh %403 : vector<8x128xf32>
    %405 = arith.mulf %400, %404 : vector<8x128xf32>
    %c5_123 = arith.constant 5 : index
    %c0_124 = arith.constant 0 : index
    %c0_125 = arith.constant 0 : index
    %406 = vector.load %arg14[%c5_123, %c0_124, %c0_125] : memref<8x8x128xf32, #tpu.memory_space<vmem>>, vector<1x8x128xf32>
    %407 = vector.shape_cast %406 : vector<1x8x128xf32> to vector<8x128xf32>
    %408 = vector.shape_cast %405 : vector<8x128xf32> to vector<1x8x128xf32>
    tpu.vector_store %arg14[%c5_123, %c0_124, %c0_125], %408 {strides = array<i32>} : memref<8x8x128xf32, #tpu.memory_space<vmem>>, vector<1x8x128xf32>,
    %c6 = arith.constant 6 : index
    %c0_126 = arith.constant 0 : index
    %c0_127 = arith.constant 0 : index
    %409 = vector.load %arg13[%c6, %c0_126, %c0_127] : memref<8x8x512xf32, #tpu.memory_space<vmem>>, vector<1x8x512xf32>
    %410 = vector.shape_cast %409 : vector<1x8x512xf32> to vector<8x512xf32>
    %411 = arith.truncf %374 : vector<8x128xf32> to vector<8x128xbf16>
    %c0_128 = arith.constant 0 : index
    %c0_129 = arith.constant 0 : index
    %412 = vector.load %arg4[%c0_128, %c0_129] : memref<128x512xbf16, #tpu.memory_space<vmem>>, vector<128x512xbf16>
    %cst_130 = arith.constant dense<0.000000e+00> : vector<8x512xf32>
    %413 = tpu.matmul %411, %412, %cst_130 {dimension_numbers = #tpu.dot_dimension_numbers<[1], [0], [0], [1], [0, 0, 1, 1], [], []>} : vector<8x128xbf16>, vector<128x512xbf16>, vector<8x512xf32> -> vector<8x512xf32>
    %414 = arith.addf %410, %413 : vector<8x512xf32>
    %415 = vector.extract_strided_slice %414 {offsets = [0, 0], sizes = [8, 128], strides = [1, 1]} : vector<8x512xf32> to vector<8x128xf32>
    %416 = arith.negf %415 : vector<8x128xf32>
    %417 = math.exp %416 : vector<8x128xf32>
    %cst_131 = arith.constant 1.000000e+00 : f32
    %418 = vector.broadcast %cst_131 : f32 to vector<8x128xf32>
    %419 = arith.addf %418, %417 : vector<8x128xf32>
    %420 = arith.divf %418, %419 : vector<8x128xf32>
    %421 = vector.extract_strided_slice %414 {offsets = [0, 128], sizes = [8, 128], strides = [1, 1]} : vector<8x512xf32> to vector<8x128xf32>
    %422 = arith.negf %421 : vector<8x128xf32>
    %423 = math.exp %422 : vector<8x128xf32>
    %cst_132 = arith.constant 1.000000e+00 : f32
    %424 = vector.broadcast %cst_132 : f32 to vector<8x128xf32>
    %425 = arith.addf %424, %423 : vector<8x128xf32>
    %426 = arith.divf %424, %425 : vector<8x128xf32>
    %427 = vector.extract_strided_slice %414 {offsets = [0, 256], sizes = [8, 128], strides = [1, 1]} : vector<8x512xf32> to vector<8x128xf32>
    %428 = math.tanh %427 : vector<8x128xf32>
    %429 = vector.extract_strided_slice %414 {offsets = [0, 384], sizes = [8, 128], strides = [1, 1]} : vector<8x512xf32> to vector<8x128xf32>
    %430 = arith.negf %429 : vector<8x128xf32>
    %431 = math.exp %430 : vector<8x128xf32>
    %cst_133 = arith.constant 1.000000e+00 : f32
    %432 = vector.broadcast %cst_133 : f32 to vector<8x128xf32>
    %433 = arith.addf %432, %431 : vector<8x128xf32>
    %434 = arith.divf %432, %433 : vector<8x128xf32>
    %435 = arith.mulf %426, %372 : vector<8x128xf32>
    %436 = arith.mulf %420, %428 : vector<8x128xf32>
    %437 = arith.addf %435, %436 : vector<8x128xf32>
    %438 = math.tanh %437 : vector<8x128xf32>
    %439 = arith.mulf %434, %438 : vector<8x128xf32>
    %440 = tpu.concatenate %439, %405 in 1 : vector<8x128xf32>, vector<8x128xf32> -> vector<8x256xf32>
    %441 = arith.truncf %440 : vector<8x256xf32> to vector<8x256xbf16>
    %c0_134 = arith.constant 0 : index
    %c0_135 = arith.constant 0 : index
    %442 = vector.load %arg6[%c0_134, %c0_135] : memref<256x512xbf16, #tpu.memory_space<vmem>>, vector<256x512xbf16>
    %cst_136 = arith.constant dense<0.000000e+00> : vector<8x512xf32>
    %443 = tpu.matmul %441, %442, %cst_136 {dimension_numbers = #tpu.dot_dimension_numbers<[1], [0], [0], [1], [0, 0, 1, 1], [], []>} : vector<8x256xbf16>, vector<256x512xbf16>, vector<8x512xf32> -> vector<8x512xf32>
    %444 = vector.broadcast %18 : vector<1x512xf32> to vector<8x512xf32>
    %445 = arith.addf %443, %444 : vector<8x512xf32>
    %446 = vector.extract_strided_slice %445 {offsets = [0, 0], sizes = [8, 128], strides = [1, 1]} : vector<8x512xf32> to vector<8x128xf32>
    %447 = arith.negf %446 : vector<8x128xf32>
    %448 = math.exp %447 : vector<8x128xf32>
    %cst_137 = arith.constant 1.000000e+00 : f32
    %449 = vector.broadcast %cst_137 : f32 to vector<8x128xf32>
    %450 = arith.addf %449, %448 : vector<8x128xf32>
    %451 = arith.divf %449, %450 : vector<8x128xf32>
    %452 = vector.extract_strided_slice %445 {offsets = [0, 128], sizes = [8, 128], strides = [1, 1]} : vector<8x512xf32> to vector<8x128xf32>
    %453 = arith.negf %452 : vector<8x128xf32>
    %454 = math.exp %453 : vector<8x128xf32>
    %cst_138 = arith.constant 1.000000e+00 : f32
    %455 = vector.broadcast %cst_138 : f32 to vector<8x128xf32>
    %456 = arith.addf %455, %454 : vector<8x128xf32>
    %457 = arith.divf %455, %456 : vector<8x128xf32>
    %458 = vector.extract_strided_slice %445 {offsets = [0, 256], sizes = [8, 128], strides = [1, 1]} : vector<8x512xf32> to vector<8x128xf32>
    %459 = math.tanh %458 : vector<8x128xf32>
    %460 = vector.extract_strided_slice %445 {offsets = [0, 384], sizes = [8, 128], strides = [1, 1]} : vector<8x512xf32> to vector<8x128xf32>
    %461 = arith.negf %460 : vector<8x128xf32>
    %462 = math.exp %461 : vector<8x128xf32>
    %cst_139 = arith.constant 1.000000e+00 : f32
    %463 = vector.broadcast %cst_139 : f32 to vector<8x128xf32>
    %464 = arith.addf %463, %462 : vector<8x128xf32>
    %465 = arith.divf %463, %464 : vector<8x128xf32>
    %466 = arith.mulf %457, %403 : vector<8x128xf32>
    %467 = arith.mulf %451, %459 : vector<8x128xf32>
    %468 = arith.addf %466, %467 : vector<8x128xf32>
    %469 = math.tanh %468 : vector<8x128xf32>
    %470 = arith.mulf %465, %469 : vector<8x128xf32>
    %c6_140 = arith.constant 6 : index
    %c0_141 = arith.constant 0 : index
    %c0_142 = arith.constant 0 : index
    %471 = vector.load %arg14[%c6_140, %c0_141, %c0_142] : memref<8x8x128xf32, #tpu.memory_space<vmem>>, vector<1x8x128xf32>
    %472 = vector.shape_cast %471 : vector<1x8x128xf32> to vector<8x128xf32>
    %473 = vector.shape_cast %470 : vector<8x128xf32> to vector<1x8x128xf32>
    tpu.vector_store %arg14[%c6_140, %c0_141, %c0_142], %473 {strides = array<i32>} : memref<8x8x128xf32, #tpu.memory_space<vmem>>, vector<1x8x128xf32>,
    %c7 = arith.constant 7 : index
    %c0_143 = arith.constant 0 : index
    %c0_144 = arith.constant 0 : index
    %474 = vector.load %arg13[%c7, %c0_143, %c0_144] : memref<8x8x512xf32, #tpu.memory_space<vmem>>, vector<1x8x512xf32>
    %475 = vector.shape_cast %474 : vector<1x8x512xf32> to vector<8x512xf32>
    %476 = arith.truncf %439 : vector<8x128xf32> to vector<8x128xbf16>
    %c0_145 = arith.constant 0 : index
    %c0_146 = arith.constant 0 : index
    %477 = vector.load %arg4[%c0_145, %c0_146] : memref<128x512xbf16, #tpu.memory_space<vmem>>, vector<128x512xbf16>
    %cst_147 = arith.constant dense<0.000000e+00> : vector<8x512xf32>
    %478 = tpu.matmul %476, %477, %cst_147 {dimension_numbers = #tpu.dot_dimension_numbers<[1], [0], [0], [1], [0, 0, 1, 1], [], []>} : vector<8x128xbf16>, vector<128x512xbf16>, vector<8x512xf32> -> vector<8x512xf32>
    %479 = arith.addf %475, %478 : vector<8x512xf32>
    %480 = vector.extract_strided_slice %479 {offsets = [0, 0], sizes = [8, 128], strides = [1, 1]} : vector<8x512xf32> to vector<8x128xf32>
    %481 = arith.negf %480 : vector<8x128xf32>
    %482 = math.exp %481 : vector<8x128xf32>
    %cst_148 = arith.constant 1.000000e+00 : f32
    %483 = vector.broadcast %cst_148 : f32 to vector<8x128xf32>
    %484 = arith.addf %483, %482 : vector<8x128xf32>
    %485 = arith.divf %483, %484 : vector<8x128xf32>
    %486 = vector.extract_strided_slice %479 {offsets = [0, 128], sizes = [8, 128], strides = [1, 1]} : vector<8x512xf32> to vector<8x128xf32>
    %487 = arith.negf %486 : vector<8x128xf32>
    %488 = math.exp %487 : vector<8x128xf32>
    %cst_149 = arith.constant 1.000000e+00 : f32
    %489 = vector.broadcast %cst_149 : f32 to vector<8x128xf32>
    %490 = arith.addf %489, %488 : vector<8x128xf32>
    %491 = arith.divf %489, %490 : vector<8x128xf32>
    %492 = vector.extract_strided_slice %479 {offsets = [0, 256], sizes = [8, 128], strides = [1, 1]} : vector<8x512xf32> to vector<8x128xf32>
    %493 = math.tanh %492 : vector<8x128xf32>
    %494 = vector.extract_strided_slice %479 {offsets = [0, 384], sizes = [8, 128], strides = [1, 1]} : vector<8x512xf32> to vector<8x128xf32>
    %495 = arith.negf %494 : vector<8x128xf32>
    %496 = math.exp %495 : vector<8x128xf32>
    %cst_150 = arith.constant 1.000000e+00 : f32
    %497 = vector.broadcast %cst_150 : f32 to vector<8x128xf32>
    %498 = arith.addf %497, %496 : vector<8x128xf32>
    %499 = arith.divf %497, %498 : vector<8x128xf32>
    %500 = arith.mulf %491, %437 : vector<8x128xf32>
    %501 = arith.mulf %485, %493 : vector<8x128xf32>
    %502 = arith.addf %500, %501 : vector<8x128xf32>
    %503 = math.tanh %502 : vector<8x128xf32>
    %504 = arith.mulf %499, %503 : vector<8x128xf32>
    %505 = tpu.concatenate %504, %470 in 1 : vector<8x128xf32>, vector<8x128xf32> -> vector<8x256xf32>
    %506 = arith.truncf %505 : vector<8x256xf32> to vector<8x256xbf16>
    %c0_151 = arith.constant 0 : index
    %c0_152 = arith.constant 0 : index
    %507 = vector.load %arg6[%c0_151, %c0_152] : memref<256x512xbf16, #tpu.memory_space<vmem>>, vector<256x512xbf16>
    %cst_153 = arith.constant dense<0.000000e+00> : vector<8x512xf32>
    %508 = tpu.matmul %506, %507, %cst_153 {dimension_numbers = #tpu.dot_dimension_numbers<[1], [0], [0], [1], [0, 0, 1, 1], [], []>} : vector<8x256xbf16>, vector<256x512xbf16>, vector<8x512xf32> -> vector<8x512xf32>
    %509 = vector.broadcast %18 : vector<1x512xf32> to vector<8x512xf32>
    %510 = arith.addf %508, %509 : vector<8x512xf32>
    %511 = vector.extract_strided_slice %510 {offsets = [0, 0], sizes = [8, 128], strides = [1, 1]} : vector<8x512xf32> to vector<8x128xf32>
    %512 = arith.negf %511 : vector<8x128xf32>
    %513 = math.exp %512 : vector<8x128xf32>
    %cst_154 = arith.constant 1.000000e+00 : f32
    %514 = vector.broadcast %cst_154 : f32 to vector<8x128xf32>
    %515 = arith.addf %514, %513 : vector<8x128xf32>
    %516 = arith.divf %514, %515 : vector<8x128xf32>
    %517 = vector.extract_strided_slice %510 {offsets = [0, 128], sizes = [8, 128], strides = [1, 1]} : vector<8x512xf32> to vector<8x128xf32>
    %518 = arith.negf %517 : vector<8x128xf32>
    %519 = math.exp %518 : vector<8x128xf32>
    %cst_155 = arith.constant 1.000000e+00 : f32
    %520 = vector.broadcast %cst_155 : f32 to vector<8x128xf32>
    %521 = arith.addf %520, %519 : vector<8x128xf32>
    %522 = arith.divf %520, %521 : vector<8x128xf32>
    %523 = vector.extract_strided_slice %510 {offsets = [0, 256], sizes = [8, 128], strides = [1, 1]} : vector<8x512xf32> to vector<8x128xf32>
    %524 = math.tanh %523 : vector<8x128xf32>
    %525 = vector.extract_strided_slice %510 {offsets = [0, 384], sizes = [8, 128], strides = [1, 1]} : vector<8x512xf32> to vector<8x128xf32>
    %526 = arith.negf %525 : vector<8x128xf32>
    %527 = math.exp %526 : vector<8x128xf32>
    %cst_156 = arith.constant 1.000000e+00 : f32
    %528 = vector.broadcast %cst_156 : f32 to vector<8x128xf32>
    %529 = arith.addf %528, %527 : vector<8x128xf32>
    %530 = arith.divf %528, %529 : vector<8x128xf32>
    %531 = arith.mulf %522, %468 : vector<8x128xf32>
    %532 = arith.mulf %516, %524 : vector<8x128xf32>
    %533 = arith.addf %531, %532 : vector<8x128xf32>
    %534 = math.tanh %533 : vector<8x128xf32>
    %535 = arith.mulf %530, %534 : vector<8x128xf32>
    %c7_157 = arith.constant 7 : index
    %c0_158 = arith.constant 0 : index
    %c0_159 = arith.constant 0 : index
    %536 = vector.load %arg14[%c7_157, %c0_158, %c0_159] : memref<8x8x128xf32, #tpu.memory_space<vmem>>, vector<1x8x128xf32>
    %537 = vector.shape_cast %536 : vector<1x8x128xf32> to vector<8x128xf32>
    %538 = vector.shape_cast %535 : vector<8x128xf32> to vector<1x8x128xf32>
    tpu.vector_store %arg14[%c7_157, %c0_158, %c0_159], %538 {strides = array<i32>} : memref<8x8x128xf32, #tpu.memory_space<vmem>>, vector<1x8x128xf32>,
    %c0_160 = arith.constant 0 : index
    %c0_161 = arith.constant 0 : index
    %c0_162 = arith.constant 0 : index
    %539 = vector.load %arg14[%c0_160, %c0_161, %c0_162] : memref<8x8x128xf32, #tpu.memory_space<vmem>>, vector<8x8x128xf32>
    %540 = vector.shape_cast %539 : vector<8x8x128xf32> to vector<64x128xf32>
    %541 = arith.truncf %540 : vector<64x128xf32> to vector<64x128xbf16>
    %c0_163 = arith.constant 0 : index
    %c0_164 = arith.constant 0 : index
    %542 = vector.load %arg8[%c0_163, %c0_164] : memref<128x128xbf16, #tpu.memory_space<vmem>>, vector<128x128xbf16>
    %cst_165 = arith.constant dense<0.000000e+00> : vector<64x128xf32>
    %543 = tpu.matmul %541, %542, %cst_165 {dimension_numbers = #tpu.dot_dimension_numbers<[1], [0], [0], [1], [0, 0, 1, 1], [], []>} : vector<64x128xbf16>, vector<128x128xbf16>, vector<64x128xf32> -> vector<64x128xf32>
    %c0_166 = arith.constant 0 : index
    %c0_167 = arith.constant 0 : index
    %544 = vector.load %arg9[%c0_166, %c0_167] : memref<1x128xf32, #tpu.memory_space<vmem>>, vector<1x128xf32>
    %545 = vector.broadcast %544 : vector<1x128xf32> to vector<64x128xf32>
    %546 = arith.addf %543, %545 : vector<64x128xf32>
    %547 = vector.shape_cast %546 : vector<64x128xf32> to vector<8x8x128xf32>
    %c0_168 = arith.constant 0 : index
    %c0_169 = arith.constant 0 : index
    %c0_170 = arith.constant 0 : index
    %548 = vector.load %arg10[%c0_168, %c0_169, %c0_170] : memref<8x8x128xf32, #tpu.memory_space<vmem>>, vector<8x8x128xf32>
    tpu.vector_store %arg10[%c0_168, %c0_169, %c0_170], %547 {strides = array<i32>} : memref<8x8x128xf32, #tpu.memory_space<vmem>>, vector<8x8x128xf32>,
    %c0_171 = arith.constant 0 : index
    %c0_172 = arith.constant 0 : index
    %c0_173 = arith.constant 0 : index
    %549 = vector.load %arg11[%c0_171, %c0_172, %c0_173] : memref<2x8x128xf32, #tpu.memory_space<vmem>>, vector<1x8x128xf32>
    %550 = vector.shape_cast %549 : vector<1x8x128xf32> to vector<8x128xf32>
    %551 = vector.shape_cast %504 : vector<8x128xf32> to vector<1x8x128xf32>
    tpu.vector_store %arg11[%c0_171, %c0_172, %c0_173], %551 {strides = array<i32>} : memref<2x8x128xf32, #tpu.memory_space<vmem>>, vector<1x8x128xf32>,
    %c0_174 = arith.constant 0 : index
    %c0_175 = arith.constant 0 : index
    %c0_176 = arith.constant 0 : index
    %552 = vector.load %arg12[%c0_174, %c0_175, %c0_176] : memref<2x8x128xf32, #tpu.memory_space<vmem>>, vector<1x8x128xf32>
    %553 = vector.shape_cast %552 : vector<1x8x128xf32> to vector<8x128xf32>
    %554 = vector.shape_cast %502 : vector<8x128xf32> to vector<1x8x128xf32>
    tpu.vector_store %arg12[%c0_174, %c0_175, %c0_176], %554 {strides = array<i32>} : memref<2x8x128xf32, #tpu.memory_space<vmem>>, vector<1x8x128xf32>,
    %c1_177 = arith.constant 1 : index
    %c0_178 = arith.constant 0 : index
    %c0_179 = arith.constant 0 : index
    %555 = vector.load %arg11[%c1_177, %c0_178, %c0_179] : memref<2x8x128xf32, #tpu.memory_space<vmem>>, vector<1x8x128xf32>
    %556 = vector.shape_cast %555 : vector<1x8x128xf32> to vector<8x128xf32>
    %557 = vector.shape_cast %535 : vector<8x128xf32> to vector<1x8x128xf32>
    tpu.vector_store %arg11[%c1_177, %c0_178, %c0_179], %557 {strides = array<i32>} : memref<2x8x128xf32, #tpu.memory_space<vmem>>, vector<1x8x128xf32>,
    %c1_180 = arith.constant 1 : index
    %c0_181 = arith.constant 0 : index
    %c0_182 = arith.constant 0 : index
    %558 = vector.load %arg12[%c1_180, %c0_181, %c0_182] : memref<2x8x128xf32, #tpu.memory_space<vmem>>, vector<1x8x128xf32>
    %559 = vector.shape_cast %558 : vector<1x8x128xf32> to vector<8x128xf32>
    %560 = vector.shape_cast %533 : vector<8x128xf32> to vector<1x8x128xf32>
    tpu.vector_store %arg12[%c1_180, %c0_181, %c0_182], %560 {strides = array<i32>} : memref<2x8x128xf32, #tpu.memory_space<vmem>>, vector<1x8x128xf32>,
    return
  }
}

</mosaic_0001>

<llo_original>
// kernel: lstm_peptides_forward.1
$region0: #{lstm_peptides_forward.1}
  #allocation0 [shape = 'u32[]', space=smem, size = 0x4, offset = 0x4, fixed_abs, tag = 'smem constant byte address 0x4 - core index']
  #allocation1 [shape = 'u32[144,128]{1,0:T(1,128)}', space=vmem, size = 0x12000, scoped, tag = 'internal scratch']
  #allocation2 [shape = 'f32[8,8,512]{2,1,0:T(8,128)}', space=vmem, size = 0x20000, scoped, tag = 'scratch operand']
  #allocation3 [shape = 'f32[8,8,128]{2,1,0:T(8,128)}', space=vmem, size = 0x8000, scoped, tag = 'scratch operand']
  %s0 = inlined_call_operand.vmem [shape: f32[8,8,128], index: 0, kind: input, shape index: {}]
  %s1 = inlined_call_operand.vmem [shape: f32[2,8,128], index: 1, kind: input, shape index: {}]
  %s2 = inlined_call_operand.vmem [shape: f32[2,8,128], index: 2, kind: input, shape index: {}]
  %s3 = inlined_call_operand.vmem [shape: bf16[128,512], index: 3, kind: input, shape index: {}]
  %s4 = inlined_call_operand.hbm [shape: bf16[128,512], index: 4, kind: input, shape index: {}]
  %s5 = inlined_call_operand.vmem [shape: f32[1,512], index: 5, kind: input, shape index: {}]
  %s6 = inlined_call_operand.hbm [shape: bf16[256,512], index: 6, kind: input, shape index: {}]
  %s7 = inlined_call_operand.vmem [shape: f32[1,512], index: 7, kind: input, shape index: {}]
  %s8 = inlined_call_operand.vmem [shape: bf16[128,128], index: 8, kind: input, shape index: {}]
  %s9 = inlined_call_operand.vmem [shape: f32[1,128], index: 9, kind: input, shape index: {}]
  %s10 = inlined_call_operand.vmem [shape: f32[8,8,128], index: 10, kind: output, shape index: {0}]
  %s11 = inlined_call_operand.vmem [shape: f32[2,8,128], index: 11, kind: output, shape index: {1}]
  %s12 = inlined_call_operand.vmem [shape: f32[2,8,128], index: 12, kind: output, shape index: {2}]
  %13 = xla_tuple %s10, %s11, %s12
  %s14 = sld [smem:[#allocation0]]
  $region74: #{lstm_peptides_forward.1} parent=0
    _
  %s16 = ssub.s32 1, %s14
  %s17 = scalar_select 0, %s16, %s14
  $region1: #{lstm_peptides_forward.1} parent=0
    #allocation4 [shape = 'u8[131072]{0}', space=vmem, size = 0x20000, scoped, tag = 'input window, operand 4, single buffered']
    #allocation5 [shape = 's32[1]{0}', space=sflag, size = 0x4, scoped, tag = 'scoped memory for lstm_peptides_forward.1']
    #allocation6 [shape = 'u8[262144]{0}', space=vmem, size = 0x40000, scoped, tag = 'input window, operand 6, single buffered']
    #allocation7 [shape = 's32[1]{0}', space=sflag, size = 0x4, scoped, tag = 'scoped memory for lstm_peptides_forward.1']
    %18 = vsyncpa [#allocation5], 0
    %19 = vsyncpa [#allocation7], 0
    // Predicated region
    $region2: #{lstm_peptides_forward.1} parent=1 // pred_check
      _
    $region3: #{lstm_peptides_forward.1} parent=1 // pred_check_branch
      %21 = sbr.rel (0) target = $region5
    $region4: #{lstm_peptides_forward.1} parent=1 // pred_region
      _
    $region5: #{lstm_peptides_forward.1} parent=1 // pred_fallthru
      _
    // Predicated region
    $region6: #{lstm_peptides_forward.1} parent=1 // pred_check
      _
    $region7: #{lstm_peptides_forward.1} parent=1 // pred_check_branch
      %23 = sbr.rel (0) target = $region9
    $region8: #{lstm_peptides_forward.1} parent=1 // pred_region
      _
    $region9: #{lstm_peptides_forward.1} parent=1 // pred_fallthru
      _
    // Predicated region
    $region10: #{lstm_peptides_forward.1} parent=1 // pred_check
      _
    $region11: #{lstm_peptides_forward.1} parent=1 // pred_check_branch
      %25 = sbr.rel (0) target = $region13
    $region12: #{lstm_peptides_forward.1} parent=1 // pred_region
      _
    $region13: #{lstm_peptides_forward.1} parent=1 // pred_fallthru
      _
    // Predicated region
    $region14: #{lstm_peptides_forward.1} parent=1 // pred_check
      _
    $region15: #{lstm_peptides_forward.1} parent=1 // pred_check_branch
      %27 = sbr.rel (0) target = $region17
    $region16: #{lstm_peptides_forward.1} parent=1 // pred_region
      _
    $region17: #{lstm_peptides_forward.1} parent=1 // pred_fallthru
      _
    // Predicated region
    $region18: #{lstm_peptides_forward.1} parent=1 // pred_check
      _
    $region19: #{lstm_peptides_forward.1} parent=1 // pred_check_branch
      %29 = sbr.rel (0) target = $region21
    $region20: #{lstm_peptides_forward.1} parent=1 // pred_region
      %s31 = ssub.s32 4096, 4096
      %32 = vsyncadd [#allocation5], %s31
      %s33 = sshll.u32 [#allocation4], 4
      %s34 = int_to_ptr.vmem [resolvable:$true] %s33
      %39 = dma.hbm_to_vmem [thread:$0]  %s4, 4096, %s34, [#allocation5], 256, 256, 16
    $region21: #{lstm_peptides_forward.1} parent=1 // pred_fallthru
      _
    // Predicated region
    $region22: #{lstm_peptides_forward.1} parent=1 // pred_check
      _
    $region23: #{lstm_peptides_forward.1} parent=1 // pred_check_branch
      %41 = sbr.rel (0) target = $region25
    $region24: #{lstm_peptides_forward.1} parent=1 // pred_region
      _
    $region25: #{lstm_peptides_forward.1} parent=1 // pred_fallthru
      _
    // Predicated region
    $region26: #{lstm_peptides_forward.1} parent=1 // pred_check
      _
    $region27: #{lstm_peptides_forward.1} parent=1 // pred_check_branch
      %43 = sbr.rel (0) target = $region29
    $region28: #{lstm_peptides_forward.1} parent=1 // pred_region
      %s45 = ssub.s32 8192, 8192
      %46 = vsyncadd [#allocation7], %s45
      %s47 = sshll.u32 [#allocation6], 4
      %s48 = int_to_ptr.vmem [resolvable:$true] %s47
      %53 = dma.hbm_to_vmem [thread:$0]  %s6, 8192, %s48, [#allocation7], 256, 256, 16
    $region29: #{lstm_peptides_forward.1} parent=1 // pred_fallthru
      _
    // Predicated region
    $region30: #{lstm_peptides_forward.1} parent=1 // pred_check
      _
    $region31: #{lstm_peptides_forward.1} parent=1 // pred_check_branch
      %55 = sbr.rel (0) target = $region33
    $region32: #{lstm_peptides_forward.1} parent=1 // pred_region
      _
    $region33: #{lstm_peptides_forward.1} parent=1 // pred_fallthru
      _
    // Predicated region
    $region34: #{lstm_peptides_forward.1} parent=1 // pred_check
      _
    $region35: #{lstm_peptides_forward.1} parent=1 // pred_check_branch
      %57 = sbr.rel (0) target = $region37
    $region36: #{lstm_peptides_forward.1} parent=1 // pred_region
      _
    $region37: #{lstm_peptides_forward.1} parent=1 // pred_fallthru
      _
    // Predicated region
    $region38: #{lstm_peptides_forward.1} parent=1 // pred_check
      _
    $region39: #{lstm_peptides_forward.1} parent=1 // pred_check_branch
      %59 = sbr.rel (0) target = $region41
    $region40: #{lstm_peptides_forward.1} parent=1 // pred_region
      _
    $region41: #{lstm_peptides_forward.1} parent=1 // pred_fallthru
      _
    // Predicated region
    $region42: #{lstm_peptides_forward.1} parent=1 // pred_check
      _
    $region43: #{lstm_peptides_forward.1} parent=1 // pred_check_branch
      %61 = sbr.rel (0) target = $region45
    $region44: #{lstm_peptides_forward.1} parent=1 // pred_region
      %62 = dma.done [#allocation5], 4096
    $region45: #{lstm_peptides_forward.1} parent=1 // pred_fallthru
      _
    // Predicated region
    $region46: #{lstm_peptides_forward.1} parent=1 // pred_check
      _
    $region47: #{lstm_peptides_forward.1} parent=1 // pred_check_branch
      %64 = sbr.rel (0) target = $region49
    $region48: #{lstm_peptides_forward.1} parent=1 // pred_region
      %65 = dma.done [#allocation7], 8192
    $region49: #{lstm_peptides_forward.1} parent=1 // pred_fallthru
      _
    %v67 = vld [vmem:[%s0] sm:$0xff]
    %v68 = vld [vmem:[%s0 + $0x8] sm:$0xff]
    %v69 = vld [vmem:[%s0 + $0x10] sm:$0xff]
    %v70 = vld [vmem:[%s0 + $0x18] sm:$0xff]
    %v71 = vld [vmem:[%s0 + $0x20] sm:$0xff]
    %v72 = vld [vmem:[%s0 + $0x28] sm:$0xff]
    %v73 = vld [vmem:[%s0 + $0x30] sm:$0xff]
    %v74 = vld [vmem:[%s0 + $0x38] sm:$0xff]
    %v75 = vpack.c.bf16 %v68, %v67
    %v76 = vpack.c.bf16 %v70, %v69
    %v77 = vpack.c.bf16 %v72, %v71
    %v78 = vpack.c.bf16 %v74, %v73
    %v79 = vld [vmem:[%s3] sm:$0xff]
    %v80 = vld [vmem:[%s3 + $0x8] sm:$0xff]
    %v81 = vld [vmem:[%s3 + $0x10] sm:$0xff]
    %v82 = vld [vmem:[%s3 + $0x18] sm:$0xff]
    %v83 = vld [vmem:[%s3 + $0x20] sm:$0xff]
    %v84 = vld [vmem:[%s3 + $0x28] sm:$0xff]
    %v85 = vld [vmem:[%s3 + $0x30] sm:$0xff]
    %v86 = vld [vmem:[%s3 + $0x38] sm:$0xff]
    %v87 = vld [vmem:[%s3 + $0x40] sm:$0xff]
    %v88 = vld [vmem:[%s3 + $0x48] sm:$0xff]
    %v89 = vld [vmem:[%s3 + $0x50] sm:$0xff]
    %v90 = vld [vmem:[%s3 + $0x58] sm:$0xff]
    %v91 = vld [vmem:[%s3 + $0x60] sm:$0xff]
    %v92 = vld [vmem:[%s3 + $0x68] sm:$0xff]
    %v93 = vld [vmem:[%s3 + $0x70] sm:$0xff]
    %v94 = vld [vmem:[%s3 + $0x78] sm:$0xff]
    %v95 = vld [vmem:[%s3 + $0x80] sm:$0xff]
    %v96 = vld [vmem:[%s3 + $0x88] sm:$0xff]
    %v97 = vld [vmem:[%s3 + $0x90] sm:$0xff]
    %v98 = vld [vmem:[%s3 + $0x98] sm:$0xff]
    %v99 = vld [vmem:[%s3 + $0xa0] sm:$0xff]
    %v100 = vld [vmem:[%s3 + $0xa8] sm:$0xff]
    %v101 = vld [vmem:[%s3 + $0xb0] sm:$0xff]
    %v102 = vld [vmem:[%s3 + $0xb8] sm:$0xff]
    %v103 = vld [vmem:[%s3 + $0xc0] sm:$0xff]
    %v104 = vld [vmem:[%s3 + $0xc8] sm:$0xff]
    %v105 = vld [vmem:[%s3 + $0xd0] sm:$0xff]
    %v106 = vld [vmem:[%s3 + $0xd8] sm:$0xff]
    %v107 = vld [vmem:[%s3 + $0xe0] sm:$0xff]
    %v108 = vld [vmem:[%s3 + $0xe8] sm:$0xff]
    %v109 = vld [vmem:[%s3 + $0xf0] sm:$0xff]
    %v110 = vld [vmem:[%s3 + $0xf8] sm:$0xff]
    %v111 = vld [vmem:[%s5] sm:$0xf]
    %v113 = vlaneseq
    %v114 = vshrl.u32 %v113, 7
    %v115 = vsub.s32 0, %v114
    %v116 = vrot.slane %v111, %v115
    %v117 = vlaneseq
    %v118 = vshrl.u32 %v117, 7
    %v119 = vsub.s32 1, %v118
    %v120 = vrot.slane %v111, %v119
    %v121 = vlaneseq
    %v122 = vshrl.u32 %v121, 7
    %v123 = vsub.s32 2, %v122
    %v124 = vrot.slane %v111, %v123
    %v125 = vlaneseq
    %v126 = vshrl.u32 %v125, 7
    %v127 = vsub.s32 3, %v126
    %v128 = vrot.slane %v111, %v127
    %v165 = vunpack.c.l.b16 %v79
    %v166 = vunpack.c.h.b16 %v79
    %v167 = vunpack.c.l.b16 %v80
    %v168 = vunpack.c.h.b16 %v80
    %v169 = vunpack.c.l.b16 %v81
    %v170 = vunpack.c.h.b16 %v81
    %v171 = vunpack.c.l.b16 %v82
    %v172 = vunpack.c.h.b16 %v82
    %v173 = vunpack.c.l.b16 %v83
    %v174 = vunpack.c.h.b16 %v83
    %v175 = vunpack.c.l.b16 %v84
    %v176 = vunpack.c.h.b16 %v84
    %v177 = vunpack.c.l.b16 %v85
    %v178 = vunpack.c.h.b16 %v85
    %v179 = vunpack.c.l.b16 %v86
    %v180 = vunpack.c.h.b16 %v86
    %v181 = vunpack.c.l.b16 %v87
    %v182 = vunpack.c.h.b16 %v87
    %v183 = vunpack.c.l.b16 %v88
    %v184 = vunpack.c.h.b16 %v88
    %v185 = vunpack.c.l.b16 %v89
    %v186 = vunpack.c.h.b16 %v89
    %v187 = vunpack.c.l.b16 %v90
    %v188 = vunpack.c.h.b16 %v90
    %v189 = vunpack.c.l.b16 %v91
    %v190 = vunpack.c.h.b16 %v91
    %v191 = vunpack.c.l.b16 %v92
    %v192 = vunpack.c.h.b16 %v92
    %v193 = vunpack.c.l.b16 %v93
    %v194 = vunpack.c.h.b16 %v93
    %v195 = vunpack.c.l.b16 %v94
    %v196 = vunpack.c.h.b16 %v94
    %v197 = vunpack.c.l.b16 %v95
    %v198 = vunpack.c.h.b16 %v95
    %v199 = vunpack.c.l.b16 %v96
    %v200 = vunpack.c.h.b16 %v96
    %v201 = vunpack.c.l.b16 %v97
    %v202 = vunpack.c.h.b16 %v97
    %v203 = vunpack.c.l.b16 %v98
    %v204 = vunpack.c.h.b16 %v98
    %v205 = vunpack.c.l.b16 %v99
    %v206 = vunpack.c.h.b16 %v99
    %v207 = vunpack.c.l.b16 %v100
    %v208 = vunpack.c.h.b16 %v100
    %v209 = vunpack.c.l.b16 %v101
    %v210 = vunpack.c.h.b16 %v101
    %v211 = vunpack.c.l.b16 %v102
    %v212 = vunpack.c.h.b16 %v102
    %v213 = vunpack.c.l.b16 %v103
    %v214 = vunpack.c.h.b16 %v103
    %v215 = vunpack.c.l.b16 %v104
    %v216 = vunpack.c.h.b16 %v104
    %v217 = vunpack.c.l.b16 %v105
    %v218 = vunpack.c.h.b16 %v105
    %v219 = vunpack.c.l.b16 %v106
    %v220 = vunpack.c.h.b16 %v106
    %v221 = vunpack.c.l.b16 %v107
    %v222 = vunpack.c.h.b16 %v107
    %v223 = vunpack.c.l.b16 %v108
    %v224 = vunpack.c.h.b16 %v108
    %v225 = vunpack.c.l.b16 %v109
    %v226 = vunpack.c.h.b16 %v109
    %v227 = vunpack.c.l.b16 %v110
    %v228 = vunpack.c.h.b16 %v110
    %v229 = vpack.c.b16 %v169, %v165
    %v230 = vpack.c.b16 %v170, %v166
    %v231 = vpack.c.b16 %v171, %v167
    %v232 = vpack.c.b16 %v172, %v168
    %v233 = vpack.c.b16 %v177, %v173
    %v234 = vpack.c.b16 %v178, %v174
    %v235 = vpack.c.b16 %v179, %v175
    %v236 = vpack.c.b16 %v180, %v176
    %v237 = vpack.c.b16 %v185, %v181
    %v238 = vpack.c.b16 %v186, %v182
    %v239 = vpack.c.b16 %v187, %v183
    %v240 = vpack.c.b16 %v188, %v184
    %v241 = vpack.c.b16 %v193, %v189
    %v242 = vpack.c.b16 %v194, %v190
    %v243 = vpack.c.b16 %v195, %v191
    %v244 = vpack.c.b16 %v196, %v192
    %v245 = vpack.c.b16 %v201, %v197
    %v246 = vpack.c.b16 %v202, %v198
    %v247 = vpack.c.b16 %v203, %v199
    %v248 = vpack.c.b16 %v204, %v200
    %v249 = vpack.c.b16 %v209, %v205
    %v250 = vpack.c.b16 %v210, %v206
    %v251 = vpack.c.b16 %v211, %v207
    %v252 = vpack.c.b16 %v212, %v208
    %v253 = vpack.c.b16 %v217, %v213
    %v254 = vpack.c.b16 %v218, %v214
    %v255 = vpack.c.b16 %v219, %v215
    %v256 = vpack.c.b16 %v220, %v216
    %v257 = vpack.c.b16 %v225, %v221
    %v258 = vpack.c.b16 %v226, %v222
    %v259 = vpack.c.b16 %v227, %v223
    %v260 = vpack.c.b16 %v228, %v224
    %293 = vmatprep.subr.bf16.mxu0 %v230
    %294 = vmatpush1.bf16.msra.mxu0 %v229
    %295 = vmatprep.subr.bf16.mxu0 %v234
    %296 = vmatpush1.bf16.msra.mxu0 %v233
    %297 = vmatprep.subr.bf16.mxu0 %v238
    %298 = vmatpush1.bf16.msra.mxu0 %v237
    %299 = vmatprep.subr.bf16.mxu0 %v242
    %300 = vmatpush1.bf16.msra.mxu0 %v241
    %301 = vmatprep.subr.bf16.mxu0 %v246
    %302 = vmatpush1.bf16.msra.mxu0 %v245
    %303 = vmatprep.subr.bf16.mxu0 %v250
    %304 = vmatpush1.bf16.msra.mxu0 %v249
    %305 = vmatprep.subr.bf16.mxu0 %v254
    %306 = vmatpush1.bf16.msra.mxu0 %v253
    %307 = vmatprep.subr.bf16.mxu0 %v258
    %308 = vmatpush1.bf16.msra.mxu0 %v257
    %309 = vmatprep.subr.bf16.mxu0 0
    %310 = vmatpush1.bf16.msra.mxu0 0
    %311 = vmatprep.subr.bf16.mxu0 0
    %312 = vmatpush1.bf16.msra.mxu0 0
    %313 = vmatprep.subr.bf16.mxu0 0
    %314 = vmatpush1.bf16.msra.mxu0 0
    %315 = vmatprep.subr.bf16.mxu0 0
    %316 = vmatpush1.bf16.msra.mxu0 0
    %317 = vmatprep.subr.bf16.mxu0 0
    %318 = vmatpush1.bf16.msra.mxu0 0
    %319 = vmatprep.subr.bf16.mxu0 0
    %320 = vmatpush1.bf16.msra.mxu0 0
    %321 = vmatprep.subr.bf16.mxu0 0
    %322 = vmatpush1.bf16.msra.mxu0 0
    %323 = vmatprep.subr.bf16.mxu0 0
    %324 = vmatpush1.bf16.msra.mxu0 0
    %325 = vmatprep.mubr.bf16.mxu0 0
    %326 = vmatmul.mubr.bf16.gmra.mrb[0].mxu0 %v75
    %v327 = vpop.f32.mrb[0].mxu0
    %v328 = vadd.f32 %v116, %v327
    %v329 = vpop.f32.mrb[0].mxu0
    %v330 = vadd.f32 %v120, %v329
    %v331 = vpop.f32.mrb[0].mxu0
    %v332 = vadd.f32 %v116, %v331
    %v333 = vpop.f32.mrb[0].mxu0
    %v334 = vadd.f32 %v120, %v333
    %335 = vmatprep.mubr.bf16.mxu0 0
    %336 = vmatmul.mubr.bf16.gmra.mrb[0].mxu0 %v76
    %v337 = vpop.f32.mrb[0].mxu0
    %v338 = vadd.f32 %v116, %v337
    %v339 = vpop.f32.mrb[0].mxu0
    %v340 = vadd.f32 %v120, %v339
    %v341 = vpop.f32.mrb[0].mxu0
    %v342 = vadd.f32 %v116, %v341
    %v343 = vpop.f32.mrb[0].mxu0
    %v344 = vadd.f32 %v120, %v343
    %345 = vmatprep.mubr.bf16.mxu0 0
    %346 = vmatmul.mubr.bf16.gmra.mrb[0].mxu0 %v77
    %v347 = vpop.f32.mrb[0].mxu0
    %v348 = vadd.f32 %v116, %v347
    %v349 = vpop.f32.mrb[0].mxu0
    %v350 = vadd.f32 %v120, %v349
    %v351 = vpop.f32.mrb[0].mxu0
    %v352 = vadd.f32 %v116, %v351
    %v353 = vpop.f32.mrb[0].mxu0
    %v354 = vadd.f32 %v120, %v353
    %355 = vmatprep.mubr.bf16.mxu0 0
    %356 = vmatmul.mubr.bf16.gmra.mrb[0].mxu0 %v78
    %v357 = vpop.f32.mrb[0].mxu0
    %v358 = vadd.f32 %v116, %v357
    %v359 = vpop.f32.mrb[0].mxu0
    %v360 = vadd.f32 %v120, %v359
    %v361 = vpop.f32.mrb[0].mxu0
    %v362 = vadd.f32 %v116, %v361
    %v363 = vpop.f32.mrb[0].mxu0
    %v364 = vadd.f32 %v120, %v363
    %365 = vdwg.mxu0
    %366 = vmatprep.subr.bf16.mxu0 %v232
    %367 = vmatpush1.bf16.msra.mxu0 %v231
    %368 = vmatprep.subr.bf16.mxu0 %v236
    %369 = vmatpush1.bf16.msra.mxu0 %v235
    %370 = vmatprep.subr.bf16.mxu0 %v240
    %371 = vmatpush1.bf16.msra.mxu0 %v239
    %372 = vmatprep.subr.bf16.mxu0 %v244
    %373 = vmatpush1.bf16.msra.mxu0 %v243
    %374 = vmatprep.subr.bf16.mxu0 %v248
    %375 = vmatpush1.bf16.msra.mxu0 %v247
    %376 = vmatprep.subr.bf16.mxu0 %v252
    %377 = vmatpush1.bf16.msra.mxu0 %v251
    %378 = vmatprep.subr.bf16.mxu0 %v256
    %379 = vmatpush1.bf16.msra.mxu0 %v255
    %380 = vmatprep.subr.bf16.mxu0 %v260
    %381 = vmatpush1.bf16.msra.mxu0 %v259
    %382 = vmatprep.subr.bf16.mxu0 0
    %383 = vmatpush1.bf16.msra.mxu0 0
    %384 = vmatprep.subr.bf16.mxu0 0
    %385 = vmatpush1.bf16.msra.mxu0 0
    %386 = vmatprep.subr.bf16.mxu0 0
    %387 = vmatpush1.bf16.msra.mxu0 0
    %388 = vmatprep.subr.bf16.mxu0 0
    %389 = vmatpush1.bf16.msra.mxu0 0
    %390 = vmatprep.subr.bf16.mxu0 0
    %391 = vmatpush1.bf16.msra.mxu0 0
    %392 = vmatprep.subr.bf16.mxu0 0
    %393 = vmatpush1.bf16.msra.mxu0 0
    %394 = vmatprep.subr.bf16.mxu0 0
    %395 = vmatpush1.bf16.msra.mxu0 0
    %396 = vmatprep.subr.bf16.mxu0 0
    %397 = vmatpush1.bf16.msra.mxu0 0
    %398 = vmatprep.mubr.bf16.mxu0 0
    %399 = vmatmul.mubr.bf16.gmra.mrb[0].mxu0 %v75
    %v400 = vpop.f32.mrb[0].mxu0
    %v401 = vadd.f32 %v124, %v400
    %v402 = vpop.f32.mrb[0].mxu0
    %v403 = vadd.f32 %v128, %v402
    %v404 = vpop.f32.mrb[0].mxu0
    %v405 = vadd.f32 %v124, %v404
    %v406 = vpop.f32.mrb[0].mxu0
    %v407 = vadd.f32 %v128, %v406
    %408 = vmatprep.mubr.bf16.mxu0 0
    %409 = vmatmul.mubr.bf16.gmra.mrb[0].mxu0 %v76
    %v410 = vpop.f32.mrb[0].mxu0
    %v411 = vadd.f32 %v124, %v410
    %v412 = vpop.f32.mrb[0].mxu0
    %v413 = vadd.f32 %v128, %v412
    %v414 = vpop.f32.mrb[0].mxu0
    %v415 = vadd.f32 %v124, %v414
    %v416 = vpop.f32.mrb[0].mxu0
    %v417 = vadd.f32 %v128, %v416
    %418 = vmatprep.mubr.bf16.mxu0 0
    %419 = vmatmul.mubr.bf16.gmra.mrb[0].mxu0 %v77
    %v420 = vpop.f32.mrb[0].mxu0
    %v421 = vadd.f32 %v124, %v420
    %v422 = vpop.f32.mrb[0].mxu0
    %v423 = vadd.f32 %v128, %v422
    %v424 = vpop.f32.mrb[0].mxu0
    %v425 = vadd.f32 %v124, %v424
    %v426 = vpop.f32.mrb[0].mxu0
    %v427 = vadd.f32 %v128, %v426
    %428 = vmatprep.mubr.bf16.mxu0 0
    %429 = vmatmul.mubr.bf16.gmra.mrb[0].mxu0 %v78
    %v430 = vpop.f32.mrb[0].mxu0
    %v431 = vadd.f32 %v124, %v430
    %v432 = vpop.f32.mrb[0].mxu0
    %v433 = vadd.f32 %v128, %v432
    %v434 = vpop.f32.mrb[0].mxu0
    %v435 = vadd.f32 %v124, %v434
    %v436 = vpop.f32.mrb[0].mxu0
    %v437 = vadd.f32 %v128, %v436
    %438 = vdwg.mxu0
    %439 = vst [vmem:[#allocation2] sm:$0xff] %v328
    %440 = vst [vmem:[#allocation2 + $0x8] sm:$0xff] %v330
    %441 = vst [vmem:[#allocation2 + $0x10] sm:$0xff] %v401
    %442 = vst [vmem:[#allocation2 + $0x18] sm:$0xff] %v403
    %443 = vst [vmem:[#allocation2 + $0x20] sm:$0xff] %v332
    %444 = vst [vmem:[#allocation2 + $0x28] sm:$0xff] %v334
    %445 = vst [vmem:[#allocation2 + $0x30] sm:$0xff] %v405
    %446 = vst [vmem:[#allocation2 + $0x38] sm:$0xff] %v407
    %447 = vst [vmem:[#allocation2 + $0x40] sm:$0xff] %v338
    %448 = vst [vmem:[#allocation2 + $0x48] sm:$0xff] %v340
    %449 = vst [vmem:[#allocation2 + $0x50] sm:$0xff] %v411
    %450 = vst [vmem:[#allocation2 + $0x58] sm:$0xff] %v413
    %451 = vst [vmem:[#allocation2 + $0x60] sm:$0xff] %v342
    %452 = vst [vmem:[#allocation2 + $0x68] sm:$0xff] %v344
    %453 = vst [vmem:[#allocation2 + $0x70] sm:$0xff] %v415
    %454 = vst [vmem:[#allocation2 + $0x78] sm:$0xff] %v417
    %455 = vst [vmem:[#allocation2 + $0x80] sm:$0xff] %v348
    %456 = vst [vmem:[#allocation2 + $0x88] sm:$0xff] %v350
    %457 = vst [vmem:[#allocation2 + $0x90] sm:$0xff] %v421
    %458 = vst [vmem:[#allocation2 + $0x98] sm:$0xff] %v423
    %459 = vst [vmem:[#allocation2 + $0xa0] sm:$0xff] %v352
    %460 = vst [vmem:[#allocation2 + $0xa8] sm:$0xff] %v354
    %461 = vst [vmem:[#allocation2 + $0xb0] sm:$0xff] %v425
    %462 = vst [vmem:[#allocation2 + $0xb8] sm:$0xff] %v427
    %463 = vst [vmem:[#allocation2 + $0xc0] sm:$0xff] %v358
    %464 = vst [vmem:[#allocation2 + $0xc8] sm:$0xff] %v360
    %465 = vst [vmem:[#allocation2 + $0xd0] sm:$0xff] %v431
    %466 = vst [vmem:[#allocation2 + $0xd8] sm:$0xff] %v433
    %467 = vst [vmem:[#allocation2 + $0xe0] sm:$0xff] %v362
    %468 = vst [vmem:[#allocation2 + $0xe8] sm:$0xff] %v364
    %469 = vst [vmem:[#allocation2 + $0xf0] sm:$0xff] %v435
    %470 = vst [vmem:[#allocation2 + $0xf8] sm:$0xff] %v437
    %v471 = vld [vmem:[%s1] sm:$0xff]
    %v472 = vld [vmem:[%s2] sm:$0xff]
    %s473 = scalar_lea.vmem %s1, 8
    %v474 = vld [vmem:[%s473] sm:$0xff]
    %s475 = scalar_lea.vmem %s2, 8
    %v476 = vld [vmem:[%s475] sm:$0xff]
    %v477 = vld [vmem:[%s7] sm:$0xf]
    %v478 = vld [vmem:[#allocation2] sm:$0xff]
    %v479 = vld [vmem:[#allocation2 + $0x8] sm:$0xff]
    %v480 = vld [vmem:[#allocation2 + $0x10] sm:$0xff]
    %v481 = vld [vmem:[#allocation2 + $0x18] sm:$0xff]
    %v482 = vpack.c.bf16 %v471, %v471
    %v483 = vld [vmem:[#allocation4] sm:$0xff]
    %v484 = vld [vmem:[#allocation4 + $0x8] sm:$0xff]
    %v485 = vld [vmem:[#allocation4 + $0x10] sm:$0xff]
    %v486 = vld [vmem:[#allocation4 + $0x18] sm:$0xff]
    %v487 = vld [vmem:[#allocation4 + $0x20] sm:$0xff]
    %v488 = vld [vmem:[#allocation4 + $0x28] sm:$0xff]
    %v489 = vld [vmem:[#allocation4 + $0x30] sm:$0xff]
    %v490 = vld [vmem:[#allocation4 + $0x38] sm:$0xff]
    %v491 = vld [vmem:[#allocation4 + $0x40] sm:$0xff]
    %v492 = vld [vmem:[#allocation4 + $0x48] sm:$0xff]
    %v493 = vld [vmem:[#allocation4 + $0x50] sm:$0xff]
    %v494 = vld [vmem:[#allocation4 + $0x58] sm:$0xff]
    %v495 = vld [vmem:[#allocation4 + $0x60] sm:$0xff]
    %v496 = vld [vmem:[#allocation4 + $0x68] sm:$0xff]
    %v497 = vld [vmem:[#allocation4 + $0x70] sm:$0xff]
    %v498 = vld [vmem:[#allocation4 + $0x78] sm:$0xff]
    %v499 = vld [vmem:[#allocation4 + $0x80] sm:$0xff]
    %v500 = vld [vmem:[#allocation4 + $0x88] sm:$0xff]
    %v501 = vld [vmem:[#allocation4 + $0x90] sm:$0xff]
    %v502 = vld [vmem:[#allocation4 + $0x98] sm:$0xff]
    %v503 = vld [vmem:[#allocation4 + $0xa0] sm:$0xff]
    %v504 = vld [vmem:[#allocation4 + $0xa8] sm:$0xff]
    %v505 = vld [vmem:[#allocation4 + $0xb0] sm:$0xff]
    %v506 = vld [vmem:[#allocation4 + $0xb8] sm:$0xff]
    %v507 = vld [vmem:[#allocation4 + $0xc0] sm:$0xff]
    %v508 = vld [vmem:[#allocation4 + $0xc8] sm:$0xff]
    %v509 = vld [vmem:[#allocation4 + $0xd0] sm:$0xff]
    %v510 = vld [vmem:[#allocation4 + $0xd8] sm:$0xff]
    %v511 = vld [vmem:[#allocation4 + $0xe0] sm:$0xff]
    %v512 = vld [vmem:[#allocation4 + $0xe8] sm:$0xff]
    %v513 = vld [vmem:[#allocation4 + $0xf0] sm:$0xff]
    %v514 = vld [vmem:[#allocation4 + $0xf8] sm:$0xff]
    %v547 = vunpack.c.l.b16 %v483
    %v548 = vunpack.c.h.b16 %v483
    %v549 = vunpack.c.l.b16 %v484
    %v550 = vunpack.c.h.b16 %v484
    %v551 = vunpack.c.l.b16 %v485
    %v552 = vunpack.c.h.b16 %v485
    %v553 = vunpack.c.l.b16 %v486
    %v554 = vunpack.c.h.b16 %v486
    %v555 = vunpack.c.l.b16 %v487
    %v556 = vunpack.c.h.b16 %v487
    %v557 = vunpack.c.l.b16 %v488
    %v558 = vunpack.c.h.b16 %v488
    %v559 = vunpack.c.l.b16 %v489
    %v560 = vunpack.c.h.b16 %v489
    %v561 = vunpack.c.l.b16 %v490
    %v562 = vunpack.c.h.b16 %v490
    %v563 = vunpack.c.l.b16 %v491
    %v564 = vunpack.c.h.b16 %v491
    %v565 = vunpack.c.l.b16 %v492
    %v566 = vunpack.c.h.b16 %v492
    %v567 = vunpack.c.l.b16 %v493
    %v568 = vunpack.c.h.b16 %v493
    %v569 = vunpack.c.l.b16 %v494
    %v570 = vunpack.c.h.b16 %v494
    %v571 = vunpack.c.l.b16 %v495
    %v572 = vunpack.c.h.b16 %v495
    %v573 = vunpack.c.l.b16 %v496
    %v574 = vunpack.c.h.b16 %v496
    %v575 = vunpack.c.l.b16 %v497
    %v576 = vunpack.c.h.b16 %v497
    %v577 = vunpack.c.l.b16 %v498
    %v578 = vunpack.c.h.b16 %v498
    %v579 = vunpack.c.l.b16 %v499
    %v580 = vunpack.c.h.b16 %v499
    %v581 = vunpack.c.l.b16 %v500
    %v582 = vunpack.c.h.b16 %v500
    %v583 = vunpack.c.l.b16 %v501
    %v584 = vunpack.c.h.b16 %v501
    %v585 = vunpack.c.l.b16 %v502
    %v586 = vunpack.c.h.b16 %v502
    %v587 = vunpack.c.l.b16 %v503
    %v588 = vunpack.c.h.b16 %v503
    %v589 = vunpack.c.l.b16 %v504
    %v590 = vunpack.c.h.b16 %v504
    %v591 = vunpack.c.l.b16 %v505
    %v592 = vunpack.c.h.b16 %v505
    %v593 = vunpack.c.l.b16 %v506
    %v594 = vunpack.c.h.b16 %v506
    %v595 = vunpack.c.l.b16 %v507
    %v596 = vunpack.c.h.b16 %v507
    %v597 = vunpack.c.l.b16 %v508
    %v598 = vunpack.c.h.b16 %v508
    %v599 = vunpack.c.l.b16 %v509
    %v600 = vunpack.c.h.b16 %v509
    %v601 = vunpack.c.l.b16 %v510
    %v602 = vunpack.c.h.b16 %v510
    %v603 = vunpack.c.l.b16 %v511
    %v604 = vunpack.c.h.b16 %v511
    %v605 = vunpack.c.l.b16 %v512
    %v606 = vunpack.c.h.b16 %v512
    %v607 = vunpack.c.l.b16 %v513
    %v608 = vunpack.c.h.b16 %v513
    %v609 = vunpack.c.l.b16 %v514
    %v610 = vunpack.c.h.b16 %v514
    %v611 = vpack.c.b16 %v551, %v547
    %v612 = vpack.c.b16 %v552, %v548
    %v613 = vpack.c.b16 %v553, %v549
    %v614 = vpack.c.b16 %v554, %v550
    %v615 = vpack.c.b16 %v559, %v555
    %v616 = vpack.c.b16 %v560, %v556
    %v617 = vpack.c.b16 %v561, %v557
    %v618 = vpack.c.b16 %v562, %v558
    %v619 = vpack.c.b16 %v567, %v563
    %v620 = vpack.c.b16 %v568, %v564
    %v621 = vpack.c.b16 %v569, %v565
    %v622 = vpack.c.b16 %v570, %v566
    %v623 = vpack.c.b16 %v575, %v571
    %v624 = vpack.c.b16 %v576, %v572
    %v625 = vpack.c.b16 %v577, %v573
    %v626 = vpack.c.b16 %v578, %v574
    %v627 = vpack.c.b16 %v583, %v579
    %v628 = vpack.c.b16 %v584, %v580
    %v629 = vpack.c.b16 %v585, %v581
    %v630 = vpack.c.b16 %v586, %v582
    %v631 = vpack.c.b16 %v591, %v587
    %v632 = vpack.c.b16 %v592, %v588
    %v633 = vpack.c.b16 %v593, %v589
    %v634 = vpack.c.b16 %v594, %v590
    %v635 = vpack.c.b16 %v599, %v595
    %v636 = vpack.c.b16 %v600, %v596
    %v637 = vpack.c.b16 %v601, %v597
    %v638 = vpack.c.b16 %v602, %v598
    %v639 = vpack.c.b16 %v607, %v603
    %v640 = vpack.c.b16 %v608, %v604
    %v641 = vpack.c.b16 %v609, %v605
    %v642 = vpack.c.b16 %v610, %v606
    %675 = vmatprep.subr.bf16.mxu0 %v612
    %676 = vmatpush1.bf16.msra.mxu0 %v611
    %677 = vmatprep.subr.bf16.mxu0 %v616
    %678 = vmatpush1.bf16.msra.mxu0 %v615
    %679 = vmatprep.subr.bf16.mxu0 %v620
    %680 = vmatpush1.bf16.msra.mxu0 %v619
    %681 = vmatprep.subr.bf16.mxu0 %v624
    %682 = vmatpush1.bf16.msra.mxu0 %v623
    %683 = vmatprep.subr.bf16.mxu0 %v628
    %684 = vmatpush1.bf16.msra.mxu0 %v627
    %685 = vmatprep.subr.bf16.mxu0 %v632
    %686 = vmatpush1.bf16.msra.mxu0 %v631
    %687 = vmatprep.subr.bf16.mxu0 %v636
    %688 = vmatpush1.bf16.msra.mxu0 %v635
    %689 = vmatprep.subr.bf16.mxu0 %v640
    %690 = vmatpush1.bf16.msra.mxu0 %v639
    %691 = vmatprep.subr.bf16.mxu0 0
    %692 = vmatpush1.bf16.msra.mxu0 0
    %693 = vmatprep.subr.bf16.mxu0 0
    %694 = vmatpush1.bf16.msra.mxu0 0
    %695 = vmatprep.subr.bf16.mxu0 0
    %696 = vmatpush1.bf16.msra.mxu0 0
    %697 = vmatprep.subr.bf16.mxu0 0
    %698 = vmatpush1.bf16.msra.mxu0 0
    %699 = vmatprep.subr.bf16.mxu0 0
    %700 = vmatpush1.bf16.msra.mxu0 0
    %701 = vmatprep.subr.bf16.mxu0 0
    %702 = vmatpush1.bf16.msra.mxu0 0
    %703 = vmatprep.subr.bf16.mxu0 0
    %704 = vmatpush1.bf16.msra.mxu0 0
    %705 = vmatprep.subr.bf16.mxu0 0
    %706 = vmatpush1.bf16.msra.mxu0 0
    %707 = vmatprep.mubr.bf16.mxu0 0
    %708 = vmatmul.mubr.bf16.gmra.mrb[0].mxu0 %v482
    %v709 = vpop.f32.mrb[0].mxu0
    %v710 = vadd.f32 0.0, %v709
    %v711 = vpop.f32.mrb[0].mxu0
    %v712 = vadd.f32 0.0, %v711
    %v713 = vpop.f32.mrb[0].mxu0
    %v714 = vpop.f32.mrb[0].mxu0
    %715 = vdwg.mxu0
    %716 = vmatprep.subr.bf16.mxu0 %v614
    %717 = vmatpush1.bf16.msra.mxu0 %v613
    %718 = vmatprep.subr.bf16.mxu0 %v618
    %719 = vmatpush1.bf16.msra.mxu0 %v617
    %720 = vmatprep.subr.bf16.mxu0 %v622
    %721 = vmatpush1.bf16.msra.mxu0 %v621
    %722 = vmatprep.subr.bf16.mxu0 %v626
    %723 = vmatpush1.bf16.msra.mxu0 %v625
    %724 = vmatprep.subr.bf16.mxu0 %v630
    %725 = vmatpush1.bf16.msra.mxu0 %v629
    %726 = vmatprep.subr.bf16.mxu0 %v634
    %727 = vmatpush1.bf16.msra.mxu0 %v633
    %728 = vmatprep.subr.bf16.mxu0 %v638
    %729 = vmatpush1.bf16.msra.mxu0 %v637
    %730 = vmatprep.subr.bf16.mxu0 %v642
    %731 = vmatpush1.bf16.msra.mxu0 %v641
    %732 = vmatprep.subr.bf16.mxu0 0
    %733 = vmatpush1.bf16.msra.mxu0 0
    %734 = vmatprep.subr.bf16.mxu0 0
    %735 = vmatpush1.bf16.msra.mxu0 0
    %736 = vmatprep.subr.bf16.mxu0 0
    %737 = vmatpush1.bf16.msra.mxu0 0
    %738 = vmatprep.subr.bf16.mxu0 0
    %739 = vmatpush1.bf16.msra.mxu0 0
    %740 = vmatprep.subr.bf16.mxu0 0
    %741 = vmatpush1.bf16.msra.mxu0 0
    %742 = vmatprep.subr.bf16.mxu0 0
    %743 = vmatpush1.bf16.msra.mxu0 0
    %744 = vmatprep.subr.bf16.mxu0 0
    %745 = vmatpush1.bf16.msra.mxu0 0
    %746 = vmatprep.subr.bf16.mxu0 0
    %747 = vmatpush1.bf16.msra.mxu0 0
    %748 = vmatprep.mubr.bf16.mxu0 0
    %749 = vmatmul.mubr.bf16.gmra.mrb[0].mxu0 %v482
    %v750 = vpop.f32.mrb[0].mxu0
    %v751 = vadd.f32 0.0, %v750
    %v752 = vpop.f32.mrb[0].mxu0
    %v753 = vadd.f32 0.0, %v752
    %v754 = vpop.f32.mrb[0].mxu0
    %v755 = vpop.f32.mrb[0].mxu0
    %756 = vdwg.mxu0
    %v757 = vadd.f32 %v478, %v710
    %v758 = vadd.f32 %v479, %v712
    %v759 = vadd.f32 %v480, %v751
    %v760 = vadd.f32 %v481, %v753
    %v761 = vxor.u32 %v757, 2147483648
    %v762 = vmul.f32 %v761, 1.442695
    %v763 = vpow.pop %v762
    %v764 = vadd.f32 %v763, 1.0
    %v765 = vrcp.pop %v764
    %v766 = vmul.f32 1.0, %v765
    %v767 = vxor.u32 %v758, 2147483648
    %v768 = vmul.f32 %v767, 1.442695
    %v769 = vpow.pop %v768
    %v770 = vadd.f32 %v769, 1.0
    %v771 = vrcp.pop %v770
    %v772 = vmul.f32 1.0, %v771
    %v773 = vtanh.pop %v759
    %v774 = vxor.u32 %v760, 2147483648
    %v775 = vmul.f32 %v774, 1.442695
    %v776 = vpow.pop %v775
    %v777 = vadd.f32 %v776, 1.0
    %v778 = vrcp.pop %v777
    %v779 = vmul.f32 1.0, %v778
    %v780 = vmul.f32 %v772, %v472
    %v781 = vmul.f32 %v766, %v773
    %v782 = vadd.f32 %v780, %v781
    %v783 = vtanh.pop %v782
    %v784 = vmul.f32 %v779, %v783
    %v785 = vpack.c.bf16 %v784, %v784
    %v786 = vpack.c.bf16 %v474, %v474
    %v787 = vld [vmem:[#allocation6] sm:$0xff]
    %v788 = vld [vmem:[#allocation6 + $0x8] sm:$0xff]
    %v789 = vld [vmem:[#allocation6 + $0x10] sm:$0xff]
    %v790 = vld [vmem:[#allocation6 + $0x18] sm:$0xff]
    %v791 = vld [vmem:[#allocation6 + $0x20] sm:$0xff]
    %v792 = vld [vmem:[#allocation6 + $0x28] sm:$0xff]
    %v793 = vld [vmem:[#allocation6 + $0x30] sm:$0xff]
    %v794 = vld [vmem:[#allocation6 + $0x38] sm:$0xff]
    %v795 = vld [vmem:[#allocation6 + $0x40] sm:$0xff]
    %v796 = vld [vmem:[#allocation6 + $0x48] sm:$0xff]
    %v797 = vld [vmem:[#allocation6 + $0x50] sm:$0xff]
    %v798 = vld [vmem:[#allocation6 + $0x58] sm:$0xff]
    %v799 = vld [vmem:[#allocation6 + $0x60] sm:$0xff]
    %v800 = vld [vmem:[#allocation6 + $0x68] sm:$0xff]
    %v801 = vld [vmem:[#allocation6 + $0x70] sm:$0xff]
    %v802 = vld [vmem:[#allocation6 + $0x78] sm:$0xff]
    %v803 = vld [vmem:[#allocation6 + $0x80] sm:$0xff]
    %v804 = vld [vmem:[#allocation6 + $0x88] sm:$0xff]
    %v805 = vld [vmem:[#allocation6 + $0x90] sm:$0xff]
    %v806 = vld [vmem:[#allocation6 + $0x98] sm:$0xff]
    %v807 = vld [vmem:[#allocation6 + $0xa0] sm:$0xff]
    %v808 = vld [vmem:[#allocation6 + $0xa8] sm:$0xff]
    %v809 = vld [vmem:[#allocation6 + $0xb0] sm:$0xff]
    %v810 = vld [vmem:[#allocation6 + $0xb8] sm:$0xff]
    %v811 = vld [vmem:[#allocation6 + $0xc0] sm:$0xff]
    %v812 = vld [vmem:[#allocation6 + $0xc8] sm:$0xff]
    %v813 = vld [vmem:[#allocation6 + $0xd0] sm:$0xff]
    %v814 = vld [vmem:[#allocation6 + $0xd8] sm:$0xff]
    %v815 = vld [vmem:[#allocation6 + $0xe0] sm:$0xff]
    %v816 = vld [vmem:[#allocation6 + $0xe8] sm:$0xff]
    %v817 = vld [vmem:[#allocation6 + $0xf0] sm:$0xff]
    %v818 = vld [vmem:[#allocation6 + $0xf8] sm:$0xff]
    %v819 = vld [vmem:[#allocation6 + $0x100] sm:$0xff]
    %v820 = vld [vmem:[#allocation6 + $0x108] sm:$0xff]
    %v821 = vld [vmem:[#allocation6 + $0x110] sm:$0xff]
    %v822 = vld [vmem:[#allocation6 + $0x118] sm:$0xff]
    %v823 = vld [vmem:[#allocation6 + $0x120] sm:$0xff]
    %v824 = vld [vmem:[#allocation6 + $0x128] sm:$0xff]
    %v825 = vld [vmem:[#allocation6 + $0x130] sm:$0xff]
    %v826 = vld [vmem:[#allocation6 + $0x138] sm:$0xff]
    %v827 = vld [vmem:[#allocation6 + $0x140] sm:$0xff]
    %v828 = vld [vmem:[#allocation6 + $0x148] sm:$0xff]
    %v829 = vld [vmem:[#allocation6 + $0x150] sm:$0xff]
    %v830 = vld [vmem:[#allocation6 + $0x158] sm:$0xff]
    %v831 = vld [vmem:[#allocation6 + $0x160] sm:$0xff]
    %v832 = vld [vmem:[#allocation6 + $0x168] sm:$0xff]
    %v833 = vld [vmem:[#allocation6 + $0x170] sm:$0xff]
    %v834 = vld [vmem:[#allocation6 + $0x178] sm:$0xff]
    %v835 = vld [vmem:[#allocation6 + $0x180] sm:$0xff]
    %v836 = vld [vmem:[#allocation6 + $0x188] sm:$0xff]
    %v837 = vld [vmem:[#allocation6 + $0x190] sm:$0xff]
    %v838 = vld [vmem:[#allocation6 + $0x198] sm:$0xff]
    %v839 = vld [vmem:[#allocation6 + $0x1a0] sm:$0xff]
    %v840 = vld [vmem:[#allocation6 + $0x1a8] sm:$0xff]
    %v841 = vld [vmem:[#allocation6 + $0x1b0] sm:$0xff]
    %v842 = vld [vmem:[#allocation6 + $0x1b8] sm:$0xff]
    %v843 = vld [vmem:[#allocation6 + $0x1c0] sm:$0xff]
    %v844 = vld [vmem:[#allocation6 + $0x1c8] sm:$0xff]
    %v845 = vld [vmem:[#allocation6 + $0x1d0] sm:$0xff]
    %v846 = vld [vmem:[#allocation6 + $0x1d8] sm:$0xff]
    %v847 = vld [vmem:[#allocation6 + $0x1e0] sm:$0xff]
    %v848 = vld [vmem:[#allocation6 + $0x1e8] sm:$0xff]
    %v849 = vld [vmem:[#allocation6 + $0x1f0] sm:$0xff]
    %v850 = vld [vmem:[#allocation6 + $0x1f8] sm:$0xff]
    %v852 = vlaneseq
    %v853 = vshrl.u32 %v852, 7
    %v854 = vsub.s32 0, %v853
    %v855 = vrot.slane %v477, %v854
    %v856 = vlaneseq
    %v857 = vshrl.u32 %v856, 7
    %v858 = vsub.s32 1, %v857
    %v859 = vrot.slane %v477, %v858
    %v860 = vlaneseq
    %v861 = vshrl.u32 %v860, 7
    %v862 = vsub.s32 2, %v861
    %v863 = vrot.slane %v477, %v862
    %v864 = vlaneseq
    %v865 = vshrl.u32 %v864, 7
    %v866 = vsub.s32 3, %v865
    %v867 = vrot.slane %v477, %v866
    %v936 = vunpack.c.l.b16 %v787
    %v937 = vunpack.c.h.b16 %v787
    %v938 = vunpack.c.l.b16 %v788
    %v939 = vunpack.c.h.b16 %v788
    %v940 = vunpack.c.l.b16 %v789
    %v941 = vunpack.c.h.b16 %v789
    %v942 = vunpack.c.l.b16 %v790
    %v943 = vunpack.c.h.b16 %v790
    %v944 = vunpack.c.l.b16 %v791
    %v945 = vunpack.c.h.b16 %v791
    %v946 = vunpack.c.l.b16 %v792
    %v947 = vunpack.c.h.b16 %v792
    %v948 = vunpack.c.l.b16 %v793
    %v949 = vunpack.c.h.b16 %v793
    %v950 = vunpack.c.l.b16 %v794
    %v951 = vunpack.c.h.b16 %v794
    %v952 = vunpack.c.l.b16 %v795
    %v953 = vunpack.c.h.b16 %v795
    %v954 = vunpack.c.l.b16 %v796
    %v955 = vunpack.c.h.b16 %v796
    %v956 = vunpack.c.l.b16 %v797
    %v957 = vunpack.c.h.b16 %v797
    %v958 = vunpack.c.l.b16 %v798
    %v959 = vunpack.c.h.b16 %v798
    %v960 = vunpack.c.l.b16 %v799
    %v961 = vunpack.c.h.b16 %v799
    %v962 = vunpack.c.l.b16 %v800
    %v963 = vunpack.c.h.b16 %v800
    %v964 = vunpack.c.l.b16 %v801
    %v965 = vunpack.c.h.b16 %v801
    %v966 = vunpack.c.l.b16 %v802
    %v967 = vunpack.c.h.b16 %v802
    %v968 = vunpack.c.l.b16 %v803
    %v969 = vunpack.c.h.b16 %v803
    %v970 = vunpack.c.l.b16 %v804
    %v971 = vunpack.c.h.b16 %v804
    %v972 = vunpack.c.l.b16 %v805
    %v973 = vunpack.c.h.b16 %v805
    %v974 = vunpack.c.l.b16 %v806
    %v975 = vunpack.c.h.b16 %v806
    %v976 = vunpack.c.l.b16 %v807
    %v977 = vunpack.c.h.b16 %v807
    %v978 = vunpack.c.l.b16 %v808
    %v979 = vunpack.c.h.b16 %v808
    %v980 = vunpack.c.l.b16 %v809
    %v981 = vunpack.c.h.b16 %v809
    %v982 = vunpack.c.l.b16 %v810
    %v983 = vunpack.c.h.b16 %v810
    %v984 = vunpack.c.l.b16 %v811
    %v985 = vunpack.c.h.b16 %v811
    %v986 = vunpack.c.l.b16 %v812
    %v987 = vunpack.c.h.b16 %v812
    %v988 = vunpack.c.l.b16 %v813
    %v989 = vunpack.c.h.b16 %v813
    %v990 = vunpack.c.l.b16 %v814
    %v991 = vunpack.c.h.b16 %v814
    %v992 = vunpack.c.l.b16 %v815
    %v993 = vunpack.c.h.b16 %v815
    %v994 = vunpack.c.l.b16 %v816
    %v995 = vunpack.c.h.b16 %v816
    %v996 = vunpack.c.l.b16 %v817
    %v997 = vunpack.c.h.b16 %v817
    %v998 = vunpack.c.l.b16 %v818
    %v999 = vunpack.c.h.b16 %v818
    %v1000 = vunpack.c.l.b16 %v819
    %v1001 = vunpack.c.h.b16 %v819
    %v1002 = vunpack.c.l.b16 %v820
    %v1003 = vunpack.c.h.b16 %v820
    %v1004 = vunpack.c.l.b16 %v821
    %v1005 = vunpack.c.h.b16 %v821
    %v1006 = vunpack.c.l.b16 %v822
    %v1007 = vunpack.c.h.b16 %v822
    %v1008 = vunpack.c.l.b16 %v823
    %v1009 = vunpack.c.h.b16 %v823
    %v1010 = vunpack.c.l.b16 %v824
    %v1011 = vunpack.c.h.b16 %v824
    %v1012 = vunpack.c.l.b16 %v825
    %v1013 = vunpack.c.h.b16 %v825
    %v1014 = vunpack.c.l.b16 %v826
    %v1015 = vunpack.c.h.b16 %v826
    %v1016 = vunpack.c.l.b16 %v827
    %v1017 = vunpack.c.h.b16 %v827
    %v1018 = vunpack.c.l.b16 %v828
    %v1019 = vunpack.c.h.b16 %v828
    %v1020 = vunpack.c.l.b16 %v829
    %v1021 = vunpack.c.h.b16 %v829
    %v1022 = vunpack.c.l.b16 %v830
    %v1023 = vunpack.c.h.b16 %v830
    %v1024 = vunpack.c.l.b16 %v831
    %v1025 = vunpack.c.h.b16 %v831
    %v1026 = vunpack.c.l.b16 %v832
    %v1027 = vunpack.c.h.b16 %v832
    %v1028 = vunpack.c.l.b16 %v833
    %v1029 = vunpack.c.h.b16 %v833
    %v1030 = vunpack.c.l.b16 %v834
    %v1031 = vunpack.c.h.b16 %v834
    %v1032 = vunpack.c.l.b16 %v835
    %v1033 = vunpack.c.h.b16 %v835
    %v1034 = vunpack.c.l.b16 %v836
    %v1035 = vunpack.c.h.b16 %v836
    %v1036 = vunpack.c.l.b16 %v837
    %v1037 = vunpack.c.h.b16 %v837
    %v1038 = vunpack.c.l.b16 %v838
    %v1039 = vunpack.c.h.b16 %v838
    %v1040 = vunpack.c.l.b16 %v839
    %v1041 = vunpack.c.h.b16 %v839
    %v1042 = vunpack.c.l.b16 %v840
    %v1043 = vunpack.c.h.b16 %v840
    %v1044 = vunpack.c.l.b16 %v841
    %v1045 = vunpack.c.h.b16 %v841
    %v1046 = vunpack.c.l.b16 %v842
    %v1047 = vunpack.c.h.b16 %v842
    %v1048 = vunpack.c.l.b16 %v843
    %v1049 = vunpack.c.h.b16 %v843
    %v1050 = vunpack.c.l.b16 %v844
    %v1051 = vunpack.c.h.b16 %v844
    %v1052 = vunpack.c.l.b16 %v845
    %v1053 = vunpack.c.h.b16 %v845
    %v1054 = vunpack.c.l.b16 %v846
    %v1055 = vunpack.c.h.b16 %v846
    %v1056 = vunpack.c.l.b16 %v847
    %v1057 = vunpack.c.h.b16 %v847
    %v1058 = vunpack.c.l.b16 %v848
    %v1059 = vunpack.c.h.b16 %v848
    %v1060 = vunpack.c.l.b16 %v849
    %v1061 = vunpack.c.h.b16 %v849
    %v1062 = vunpack.c.l.b16 %v850
    %v1063 = vunpack.c.h.b16 %v850
    %v1064 = vpack.c.b16 %v940, %v936
    %v1065 = vpack.c.b16 %v941, %v937
    %v1066 = vpack.c.b16 %v942, %v938
    %v1067 = vpack.c.b16 %v943, %v939
    %v1068 = vpack.c.b16 %v948, %v944
    %v1069 = vpack.c.b16 %v949, %v945
    %v1070 = vpack.c.b16 %v950, %v946
    %v1071 = vpack.c.b16 %v951, %v947
    %v1072 = vpack.c.b16 %v956, %v952
    %v1073 = vpack.c.b16 %v957, %v953
    %v1074 = vpack.c.b16 %v958, %v954
    %v1075 = vpack.c.b16 %v959, %v955
    %v1076 = vpack.c.b16 %v964, %v960
    %v1077 = vpack.c.b16 %v965, %v961
    %v1078 = vpack.c.b16 %v966, %v962
    %v1079 = vpack.c.b16 %v967, %v963
    %v1080 = vpack.c.b16 %v972, %v968
    %v1081 = vpack.c.b16 %v973, %v969
    %v1082 = vpack.c.b16 %v974, %v970
    %v1083 = vpack.c.b16 %v975, %v971
    %v1084 = vpack.c.b16 %v980, %v976
    %v1085 = vpack.c.b16 %v981, %v977
    %v1086 = vpack.c.b16 %v982, %v978
    %v1087 = vpack.c.b16 %v983, %v979
    %v1088 = vpack.c.b16 %v988, %v984
    %v1089 = vpack.c.b16 %v989, %v985
    %v1090 = vpack.c.b16 %v990, %v986
    %v1091 = vpack.c.b16 %v991, %v987
    %v1092 = vpack.c.b16 %v996, %v992
    %v1093 = vpack.c.b16 %v997, %v993
    %v1094 = vpack.c.b16 %v998, %v994
    %v1095 = vpack.c.b16 %v999, %v995
    %v1096 = vpack.c.b16 %v1004, %v1000
    %v1097 = vpack.c.b16 %v1005, %v1001
    %v1098 = vpack.c.b16 %v1006, %v1002
    %v1099 = vpack.c.b16 %v1007, %v1003
    %v1100 = vpack.c.b16 %v1012, %v1008
    %v1101 = vpack.c.b16 %v1013, %v1009
    %v1102 = vpack.c.b16 %v1014, %v1010
    %v1103 = vpack.c.b16 %v1015, %v1011
    %v1104 = vpack.c.b16 %v1020, %v1016
    %v1105 = vpack.c.b16 %v1021, %v1017
    %v1106 = vpack.c.b16 %v1022, %v1018
    %v1107 = vpack.c.b16 %v1023, %v1019
    %v1108 = vpack.c.b16 %v1028, %v1024
    %v1109 = vpack.c.b16 %v1029, %v1025
    %v1110 = vpack.c.b16 %v1030, %v1026
    %v1111 = vpack.c.b16 %v1031, %v1027
    %v1112 = vpack.c.b16 %v1036, %v1032
    %v1113 = vpack.c.b16 %v1037, %v1033
    %v1114 = vpack.c.b16 %v1038, %v1034
    %v1115 = vpack.c.b16 %v1039, %v1035
    %v1116 = vpack.c.b16 %v1044, %v1040
    %v1117 = vpack.c.b16 %v1045, %v1041
    %v1118 = vpack.c.b16 %v1046, %v1042
    %v1119 = vpack.c.b16 %v1047, %v1043
    %v1120 = vpack.c.b16 %v1052, %v1048
    %v1121 = vpack.c.b16 %v1053, %v1049
    %v1122 = vpack.c.b16 %v1054, %v1050
    %v1123 = vpack.c.b16 %v1055, %v1051
    %v1124 = vpack.c.b16 %v1060, %v1056
    %v1125 = vpack.c.b16 %v1061, %v1057
    %v1126 = vpack.c.b16 %v1062, %v1058
    %v1127 = vpack.c.b16 %v1063, %v1059
    %1192 = vmatprep.subr.bf16.mxu0 %v1065
    %1193 = vmatpush1.bf16.msra.mxu0 %v1064
    %1194 = vmatprep.subr.bf16.mxu0 %v1069
    %1195 = vmatpush1.bf16.msra.mxu0 %v1068
    %1196 = vmatprep.subr.bf16.mxu0 %v1073
    %1197 = vmatpush1.bf16.msra.mxu0 %v1072
    %1198 = vmatprep.subr.bf16.mxu0 %v1077
    %1199 = vmatpush1.bf16.msra.mxu0 %v1076
    %1200 = vmatprep.subr.bf16.mxu0 %v1081
    %1201 = vmatpush1.bf16.msra.mxu0 %v1080
    %1202 = vmatprep.subr.bf16.mxu0 %v1085
    %1203 = vmatpush1.bf16.msra.mxu0 %v1084
    %1204 = vmatprep.subr.bf16.mxu0 %v1089
    %1205 = vmatpush1.bf16.msra.mxu0 %v1088
    %1206 = vmatprep.subr.bf16.mxu0 %v1093
    %1207 = vmatpush1.bf16.msra.mxu0 %v1092
    %1208 = vmatprep.subr.bf16.mxu0 %v1097
    %1209 = vmatpush1.bf16.msra.mxu0 %v1096
    %1210 = vmatprep.subr.bf16.mxu0 %v1101
    %1211 = vmatpush1.bf16.msra.mxu0 %v1100
    %1212 = vmatprep.subr.bf16.mxu0 %v1105
    %1213 = vmatpush1.bf16.msra.mxu0 %v1104
    %1214 = vmatprep.subr.bf16.mxu0 %v1109
    %1215 = vmatpush1.bf16.msra.mxu0 %v1108
    %1216 = vmatprep.subr.bf16.mxu0 %v1113
    %1217 = vmatpush1.bf16.msra.mxu0 %v1112
    %1218 = vmatprep.subr.bf16.mxu0 %v1117
    %1219 = vmatpush1.bf16.msra.mxu0 %v1116
    %1220 = vmatprep.subr.bf16.mxu0 %v1121
    %1221 = vmatpush1.bf16.msra.mxu0 %v1120
    %1222 = vmatprep.subr.bf16.mxu0 %v1125
    %1223 = vmatpush1.bf16.msra.mxu0 %v1124
    %1224 = vmatprep.mubr.bf16.mxu0 %v786
    %1225 = vmatmul.mubr.bf16.gmra.mrb[0].mxu0 %v785
    %v1226 = vpop.f32.mrb[0].mxu0
    %v1227 = vadd.f32 %v855, %v1226
    %v1228 = vpop.f32.mrb[0].mxu0
    %v1229 = vadd.f32 %v859, %v1228
    %v1230 = vpop.f32.mrb[0].mxu0
    %v1231 = vpop.f32.mrb[0].mxu0
    %1232 = vdwg.mxu0
    %1233 = vmatprep.subr.bf16.mxu0 %v1067
    %1234 = vmatpush1.bf16.msra.mxu0 %v1066
    %1235 = vmatprep.subr.bf16.mxu0 %v1071
    %1236 = vmatpush1.bf16.msra.mxu0 %v1070
    %1237 = vmatprep.subr.bf16.mxu0 %v1075
    %1238 = vmatpush1.bf16.msra.mxu0 %v1074
    %1239 = vmatprep.subr.bf16.mxu0 %v1079
    %1240 = vmatpush1.bf16.msra.mxu0 %v1078
    %1241 = vmatprep.subr.bf16.mxu0 %v1083
    %1242 = vmatpush1.bf16.msra.mxu0 %v1082
    %1243 = vmatprep.subr.bf16.mxu0 %v1087
    %1244 = vmatpush1.bf16.msra.mxu0 %v1086
    %1245 = vmatprep.subr.bf16.mxu0 %v1091
    %1246 = vmatpush1.bf16.msra.mxu0 %v1090
    %1247 = vmatprep.subr.bf16.mxu0 %v1095
    %1248 = vmatpush1.bf16.msra.mxu0 %v1094
    %1249 = vmatprep.subr.bf16.mxu0 %v1099
    %1250 = vmatpush1.bf16.msra.mxu0 %v1098
    %1251 = vmatprep.subr.bf16.mxu0 %v1103
    %1252 = vmatpush1.bf16.msra.mxu0 %v1102
    %1253 = vmatprep.subr.bf16.mxu0 %v1107
    %1254 = vmatpush1.bf16.msra.mxu0 %v1106
    %1255 = vmatprep.subr.bf16.mxu0 %v1111
    %1256 = vmatpush1.bf16.msra.mxu0 %v1110
    %1257 = vmatprep.subr.bf16.mxu0 %v1115
    %1258 = vmatpush1.bf16.msra.mxu0 %v1114
    %1259 = vmatprep.subr.bf16.mxu0 %v1119
    %1260 = vmatpush1.bf16.msra.mxu0 %v1118
    %1261 = vmatprep.subr.bf16.mxu0 %v1123
    %1262 = vmatpush1.bf16.msra.mxu0 %v1122
    %1263 = vmatprep.subr.bf16.mxu0 %v1127
    %1264 = vmatpush1.bf16.msra.mxu0 %v1126
    %1265 = vmatprep.mubr.bf16.mxu0 %v786
    %1266 = vmatmul.mubr.bf16.gmra.mrb[0].mxu0 %v785
    %v1267 = vpop.f32.mrb[0].mxu0
    %v1268 = vadd.f32 %v863, %v1267
    %v1269 = vpop.f32.mrb[0].mxu0
    %v1270 = vadd.f32 %v867, %v1269
    %v1271 = vpop.f32.mrb[0].mxu0
    %v1272 = vpop.f32.mrb[0].mxu0
    %1273 = vdwg.mxu0
    %v1274 = vxor.u32 %v1227, 2147483648
    %v1275 = vmul.f32 %v1274, 1.442695
    %v1276 = vpow.pop %v1275
    %v1277 = vadd.f32 %v1276, 1.0
    %v1278 = vrcp.pop %v1277
    %v1279 = vmul.f32 1.0, %v1278
    %v1280 = vxor.u32 %v1229, 2147483648
    %v1281 = vmul.f32 %v1280, 1.442695
    %v1282 = vpow.pop %v1281
    %v1283 = vadd.f32 %v1282, 1.0
    %v1284 = vrcp.pop %v1283
    %v1285 = vmul.f32 1.0, %v1284
    %v1286 = vtanh.pop %v1268
    %v1287 = vxor.u32 %v1270, 2147483648
    %v1288 = vmul.f32 %v1287, 1.442695
    %v1289 = vpow.pop %v1288
    %v1290 = vadd.f32 %v1289, 1.0
    %v1291 = vrcp.pop %v1290
    %v1292 = vmul.f32 1.0, %v1291
    %v1293 = vmul.f32 %v1285, %v476
    %v1294 = vmul.f32 %v1279, %v1286
    %v1295 = vadd.f32 %v1293, %v1294
    %v1296 = vtanh.pop %v1295
    %v1297 = vmul.f32 %v1292, %v1296
    %1298 = vst [vmem:[#allocation3] sm:$0xff] %v1297
    %s1299 = scalar_lea.vmem [#allocation2], 32
    %v1300 = vld [vmem:[%s1299] sm:$0xff]
    %v1301 = vld [vmem:[%s1299 + $0x8] sm:$0xff]
    %v1302 = vld [vmem:[%s1299 + $0x10] sm:$0xff]
    %v1303 = vld [vmem:[%s1299 + $0x18] sm:$0xff]
    %v1304 = vld [vmem:[#allocation4] sm:$0xff]
    %v1305 = vld [vmem:[#allocation4 + $0x8] sm:$0xff]
    %v1306 = vld [vmem:[#allocation4 + $0x10] sm:$0xff]
    %v1307 = vld [vmem:[#allocation4 + $0x18] sm:$0xff]
    %v1308 = vld [vmem:[#allocation4 + $0x20] sm:$0xff]
    %v1309 = vld [vmem:[#allocation4 + $0x28] sm:$0xff]
    %v1310 = vld [vmem:[#allocation4 + $0x30] sm:$0xff]
    %v1311 = vld [vmem:[#allocation4 + $0x38] sm:$0xff]
    %v1312 = vld [vmem:[#allocation4 + $0x40] sm:$0xff]
    %v1313 = vld [vmem:[#allocation4 + $0x48] sm:$0xff]
    %v1314 = vld [vmem:[#allocation4 + $0x50] sm:$0xff]
    %v1315 = vld [vmem:[#allocation4 + $0x58] sm:$0xff]
    %v1316 = vld [vmem:[#allocation4 + $0x60] sm:$0xff]
    %v1317 = vld [vmem:[#allocation4 + $0x68] sm:$0xff]
    %v1318 = vld [vmem:[#allocation4 + $0x70] sm:$0xff]
    %v1319 = vld [vmem:[#allocation4 + $0x78] sm:$0xff]
    %v1320 = vld [vmem:[#allocation4 + $0x80] sm:$0xff]
    %v1321 = vld [vmem:[#allocation4 + $0x88] sm:$0xff]
    %v1322 = vld [vmem:[#allocation4 + $0x90] sm:$0xff]
    %v1323 = vld [vmem:[#allocation4 + $0x98] sm:$0xff]
    %v1324 = vld [vmem:[#allocation4 + $0xa0] sm:$0xff]
    %v1325 = vld [vmem:[#allocation4 + $0xa8] sm:$0xff]
    %v1326 = vld [vmem:[#allocation4 + $0xb0] sm:$0xff]
    %v1327 = vld [vmem:[#allocation4 + $0xb8] sm:$0xff]
    %v1328 = vld [vmem:[#allocation4 + $0xc0] sm:$0xff]
    %v1329 = vld [vmem:[#allocation4 + $0xc8] sm:$0xff]
    %v1330 = vld [vmem:[#allocation4 + $0xd0] sm:$0xff]
    %v1331 = vld [vmem:[#allocation4 + $0xd8] sm:$0xff]
    %v1332 = vld [vmem:[#allocation4 + $0xe0] sm:$0xff]
    %v1333 = vld [vmem:[#allocation4 + $0xe8] sm:$0xff]
    %v1334 = vld [vmem:[#allocation4 + $0xf0] sm:$0xff]
    %v1335 = vld [vmem:[#allocation4 + $0xf8] sm:$0xff]
    %v1368 = vunpack.c.l.b16 %v1304
    %v1369 = vunpack.c.h.b16 %v1304
    %v1370 = vunpack.c.l.b16 %v1305
    %v1371 = vunpack.c.h.b16 %v1305
    %v1372 = vunpack.c.l.b16 %v1306
    %v1373 = vunpack.c.h.b16 %v1306
    %v1374 = vunpack.c.l.b16 %v1307
    %v1375 = vunpack.c.h.b16 %v1307
    %v1376 = vunpack.c.l.b16 %v1308
    %v1377 = vunpack.c.h.b16 %v1308
    %v1378 = vunpack.c.l.b16 %v1309
    %v1379 = vunpack.c.h.b16 %v1309
    %v1380 = vunpack.c.l.b16 %v1310
    %v1381 = vunpack.c.h.b16 %v1310
    %v1382 = vunpack.c.l.b16 %v1311
    %v1383 = vunpack.c.h.b16 %v1311
    %v1384 = vunpack.c.l.b16 %v1312
    %v1385 = vunpack.c.h.b16 %v1312
    %v1386 = vunpack.c.l.b16 %v1313
    %v1387 = vunpack.c.h.b16 %v1313
    %v1388 = vunpack.c.l.b16 %v1314
    %v1389 = vunpack.c.h.b16 %v1314
    %v1390 = vunpack.c.l.b16 %v1315
    %v1391 = vunpack.c.h.b16 %v1315
    %v1392 = vunpack.c.l.b16 %v1316
    %v1393 = vunpack.c.h.b16 %v1316
    %v1394 = vunpack.c.l.b16 %v1317
    %v1395 = vunpack.c.h.b16 %v1317
    %v1396 = vunpack.c.l.b16 %v1318
    %v1397 = vunpack.c.h.b16 %v1318
    %v1398 = vunpack.c.l.b16 %v1319
    %v1399 = vunpack.c.h.b16 %v1319
    %v1400 = vunpack.c.l.b16 %v1320
    %v1401 = vunpack.c.h.b16 %v1320
    %v1402 = vunpack.c.l.b16 %v1321
    %v1403 = vunpack.c.h.b16 %v1321
    %v1404 = vunpack.c.l.b16 %v1322
    %v1405 = vunpack.c.h.b16 %v1322
    %v1406 = vunpack.c.l.b16 %v1323
    %v1407 = vunpack.c.h.b16 %v1323
    %v1408 = vunpack.c.l.b16 %v1324
    %v1409 = vunpack.c.h.b16 %v1324
    %v1410 = vunpack.c.l.b16 %v1325
    %v1411 = vunpack.c.h.b16 %v1325
    %v1412 = vunpack.c.l.b16 %v1326
    %v1413 = vunpack.c.h.b16 %v1326
    %v1414 = vunpack.c.l.b16 %v1327
    %v1415 = vunpack.c.h.b16 %v1327
    %v1416 = vunpack.c.l.b16 %v1328
    %v1417 = vunpack.c.h.b16 %v1328
    %v1418 = vunpack.c.l.b16 %v1329
    %v1419 = vunpack.c.h.b16 %v1329
    %v1420 = vunpack.c.l.b16 %v1330
    %v1421 = vunpack.c.h.b16 %v1330
    %v1422 = vunpack.c.l.b16 %v1331
    %v1423 = vunpack.c.h.b16 %v1331
    %v1424 = vunpack.c.l.b16 %v1332
    %v1425 = vunpack.c.h.b16 %v1332
    %v1426 = vunpack.c.l.b16 %v1333
    %v1427 = vunpack.c.h.b16 %v1333
    %v1428 = vunpack.c.l.b16 %v1334
    %v1429 = vunpack.c.h.b16 %v1334
    %v1430 = vunpack.c.l.b16 %v1335
    %v1431 = vunpack.c.h.b16 %v1335
    %v1432 = vpack.c.b16 %v1372, %v1368
    %v1433 = vpack.c.b16 %v1373, %v1369
    %v1434 = vpack.c.b16 %v1374, %v1370
    %v1435 = vpack.c.b16 %v1375, %v1371
    %v1436 = vpack.c.b16 %v1380, %v1376
    %v1437 = vpack.c.b16 %v1381, %v1377
    %v1438 = vpack.c.b16 %v1382, %v1378
    %v1439 = vpack.c.b16 %v1383, %v1379
    %v1440 = vpack.c.b16 %v1388, %v1384
    %v1441 = vpack.c.b16 %v1389, %v1385
    %v1442 = vpack.c.b16 %v1390, %v1386
    %v1443 = vpack.c.b16 %v1391, %v1387
    %v1444 = vpack.c.b16 %v1396, %v1392
    %v1445 = vpack.c.b16 %v1397, %v1393
    %v1446 = vpack.c.b16 %v1398, %v1394
    %v1447 = vpack.c.b16 %v1399, %v1395
    %v1448 = vpack.c.b16 %v1404, %v1400
    %v1449 = vpack.c.b16 %v1405, %v1401
    %v1450 = vpack.c.b16 %v1406, %v1402
    %v1451 = vpack.c.b16 %v1407, %v1403
    %v1452 = vpack.c.b16 %v1412, %v1408
    %v1453 = vpack.c.b16 %v1413, %v1409
    %v1454 = vpack.c.b16 %v1414, %v1410
    %v1455 = vpack.c.b16 %v1415, %v1411
    %v1456 = vpack.c.b16 %v1420, %v1416
    %v1457 = vpack.c.b16 %v1421, %v1417
    %v1458 = vpack.c.b16 %v1422, %v1418
    %v1459 = vpack.c.b16 %v1423, %v1419
    %v1460 = vpack.c.b16 %v1428, %v1424
    %v1461 = vpack.c.b16 %v1429, %v1425
    %v1462 = vpack.c.b16 %v1430, %v1426
    %v1463 = vpack.c.b16 %v1431, %v1427
    %1496 = vmatprep.subr.bf16.mxu0 %v1433
    %1497 = vmatpush1.bf16.msra.mxu0 %v1432
    %1498 = vmatprep.subr.bf16.mxu0 %v1437
    %1499 = vmatpush1.bf16.msra.mxu0 %v1436
    %1500 = vmatprep.subr.bf16.mxu0 %v1441
    %1501 = vmatpush1.bf16.msra.mxu0 %v1440
    %1502 = vmatprep.subr.bf16.mxu0 %v1445
    %1503 = vmatpush1.bf16.msra.mxu0 %v1444
    %1504 = vmatprep.subr.bf16.mxu0 %v1449
    %1505 = vmatpush1.bf16.msra.mxu0 %v1448
    %1506 = vmatprep.subr.bf16.mxu0 %v1453
    %1507 = vmatpush1.bf16.msra.mxu0 %v1452
    %1508 = vmatprep.subr.bf16.mxu0 %v1457
    %1509 = vmatpush1.bf16.msra.mxu0 %v1456
    %1510 = vmatprep.subr.bf16.mxu0 %v1461
    %1511 = vmatpush1.bf16.msra.mxu0 %v1460
    %1512 = vmatprep.subr.bf16.mxu0 0
    %1513 = vmatpush1.bf16.msra.mxu0 0
    %1514 = vmatprep.subr.bf16.mxu0 0
    %1515 = vmatpush1.bf16.msra.mxu0 0
    %1516 = vmatprep.subr.bf16.mxu0 0
    %1517 = vmatpush1.bf16.msra.mxu0 0
    %1518 = vmatprep.subr.bf16.mxu0 0
    %1519 = vmatpush1.bf16.msra.mxu0 0
    %1520 = vmatprep.subr.bf16.mxu0 0
    %1521 = vmatpush1.bf16.msra.mxu0 0
    %1522 = vmatprep.subr.bf16.mxu0 0
    %1523 = vmatpush1.bf16.msra.mxu0 0
    %1524 = vmatprep.subr.bf16.mxu0 0
    %1525 = vmatpush1.bf16.msra.mxu0 0
    %1526 = vmatprep.subr.bf16.mxu0 0
    %1527 = vmatpush1.bf16.msra.mxu0 0
    %1528 = vmatprep.mubr.bf16.mxu0 0
    %1529 = vmatmul.mubr.bf16.gmra.mrb[0].mxu0 %v785
    %v1530 = vpop.f32.mrb[0].mxu0
    %v1531 = vadd.f32 0.0, %v1530
    %v1532 = vpop.f32.mrb[0].mxu0
    %v1533 = vadd.f32 0.0, %v1532
    %v1534 = vpop.f32.mrb[0].mxu0
    %v1535 = vpop.f32.mrb[0].mxu0
    %1536 = vdwg.mxu0
    %1537 = vmatprep.subr.bf16.mxu0 %v1435
    %1538 = vmatpush1.bf16.msra.mxu0 %v1434
    %1539 = vmatprep.subr.bf16.mxu0 %v1439
    %1540 = vmatpush1.bf16.msra.mxu0 %v1438
    %1541 = vmatprep.subr.bf16.mxu0 %v1443
    %1542 = vmatpush1.bf16.msra.mxu0 %v1442
    %1543 = vmatprep.subr.bf16.mxu0 %v1447
    %1544 = vmatpush1.bf16.msra.mxu0 %v1446
    %1545 = vmatprep.subr.bf16.mxu0 %v1451
    %1546 = vmatpush1.bf16.msra.mxu0 %v1450
    %1547 = vmatprep.subr.bf16.mxu0 %v1455
    %1548 = vmatpush1.bf16.msra.mxu0 %v1454
    %1549 = vmatprep.subr.bf16.mxu0 %v1459
    %1550 = vmatpush1.bf16.msra.mxu0 %v1458
    %1551 = vmatprep.subr.bf16.mxu0 %v1463
    %1552 = vmatpush1.bf16.msra.mxu0 %v1462
    %1553 = vmatprep.subr.bf16.mxu0 0
    %1554 = vmatpush1.bf16.msra.mxu0 0
    %1555 = vmatprep.subr.bf16.mxu0 0
    %1556 = vmatpush1.bf16.msra.mxu0 0
    %1557 = vmatprep.subr.bf16.mxu0 0
    %1558 = vmatpush1.bf16.msra.mxu0 0
    %1559 = vmatprep.subr.bf16.mxu0 0
    %1560 = vmatpush1.bf16.msra.mxu0 0
    %1561 = vmatprep.subr.bf16.mxu0 0
    %1562 = vmatpush1.bf16.msra.mxu0 0
    %1563 = vmatprep.subr.bf16.mxu0 0
    %1564 = vmatpush1.bf16.msra.mxu0 0
    %1565 = vmatprep.subr.bf16.mxu0 0
    %1566 = vmatpush1.bf16.msra.mxu0 0
    %1567 = vmatprep.subr.bf16.mxu0 0
    %1568 = vmatpush1.bf16.msra.mxu0 0
    %1569 = vmatprep.mubr.bf16.mxu0 0
    %1570 = vmatmul.mubr.bf16.gmra.mrb[0].mxu0 %v785
    %v1571 = vpop.f32.mrb[0].mxu0
    %v1572 = vadd.f32 0.0, %v1571
    %v1573 = vpop.f32.mrb[0].mxu0
    %v1574 = vadd.f32 0.0, %v1573
    %v1575 = vpop.f32.mrb[0].mxu0
    %v1576 = vpop.f32.mrb[0].mxu0
    %1577 = vdwg.mxu0
    %v1578 = vadd.f32 %v1300, %v1531
    %v1579 = vadd.f32 %v1301, %v1533
    %v1580 = vadd.f32 %v1302, %v1572
    %v1581 = vadd.f32 %v1303, %v1574
    %v1582 = vxor.u32 %v1578, 2147483648
    %v1583 = vmul.f32 %v1582, 1.442695
    %v1584 = vpow.pop %v1583
    %v1585 = vadd.f32 %v1584, 1.0
    %v1586 = vrcp.pop %v1585
    %v1587 = vmul.f32 1.0, %v1586
    %v1588 = vxor.u32 %v1579, 2147483648
    %v1589 = vmul.f32 %v1588, 1.442695
    %v1590 = vpow.pop %v1589
    %v1591 = vadd.f32 %v1590, 1.0
    %v1592 = vrcp.pop %v1591
    %v1593 = vmul.f32 1.0, %v1592
    %v1594 = vtanh.pop %v1580
    %v1595 = vxor.u32 %v1581, 2147483648
    %v1596 = vmul.f32 %v1595, 1.442695
    %v1597 = vpow.pop %v1596
    %v1598 = vadd.f32 %v1597, 1.0
    %v1599 = vrcp.pop %v1598
    %v1600 = vmul.f32 1.0, %v1599
    %v1601 = vmul.f32 %v1593, %v782
    %v1602 = vmul.f32 %v1587, %v1594
    %v1603 = vadd.f32 %v1601, %v1602
    %v1604 = vtanh.pop %v1603
    %v1605 = vmul.f32 %v1600, %v1604
    %v1606 = vpack.c.bf16 %v1605, %v1605
    %v1607 = vpack.c.bf16 %v1297, %v1297
    %v1608 = vld [vmem:[#allocation6] sm:$0xff]
    %v1609 = vld [vmem:[#allocation6 + $0x8] sm:$0xff]
    %v1610 = vld [vmem:[#allocation6 + $0x10] sm:$0xff]
    %v1611 = vld [vmem:[#allocation6 + $0x18] sm:$0xff]
    %v1612 = vld [vmem:[#allocation6 + $0x20] sm:$0xff]
    %v1613 = vld [vmem:[#allocation6 + $0x28] sm:$0xff]
    %v1614 = vld [vmem:[#allocation6 + $0x30] sm:$0xff]
    %v1615 = vld [vmem:[#allocation6 + $0x38] sm:$0xff]
    %v1616 = vld [vmem:[#allocation6 + $0x40] sm:$0xff]
    %v1617 = vld [vmem:[#allocation6 + $0x48] sm:$0xff]
    %v1618 = vld [vmem:[#allocation6 + $0x50] sm:$0xff]
    %v1619 = vld [vmem:[#allocation6 + $0x58] sm:$0xff]
    %v1620 = vld [vmem:[#allocation6 + $0x60] sm:$0xff]
    %v1621 = vld [vmem:[#allocation6 + $0x68] sm:$0xff]
    %v1622 = vld [vmem:[#allocation6 + $0x70] sm:$0xff]
    %v1623 = vld [vmem:[#allocation6 + $0x78] sm:$0xff]
    %v1624 = vld [vmem:[#allocation6 + $0x80] sm:$0xff]
    %v1625 = vld [vmem:[#allocation6 + $0x88] sm:$0xff]
    %v1626 = vld [vmem:[#allocation6 + $0x90] sm:$0xff]
    %v1627 = vld [vmem:[#allocation6 + $0x98] sm:$0xff]
    %v1628 = vld [vmem:[#allocation6 + $0xa0] sm:$0xff]
    %v1629 = vld [vmem:[#allocation6 + $0xa8] sm:$0xff]
    %v1630 = vld [vmem:[#allocation6 + $0xb0] sm:$0xff]
    %v1631 = vld [vmem:[#allocation6 + $0xb8] sm:$0xff]
    %v1632 = vld [vmem:[#allocation6 + $0xc0] sm:$0xff]
    %v1633 = vld [vmem:[#allocation6 + $0xc8] sm:$0xff]
    %v1634 = vld [vmem:[#allocation6 + $0xd0] sm:$0xff]
    %v1635 = vld [vmem:[#allocation6 + $0xd8] sm:$0xff]
    %v1636 = vld [vmem:[#allocation6 + $0xe0] sm:$0xff]
    %v1637 = vld [vmem:[#allocation6 + $0xe8] sm:$0xff]
    %v1638 = vld [vmem:[#allocation6 + $0xf0] sm:$0xff]
    %v1639 = vld [vmem:[#allocation6 + $0xf8] sm:$0xff]
    %v1640 = vld [vmem:[#allocation6 + $0x100] sm:$0xff]
    %v1641 = vld [vmem:[#allocation6 + $0x108] sm:$0xff]
    %v1642 = vld [vmem:[#allocation6 + $0x110] sm:$0xff]
    %v1643 = vld [vmem:[#allocation6 + $0x118] sm:$0xff]
    %v1644 = vld [vmem:[#allocation6 + $0x120] sm:$0xff]
    %v1645 = vld [vmem:[#allocation6 + $0x128] sm:$0xff]
    %v1646 = vld [vmem:[#allocation6 + $0x130] sm:$0xff]
    %v1647 = vld [vmem:[#allocation6 + $0x138] sm:$0xff]
    %v1648 = vld [vmem:[#allocation6 + $0x140] sm:$0xff]
    %v1649 = vld [vmem:[#allocation6 + $0x148] sm:$0xff]
    %v1650 = vld [vmem:[#allocation6 + $0x150] sm:$0xff]
    %v1651 = vld [vmem:[#allocation6 + $0x158] sm:$0xff]
    %v1652 = vld [vmem:[#allocation6 + $0x160] sm:$0xff]
    %v1653 = vld [vmem:[#allocation6 + $0x168] sm:$0xff]
    %v1654 = vld [vmem:[#allocation6 + $0x170] sm:$0xff]
    %v1655 = vld [vmem:[#allocation6 + $0x178] sm:$0xff]
    %v1656 = vld [vmem:[#allocation6 + $0x180] sm:$0xff]
    %v1657 = vld [vmem:[#allocation6 + $0x188] sm:$0xff]
    %v1658 = vld [vmem:[#allocation6 + $0x190] sm:$0xff]
    %v1659 = vld [vmem:[#allocation6 + $0x198] sm:$0xff]
    %v1660 = vld [vmem:[#allocation6 + $0x1a0] sm:$0xff]
    %v1661 = vld [vmem:[#allocation6 + $0x1a8] sm:$0xff]
    %v1662 = vld [vmem:[#allocation6 + $0x1b0] sm:$0xff]
    %v1663 = vld [vmem:[#allocation6 + $0x1b8] sm:$0xff]
    %v1664 = vld [vmem:[#allocation6 + $0x1c0] sm:$0xff]
    %v1665 = vld [vmem:[#allocation6 + $0x1c8] sm:$0xff]
    %v1666 = vld [vmem:[#allocation6 + $0x1d0] sm:$0xff]
    %v1667 = vld [vmem:[#allocation6 + $0x1d8] sm:$0xff]
    %v1668 = vld [vmem:[#allocation6 + $0x1e0] sm:$0xff]
    %v1669 = vld [vmem:[#allocation6 + $0x1e8] sm:$0xff]
    %v1670 = vld [vmem:[#allocation6 + $0x1f0] sm:$0xff]
    %v1671 = vld [vmem:[#allocation6 + $0x1f8] sm:$0xff]
    %v1736 = vunpack.c.l.b16 %v1608
    %v1737 = vunpack.c.h.b16 %v1608
    %v1738 = vunpack.c.l.b16 %v1609
    %v1739 = vunpack.c.h.b16 %v1609
    %v1740 = vunpack.c.l.b16 %v1610
    %v1741 = vunpack.c.h.b16 %v1610
    %v1742 = vunpack.c.l.b16 %v1611
    %v1743 = vunpack.c.h.b16 %v1611
    %v1744 = vunpack.c.l.b16 %v1612
    %v1745 = vunpack.c.h.b16 %v1612
    %v1746 = vunpack.c.l.b16 %v1613
    %v1747 = vunpack.c.h.b16 %v1613
    %v1748 = vunpack.c.l.b16 %v1614
    %v1749 = vunpack.c.h.b16 %v1614
    %v1750 = vunpack.c.l.b16 %v1615
    %v1751 = vunpack.c.h.b16 %v1615
    %v1752 = vunpack.c.l.b16 %v1616
    %v1753 = vunpack.c.h.b16 %v1616
    %v1754 = vunpack.c.l.b16 %v1617
    %v1755 = vunpack.c.h.b16 %v1617
    %v1756 = vunpack.c.l.b16 %v1618
    %v1757 = vunpack.c.h.b16 %v1618
    %v1758 = vunpack.c.l.b16 %v1619
    %v1759 = vunpack.c.h.b16 %v1619
    %v1760 = vunpack.c.l.b16 %v1620
    %v1761 = vunpack.c.h.b16 %v1620
    %v1762 = vunpack.c.l.b16 %v1621
    %v1763 = vunpack.c.h.b16 %v1621
    %v1764 = vunpack.c.l.b16 %v1622
    %v1765 = vunpack.c.h.b16 %v1622
    %v1766 = vunpack.c.l.b16 %v1623
    %v1767 = vunpack.c.h.b16 %v1623
    %v1768 = vunpack.c.l.b16 %v1624
    %v1769 = vunpack.c.h.b16 %v1624
    %v1770 = vunpack.c.l.b16 %v1625
    %v1771 = vunpack.c.h.b16 %v1625
    %v1772 = vunpack.c.l.b16 %v1626
    %v1773 = vunpack.c.h.b16 %v1626
    %v1774 = vunpack.c.l.b16 %v1627
    %v1775 = vunpack.c.h.b16 %v1627
    %v1776 = vunpack.c.l.b16 %v1628
    %v1777 = vunpack.c.h.b16 %v1628
    %v1778 = vunpack.c.l.b16 %v1629
    %v1779 = vunpack.c.h.b16 %v1629
    %v1780 = vunpack.c.l.b16 %v1630
    %v1781 = vunpack.c.h.b16 %v1630
    %v1782 = vunpack.c.l.b16 %v1631
    %v1783 = vunpack.c.h.b16 %v1631
    %v1784 = vunpack.c.l.b16 %v1632
    %v1785 = vunpack.c.h.b16 %v1632
    %v1786 = vunpack.c.l.b16 %v1633
    %v1787 = vunpack.c.h.b16 %v1633
    %v1788 = vunpack.c.l.b16 %v1634
    %v1789 = vunpack.c.h.b16 %v1634
    %v1790 = vunpack.c.l.b16 %v1635
    %v1791 = vunpack.c.h.b16 %v1635
    %v1792 = vunpack.c.l.b16 %v1636
    %v1793 = vunpack.c.h.b16 %v1636
    %v1794 = vunpack.c.l.b16 %v1637
    %v1795 = vunpack.c.h.b16 %v1637
    %v1796 = vunpack.c.l.b16 %v1638
    %v1797 = vunpack.c.h.b16 %v1638
    %v1798 = vunpack.c.l.b16 %v1639
    %v1799 = vunpack.c.h.b16 %v1639
    %v1800 = vunpack.c.l.b16 %v1640
    %v1801 = vunpack.c.h.b16 %v1640
    %v1802 = vunpack.c.l.b16 %v1641
    %v1803 = vunpack.c.h.b16 %v1641
    %v1804 = vunpack.c.l.b16 %v1642
    %v1805 = vunpack.c.h.b16 %v1642
    %v1806 = vunpack.c.l.b16 %v1643
    %v1807 = vunpack.c.h.b16 %v1643
    %v1808 = vunpack.c.l.b16 %v1644
    %v1809 = vunpack.c.h.b16 %v1644
    %v1810 = vunpack.c.l.b16 %v1645
    %v1811 = vunpack.c.h.b16 %v1645
    %v1812 = vunpack.c.l.b16 %v1646
    %v1813 = vunpack.c.h.b16 %v1646
    %v1814 = vunpack.c.l.b16 %v1647
    %v1815 = vunpack.c.h.b16 %v1647
    %v1816 = vunpack.c.l.b16 %v1648
    %v1817 = vunpack.c.h.b16 %v1648
    %v1818 = vunpack.c.l.b16 %v1649
    %v1819 = vunpack.c.h.b16 %v1649
    %v1820 = vunpack.c.l.b16 %v1650
    %v1821 = vunpack.c.h.b16 %v1650
    %v1822 = vunpack.c.l.b16 %v1651
    %v1823 = vunpack.c.h.b16 %v1651
    %v1824 = vunpack.c.l.b16 %v1652
    %v1825 = vunpack.c.h.b16 %v1652
    %v1826 = vunpack.c.l.b16 %v1653
    %v1827 = vunpack.c.h.b16 %v1653
    %v1828 = vunpack.c.l.b16 %v1654
    %v1829 = vunpack.c.h.b16 %v1654
    %v1830 = vunpack.c.l.b16 %v1655
    %v1831 = vunpack.c.h.b16 %v1655
    %v1832 = vunpack.c.l.b16 %v1656
    %v1833 = vunpack.c.h.b16 %v1656
    %v1834 = vunpack.c.l.b16 %v1657
    %v1835 = vunpack.c.h.b16 %v1657
    %v1836 = vunpack.c.l.b16 %v1658
    %v1837 = vunpack.c.h.b16 %v1658
    %v1838 = vunpack.c.l.b16 %v1659
    %v1839 = vunpack.c.h.b16 %v1659
    %v1840 = vunpack.c.l.b16 %v1660
    %v1841 = vunpack.c.h.b16 %v1660
    %v1842 = vunpack.c.l.b16 %v1661
    %v1843 = vunpack.c.h.b16 %v1661
    %v1844 = vunpack.c.l.b16 %v1662
    %v1845 = vunpack.c.h.b16 %v1662
    %v1846 = vunpack.c.l.b16 %v1663
    %v1847 = vunpack.c.h.b16 %v1663
    %v1848 = vunpack.c.l.b16 %v1664
    %v1849 = vunpack.c.h.b16 %v1664
    %v1850 = vunpack.c.l.b16 %v1665
    %v1851 = vunpack.c.h.b16 %v1665
    %v1852 = vunpack.c.l.b16 %v1666
    %v1853 = vunpack.c.h.b16 %v1666
    %v1854 = vunpack.c.l.b16 %v1667
    %v1855 = vunpack.c.h.b16 %v1667
    %v1856 = vunpack.c.l.b16 %v1668
    %v1857 = vunpack.c.h.b16 %v1668
    %v1858 = vunpack.c.l.b16 %v1669
    %v1859 = vunpack.c.h.b16 %v1669
    %v1860 = vunpack.c.l.b16 %v1670
    %v1861 = vunpack.c.h.b16 %v1670
    %v1862 = vunpack.c.l.b16 %v1671
    %v1863 = vunpack.c.h.b16 %v1671
    %v1864 = vpack.c.b16 %v1740, %v1736
    %v1865 = vpack.c.b16 %v1741, %v1737
    %v1866 = vpack.c.b16 %v1742, %v1738
    %v1867 = vpack.c.b16 %v1743, %v1739
    %v1868 = vpack.c.b16 %v1748, %v1744
    %v1869 = vpack.c.b16 %v1749, %v1745
    %v1870 = vpack.c.b16 %v1750, %v1746
    %v1871 = vpack.c.b16 %v1751, %v1747
    %v1872 = vpack.c.b16 %v1756, %v1752
    %v1873 = vpack.c.b16 %v1757, %v1753
    %v1874 = vpack.c.b16 %v1758, %v1754
    %v1875 = vpack.c.b16 %v1759, %v1755
    %v1876 = vpack.c.b16 %v1764, %v1760
    %v1877 = vpack.c.b16 %v1765, %v1761
    %v1878 = vpack.c.b16 %v1766, %v1762
    %v1879 = vpack.c.b16 %v1767, %v1763
    %v1880 = vpack.c.b16 %v1772, %v1768
    %v1881 = vpack.c.b16 %v1773, %v1769
    %v1882 = vpack.c.b16 %v1774, %v1770
    %v1883 = vpack.c.b16 %v1775, %v1771
    %v1884 = vpack.c.b16 %v1780, %v1776
    %v1885 = vpack.c.b16 %v1781, %v1777
    %v1886 = vpack.c.b16 %v1782, %v1778
    %v1887 = vpack.c.b16 %v1783, %v1779
    %v1888 = vpack.c.b16 %v1788, %v1784
    %v1889 = vpack.c.b16 %v1789, %v1785
    %v1890 = vpack.c.b16 %v1790, %v1786
    %v1891 = vpack.c.b16 %v1791, %v1787
    %v1892 = vpack.c.b16 %v1796, %v1792
    %v1893 = vpack.c.b16 %v1797, %v1793
    %v1894 = vpack.c.b16 %v1798, %v1794
    %v1895 = vpack.c.b16 %v1799, %v1795
    %v1896 = vpack.c.b16 %v1804, %v1800
    %v1897 = vpack.c.b16 %v1805, %v1801
    %v1898 = vpack.c.b16 %v1806, %v1802
    %v1899 = vpack.c.b16 %v1807, %v1803
    %v1900 = vpack.c.b16 %v1812, %v1808
    %v1901 = vpack.c.b16 %v1813, %v1809
    %v1902 = vpack.c.b16 %v1814, %v1810
    %v1903 = vpack.c.b16 %v1815, %v1811
    %v1904 = vpack.c.b16 %v1820, %v1816
    %v1905 = vpack.c.b16 %v1821, %v1817
    %v1906 = vpack.c.b16 %v1822, %v1818
    %v1907 = vpack.c.b16 %v1823, %v1819
    %v1908 = vpack.c.b16 %v1828, %v1824
    %v1909 = vpack.c.b16 %v1829, %v1825
    %v1910 = vpack.c.b16 %v1830, %v1826
    %v1911 = vpack.c.b16 %v1831, %v1827
    %v1912 = vpack.c.b16 %v1836, %v1832
    %v1913 = vpack.c.b16 %v1837, %v1833
    %v1914 = vpack.c.b16 %v1838, %v1834
    %v1915 = vpack.c.b16 %v1839, %v1835
    %v1916 = vpack.c.b16 %v1844, %v1840
    %v1917 = vpack.c.b16 %v1845, %v1841
    %v1918 = vpack.c.b16 %v1846, %v1842
    %v1919 = vpack.c.b16 %v1847, %v1843
    %v1920 = vpack.c.b16 %v1852, %v1848
    %v1921 = vpack.c.b16 %v1853, %v1849
    %v1922 = vpack.c.b16 %v1854, %v1850
    %v1923 = vpack.c.b16 %v1855, %v1851
    %v1924 = vpack.c.b16 %v1860, %v1856
    %v1925 = vpack.c.b16 %v1861, %v1857
    %v1926 = vpack.c.b16 %v1862, %v1858
    %v1927 = vpack.c.b16 %v1863, %v1859
    %1992 = vmatprep.subr.bf16.mxu0 %v1865
    %1993 = vmatpush1.bf16.msra.mxu0 %v1864
    %1994 = vmatprep.subr.bf16.mxu0 %v1869
    %1995 = vmatpush1.bf16.msra.mxu0 %v1868
    %1996 = vmatprep.subr.bf16.mxu0 %v1873
    %1997 = vmatpush1.bf16.msra.mxu0 %v1872
    %1998 = vmatprep.subr.bf16.mxu0 %v1877
    %1999 = vmatpush1.bf16.msra.mxu0 %v1876
    %2000 = vmatprep.subr.bf16.mxu0 %v1881
    %2001 = vmatpush1.bf16.msra.mxu0 %v1880
    %2002 = vmatprep.subr.bf16.mxu0 %v1885
    %2003 = vmatpush1.bf16.msra.mxu0 %v1884
    %2004 = vmatprep.subr.bf16.mxu0 %v1889
    %2005 = vmatpush1.bf16.msra.mxu0 %v1888
    %2006 = vmatprep.subr.bf16.mxu0 %v1893
    %2007 = vmatpush1.bf16.msra.mxu0 %v1892
    %2008 = vmatprep.subr.bf16.mxu0 %v1897
    %2009 = vmatpush1.bf16.msra.mxu0 %v1896
    %2010 = vmatprep.subr.bf16.mxu0 %v1901
    %2011 = vmatpush1.bf16.msra.mxu0 %v1900
    %2012 = vmatprep.subr.bf16.mxu0 %v1905
    %2013 = vmatpush1.bf16.msra.mxu0 %v1904
    %2014 = vmatprep.subr.bf16.mxu0 %v1909
    %2015 = vmatpush1.bf16.msra.mxu0 %v1908
    %2016 = vmatprep.subr.bf16.mxu0 %v1913
    %2017 = vmatpush1.bf16.msra.mxu0 %v1912
    %2018 = vmatprep.subr.bf16.mxu0 %v1917
    %2019 = vmatpush1.bf16.msra.mxu0 %v1916
    %2020 = vmatprep.subr.bf16.mxu0 %v1921
    %2021 = vmatpush1.bf16.msra.mxu0 %v1920
    %2022 = vmatprep.subr.bf16.mxu0 %v1925
    %2023 = vmatpush1.bf16.msra.mxu0 %v1924
    %2024 = vmatprep.mubr.bf16.mxu0 %v1607
    %2025 = vmatmul.mubr.bf16.gmra.mrb[0].mxu0 %v1606
    %v2026 = vpop.f32.mrb[0].mxu0
    %v2027 = vadd.f32 %v855, %v2026
    %v2028 = vpop.f32.mrb[0].mxu0
    %v2029 = vadd.f32 %v859, %v2028
    %v2030 = vpop.f32.mrb[0].mxu0
    %v2031 = vpop.f32.mrb[0].mxu0
    %2032 = vdwg.mxu0
    %2033 = vmatprep.subr.bf16.mxu0 %v1867
    %2034 = vmatpush1.bf16.msra.mxu0 %v1866
    %2035 = vmatprep.subr.bf16.mxu0 %v1871
    %2036 = vmatpush1.bf16.msra.mxu0 %v1870
    %2037 = vmatprep.subr.bf16.mxu0 %v1875
    %2038 = vmatpush1.bf16.msra.mxu0 %v1874
    %2039 = vmatprep.subr.bf16.mxu0 %v1879
    %2040 = vmatpush1.bf16.msra.mxu0 %v1878
    %2041 = vmatprep.subr.bf16.mxu0 %v1883
    %2042 = vmatpush1.bf16.msra.mxu0 %v1882
    %2043 = vmatprep.subr.bf16.mxu0 %v1887
    %2044 = vmatpush1.bf16.msra.mxu0 %v1886
    %2045 = vmatprep.subr.bf16.mxu0 %v1891
    %2046 = vmatpush1.bf16.msra.mxu0 %v1890
    %2047 = vmatprep.subr.bf16.mxu0 %v1895
    %2048 = vmatpush1.bf16.msra.mxu0 %v1894
    %2049 = vmatprep.subr.bf16.mxu0 %v1899
    %2050 = vmatpush1.bf16.msra.mxu0 %v1898
    %2051 = vmatprep.subr.bf16.mxu0 %v1903
    %2052 = vmatpush1.bf16.msra.mxu0 %v1902
    %2053 = vmatprep.subr.bf16.mxu0 %v1907
    %2054 = vmatpush1.bf16.msra.mxu0 %v1906
    %2055 = vmatprep.subr.bf16.mxu0 %v1911
    %2056 = vmatpush1.bf16.msra.mxu0 %v1910
    %2057 = vmatprep.subr.bf16.mxu0 %v1915
    %2058 = vmatpush1.bf16.msra.mxu0 %v1914
    %2059 = vmatprep.subr.bf16.mxu0 %v1919
    %2060 = vmatpush1.bf16.msra.mxu0 %v1918
    %2061 = vmatprep.subr.bf16.mxu0 %v1923
    %2062 = vmatpush1.bf16.msra.mxu0 %v1922
    %2063 = vmatprep.subr.bf16.mxu0 %v1927
    %2064 = vmatpush1.bf16.msra.mxu0 %v1926
    %2065 = vmatprep.mubr.bf16.mxu0 %v1607
    %2066 = vmatmul.mubr.bf16.gmra.mrb[0].mxu0 %v1606
    %v2067 = vpop.f32.mrb[0].mxu0
    %v2068 = vadd.f32 %v863, %v2067
    %v2069 = vpop.f32.mrb[0].mxu0
    %v2070 = vadd.f32 %v867, %v2069
    %v2071 = vpop.f32.mrb[0].mxu0
    %v2072 = vpop.f32.mrb[0].mxu0
    %2073 = vdwg.mxu0
    %v2074 = vxor.u32 %v2027, 2147483648
    %v2075 = vmul.f32 %v2074, 1.442695
    %v2076 = vpow.pop %v2075
    %v2077 = vadd.f32 %v2076, 1.0
    %v2078 = vrcp.pop %v2077
    %v2079 = vmul.f32 1.0, %v2078
    %v2080 = vxor.u32 %v2029, 2147483648
    %v2081 = vmul.f32 %v2080, 1.442695
    %v2082 = vpow.pop %v2081
    %v2083 = vadd.f32 %v2082, 1.0
    %v2084 = vrcp.pop %v2083
    %v2085 = vmul.f32 1.0, %v2084
    %v2086 = vtanh.pop %v2068
    %v2087 = vxor.u32 %v2070, 2147483648
    %v2088 = vmul.f32 %v2087, 1.442695
    %v2089 = vpow.pop %v2088
    %v2090 = vadd.f32 %v2089, 1.0
    %v2091 = vrcp.pop %v2090
    %v2092 = vmul.f32 1.0, %v2091
    %v2093 = vmul.f32 %v2085, %v1295
    %v2094 = vmul.f32 %v2079, %v2086
    %v2095 = vadd.f32 %v2093, %v2094
    %v2096 = vtanh.pop %v2095
    %v2097 = vmul.f32 %v2092, %v2096
    %s2098 = scalar_lea.vmem [#allocation3], 8
    %2099 = vst [vmem:[%s2098] sm:$0xff] %v2097
    %s2100 = scalar_lea.vmem [#allocation2], 64
    %v2101 = vld [vmem:[%s2100] sm:$0xff]
    %v2102 = vld [vmem:[%s2100 + $0x8] sm:$0xff]
    %v2103 = vld [vmem:[%s2100 + $0x10] sm:$0xff]
    %v2104 = vld [vmem:[%s2100 + $0x18] sm:$0xff]
    %v2105 = vld [vmem:[#allocation4] sm:$0xff]
    %v2106 = vld [vmem:[#allocation4 + $0x8] sm:$0xff]
    %v2107 = vld [vmem:[#allocation4 + $0x10] sm:$0xff]
    %v2108 = vld [vmem:[#allocation4 + $0x18] sm:$0xff]
    %v2109 = vld [vmem:[#allocation4 + $0x20] sm:$0xff]
    %v2110 = vld [vmem:[#allocation4 + $0x28] sm:$0xff]
    %v2111 = vld [vmem:[#allocation4 + $0x30] sm:$0xff]
    %v2112 = vld [vmem:[#allocation4 + $0x38] sm:$0xff]
    %v2113 = vld [vmem:[#allocation4 + $0x40] sm:$0xff]
    %v2114 = vld [vmem:[#allocation4 + $0x48] sm:$0xff]
    %v2115 = vld [vmem:[#allocation4 + $0x50] sm:$0xff]
    %v2116 = vld [vmem:[#allocation4 + $0x58] sm:$0xff]
    %v2117 = vld [vmem:[#allocation4 + $0x60] sm:$0xff]
    %v2118 = vld [vmem:[#allocation4 + $0x68] sm:$0xff]
    %v2119 = vld [vmem:[#allocation4 + $0x70] sm:$0xff]
    %v2120 = vld [vmem:[#allocation4 + $0x78] sm:$0xff]
    %v2121 = vld [vmem:[#allocation4 + $0x80] sm:$0xff]
    %v2122 = vld [vmem:[#allocation4 + $0x88] sm:$0xff]
    %v2123 = vld [vmem:[#allocation4 + $0x90] sm:$0xff]
    %v2124 = vld [vmem:[#allocation4 + $0x98] sm:$0xff]
    %v2125 = vld [vmem:[#allocation4 + $0xa0] sm:$0xff]
    %v2126 = vld [vmem:[#allocation4 + $0xa8] sm:$0xff]
    %v2127 = vld [vmem:[#allocation4 + $0xb0] sm:$0xff]
    %v2128 = vld [vmem:[#allocation4 + $0xb8] sm:$0xff]
    %v2129 = vld [vmem:[#allocation4 + $0xc0] sm:$0xff]
    %v2130 = vld [vmem:[#allocation4 + $0xc8] sm:$0xff]
    %v2131 = vld [vmem:[#allocation4 + $0xd0] sm:$0xff]
    %v2132 = vld [vmem:[#allocation4 + $0xd8] sm:$0xff]
    %v2133 = vld [vmem:[#allocation4 + $0xe0] sm:$0xff]
    %v2134 = vld [vmem:[#allocation4 + $0xe8] sm:$0xff]
    %v2135 = vld [vmem:[#allocation4 + $0xf0] sm:$0xff]
    %v2136 = vld [vmem:[#allocation4 + $0xf8] sm:$0xff]
    %v2169 = vunpack.c.l.b16 %v2105
    %v2170 = vunpack.c.h.b16 %v2105
    %v2171 = vunpack.c.l.b16 %v2106
    %v2172 = vunpack.c.h.b16 %v2106
    %v2173 = vunpack.c.l.b16 %v2107
    %v2174 = vunpack.c.h.b16 %v2107
    %v2175 = vunpack.c.l.b16 %v2108
    %v2176 = vunpack.c.h.b16 %v2108
    %v2177 = vunpack.c.l.b16 %v2109
    %v2178 = vunpack.c.h.b16 %v2109
    %v2179 = vunpack.c.l.b16 %v2110
    %v2180 = vunpack.c.h.b16 %v2110
    %v2181 = vunpack.c.l.b16 %v2111
    %v2182 = vunpack.c.h.b16 %v2111
    %v2183 = vunpack.c.l.b16 %v2112
    %v2184 = vunpack.c.h.b16 %v2112
    %v2185 = vunpack.c.l.b16 %v2113
    %v2186 = vunpack.c.h.b16 %v2113
    %v2187 = vunpack.c.l.b16 %v2114
    %v2188 = vunpack.c.h.b16 %v2114
    %v2189 = vunpack.c.l.b16 %v2115
    %v2190 = vunpack.c.h.b16 %v2115
    %v2191 = vunpack.c.l.b16 %v2116
    %v2192 = vunpack.c.h.b16 %v2116
    %v2193 = vunpack.c.l.b16 %v2117
    %v2194 = vunpack.c.h.b16 %v2117
    %v2195 = vunpack.c.l.b16 %v2118
    %v2196 = vunpack.c.h.b16 %v2118
    %v2197 = vunpack.c.l.b16 %v2119
    %v2198 = vunpack.c.h.b16 %v2119
    %v2199 = vunpack.c.l.b16 %v2120
    %v2200 = vunpack.c.h.b16 %v2120
    %v2201 = vunpack.c.l.b16 %v2121
    %v2202 = vunpack.c.h.b16 %v2121
    %v2203 = vunpack.c.l.b16 %v2122
    %v2204 = vunpack.c.h.b16 %v2122
    %v2205 = vunpack.c.l.b16 %v2123
    %v2206 = vunpack.c.h.b16 %v2123
    %v2207 = vunpack.c.l.b16 %v2124
    %v2208 = vunpack.c.h.b16 %v2124
    %v2209 = vunpack.c.l.b16 %v2125
    %v2210 = vunpack.c.h.b16 %v2125
    %v2211 = vunpack.c.l.b16 %v2126
    %v2212 = vunpack.c.h.b16 %v2126
    %v2213 = vunpack.c.l.b16 %v2127
    %v2214 = vunpack.c.h.b16 %v2127
    %v2215 = vunpack.c.l.b16 %v2128
    %v2216 = vunpack.c.h.b16 %v2128
    %v2217 = vunpack.c.l.b16 %v2129
    %v2218 = vunpack.c.h.b16 %v2129
    %v2219 = vunpack.c.l.b16 %v2130
    %v2220 = vunpack.c.h.b16 %v2130
    %v2221 = vunpack.c.l.b16 %v2131
    %v2222 = vunpack.c.h.b16 %v2131
    %v2223 = vunpack.c.l.b16 %v2132
    %v2224 = vunpack.c.h.b16 %v2132
    %v2225 = vunpack.c.l.b16 %v2133
    %v2226 = vunpack.c.h.b16 %v2133
    %v2227 = vunpack.c.l.b16 %v2134
    %v2228 = vunpack.c.h.b16 %v2134
    %v2229 = vunpack.c.l.b16 %v2135
    %v2230 = vunpack.c.h.b16 %v2135
    %v2231 = vunpack.c.l.b16 %v2136
    %v2232 = vunpack.c.h.b16 %v2136
    %v2233 = vpack.c.b16 %v2173, %v2169
    %v2234 = vpack.c.b16 %v2174, %v2170
    %v2235 = vpack.c.b16 %v2175, %v2171
    %v2236 = vpack.c.b16 %v2176, %v2172
    %v2237 = vpack.c.b16 %v2181, %v2177
    %v2238 = vpack.c.b16 %v2182, %v2178
    %v2239 = vpack.c.b16 %v2183, %v2179
    %v2240 = vpack.c.b16 %v2184, %v2180
    %v2241 = vpack.c.b16 %v2189, %v2185
    %v2242 = vpack.c.b16 %v2190, %v2186
    %v2243 = vpack.c.b16 %v2191, %v2187
    %v2244 = vpack.c.b16 %v2192, %v2188
    %v2245 = vpack.c.b16 %v2197, %v2193
    %v2246 = vpack.c.b16 %v2198, %v2194
    %v2247 = vpack.c.b16 %v2199, %v2195
    %v2248 = vpack.c.b16 %v2200, %v2196
    %v2249 = vpack.c.b16 %v2205, %v2201
    %v2250 = vpack.c.b16 %v2206, %v2202
    %v2251 = vpack.c.b16 %v2207, %v2203
    %v2252 = vpack.c.b16 %v2208, %v2204
    %v2253 = vpack.c.b16 %v2213, %v2209
    %v2254 = vpack.c.b16 %v2214, %v2210
    %v2255 = vpack.c.b16 %v2215, %v2211
    %v2256 = vpack.c.b16 %v2216, %v2212
    %v2257 = vpack.c.b16 %v2221, %v2217
    %v2258 = vpack.c.b16 %v2222, %v2218
    %v2259 = vpack.c.b16 %v2223, %v2219
    %v2260 = vpack.c.b16 %v2224, %v2220
    %v2261 = vpack.c.b16 %v2229, %v2225
    %v2262 = vpack.c.b16 %v2230, %v2226
    %v2263 = vpack.c.b16 %v2231, %v2227
    %v2264 = vpack.c.b16 %v2232, %v2228
    %2297 = vmatprep.subr.bf16.mxu0 %v2234
    %2298 = vmatpush1.bf16.msra.mxu0 %v2233
    %2299 = vmatprep.subr.bf16.mxu0 %v2238
    %2300 = vmatpush1.bf16.msra.mxu0 %v2237
    %2301 = vmatprep.subr.bf16.mxu0 %v2242
    %2302 = vmatpush1.bf16.msra.mxu0 %v2241
    %2303 = vmatprep.subr.bf16.mxu0 %v2246
    %2304 = vmatpush1.bf16.msra.mxu0 %v2245
    %2305 = vmatprep.subr.bf16.mxu0 %v2250
    %2306 = vmatpush1.bf16.msra.mxu0 %v2249
    %2307 = vmatprep.subr.bf16.mxu0 %v2254
    %2308 = vmatpush1.bf16.msra.mxu0 %v2253
    %2309 = vmatprep.subr.bf16.mxu0 %v2258
    %2310 = vmatpush1.bf16.msra.mxu0 %v2257
    %2311 = vmatprep.subr.bf16.mxu0 %v2262
    %2312 = vmatpush1.bf16.msra.mxu0 %v2261
    %2313 = vmatprep.subr.bf16.mxu0 0
    %2314 = vmatpush1.bf16.msra.mxu0 0
    %2315 = vmatprep.subr.bf16.mxu0 0
    %2316 = vmatpush1.bf16.msra.mxu0 0
    %2317 = vmatprep.subr.bf16.mxu0 0
    %2318 = vmatpush1.bf16.msra.mxu0 0
    %2319 = vmatprep.subr.bf16.mxu0 0
    %2320 = vmatpush1.bf16.msra.mxu0 0
    %2321 = vmatprep.subr.bf16.mxu0 0
    %2322 = vmatpush1.bf16.msra.mxu0 0
    %2323 = vmatprep.subr.bf16.mxu0 0
    %2324 = vmatpush1.bf16.msra.mxu0 0
    %2325 = vmatprep.subr.bf16.mxu0 0
    %2326 = vmatpush1.bf16.msra.mxu0 0
    %2327 = vmatprep.subr.bf16.mxu0 0
    %2328 = vmatpush1.bf16.msra.mxu0 0
    %2329 = vmatprep.mubr.bf16.mxu0 0
    %2330 = vmatmul.mubr.bf16.gmra.mrb[0].mxu0 %v1606
    %v2331 = vpop.f32.mrb[0].mxu0
    %v2332 = vadd.f32 0.0, %v2331
    %v2333 = vpop.f32.mrb[0].mxu0
    %v2334 = vadd.f32 0.0, %v2333
    %v2335 = vpop.f32.mrb[0].mxu0
    %v2336 = vpop.f32.mrb[0].mxu0
    %2337 = vdwg.mxu0
    %2338 = vmatprep.subr.bf16.mxu0 %v2236
    %2339 = vmatpush1.bf16.msra.mxu0 %v2235
    %2340 = vmatprep.subr.bf16.mxu0 %v2240
    %2341 = vmatpush1.bf16.msra.mxu0 %v2239
    %2342 = vmatprep.subr.bf16.mxu0 %v2244
    %2343 = vmatpush1.bf16.msra.mxu0 %v2243
    %2344 = vmatprep.subr.bf16.mxu0 %v2248
    %2345 = vmatpush1.bf16.msra.mxu0 %v2247
    %2346 = vmatprep.subr.bf16.mxu0 %v2252
    %2347 = vmatpush1.bf16.msra.mxu0 %v2251
    %2348 = vmatprep.subr.bf16.mxu0 %v2256
    %2349 = vmatpush1.bf16.msra.mxu0 %v2255
    %2350 = vmatprep.subr.bf16.mxu0 %v2260
    %2351 = vmatpush1.bf16.msra.mxu0 %v2259
    %2352 = vmatprep.subr.bf16.mxu0 %v2264
    %2353 = vmatpush1.bf16.msra.mxu0 %v2263
    %2354 = vmatprep.subr.bf16.mxu0 0
    %2355 = vmatpush1.bf16.msra.mxu0 0
    %2356 = vmatprep.subr.bf16.mxu0 0
    %2357 = vmatpush1.bf16.msra.mxu0 0
    %2358 = vmatprep.subr.bf16.mxu0 0
    %2359 = vmatpush1.bf16.msra.mxu0 0
    %2360 = vmatprep.subr.bf16.mxu0 0
    %2361 = vmatpush1.bf16.msra.mxu0 0
    %2362 = vmatprep.subr.bf16.mxu0 0
    %2363 = vmatpush1.bf16.msra.mxu0 0
    %2364 = vmatprep.subr.bf16.mxu0 0
    %2365 = vmatpush1.bf16.msra.mxu0 0
    %2366 = vmatprep.subr.bf16.mxu0 0
    %2367 = vmatpush1.bf16.msra.mxu0 0
    %2368 = vmatprep.subr.bf16.mxu0 0
    %2369 = vmatpush1.bf16.msra.mxu0 0
    %2370 = vmatprep.mubr.bf16.mxu0 0
    %2371 = vmatmul.mubr.bf16.gmra.mrb[0].mxu0 %v1606
    %v2372 = vpop.f32.mrb[0].mxu0
    %v2373 = vadd.f32 0.0, %v2372
    %v2374 = vpop.f32.mrb[0].mxu0
    %v2375 = vadd.f32 0.0, %v2374
    %v2376 = vpop.f32.mrb[0].mxu0
    %v2377 = vpop.f32.mrb[0].mxu0
    %2378 = vdwg.mxu0
    %v2379 = vadd.f32 %v2101, %v2332
    %v2380 = vadd.f32 %v2102, %v2334
    %v2381 = vadd.f32 %v2103, %v2373
    %v2382 = vadd.f32 %v2104, %v2375
    %v2383 = vxor.u32 %v2379, 2147483648
    %v2384 = vmul.f32 %v2383, 1.442695
    %v2385 = vpow.pop %v2384
    %v2386 = vadd.f32 %v2385, 1.0
    %v2387 = vrcp.pop %v2386
    %v2388 = vmul.f32 1.0, %v2387
    %v2389 = vxor.u32 %v2380, 2147483648
    %v2390 = vmul.f32 %v2389, 1.442695
    %v2391 = vpow.pop %v2390
    %v2392 = vadd.f32 %v2391, 1.0
    %v2393 = vrcp.pop %v2392
    %v2394 = vmul.f32 1.0, %v2393
    %v2395 = vtanh.pop %v2381
    %v2396 = vxor.u32 %v2382, 2147483648
    %v2397 = vmul.f32 %v2396, 1.442695
    %v2398 = vpow.pop %v2397
    %v2399 = vadd.f32 %v2398, 1.0
    %v2400 = vrcp.pop %v2399
    %v2401 = vmul.f32 1.0, %v2400
    %v2402 = vmul.f32 %v2394, %v1603
    %v2403 = vmul.f32 %v2388, %v2395
    %v2404 = vadd.f32 %v2402, %v2403
    %v2405 = vtanh.pop %v2404
    %v2406 = vmul.f32 %v2401, %v2405
    %v2407 = vpack.c.bf16 %v2406, %v2406
    %v2408 = vpack.c.bf16 %v2097, %v2097
    %v2409 = vld [vmem:[#allocation6] sm:$0xff]
    %v2410 = vld [vmem:[#allocation6 + $0x8] sm:$0xff]
    %v2411 = vld [vmem:[#allocation6 + $0x10] sm:$0xff]
    %v2412 = vld [vmem:[#allocation6 + $0x18] sm:$0xff]
    %v2413 = vld [vmem:[#allocation6 + $0x20] sm:$0xff]
    %v2414 = vld [vmem:[#allocation6 + $0x28] sm:$0xff]
    %v2415 = vld [vmem:[#allocation6 + $0x30] sm:$0xff]
    %v2416 = vld [vmem:[#allocation6 + $0x38] sm:$0xff]
    %v2417 = vld [vmem:[#allocation6 + $0x40] sm:$0xff]
    %v2418 = vld [vmem:[#allocation6 + $0x48] sm:$0xff]
    %v2419 = vld [vmem:[#allocation6 + $0x50] sm:$0xff]
    %v2420 = vld [vmem:[#allocation6 + $0x58] sm:$0xff]
    %v2421 = vld [vmem:[#allocation6 + $0x60] sm:$0xff]
    %v2422 = vld [vmem:[#allocation6 + $0x68] sm:$0xff]
    %v2423 = vld [vmem:[#allocation6 + $0x70] sm:$0xff]
    %v2424 = vld [vmem:[#allocation6 + $0x78] sm:$0xff]
    %v2425 = vld [vmem:[#allocation6 + $0x80] sm:$0xff]
    %v2426 = vld [vmem:[#allocation6 + $0x88] sm:$0xff]
    %v2427 = vld [vmem:[#allocation6 + $0x90] sm:$0xff]
    %v2428 = vld [vmem:[#allocation6 + $0x98] sm:$0xff]
    %v2429 = vld [vmem:[#allocation6 + $0xa0] sm:$0xff]
    %v2430 = vld [vmem:[#allocation6 + $0xa8] sm:$0xff]
    %v2431 = vld [vmem:[#allocation6 + $0xb0] sm:$0xff]
    %v2432 = vld [vmem:[#allocation6 + $0xb8] sm:$0xff]
    %v2433 = vld [vmem:[#allocation6 + $0xc0] sm:$0xff]
    %v2434 = vld [vmem:[#allocation6 + $0xc8] sm:$0xff]
    %v2435 = vld [vmem:[#allocation6 + $0xd0] sm:$0xff]
    %v2436 = vld [vmem:[#allocation6 + $0xd8] sm:$0xff]
    %v2437 = vld [vmem:[#allocation6 + $0xe0] sm:$0xff]
    %v2438 = vld [vmem:[#allocation6 + $0xe8] sm:$0xff]
    %v2439 = vld [vmem:[#allocation6 + $0xf0] sm:$0xff]
    %v2440 = vld [vmem:[#allocation6 + $0xf8] sm:$0xff]
    %v2441 = vld [vmem:[#allocation6 + $0x100] sm:$0xff]
    %v2442 = vld [vmem:[#allocation6 + $0x108] sm:$0xff]
    %v2443 = vld [vmem:[#allocation6 + $0x110] sm:$0xff]
    %v2444 = vld [vmem:[#allocation6 + $0x118] sm:$0xff]
    %v2445 = vld [vmem:[#allocation6 + $0x120] sm:$0xff]
    %v2446 = vld [vmem:[#allocation6 + $0x128] sm:$0xff]
    %v2447 = vld [vmem:[#allocation6 + $0x130] sm:$0xff]
    %v2448 = vld [vmem:[#allocation6 + $0x138] sm:$0xff]
    %v2449 = vld [vmem:[#allocation6 + $0x140] sm:$0xff]
    %v2450 = vld [vmem:[#allocation6 + $0x148] sm:$0xff]
    %v2451 = vld [vmem:[#allocation6 + $0x150] sm:$0xff]
    %v2452 = vld [vmem:[#allocation6 + $0x158] sm:$0xff]
    %v2453 = vld [vmem:[#allocation6 + $0x160] sm:$0xff]
    %v2454 = vld [vmem:[#allocation6 + $0x168] sm:$0xff]
    %v2455 = vld [vmem:[#allocation6 + $0x170] sm:$0xff]
    %v2456 = vld [vmem:[#allocation6 + $0x178] sm:$0xff]
    %v2457 = vld [vmem:[#allocation6 + $0x180] sm:$0xff]
    %v2458 = vld [vmem:[#allocation6 + $0x188] sm:$0xff]
    %v2459 = vld [vmem:[#allocation6 + $0x190] sm:$0xff]
    %v2460 = vld [vmem:[#allocation6 + $0x198] sm:$0xff]
    %v2461 = vld [vmem:[#allocation6 + $0x1a0] sm:$0xff]
    %v2462 = vld [vmem:[#allocation6 + $0x1a8] sm:$0xff]
    %v2463 = vld [vmem:[#allocation6 + $0x1b0] sm:$0xff]
    %v2464 = vld [vmem:[#allocation6 + $0x1b8] sm:$0xff]
    %v2465 = vld [vmem:[#allocation6 + $0x1c0] sm:$0xff]
    %v2466 = vld [vmem:[#allocation6 + $0x1c8] sm:$0xff]
    %v2467 = vld [vmem:[#allocation6 + $0x1d0] sm:$0xff]
    %v2468 = vld [vmem:[#allocation6 + $0x1d8] sm:$0xff]
    %v2469 = vld [vmem:[#allocation6 + $0x1e0] sm:$0xff]
    %v2470 = vld [vmem:[#allocation6 + $0x1e8] sm:$0xff]
    %v2471 = vld [vmem:[#allocation6 + $0x1f0] sm:$0xff]
    %v2472 = vld [vmem:[#allocation6 + $0x1f8] sm:$0xff]
    %v2537 = vunpack.c.l.b16 %v2409
    %v2538 = vunpack.c.h.b16 %v2409
    %v2539 = vunpack.c.l.b16 %v2410
    %v2540 = vunpack.c.h.b16 %v2410
    %v2541 = vunpack.c.l.b16 %v2411
    %v2542 = vunpack.c.h.b16 %v2411
    %v2543 = vunpack.c.l.b16 %v2412
    %v2544 = vunpack.c.h.b16 %v2412
    %v2545 = vunpack.c.l.b16 %v2413
    %v2546 = vunpack.c.h.b16 %v2413
    %v2547 = vunpack.c.l.b16 %v2414
    %v2548 = vunpack.c.h.b16 %v2414
    %v2549 = vunpack.c.l.b16 %v2415
    %v2550 = vunpack.c.h.b16 %v2415
    %v2551 = vunpack.c.l.b16 %v2416
    %v2552 = vunpack.c.h.b16 %v2416
    %v2553 = vunpack.c.l.b16 %v2417
    %v2554 = vunpack.c.h.b16 %v2417
    %v2555 = vunpack.c.l.b16 %v2418
    %v2556 = vunpack.c.h.b16 %v2418
    %v2557 = vunpack.c.l.b16 %v2419
    %v2558 = vunpack.c.h.b16 %v2419
    %v2559 = vunpack.c.l.b16 %v2420
    %v2560 = vunpack.c.h.b16 %v2420
    %v2561 = vunpack.c.l.b16 %v2421
    %v2562 = vunpack.c.h.b16 %v2421
    %v2563 = vunpack.c.l.b16 %v2422
    %v2564 = vunpack.c.h.b16 %v2422
    %v2565 = vunpack.c.l.b16 %v2423
    %v2566 = vunpack.c.h.b16 %v2423
    %v2567 = vunpack.c.l.b16 %v2424
    %v2568 = vunpack.c.h.b16 %v2424
    %v2569 = vunpack.c.l.b16 %v2425
    %v2570 = vunpack.c.h.b16 %v2425
    %v2571 = vunpack.c.l.b16 %v2426
    %v2572 = vunpack.c.h.b16 %v2426
    %v2573 = vunpack.c.l.b16 %v2427
    %v2574 = vunpack.c.h.b16 %v2427
    %v2575 = vunpack.c.l.b16 %v2428
    %v2576 = vunpack.c.h.b16 %v2428
    %v2577 = vunpack.c.l.b16 %v2429
    %v2578 = vunpack.c.h.b16 %v2429
    %v2579 = vunpack.c.l.b16 %v2430
    %v2580 = vunpack.c.h.b16 %v2430
    %v2581 = vunpack.c.l.b16 %v2431
    %v2582 = vunpack.c.h.b16 %v2431
    %v2583 = vunpack.c.l.b16 %v2432
    %v2584 = vunpack.c.h.b16 %v2432
    %v2585 = vunpack.c.l.b16 %v2433
    %v2586 = vunpack.c.h.b16 %v2433
    %v2587 = vunpack.c.l.b16 %v2434
    %v2588 = vunpack.c.h.b16 %v2434
    %v2589 = vunpack.c.l.b16 %v2435
    %v2590 = vunpack.c.h.b16 %v2435
    %v2591 = vunpack.c.l.b16 %v2436
    %v2592 = vunpack.c.h.b16 %v2436
    %v2593 = vunpack.c.l.b16 %v2437
    %v2594 = vunpack.c.h.b16 %v2437
    %v2595 = vunpack.c.l.b16 %v2438
    %v2596 = vunpack.c.h.b16 %v2438
    %v2597 = vunpack.c.l.b16 %v2439
    %v2598 = vunpack.c.h.b16 %v2439
    %v2599 = vunpack.c.l.b16 %v2440
    %v2600 = vunpack.c.h.b16 %v2440
    %v2601 = vunpack.c.l.b16 %v2441
    %v2602 = vunpack.c.h.b16 %v2441
    %v2603 = vunpack.c.l.b16 %v2442
    %v2604 = vunpack.c.h.b16 %v2442
    %v2605 = vunpack.c.l.b16 %v2443
    %v2606 = vunpack.c.h.b16 %v2443
    %v2607 = vunpack.c.l.b16 %v2444
    %v2608 = vunpack.c.h.b16 %v2444
    %v2609 = vunpack.c.l.b16 %v2445
    %v2610 = vunpack.c.h.b16 %v2445
    %v2611 = vunpack.c.l.b16 %v2446
    %v2612 = vunpack.c.h.b16 %v2446
    %v2613 = vunpack.c.l.b16 %v2447
    %v2614 = vunpack.c.h.b16 %v2447
    %v2615 = vunpack.c.l.b16 %v2448
    %v2616 = vunpack.c.h.b16 %v2448
    %v2617 = vunpack.c.l.b16 %v2449
    %v2618 = vunpack.c.h.b16 %v2449
    %v2619 = vunpack.c.l.b16 %v2450
    %v2620 = vunpack.c.h.b16 %v2450
    %v2621 = vunpack.c.l.b16 %v2451
    %v2622 = vunpack.c.h.b16 %v2451
    %v2623 = vunpack.c.l.b16 %v2452
    %v2624 = vunpack.c.h.b16 %v2452
    %v2625 = vunpack.c.l.b16 %v2453
    %v2626 = vunpack.c.h.b16 %v2453
    %v2627 = vunpack.c.l.b16 %v2454
    %v2628 = vunpack.c.h.b16 %v2454
    %v2629 = vunpack.c.l.b16 %v2455
    %v2630 = vunpack.c.h.b16 %v2455
    %v2631 = vunpack.c.l.b16 %v2456
    %v2632 = vunpack.c.h.b16 %v2456
    %v2633 = vunpack.c.l.b16 %v2457
    %v2634 = vunpack.c.h.b16 %v2457
    %v2635 = vunpack.c.l.b16 %v2458
    %v2636 = vunpack.c.h.b16 %v2458
    %v2637 = vunpack.c.l.b16 %v2459
    %v2638 = vunpack.c.h.b16 %v2459
    %v2639 = vunpack.c.l.b16 %v2460
    %v2640 = vunpack.c.h.b16 %v2460
    %v2641 = vunpack.c.l.b16 %v2461
    %v2642 = vunpack.c.h.b16 %v2461
    %v2643 = vunpack.c.l.b16 %v2462
    %v2644 = vunpack.c.h.b16 %v2462
    %v2645 = vunpack.c.l.b16 %v2463
    %v2646 = vunpack.c.h.b16 %v2463
    %v2647 = vunpack.c.l.b16 %v2464
    %v2648 = vunpack.c.h.b16 %v2464
    %v2649 = vunpack.c.l.b16 %v2465
    %v2650 = vunpack.c.h.b16 %v2465
    %v2651 = vunpack.c.l.b16 %v2466
    %v2652 = vunpack.c.h.b16 %v2466
    %v2653 = vunpack.c.l.b16 %v2467
    %v2654 = vunpack.c.h.b16 %v2467
    %v2655 = vunpack.c.l.b16 %v2468
    %v2656 = vunpack.c.h.b16 %v2468
    %v2657 = vunpack.c.l.b16 %v2469
    %v2658 = vunpack.c.h.b16 %v2469
    %v2659 = vunpack.c.l.b16 %v2470
    %v2660 = vunpack.c.h.b16 %v2470
    %v2661 = vunpack.c.l.b16 %v2471
    %v2662 = vunpack.c.h.b16 %v2471
    %v2663 = vunpack.c.l.b16 %v2472
    %v2664 = vunpack.c.h.b16 %v2472
    %v2665 = vpack.c.b16 %v2541, %v2537
    %v2666 = vpack.c.b16 %v2542, %v2538
    %v2667 = vpack.c.b16 %v2543, %v2539
    %v2668 = vpack.c.b16 %v2544, %v2540
    %v2669 = vpack.c.b16 %v2549, %v2545
    %v2670 = vpack.c.b16 %v2550, %v2546
    %v2671 = vpack.c.b16 %v2551, %v2547
    %v2672 = vpack.c.b16 %v2552, %v2548
    %v2673 = vpack.c.b16 %v2557, %v2553
    %v2674 = vpack.c.b16 %v2558, %v2554
    %v2675 = vpack.c.b16 %v2559, %v2555
    %v2676 = vpack.c.b16 %v2560, %v2556
    %v2677 = vpack.c.b16 %v2565, %v2561
    %v2678 = vpack.c.b16 %v2566, %v2562
    %v2679 = vpack.c.b16 %v2567, %v2563
    %v2680 = vpack.c.b16 %v2568, %v2564
    %v2681 = vpack.c.b16 %v2573, %v2569
    %v2682 = vpack.c.b16 %v2574, %v2570
    %v2683 = vpack.c.b16 %v2575, %v2571
    %v2684 = vpack.c.b16 %v2576, %v2572
    %v2685 = vpack.c.b16 %v2581, %v2577
    %v2686 = vpack.c.b16 %v2582, %v2578
    %v2687 = vpack.c.b16 %v2583, %v2579
    %v2688 = vpack.c.b16 %v2584, %v2580
    %v2689 = vpack.c.b16 %v2589, %v2585
    %v2690 = vpack.c.b16 %v2590, %v2586
    %v2691 = vpack.c.b16 %v2591, %v2587
    %v2692 = vpack.c.b16 %v2592, %v2588
    %v2693 = vpack.c.b16 %v2597, %v2593
    %v2694 = vpack.c.b16 %v2598, %v2594
    %v2695 = vpack.c.b16 %v2599, %v2595
    %v2696 = vpack.c.b16 %v2600, %v2596
    %v2697 = vpack.c.b16 %v2605, %v2601
    %v2698 = vpack.c.b16 %v2606, %v2602
    %v2699 = vpack.c.b16 %v2607, %v2603
    %v2700 = vpack.c.b16 %v2608, %v2604
    %v2701 = vpack.c.b16 %v2613, %v2609
    %v2702 = vpack.c.b16 %v2614, %v2610
    %v2703 = vpack.c.b16 %v2615, %v2611
    %v2704 = vpack.c.b16 %v2616, %v2612
    %v2705 = vpack.c.b16 %v2621, %v2617
    %v2706 = vpack.c.b16 %v2622, %v2618
    %v2707 = vpack.c.b16 %v2623, %v2619
    %v2708 = vpack.c.b16 %v2624, %v2620
    %v2709 = vpack.c.b16 %v2629, %v2625
    %v2710 = vpack.c.b16 %v2630, %v2626
    %v2711 = vpack.c.b16 %v2631, %v2627
    %v2712 = vpack.c.b16 %v2632, %v2628
    %v2713 = vpack.c.b16 %v2637, %v2633
    %v2714 = vpack.c.b16 %v2638, %v2634
    %v2715 = vpack.c.b16 %v2639, %v2635
    %v2716 = vpack.c.b16 %v2640, %v2636
    %v2717 = vpack.c.b16 %v2645, %v2641
    %v2718 = vpack.c.b16 %v2646, %v2642
    %v2719 = vpack.c.b16 %v2647, %v2643
    %v2720 = vpack.c.b16 %v2648, %v2644
    %v2721 = vpack.c.b16 %v2653, %v2649
    %v2722 = vpack.c.b16 %v2654, %v2650
    %v2723 = vpack.c.b16 %v2655, %v2651
    %v2724 = vpack.c.b16 %v2656, %v2652
    %v2725 = vpack.c.b16 %v2661, %v2657
    %v2726 = vpack.c.b16 %v2662, %v2658
    %v2727 = vpack.c.b16 %v2663, %v2659
    %v2728 = vpack.c.b16 %v2664, %v2660
    %2793 = vmatprep.subr.bf16.mxu0 %v2666
    %2794 = vmatpush1.bf16.msra.mxu0 %v2665
    %2795 = vmatprep.subr.bf16.mxu0 %v2670
    %2796 = vmatpush1.bf16.msra.mxu0 %v2669
    %2797 = vmatprep.subr.bf16.mxu0 %v2674
    %2798 = vmatpush1.bf16.msra.mxu0 %v2673
    %2799 = vmatprep.subr.bf16.mxu0 %v2678
    %2800 = vmatpush1.bf16.msra.mxu0 %v2677
    %2801 = vmatprep.subr.bf16.mxu0 %v2682
    %2802 = vmatpush1.bf16.msra.mxu0 %v2681
    %2803 = vmatprep.subr.bf16.mxu0 %v2686
    %2804 = vmatpush1.bf16.msra.mxu0 %v2685
    %2805 = vmatprep.subr.bf16.mxu0 %v2690
    %2806 = vmatpush1.bf16.msra.mxu0 %v2689
    %2807 = vmatprep.subr.bf16.mxu0 %v2694
    %2808 = vmatpush1.bf16.msra.mxu0 %v2693
    %2809 = vmatprep.subr.bf16.mxu0 %v2698
    %2810 = vmatpush1.bf16.msra.mxu0 %v2697
    %2811 = vmatprep.subr.bf16.mxu0 %v2702
    %2812 = vmatpush1.bf16.msra.mxu0 %v2701
    %2813 = vmatprep.subr.bf16.mxu0 %v2706
    %2814 = vmatpush1.bf16.msra.mxu0 %v2705
    %2815 = vmatprep.subr.bf16.mxu0 %v2710
    %2816 = vmatpush1.bf16.msra.mxu0 %v2709
    %2817 = vmatprep.subr.bf16.mxu0 %v2714
    %2818 = vmatpush1.bf16.msra.mxu0 %v2713
    %2819 = vmatprep.subr.bf16.mxu0 %v2718
    %2820 = vmatpush1.bf16.msra.mxu0 %v2717
    %2821 = vmatprep.subr.bf16.mxu0 %v2722
    %2822 = vmatpush1.bf16.msra.mxu0 %v2721
    %2823 = vmatprep.subr.bf16.mxu0 %v2726
    %2824 = vmatpush1.bf16.msra.mxu0 %v2725
    %2825 = vmatprep.mubr.bf16.mxu0 %v2408
    %2826 = vmatmul.mubr.bf16.gmra.mrb[0].mxu0 %v2407
    %v2827 = vpop.f32.mrb[0].mxu0
    %v2828 = vadd.f32 %v855, %v2827
    %v2829 = vpop.f32.mrb[0].mxu0
    %v2830 = vadd.f32 %v859, %v2829
    %v2831 = vpop.f32.mrb[0].mxu0
    %v2832 = vpop.f32.mrb[0].mxu0
    %2833 = vdwg.mxu0
    %2834 = vmatprep.subr.bf16.mxu0 %v2668
    %2835 = vmatpush1.bf16.msra.mxu0 %v2667
    %2836 = vmatprep.subr.bf16.mxu0 %v2672
    %2837 = vmatpush1.bf16.msra.mxu0 %v2671
    %2838 = vmatprep.subr.bf16.mxu0 %v2676
    %2839 = vmatpush1.bf16.msra.mxu0 %v2675
    %2840 = vmatprep.subr.bf16.mxu0 %v2680
    %2841 = vmatpush1.bf16.msra.mxu0 %v2679
    %2842 = vmatprep.subr.bf16.mxu0 %v2684
    %2843 = vmatpush1.bf16.msra.mxu0 %v2683
    %2844 = vmatprep.subr.bf16.mxu0 %v2688
    %2845 = vmatpush1.bf16.msra.mxu0 %v2687
    %2846 = vmatprep.subr.bf16.mxu0 %v2692
    %2847 = vmatpush1.bf16.msra.mxu0 %v2691
    %2848 = vmatprep.subr.bf16.mxu0 %v2696
    %2849 = vmatpush1.bf16.msra.mxu0 %v2695
    %2850 = vmatprep.subr.bf16.mxu0 %v2700
    %2851 = vmatpush1.bf16.msra.mxu0 %v2699
    %2852 = vmatprep.subr.bf16.mxu0 %v2704
    %2853 = vmatpush1.bf16.msra.mxu0 %v2703
    %2854 = vmatprep.subr.bf16.mxu0 %v2708
    %2855 = vmatpush1.bf16.msra.mxu0 %v2707
    %2856 = vmatprep.subr.bf16.mxu0 %v2712
    %2857 = vmatpush1.bf16.msra.mxu0 %v2711
    %2858 = vmatprep.subr.bf16.mxu0 %v2716
    %2859 = vmatpush1.bf16.msra.mxu0 %v2715
    %2860 = vmatprep.subr.bf16.mxu0 %v2720
    %2861 = vmatpush1.bf16.msra.mxu0 %v2719
    %2862 = vmatprep.subr.bf16.mxu0 %v2724
    %2863 = vmatpush1.bf16.msra.mxu0 %v2723
    %2864 = vmatprep.subr.bf16.mxu0 %v2728
    %2865 = vmatpush1.bf16.msra.mxu0 %v2727
    %2866 = vmatprep.mubr.bf16.mxu0 %v2408
    %2867 = vmatmul.mubr.bf16.gmra.mrb[0].mxu0 %v2407
    %v2868 = vpop.f32.mrb[0].mxu0
    %v2869 = vadd.f32 %v863, %v2868
    %v2870 = vpop.f32.mrb[0].mxu0
    %v2871 = vadd.f32 %v867, %v2870
    %v2872 = vpop.f32.mrb[0].mxu0
    %v2873 = vpop.f32.mrb[0].mxu0
    %2874 = vdwg.mxu0
    %v2875 = vxor.u32 %v2828, 2147483648
    %v2876 = vmul.f32 %v2875, 1.442695
    %v2877 = vpow.pop %v2876
    %v2878 = vadd.f32 %v2877, 1.0
    %v2879 = vrcp.pop %v2878
    %v2880 = vmul.f32 1.0, %v2879
    %v2881 = vxor.u32 %v2830, 2147483648
    %v2882 = vmul.f32 %v2881, 1.442695
    %v2883 = vpow.pop %v2882
    %v2884 = vadd.f32 %v2883, 1.0
    %v2885 = vrcp.pop %v2884
    %v2886 = vmul.f32 1.0, %v2885
    %v2887 = vtanh.pop %v2869
    %v2888 = vxor.u32 %v2871, 2147483648
    %v2889 = vmul.f32 %v2888, 1.442695
    %v2890 = vpow.pop %v2889
    %v2891 = vadd.f32 %v2890, 1.0
    %v2892 = vrcp.pop %v2891
    %v2893 = vmul.f32 1.0, %v2892
    %v2894 = vmul.f32 %v2886, %v2095
    %v2895 = vmul.f32 %v2880, %v2887
    %v2896 = vadd.f32 %v2894, %v2895
    %v2897 = vtanh.pop %v2896
    %v2898 = vmul.f32 %v2893, %v2897
    %s2899 = scalar_lea.vmem [#allocation3], 16
    %2900 = vst [vmem:[%s2899] sm:$0xff] %v2898
    %s2901 = scalar_lea.vmem [#allocation2], 96
    %v2902 = vld [vmem:[%s2901] sm:$0xff]
    %v2903 = vld [vmem:[%s2901 + $0x8] sm:$0xff]
    %v2904 = vld [vmem:[%s2901 + $0x10] sm:$0xff]
    %v2905 = vld [vmem:[%s2901 + $0x18] sm:$0xff]
    %v2906 = vld [vmem:[#allocation4] sm:$0xff]
    %v2907 = vld [vmem:[#allocation4 + $0x8] sm:$0xff]
    %v2908 = vld [vmem:[#allocation4 + $0x10] sm:$0xff]
    %v2909 = vld [vmem:[#allocation4 + $0x18] sm:$0xff]
    %v2910 = vld [vmem:[#allocation4 + $0x20] sm:$0xff]
    %v2911 = vld [vmem:[#allocation4 + $0x28] sm:$0xff]
    %v2912 = vld [vmem:[#allocation4 + $0x30] sm:$0xff]
    %v2913 = vld [vmem:[#allocation4 + $0x38] sm:$0xff]
    %v2914 = vld [vmem:[#allocation4 + $0x40] sm:$0xff]
    %v2915 = vld [vmem:[#allocation4 + $0x48] sm:$0xff]
    %v2916 = vld [vmem:[#allocation4 + $0x50] sm:$0xff]
    %v2917 = vld [vmem:[#allocation4 + $0x58] sm:$0xff]
    %v2918 = vld [vmem:[#allocation4 + $0x60] sm:$0xff]
    %v2919 = vld [vmem:[#allocation4 + $0x68] sm:$0xff]
    %v2920 = vld [vmem:[#allocation4 + $0x70] sm:$0xff]
    %v2921 = vld [vmem:[#allocation4 + $0x78] sm:$0xff]
    %v2922 = vld [vmem:[#allocation4 + $0x80] sm:$0xff]
    %v2923 = vld [vmem:[#allocation4 + $0x88] sm:$0xff]
    %v2924 = vld [vmem:[#allocation4 + $0x90] sm:$0xff]
    %v2925 = vld [vmem:[#allocation4 + $0x98] sm:$0xff]
    %v2926 = vld [vmem:[#allocation4 + $0xa0] sm:$0xff]
    %v2927 = vld [vmem:[#allocation4 + $0xa8] sm:$0xff]
    %v2928 = vld [vmem:[#allocation4 + $0xb0] sm:$0xff]
    %v2929 = vld [vmem:[#allocation4 + $0xb8] sm:$0xff]
    %v2930 = vld [vmem:[#allocation4 + $0xc0] sm:$0xff]
    %v2931 = vld [vmem:[#allocation4 + $0xc8] sm:$0xff]
    %v2932 = vld [vmem:[#allocation4 + $0xd0] sm:$0xff]
    %v2933 = vld [vmem:[#allocation4 + $0xd8] sm:$0xff]
    %v2934 = vld [vmem:[#allocation4 + $0xe0] sm:$0xff]
    %v2935 = vld [vmem:[#allocation4 + $0xe8] sm:$0xff]
    %v2936 = vld [vmem:[#allocation4 + $0xf0] sm:$0xff]
    %v2937 = vld [vmem:[#allocation4 + $0xf8] sm:$0xff]
    %v2970 = vunpack.c.l.b16 %v2906
    %v2971 = vunpack.c.h.b16 %v2906
    %v2972 = vunpack.c.l.b16 %v2907
    %v2973 = vunpack.c.h.b16 %v2907
    %v2974 = vunpack.c.l.b16 %v2908
    %v2975 = vunpack.c.h.b16 %v2908
    %v2976 = vunpack.c.l.b16 %v2909
    %v2977 = vunpack.c.h.b16 %v2909
    %v2978 = vunpack.c.l.b16 %v2910
    %v2979 = vunpack.c.h.b16 %v2910
    %v2980 = vunpack.c.l.b16 %v2911
    %v2981 = vunpack.c.h.b16 %v2911
    %v2982 = vunpack.c.l.b16 %v2912
    %v2983 = vunpack.c.h.b16 %v2912
    %v2984 = vunpack.c.l.b16 %v2913
    %v2985 = vunpack.c.h.b16 %v2913
    %v2986 = vunpack.c.l.b16 %v2914
    %v2987 = vunpack.c.h.b16 %v2914
    %v2988 = vunpack.c.l.b16 %v2915
    %v2989 = vunpack.c.h.b16 %v2915
    %v2990 = vunpack.c.l.b16 %v2916
    %v2991 = vunpack.c.h.b16 %v2916
    %v2992 = vunpack.c.l.b16 %v2917
    %v2993 = vunpack.c.h.b16 %v2917
    %v2994 = vunpack.c.l.b16 %v2918
    %v2995 = vunpack.c.h.b16 %v2918
    %v2996 = vunpack.c.l.b16 %v2919
    %v2997 = vunpack.c.h.b16 %v2919
    %v2998 = vunpack.c.l.b16 %v2920
    %v2999 = vunpack.c.h.b16 %v2920
    %v3000 = vunpack.c.l.b16 %v2921
    %v3001 = vunpack.c.h.b16 %v2921
    %v3002 = vunpack.c.l.b16 %v2922
    %v3003 = vunpack.c.h.b16 %v2922
    %v3004 = vunpack.c.l.b16 %v2923
    %v3005 = vunpack.c.h.b16 %v2923
    %v3006 = vunpack.c.l.b16 %v2924
    %v3007 = vunpack.c.h.b16 %v2924
    %v3008 = vunpack.c.l.b16 %v2925
    %v3009 = vunpack.c.h.b16 %v2925
    %v3010 = vunpack.c.l.b16 %v2926
    %v3011 = vunpack.c.h.b16 %v2926
    %v3012 = vunpack.c.l.b16 %v2927
    %v3013 = vunpack.c.h.b16 %v2927
    %v3014 = vunpack.c.l.b16 %v2928
    %v3015 = vunpack.c.h.b16 %v2928
    %v3016 = vunpack.c.l.b16 %v2929
    %v3017 = vunpack.c.h.b16 %v2929
    %v3018 = vunpack.c.l.b16 %v2930
    %v3019 = vunpack.c.h.b16 %v2930
    %v3020 = vunpack.c.l.b16 %v2931
    %v3021 = vunpack.c.h.b16 %v2931
    %v3022 = vunpack.c.l.b16 %v2932
    %v3023 = vunpack.c.h.b16 %v2932
    %v3024 = vunpack.c.l.b16 %v2933
    %v3025 = vunpack.c.h.b16 %v2933
    %v3026 = vunpack.c.l.b16 %v2934
    %v3027 = vunpack.c.h.b16 %v2934
    %v3028 = vunpack.c.l.b16 %v2935
    %v3029 = vunpack.c.h.b16 %v2935
    %v3030 = vunpack.c.l.b16 %v2936
    %v3031 = vunpack.c.h.b16 %v2936
    %v3032 = vunpack.c.l.b16 %v2937
    %v3033 = vunpack.c.h.b16 %v2937
    %v3034 = vpack.c.b16 %v2974, %v2970
    %v3035 = vpack.c.b16 %v2975, %v2971
    %v3036 = vpack.c.b16 %v2976, %v2972
    %v3037 = vpack.c.b16 %v2977, %v2973
    %v3038 = vpack.c.b16 %v2982, %v2978
    %v3039 = vpack.c.b16 %v2983, %v2979
    %v3040 = vpack.c.b16 %v2984, %v2980
    %v3041 = vpack.c.b16 %v2985, %v2981
    %v3042 = vpack.c.b16 %v2990, %v2986
    %v3043 = vpack.c.b16 %v2991, %v2987
    %v3044 = vpack.c.b16 %v2992, %v2988
    %v3045 = vpack.c.b16 %v2993, %v2989
    %v3046 = vpack.c.b16 %v2998, %v2994
    %v3047 = vpack.c.b16 %v2999, %v2995
    %v3048 = vpack.c.b16 %v3000, %v2996
    %v3049 = vpack.c.b16 %v3001, %v2997
    %v3050 = vpack.c.b16 %v3006, %v3002
    %v3051 = vpack.c.b16 %v3007, %v3003
    %v3052 = vpack.c.b16 %v3008, %v3004
    %v3053 = vpack.c.b16 %v3009, %v3005
    %v3054 = vpack.c.b16 %v3014, %v3010
    %v3055 = vpack.c.b16 %v3015, %v3011
    %v3056 = vpack.c.b16 %v3016, %v3012
    %v3057 = vpack.c.b16 %v3017, %v3013
    %v3058 = vpack.c.b16 %v3022, %v3018
    %v3059 = vpack.c.b16 %v3023, %v3019
    %v3060 = vpack.c.b16 %v3024, %v3020
    %v3061 = vpack.c.b16 %v3025, %v3021
    %v3062 = vpack.c.b16 %v3030, %v3026
    %v3063 = vpack.c.b16 %v3031, %v3027
    %v3064 = vpack.c.b16 %v3032, %v3028
    %v3065 = vpack.c.b16 %v3033, %v3029
    %3098 = vmatprep.subr.bf16.mxu0 %v3035
    %3099 = vmatpush1.bf16.msra.mxu0 %v3034
    %3100 = vmatprep.subr.bf16.mxu0 %v3039
    %3101 = vmatpush1.bf16.msra.mxu0 %v3038
    %3102 = vmatprep.subr.bf16.mxu0 %v3043
    %3103 = vmatpush1.bf16.msra.mxu0 %v3042
    %3104 = vmatprep.subr.bf16.mxu0 %v3047
    %3105 = vmatpush1.bf16.msra.mxu0 %v3046
    %3106 = vmatprep.subr.bf16.mxu0 %v3051
    %3107 = vmatpush1.bf16.msra.mxu0 %v3050
    %3108 = vmatprep.subr.bf16.mxu0 %v3055
    %3109 = vmatpush1.bf16.msra.mxu0 %v3054
    %3110 = vmatprep.subr.bf16.mxu0 %v3059
    %3111 = vmatpush1.bf16.msra.mxu0 %v3058
    %3112 = vmatprep.subr.bf16.mxu0 %v3063
    %3113 = vmatpush1.bf16.msra.mxu0 %v3062
    %3114 = vmatprep.subr.bf16.mxu0 0
    %3115 = vmatpush1.bf16.msra.mxu0 0
    %3116 = vmatprep.subr.bf16.mxu0 0
    %3117 = vmatpush1.bf16.msra.mxu0 0
    %3118 = vmatprep.subr.bf16.mxu0 0
    %3119 = vmatpush1.bf16.msra.mxu0 0
    %3120 = vmatprep.subr.bf16.mxu0 0
    %3121 = vmatpush1.bf16.msra.mxu0 0
    %3122 = vmatprep.subr.bf16.mxu0 0
    %3123 = vmatpush1.bf16.msra.mxu0 0
    %3124 = vmatprep.subr.bf16.mxu0 0
    %3125 = vmatpush1.bf16.msra.mxu0 0
    %3126 = vmatprep.subr.bf16.mxu0 0
    %3127 = vmatpush1.bf16.msra.mxu0 0
    %3128 = vmatprep.subr.bf16.mxu0 0
    %3129 = vmatpush1.bf16.msra.mxu0 0
    %3130 = vmatprep.mubr.bf16.mxu0 0
    %3131 = vmatmul.mubr.bf16.gmra.mrb[0].mxu0 %v2407
    %v3132 = vpop.f32.mrb[0].mxu0
    %v3133 = vadd.f32 0.0, %v3132
    %v3134 = vpop.f32.mrb[0].mxu0
    %v3135 = vadd.f32 0.0, %v3134
    %v3136 = vpop.f32.mrb[0].mxu0
    %v3137 = vpop.f32.mrb[0].mxu0
    %3138 = vdwg.mxu0
    %3139 = vmatprep.subr.bf16.mxu0 %v3037
    %3140 = vmatpush1.bf16.msra.mxu0 %v3036
    %3141 = vmatprep.subr.bf16.mxu0 %v3041
    %3142 = vmatpush1.bf16.msra.mxu0 %v3040
    %3143 = vmatprep.subr.bf16.mxu0 %v3045
    %3144 = vmatpush1.bf16.msra.mxu0 %v3044
    %3145 = vmatprep.subr.bf16.mxu0 %v3049
    %3146 = vmatpush1.bf16.msra.mxu0 %v3048
    %3147 = vmatprep.subr.bf16.mxu0 %v3053
    %3148 = vmatpush1.bf16.msra.mxu0 %v3052
    %3149 = vmatprep.subr.bf16.mxu0 %v3057
    %3150 = vmatpush1.bf16.msra.mxu0 %v3056
    %3151 = vmatprep.subr.bf16.mxu0 %v3061
    %3152 = vmatpush1.bf16.msra.mxu0 %v3060
    %3153 = vmatprep.subr.bf16.mxu0 %v3065
    %3154 = vmatpush1.bf16.msra.mxu0 %v3064
    %3155 = vmatprep.subr.bf16.mxu0 0
    %3156 = vmatpush1.bf16.msra.mxu0 0
    %3157 = vmatprep.subr.bf16.mxu0 0
    %3158 = vmatpush1.bf16.msra.mxu0 0
    %3159 = vmatprep.subr.bf16.mxu0 0
    %3160 = vmatpush1.bf16.msra.mxu0 0
    %3161 = vmatprep.subr.bf16.mxu0 0
    %3162 = vmatpush1.bf16.msra.mxu0 0
    %3163 = vmatprep.subr.bf16.mxu0 0
    %3164 = vmatpush1.bf16.msra.mxu0 0
    %3165 = vmatprep.subr.bf16.mxu0 0
    %3166 = vmatpush1.bf16.msra.mxu0 0
    %3167 = vmatprep.subr.bf16.mxu0 0
    %3168 = vmatpush1.bf16.msra.mxu0 0
    %3169 = vmatprep.subr.bf16.mxu0 0
    %3170 = vmatpush1.bf16.msra.mxu0 0
    %3171 = vmatprep.mubr.bf16.mxu0 0
    %3172 = vmatmul.mubr.bf16.gmra.mrb[0].mxu0 %v2407
    %v3173 = vpop.f32.mrb[0].mxu0
    %v3174 = vadd.f32 0.0, %v3173
    %v3175 = vpop.f32.mrb[0].mxu0
    %v3176 = vadd.f32 0.0, %v3175
    %v3177 = vpop.f32.mrb[0].mxu0
    %v3178 = vpop.f32.mrb[0].mxu0
    %3179 = vdwg.mxu0
    %v3180 = vadd.f32 %v2902, %v3133
    %v3181 = vadd.f32 %v2903, %v3135
    %v3182 = vadd.f32 %v2904, %v3174
    %v3183 = vadd.f32 %v2905, %v3176
    %v3184 = vxor.u32 %v3180, 2147483648
    %v3185 = vmul.f32 %v3184, 1.442695
    %v3186 = vpow.pop %v3185
    %v3187 = vadd.f32 %v3186, 1.0
    %v3188 = vrcp.pop %v3187
    %v3189 = vmul.f32 1.0, %v3188
    %v3190 = vxor.u32 %v3181, 2147483648
    %v3191 = vmul.f32 %v3190, 1.442695
    %v3192 = vpow.pop %v3191
    %v3193 = vadd.f32 %v3192, 1.0
    %v3194 = vrcp.pop %v3193
    %v3195 = vmul.f32 1.0, %v3194
    %v3196 = vtanh.pop %v3182
    %v3197 = vxor.u32 %v3183, 2147483648
    %v3198 = vmul.f32 %v3197, 1.442695
    %v3199 = vpow.pop %v3198
    %v3200 = vadd.f32 %v3199, 1.0
    %v3201 = vrcp.pop %v3200
    %v3202 = vmul.f32 1.0, %v3201
    %v3203 = vmul.f32 %v3195, %v2404
    %v3204 = vmul.f32 %v3189, %v3196
    %v3205 = vadd.f32 %v3203, %v3204
    %v3206 = vtanh.pop %v3205
    %v3207 = vmul.f32 %v3202, %v3206
    %v3208 = vpack.c.bf16 %v3207, %v3207
    %v3209 = vpack.c.bf16 %v2898, %v2898
    %v3210 = vld [vmem:[#allocation6] sm:$0xff]
    %v3211 = vld [vmem:[#allocation6 + $0x8] sm:$0xff]
    %v3212 = vld [vmem:[#allocation6 + $0x10] sm:$0xff]
    %v3213 = vld [vmem:[#allocation6 + $0x18] sm:$0xff]
    %v3214 = vld [vmem:[#allocation6 + $0x20] sm:$0xff]
    %v3215 = vld [vmem:[#allocation6 + $0x28] sm:$0xff]
    %v3216 = vld [vmem:[#allocation6 + $0x30] sm:$0xff]
    %v3217 = vld [vmem:[#allocation6 + $0x38] sm:$0xff]
    %v3218 = vld [vmem:[#allocation6 + $0x40] sm:$0xff]
    %v3219 = vld [vmem:[#allocation6 + $0x48] sm:$0xff]
    %v3220 = vld [vmem:[#allocation6 + $0x50] sm:$0xff]
    %v3221 = vld [vmem:[#allocation6 + $0x58] sm:$0xff]
    %v3222 = vld [vmem:[#allocation6 + $0x60] sm:$0xff]
    %v3223 = vld [vmem:[#allocation6 + $0x68] sm:$0xff]
    %v3224 = vld [vmem:[#allocation6 + $0x70] sm:$0xff]
    %v3225 = vld [vmem:[#allocation6 + $0x78] sm:$0xff]
    %v3226 = vld [vmem:[#allocation6 + $0x80] sm:$0xff]
    %v3227 = vld [vmem:[#allocation6 + $0x88] sm:$0xff]
    %v3228 = vld [vmem:[#allocation6 + $0x90] sm:$0xff]
    %v3229 = vld [vmem:[#allocation6 + $0x98] sm:$0xff]
    %v3230 = vld [vmem:[#allocation6 + $0xa0] sm:$0xff]
    %v3231 = vld [vmem:[#allocation6 + $0xa8] sm:$0xff]
    %v3232 = vld [vmem:[#allocation6 + $0xb0] sm:$0xff]
    %v3233 = vld [vmem:[#allocation6 + $0xb8] sm:$0xff]
    %v3234 = vld [vmem:[#allocation6 + $0xc0] sm:$0xff]
    %v3235 = vld [vmem:[#allocation6 + $0xc8] sm:$0xff]
    %v3236 = vld [vmem:[#allocation6 + $0xd0] sm:$0xff]
    %v3237 = vld [vmem:[#allocation6 + $0xd8] sm:$0xff]
    %v3238 = vld [vmem:[#allocation6 + $0xe0] sm:$0xff]
    %v3239 = vld [vmem:[#allocation6 + $0xe8] sm:$0xff]
    %v3240 = vld [vmem:[#allocation6 + $0xf0] sm:$0xff]
    %v3241 = vld [vmem:[#allocation6 + $0xf8] sm:$0xff]
    %v3242 = vld [vmem:[#allocation6 + $0x100] sm:$0xff]
    %v3243 = vld [vmem:[#allocation6 + $0x108] sm:$0xff]
    %v3244 = vld [vmem:[#allocation6 + $0x110] sm:$0xff]
    %v3245 = vld [vmem:[#allocation6 + $0x118] sm:$0xff]
    %v3246 = vld [vmem:[#allocation6 + $0x120] sm:$0xff]
    %v3247 = vld [vmem:[#allocation6 + $0x128] sm:$0xff]
    %v3248 = vld [vmem:[#allocation6 + $0x130] sm:$0xff]
    %v3249 = vld [vmem:[#allocation6 + $0x138] sm:$0xff]
    %v3250 = vld [vmem:[#allocation6 + $0x140] sm:$0xff]
    %v3251 = vld [vmem:[#allocation6 + $0x148] sm:$0xff]
    %v3252 = vld [vmem:[#allocation6 + $0x150] sm:$0xff]
    %v3253 = vld [vmem:[#allocation6 + $0x158] sm:$0xff]
    %v3254 = vld [vmem:[#allocation6 + $0x160] sm:$0xff]
    %v3255 = vld [vmem:[#allocation6 + $0x168] sm:$0xff]
    %v3256 = vld [vmem:[#allocation6 + $0x170] sm:$0xff]
    %v3257 = vld [vmem:[#allocation6 + $0x178] sm:$0xff]
    %v3258 = vld [vmem:[#allocation6 + $0x180] sm:$0xff]
    %v3259 = vld [vmem:[#allocation6 + $0x188] sm:$0xff]
    %v3260 = vld [vmem:[#allocation6 + $0x190] sm:$0xff]
    %v3261 = vld [vmem:[#allocation6 + $0x198] sm:$0xff]
    %v3262 = vld [vmem:[#allocation6 + $0x1a0] sm:$0xff]
    %v3263 = vld [vmem:[#allocation6 + $0x1a8] sm:$0xff]
    %v3264 = vld [vmem:[#allocation6 + $0x1b0] sm:$0xff]
    %v3265 = vld [vmem:[#allocation6 + $0x1b8] sm:$0xff]
    %v3266 = vld [vmem:[#allocation6 + $0x1c0] sm:$0xff]
    %v3267 = vld [vmem:[#allocation6 + $0x1c8] sm:$0xff]
    %v3268 = vld [vmem:[#allocation6 + $0x1d0] sm:$0xff]
    %v3269 = vld [vmem:[#allocation6 + $0x1d8] sm:$0xff]
    %v3270 = vld [vmem:[#allocation6 + $0x1e0] sm:$0xff]
    %v3271 = vld [vmem:[#allocation6 + $0x1e8] sm:$0xff]
    %v3272 = vld [vmem:[#allocation6 + $0x1f0] sm:$0xff]
    %v3273 = vld [vmem:[#allocation6 + $0x1f8] sm:$0xff]
    %v3338 = vunpack.c.l.b16 %v3210
    %v3339 = vunpack.c.h.b16 %v3210
    %v3340 = vunpack.c.l.b16 %v3211
    %v3341 = vunpack.c.h.b16 %v3211
    %v3342 = vunpack.c.l.b16 %v3212
    %v3343 = vunpack.c.h.b16 %v3212
    %v3344 = vunpack.c.l.b16 %v3213
    %v3345 = vunpack.c.h.b16 %v3213
    %v3346 = vunpack.c.l.b16 %v3214
    %v3347 = vunpack.c.h.b16 %v3214
    %v3348 = vunpack.c.l.b16 %v3215
    %v3349 = vunpack.c.h.b16 %v3215
    %v3350 = vunpack.c.l.b16 %v3216
    %v3351 = vunpack.c.h.b16 %v3216
    %v3352 = vunpack.c.l.b16 %v3217
    %v3353 = vunpack.c.h.b16 %v3217
    %v3354 = vunpack.c.l.b16 %v3218
    %v3355 = vunpack.c.h.b16 %v3218
    %v3356 = vunpack.c.l.b16 %v3219
    %v3357 = vunpack.c.h.b16 %v3219
    %v3358 = vunpack.c.l.b16 %v3220
    %v3359 = vunpack.c.h.b16 %v3220
    %v3360 = vunpack.c.l.b16 %v3221
    %v3361 = vunpack.c.h.b16 %v3221
    %v3362 = vunpack.c.l.b16 %v3222
    %v3363 = vunpack.c.h.b16 %v3222
    %v3364 = vunpack.c.l.b16 %v3223
    %v3365 = vunpack.c.h.b16 %v3223
    %v3366 = vunpack.c.l.b16 %v3224
    %v3367 = vunpack.c.h.b16 %v3224
    %v3368 = vunpack.c.l.b16 %v3225
    %v3369 = vunpack.c.h.b16 %v3225
    %v3370 = vunpack.c.l.b16 %v3226
    %v3371 = vunpack.c.h.b16 %v3226
    %v3372 = vunpack.c.l.b16 %v3227
    %v3373 = vunpack.c.h.b16 %v3227
    %v3374 = vunpack.c.l.b16 %v3228
    %v3375 = vunpack.c.h.b16 %v3228
    %v3376 = vunpack.c.l.b16 %v3229
    %v3377 = vunpack.c.h.b16 %v3229
    %v3378 = vunpack.c.l.b16 %v3230
    %v3379 = vunpack.c.h.b16 %v3230
    %v3380 = vunpack.c.l.b16 %v3231
    %v3381 = vunpack.c.h.b16 %v3231
    %v3382 = vunpack.c.l.b16 %v3232
    %v3383 = vunpack.c.h.b16 %v3232
    %v3384 = vunpack.c.l.b16 %v3233
    %v3385 = vunpack.c.h.b16 %v3233
    %v3386 = vunpack.c.l.b16 %v3234
    %v3387 = vunpack.c.h.b16 %v3234
    %v3388 = vunpack.c.l.b16 %v3235
    %v3389 = vunpack.c.h.b16 %v3235
    %v3390 = vunpack.c.l.b16 %v3236
    %v3391 = vunpack.c.h.b16 %v3236
    %v3392 = vunpack.c.l.b16 %v3237
    %v3393 = vunpack.c.h.b16 %v3237
    %v3394 = vunpack.c.l.b16 %v3238
    %v3395 = vunpack.c.h.b16 %v3238
    %v3396 = vunpack.c.l.b16 %v3239
    %v3397 = vunpack.c.h.b16 %v3239
    %v3398 = vunpack.c.l.b16 %v3240
    %v3399 = vunpack.c.h.b16 %v3240
    %v3400 = vunpack.c.l.b16 %v3241
    %v3401 = vunpack.c.h.b16 %v3241
    %v3402 = vunpack.c.l.b16 %v3242
    %v3403 = vunpack.c.h.b16 %v3242
    %v3404 = vunpack.c.l.b16 %v3243
    %v3405 = vunpack.c.h.b16 %v3243
    %v3406 = vunpack.c.l.b16 %v3244
    %v3407 = vunpack.c.h.b16 %v3244
    %v3408 = vunpack.c.l.b16 %v3245
    %v3409 = vunpack.c.h.b16 %v3245
    %v3410 = vunpack.c.l.b16 %v3246
    %v3411 = vunpack.c.h.b16 %v3246
    %v3412 = vunpack.c.l.b16 %v3247
    %v3413 = vunpack.c.h.b16 %v3247
    %v3414 = vunpack.c.l.b16 %v3248
    %v3415 = vunpack.c.h.b16 %v3248
    %v3416 = vunpack.c.l.b16 %v3249
    %v3417 = vunpack.c.h.b16 %v3249
    %v3418 = vunpack.c.l.b16 %v3250
    %v3419 = vunpack.c.h.b16 %v3250
    %v3420 = vunpack.c.l.b16 %v3251
    %v3421 = vunpack.c.h.b16 %v3251
    %v3422 = vunpack.c.l.b16 %v3252
    %v3423 = vunpack.c.h.b16 %v3252
    %v3424 = vunpack.c.l.b16 %v3253
    %v3425 = vunpack.c.h.b16 %v3253
    %v3426 = vunpack.c.l.b16 %v3254
    %v3427 = vunpack.c.h.b16 %v3254
    %v3428 = vunpack.c.l.b16 %v3255
    %v3429 = vunpack.c.h.b16 %v3255
    %v3430 = vunpack.c.l.b16 %v3256
    %v3431 = vunpack.c.h.b16 %v3256
    %v3432 = vunpack.c.l.b16 %v3257
    %v3433 = vunpack.c.h.b16 %v3257
    %v3434 = vunpack.c.l.b16 %v3258
    %v3435 = vunpack.c.h.b16 %v3258
    %v3436 = vunpack.c.l.b16 %v3259
    %v3437 = vunpack.c.h.b16 %v3259
    %v3438 = vunpack.c.l.b16 %v3260
    %v3439 = vunpack.c.h.b16 %v3260
    %v3440 = vunpack.c.l.b16 %v3261
    %v3441 = vunpack.c.h.b16 %v3261
    %v3442 = vunpack.c.l.b16 %v3262
    %v3443 = vunpack.c.h.b16 %v3262
    %v3444 = vunpack.c.l.b16 %v3263
    %v3445 = vunpack.c.h.b16 %v3263
    %v3446 = vunpack.c.l.b16 %v3264
    %v3447 = vunpack.c.h.b16 %v3264
    %v3448 = vunpack.c.l.b16 %v3265
    %v3449 = vunpack.c.h.b16 %v3265
    %v3450 = vunpack.c.l.b16 %v3266
    %v3451 = vunpack.c.h.b16 %v3266
    %v3452 = vunpack.c.l.b16 %v3267
    %v3453 = vunpack.c.h.b16 %v3267
    %v3454 = vunpack.c.l.b16 %v3268
    %v3455 = vunpack.c.h.b16 %v3268
    %v3456 = vunpack.c.l.b16 %v3269
    %v3457 = vunpack.c.h.b16 %v3269
    %v3458 = vunpack.c.l.b16 %v3270
    %v3459 = vunpack.c.h.b16 %v3270
    %v3460 = vunpack.c.l.b16 %v3271
    %v3461 = vunpack.c.h.b16 %v3271
    %v3462 = vunpack.c.l.b16 %v3272
    %v3463 = vunpack.c.h.b16 %v3272
    %v3464 = vunpack.c.l.b16 %v3273
    %v3465 = vunpack.c.h.b16 %v3273
    %v3466 = vpack.c.b16 %v3342, %v3338
    %v3467 = vpack.c.b16 %v3343, %v3339
    %v3468 = vpack.c.b16 %v3344, %v3340
    %v3469 = vpack.c.b16 %v3345, %v3341
    %v3470 = vpack.c.b16 %v3350, %v3346
    %v3471 = vpack.c.b16 %v3351, %v3347
    %v3472 = vpack.c.b16 %v3352, %v3348
    %v3473 = vpack.c.b16 %v3353, %v3349
    %v3474 = vpack.c.b16 %v3358, %v3354
    %v3475 = vpack.c.b16 %v3359, %v3355
    %v3476 = vpack.c.b16 %v3360, %v3356
    %v3477 = vpack.c.b16 %v3361, %v3357
    %v3478 = vpack.c.b16 %v3366, %v3362
    %v3479 = vpack.c.b16 %v3367, %v3363
    %v3480 = vpack.c.b16 %v3368, %v3364
    %v3481 = vpack.c.b16 %v3369, %v3365
    %v3482 = vpack.c.b16 %v3374, %v3370
    %v3483 = vpack.c.b16 %v3375, %v3371
    %v3484 = vpack.c.b16 %v3376, %v3372
    %v3485 = vpack.c.b16 %v3377, %v3373
    %v3486 = vpack.c.b16 %v3382, %v3378
    %v3487 = vpack.c.b16 %v3383, %v3379
    %v3488 = vpack.c.b16 %v3384, %v3380
    %v3489 = vpack.c.b16 %v3385, %v3381
    %v3490 = vpack.c.b16 %v3390, %v3386
    %v3491 = vpack.c.b16 %v3391, %v3387
    %v3492 = vpack.c.b16 %v3392, %v3388
    %v3493 = vpack.c.b16 %v3393, %v3389
    %v3494 = vpack.c.b16 %v3398, %v3394
    %v3495 = vpack.c.b16 %v3399, %v3395
    %v3496 = vpack.c.b16 %v3400, %v3396
    %v3497 = vpack.c.b16 %v3401, %v3397
    %v3498 = vpack.c.b16 %v3406, %v3402
    %v3499 = vpack.c.b16 %v3407, %v3403
    %v3500 = vpack.c.b16 %v3408, %v3404
    %v3501 = vpack.c.b16 %v3409, %v3405
    %v3502 = vpack.c.b16 %v3414, %v3410
    %v3503 = vpack.c.b16 %v3415, %v3411
    %v3504 = vpack.c.b16 %v3416, %v3412
    %v3505 = vpack.c.b16 %v3417, %v3413
    %v3506 = vpack.c.b16 %v3422, %v3418
    %v3507 = vpack.c.b16 %v3423, %v3419
    %v3508 = vpack.c.b16 %v3424, %v3420
    %v3509 = vpack.c.b16 %v3425, %v3421
    %v3510 = vpack.c.b16 %v3430, %v3426
    %v3511 = vpack.c.b16 %v3431, %v3427
    %v3512 = vpack.c.b16 %v3432, %v3428
    %v3513 = vpack.c.b16 %v3433, %v3429
    %v3514 = vpack.c.b16 %v3438, %v3434
    %v3515 = vpack.c.b16 %v3439, %v3435
    %v3516 = vpack.c.b16 %v3440, %v3436
    %v3517 = vpack.c.b16 %v3441, %v3437
    %v3518 = vpack.c.b16 %v3446, %v3442
    %v3519 = vpack.c.b16 %v3447, %v3443
    %v3520 = vpack.c.b16 %v3448, %v3444
    %v3521 = vpack.c.b16 %v3449, %v3445
    %v3522 = vpack.c.b16 %v3454, %v3450
    %v3523 = vpack.c.b16 %v3455, %v3451
    %v3524 = vpack.c.b16 %v3456, %v3452
    %v3525 = vpack.c.b16 %v3457, %v3453
    %v3526 = vpack.c.b16 %v3462, %v3458
    %v3527 = vpack.c.b16 %v3463, %v3459
    %v3528 = vpack.c.b16 %v3464, %v3460
    %v3529 = vpack.c.b16 %v3465, %v3461
    %3594 = vmatprep.subr.bf16.mxu0 %v3467
    %3595 = vmatpush1.bf16.msra.mxu0 %v3466
    %3596 = vmatprep.subr.bf16.mxu0 %v3471
    %3597 = vmatpush1.bf16.msra.mxu0 %v3470
    %3598 = vmatprep.subr.bf16.mxu0 %v3475
    %3599 = vmatpush1.bf16.msra.mxu0 %v3474
    %3600 = vmatprep.subr.bf16.mxu0 %v3479
    %3601 = vmatpush1.bf16.msra.mxu0 %v3478
    %3602 = vmatprep.subr.bf16.mxu0 %v3483
    %3603 = vmatpush1.bf16.msra.mxu0 %v3482
    %3604 = vmatprep.subr.bf16.mxu0 %v3487
    %3605 = vmatpush1.bf16.msra.mxu0 %v3486
    %3606 = vmatprep.subr.bf16.mxu0 %v3491
    %3607 = vmatpush1.bf16.msra.mxu0 %v3490
    %3608 = vmatprep.subr.bf16.mxu0 %v3495
    %3609 = vmatpush1.bf16.msra.mxu0 %v3494
    %3610 = vmatprep.subr.bf16.mxu0 %v3499
    %3611 = vmatpush1.bf16.msra.mxu0 %v3498
    %3612 = vmatprep.subr.bf16.mxu0 %v3503
    %3613 = vmatpush1.bf16.msra.mxu0 %v3502
    %3614 = vmatprep.subr.bf16.mxu0 %v3507
    %3615 = vmatpush1.bf16.msra.mxu0 %v3506
    %3616 = vmatprep.subr.bf16.mxu0 %v3511
    %3617 = vmatpush1.bf16.msra.mxu0 %v3510
    %3618 = vmatprep.subr.bf16.mxu0 %v3515
    %3619 = vmatpush1.bf16.msra.mxu0 %v3514
    %3620 = vmatprep.subr.bf16.mxu0 %v3519
    %3621 = vmatpush1.bf16.msra.mxu0 %v3518
    %3622 = vmatprep.subr.bf16.mxu0 %v3523
    %3623 = vmatpush1.bf16.msra.mxu0 %v3522
    %3624 = vmatprep.subr.bf16.mxu0 %v3527
    %3625 = vmatpush1.bf16.msra.mxu0 %v3526
    %3626 = vmatprep.mubr.bf16.mxu0 %v3209
    %3627 = vmatmul.mubr.bf16.gmra.mrb[0].mxu0 %v3208
    %v3628 = vpop.f32.mrb[0].mxu0
    %v3629 = vadd.f32 %v855, %v3628
    %v3630 = vpop.f32.mrb[0].mxu0
    %v3631 = vadd.f32 %v859, %v3630
    %v3632 = vpop.f32.mrb[0].mxu0
    %v3633 = vpop.f32.mrb[0].mxu0
    %3634 = vdwg.mxu0
    %3635 = vmatprep.subr.bf16.mxu0 %v3469
    %3636 = vmatpush1.bf16.msra.mxu0 %v3468
    %3637 = vmatprep.subr.bf16.mxu0 %v3473
    %3638 = vmatpush1.bf16.msra.mxu0 %v3472
    %3639 = vmatprep.subr.bf16.mxu0 %v3477
    %3640 = vmatpush1.bf16.msra.mxu0 %v3476
    %3641 = vmatprep.subr.bf16.mxu0 %v3481
    %3642 = vmatpush1.bf16.msra.mxu0 %v3480
    %3643 = vmatprep.subr.bf16.mxu0 %v3485
    %3644 = vmatpush1.bf16.msra.mxu0 %v3484
    %3645 = vmatprep.subr.bf16.mxu0 %v3489
    %3646 = vmatpush1.bf16.msra.mxu0 %v3488
    %3647 = vmatprep.subr.bf16.mxu0 %v3493
    %3648 = vmatpush1.bf16.msra.mxu0 %v3492
    %3649 = vmatprep.subr.bf16.mxu0 %v3497
    %3650 = vmatpush1.bf16.msra.mxu0 %v3496
    %3651 = vmatprep.subr.bf16.mxu0 %v3501
    %3652 = vmatpush1.bf16.msra.mxu0 %v3500
    %3653 = vmatprep.subr.bf16.mxu0 %v3505
    %3654 = vmatpush1.bf16.msra.mxu0 %v3504
    %3655 = vmatprep.subr.bf16.mxu0 %v3509
    %3656 = vmatpush1.bf16.msra.mxu0 %v3508
    %3657 = vmatprep.subr.bf16.mxu0 %v3513
    %3658 = vmatpush1.bf16.msra.mxu0 %v3512
    %3659 = vmatprep.subr.bf16.mxu0 %v3517
    %3660 = vmatpush1.bf16.msra.mxu0 %v3516
    %3661 = vmatprep.subr.bf16.mxu0 %v3521
    %3662 = vmatpush1.bf16.msra.mxu0 %v3520
    %3663 = vmatprep.subr.bf16.mxu0 %v3525
    %3664 = vmatpush1.bf16.msra.mxu0 %v3524
    %3665 = vmatprep.subr.bf16.mxu0 %v3529
    %3666 = vmatpush1.bf16.msra.mxu0 %v3528
    %3667 = vmatprep.mubr.bf16.mxu0 %v3209
    %3668 = vmatmul.mubr.bf16.gmra.mrb[0].mxu0 %v3208
    %v3669 = vpop.f32.mrb[0].mxu0
    %v3670 = vadd.f32 %v863, %v3669
    %v3671 = vpop.f32.mrb[0].mxu0
    %v3672 = vadd.f32 %v867, %v3671
    %v3673 = vpop.f32.mrb[0].mxu0
    %v3674 = vpop.f32.mrb[0].mxu0
    %3675 = vdwg.mxu0
    %v3676 = vxor.u32 %v3629, 2147483648
    %v3677 = vmul.f32 %v3676, 1.442695
    %v3678 = vpow.pop %v3677
    %v3679 = vadd.f32 %v3678, 1.0
    %v3680 = vrcp.pop %v3679
    %v3681 = vmul.f32 1.0, %v3680
    %v3682 = vxor.u32 %v3631, 2147483648
    %v3683 = vmul.f32 %v3682, 1.442695
    %v3684 = vpow.pop %v3683
    %v3685 = vadd.f32 %v3684, 1.0
    %v3686 = vrcp.pop %v3685
    %v3687 = vmul.f32 1.0, %v3686
    %v3688 = vtanh.pop %v3670
    %v3689 = vxor.u32 %v3672, 2147483648
    %v3690 = vmul.f32 %v3689, 1.442695
    %v3691 = vpow.pop %v3690
    %v3692 = vadd.f32 %v3691, 1.0
    %v3693 = vrcp.pop %v3692
    %v3694 = vmul.f32 1.0, %v3693
    %v3695 = vmul.f32 %v3687, %v2896
    %v3696 = vmul.f32 %v3681, %v3688
    %v3697 = vadd.f32 %v3695, %v3696
    %v3698 = vtanh.pop %v3697
    %v3699 = vmul.f32 %v3694, %v3698
    %s3700 = scalar_lea.vmem [#allocation3], 24
    %3701 = vst [vmem:[%s3700] sm:$0xff] %v3699
    %s3702 = scalar_lea.vmem [#allocation2], 128
    %v3703 = vld [vmem:[%s3702] sm:$0xff]
    %v3704 = vld [vmem:[%s3702 + $0x8] sm:$0xff]
    %v3705 = vld [vmem:[%s3702 + $0x10] sm:$0xff]
    %v3706 = vld [vmem:[%s3702 + $0x18] sm:$0xff]
    %v3707 = vld [vmem:[#allocation4] sm:$0xff]
    %v3708 = vld [vmem:[#allocation4 + $0x8] sm:$0xff]
    %v3709 = vld [vmem:[#allocation4 + $0x10] sm:$0xff]
    %v3710 = vld [vmem:[#allocation4 + $0x18] sm:$0xff]
    %v3711 = vld [vmem:[#allocation4 + $0x20] sm:$0xff]
    %v3712 = vld [vmem:[#allocation4 + $0x28] sm:$0xff]
    %v3713 = vld [vmem:[#allocation4 + $0x30] sm:$0xff]
    %v3714 = vld [vmem:[#allocation4 + $0x38] sm:$0xff]
    %v3715 = vld [vmem:[#allocation4 + $0x40] sm:$0xff]
    %v3716 = vld [vmem:[#allocation4 + $0x48] sm:$0xff]
    %v3717 = vld [vmem:[#allocation4 + $0x50] sm:$0xff]
    %v3718 = vld [vmem:[#allocation4 + $0x58] sm:$0xff]
    %v3719 = vld [vmem:[#allocation4 + $0x60] sm:$0xff]
    %v3720 = vld [vmem:[#allocation4 + $0x68] sm:$0xff]
    %v3721 = vld [vmem:[#allocation4 + $0x70] sm:$0xff]
    %v3722 = vld [vmem:[#allocation4 + $0x78] sm:$0xff]
    %v3723 = vld [vmem:[#allocation4 + $0x80] sm:$0xff]
    %v3724 = vld [vmem:[#allocation4 + $0x88] sm:$0xff]
    %v3725 = vld [vmem:[#allocation4 + $0x90] sm:$0xff]
    %v3726 = vld [vmem:[#allocation4 + $0x98] sm:$0xff]
    %v3727 = vld [vmem:[#allocation4 + $0xa0] sm:$0xff]
    %v3728 = vld [vmem:[#allocation4 + $0xa8] sm:$0xff]
    %v3729 = vld [vmem:[#allocation4 + $0xb0] sm:$0xff]
    %v3730 = vld [vmem:[#allocation4 + $0xb8] sm:$0xff]
    %v3731 = vld [vmem:[#allocation4 + $0xc0] sm:$0xff]
    %v3732 = vld [vmem:[#allocation4 + $0xc8] sm:$0xff]
    %v3733 = vld [vmem:[#allocation4 + $0xd0] sm:$0xff]
    %v3734 = vld [vmem:[#allocation4 + $0xd8] sm:$0xff]
    %v3735 = vld [vmem:[#allocation4 + $0xe0] sm:$0xff]
    %v3736 = vld [vmem:[#allocation4 + $0xe8] sm:$0xff]
    %v3737 = vld [vmem:[#allocation4 + $0xf0] sm:$0xff]
    %v3738 = vld [vmem:[#allocation4 + $0xf8] sm:$0xff]
    %v3771 = vunpack.c.l.b16 %v3707
    %v3772 = vunpack.c.h.b16 %v3707
    %v3773 = vunpack.c.l.b16 %v3708
    %v3774 = vunpack.c.h.b16 %v3708
    %v3775 = vunpack.c.l.b16 %v3709
    %v3776 = vunpack.c.h.b16 %v3709
    %v3777 = vunpack.c.l.b16 %v3710
    %v3778 = vunpack.c.h.b16 %v3710
    %v3779 = vunpack.c.l.b16 %v3711
    %v3780 = vunpack.c.h.b16 %v3711
    %v3781 = vunpack.c.l.b16 %v3712
    %v3782 = vunpack.c.h.b16 %v3712
    %v3783 = vunpack.c.l.b16 %v3713
    %v3784 = vunpack.c.h.b16 %v3713
    %v3785 = vunpack.c.l.b16 %v3714
    %v3786 = vunpack.c.h.b16 %v3714
    %v3787 = vunpack.c.l.b16 %v3715
    %v3788 = vunpack.c.h.b16 %v3715
    %v3789 = vunpack.c.l.b16 %v3716
    %v3790 = vunpack.c.h.b16 %v3716
    %v3791 = vunpack.c.l.b16 %v3717
    %v3792 = vunpack.c.h.b16 %v3717
    %v3793 = vunpack.c.l.b16 %v3718
    %v3794 = vunpack.c.h.b16 %v3718
    %v3795 = vunpack.c.l.b16 %v3719
    %v3796 = vunpack.c.h.b16 %v3719
    %v3797 = vunpack.c.l.b16 %v3720
    %v3798 = vunpack.c.h.b16 %v3720
    %v3799 = vunpack.c.l.b16 %v3721
    %v3800 = vunpack.c.h.b16 %v3721
    %v3801 = vunpack.c.l.b16 %v3722
    %v3802 = vunpack.c.h.b16 %v3722
    %v3803 = vunpack.c.l.b16 %v3723
    %v3804 = vunpack.c.h.b16 %v3723
    %v3805 = vunpack.c.l.b16 %v3724
    %v3806 = vunpack.c.h.b16 %v3724
    %v3807 = vunpack.c.l.b16 %v3725
    %v3808 = vunpack.c.h.b16 %v3725
    %v3809 = vunpack.c.l.b16 %v3726
    %v3810 = vunpack.c.h.b16 %v3726
    %v3811 = vunpack.c.l.b16 %v3727
    %v3812 = vunpack.c.h.b16 %v3727
    %v3813 = vunpack.c.l.b16 %v3728
    %v3814 = vunpack.c.h.b16 %v3728
    %v3815 = vunpack.c.l.b16 %v3729
    %v3816 = vunpack.c.h.b16 %v3729
    %v3817 = vunpack.c.l.b16 %v3730
    %v3818 = vunpack.c.h.b16 %v3730
    %v3819 = vunpack.c.l.b16 %v3731
    %v3820 = vunpack.c.h.b16 %v3731
    %v3821 = vunpack.c.l.b16 %v3732
    %v3822 = vunpack.c.h.b16 %v3732
    %v3823 = vunpack.c.l.b16 %v3733
    %v3824 = vunpack.c.h.b16 %v3733
    %v3825 = vunpack.c.l.b16 %v3734
    %v3826 = vunpack.c.h.b16 %v3734
    %v3827 = vunpack.c.l.b16 %v3735
    %v3828 = vunpack.c.h.b16 %v3735
    %v3829 = vunpack.c.l.b16 %v3736
    %v3830 = vunpack.c.h.b16 %v3736
    %v3831 = vunpack.c.l.b16 %v3737
    %v3832 = vunpack.c.h.b16 %v3737
    %v3833 = vunpack.c.l.b16 %v3738
    %v3834 = vunpack.c.h.b16 %v3738
    %v3835 = vpack.c.b16 %v3775, %v3771
    %v3836 = vpack.c.b16 %v3776, %v3772
    %v3837 = vpack.c.b16 %v3777, %v3773
    %v3838 = vpack.c.b16 %v3778, %v3774
    %v3839 = vpack.c.b16 %v3783, %v3779
    %v3840 = vpack.c.b16 %v3784, %v3780
    %v3841 = vpack.c.b16 %v3785, %v3781
    %v3842 = vpack.c.b16 %v3786, %v3782
    %v3843 = vpack.c.b16 %v3791, %v3787
    %v3844 = vpack.c.b16 %v3792, %v3788
    %v3845 = vpack.c.b16 %v3793, %v3789
    %v3846 = vpack.c.b16 %v3794, %v3790
    %v3847 = vpack.c.b16 %v3799, %v3795
    %v3848 = vpack.c.b16 %v3800, %v3796
    %v3849 = vpack.c.b16 %v3801, %v3797
    %v3850 = vpack.c.b16 %v3802, %v3798
    %v3851 = vpack.c.b16 %v3807, %v3803
    %v3852 = vpack.c.b16 %v3808, %v3804
    %v3853 = vpack.c.b16 %v3809, %v3805
    %v3854 = vpack.c.b16 %v3810, %v3806
    %v3855 = vpack.c.b16 %v3815, %v3811
    %v3856 = vpack.c.b16 %v3816, %v3812
    %v3857 = vpack.c.b16 %v3817, %v3813
    %v3858 = vpack.c.b16 %v3818, %v3814
    %v3859 = vpack.c.b16 %v3823, %v3819
    %v3860 = vpack.c.b16 %v3824, %v3820
    %v3861 = vpack.c.b16 %v3825, %v3821
    %v3862 = vpack.c.b16 %v3826, %v3822
    %v3863 = vpack.c.b16 %v3831, %v3827
    %v3864 = vpack.c.b16 %v3832, %v3828
    %v3865 = vpack.c.b16 %v3833, %v3829
    %v3866 = vpack.c.b16 %v3834, %v3830
    %3899 = vmatprep.subr.bf16.mxu0 %v3836
    %3900 = vmatpush1.bf16.msra.mxu0 %v3835
    %3901 = vmatprep.subr.bf16.mxu0 %v3840
    %3902 = vmatpush1.bf16.msra.mxu0 %v3839
    %3903 = vmatprep.subr.bf16.mxu0 %v3844
    %3904 = vmatpush1.bf16.msra.mxu0 %v3843
    %3905 = vmatprep.subr.bf16.mxu0 %v3848
    %3906 = vmatpush1.bf16.msra.mxu0 %v3847
    %3907 = vmatprep.subr.bf16.mxu0 %v3852
    %3908 = vmatpush1.bf16.msra.mxu0 %v3851
    %3909 = vmatprep.subr.bf16.mxu0 %v3856
    %3910 = vmatpush1.bf16.msra.mxu0 %v3855
    %3911 = vmatprep.subr.bf16.mxu0 %v3860
    %3912 = vmatpush1.bf16.msra.mxu0 %v3859
    %3913 = vmatprep.subr.bf16.mxu0 %v3864
    %3914 = vmatpush1.bf16.msra.mxu0 %v3863
    %3915 = vmatprep.subr.bf16.mxu0 0
    %3916 = vmatpush1.bf16.msra.mxu0 0
    %3917 = vmatprep.subr.bf16.mxu0 0
    %3918 = vmatpush1.bf16.msra.mxu0 0
    %3919 = vmatprep.subr.bf16.mxu0 0
    %3920 = vmatpush1.bf16.msra.mxu0 0
    %3921 = vmatprep.subr.bf16.mxu0 0
    %3922 = vmatpush1.bf16.msra.mxu0 0
    %3923 = vmatprep.subr.bf16.mxu0 0
    %3924 = vmatpush1.bf16.msra.mxu0 0
    %3925 = vmatprep.subr.bf16.mxu0 0
    %3926 = vmatpush1.bf16.msra.mxu0 0
    %3927 = vmatprep.subr.bf16.mxu0 0
    %3928 = vmatpush1.bf16.msra.mxu0 0
    %3929 = vmatprep.subr.bf16.mxu0 0
    %3930 = vmatpush1.bf16.msra.mxu0 0
    %3931 = vmatprep.mubr.bf16.mxu0 0
    %3932 = vmatmul.mubr.bf16.gmra.mrb[0].mxu0 %v3208
    %v3933 = vpop.f32.mrb[0].mxu0
    %v3934 = vadd.f32 0.0, %v3933
    %v3935 = vpop.f32.mrb[0].mxu0
    %v3936 = vadd.f32 0.0, %v3935
    %v3937 = vpop.f32.mrb[0].mxu0
    %v3938 = vpop.f32.mrb[0].mxu0
    %3939 = vdwg.mxu0
    %3940 = vmatprep.subr.bf16.mxu0 %v3838
    %3941 = vmatpush1.bf16.msra.mxu0 %v3837
    %3942 = vmatprep.subr.bf16.mxu0 %v3842
    %3943 = vmatpush1.bf16.msra.mxu0 %v3841
    %3944 = vmatprep.subr.bf16.mxu0 %v3846
    %3945 = vmatpush1.bf16.msra.mxu0 %v3845
    %3946 = vmatprep.subr.bf16.mxu0 %v3850
    %3947 = vmatpush1.bf16.msra.mxu0 %v3849
    %3948 = vmatprep.subr.bf16.mxu0 %v3854
    %3949 = vmatpush1.bf16.msra.mxu0 %v3853
    %3950 = vmatprep.subr.bf16.mxu0 %v3858
    %3951 = vmatpush1.bf16.msra.mxu0 %v3857
    %3952 = vmatprep.subr.bf16.mxu0 %v3862
    %3953 = vmatpush1.bf16.msra.mxu0 %v3861
    %3954 = vmatprep.subr.bf16.mxu0 %v3866
    %3955 = vmatpush1.bf16.msra.mxu0 %v3865
    %3956 = vmatprep.subr.bf16.mxu0 0
    %3957 = vmatpush1.bf16.msra.mxu0 0
    %3958 = vmatprep.subr.bf16.mxu0 0
    %3959 = vmatpush1.bf16.msra.mxu0 0
    %3960 = vmatprep.subr.bf16.mxu0 0
    %3961 = vmatpush1.bf16.msra.mxu0 0
    %3962 = vmatprep.subr.bf16.mxu0 0
    %3963 = vmatpush1.bf16.msra.mxu0 0
    %3964 = vmatprep.subr.bf16.mxu0 0
    %3965 = vmatpush1.bf16.msra.mxu0 0
    %3966 = vmatprep.subr.bf16.mxu0 0
    %3967 = vmatpush1.bf16.msra.mxu0 0
    %3968 = vmatprep.subr.bf16.mxu0 0
    %3969 = vmatpush1.bf16.msra.mxu0 0
    %3970 = vmatprep.subr.bf16.mxu0 0
    %3971 = vmatpush1.bf16.msra.mxu0 0
    %3972 = vmatprep.mubr.bf16.mxu0 0
    %3973 = vmatmul.mubr.bf16.gmra.mrb[0].mxu0 %v3208
    %v3974 = vpop.f32.mrb[0].mxu0
    %v3975 = vadd.f32 0.0, %v3974
    %v3976 = vpop.f32.mrb[0].mxu0
    %v3977 = vadd.f32 0.0, %v3976
    %v3978 = vpop.f32.mrb[0].mxu0
    %v3979 = vpop.f32.mrb[0].mxu0
    %3980 = vdwg.mxu0
    %v3981 = vadd.f32 %v3703, %v3934
    %v3982 = vadd.f32 %v3704, %v3936
    %v3983 = vadd.f32 %v3705, %v3975
    %v3984 = vadd.f32 %v3706, %v3977
    %v3985 = vxor.u32 %v3981, 2147483648
    %v3986 = vmul.f32 %v3985, 1.442695
    %v3987 = vpow.pop %v3986
    %v3988 = vadd.f32 %v3987, 1.0
    %v3989 = vrcp.pop %v3988
    %v3990 = vmul.f32 1.0, %v3989
    %v3991 = vxor.u32 %v3982, 2147483648
    %v3992 = vmul.f32 %v3991, 1.442695
    %v3993 = vpow.pop %v3992
    %v3994 = vadd.f32 %v3993, 1.0
    %v3995 = vrcp.pop %v3994
    %v3996 = vmul.f32 1.0, %v3995
    %v3997 = vtanh.pop %v3983
    %v3998 = vxor.u32 %v3984, 2147483648
    %v3999 = vmul.f32 %v3998, 1.442695
    %v4000 = vpow.pop %v3999
    %v4001 = vadd.f32 %v4000, 1.0
    %v4002 = vrcp.pop %v4001
    %v4003 = vmul.f32 1.0, %v4002
    %v4004 = vmul.f32 %v3996, %v3205
    %v4005 = vmul.f32 %v3990, %v3997
    %v4006 = vadd.f32 %v4004, %v4005
    %v4007 = vtanh.pop %v4006
    %v4008 = vmul.f32 %v4003, %v4007
    %v4009 = vpack.c.bf16 %v4008, %v4008
    %v4010 = vpack.c.bf16 %v3699, %v3699
    %v4011 = vld [vmem:[#allocation6] sm:$0xff]
    %v4012 = vld [vmem:[#allocation6 + $0x8] sm:$0xff]
    %v4013 = vld [vmem:[#allocation6 + $0x10] sm:$0xff]
    %v4014 = vld [vmem:[#allocation6 + $0x18] sm:$0xff]
    %v4015 = vld [vmem:[#allocation6 + $0x20] sm:$0xff]
    %v4016 = vld [vmem:[#allocation6 + $0x28] sm:$0xff]
    %v4017 = vld [vmem:[#allocation6 + $0x30] sm:$0xff]
    %v4018 = vld [vmem:[#allocation6 + $0x38] sm:$0xff]
    %v4019 = vld [vmem:[#allocation6 + $0x40] sm:$0xff]
    %v4020 = vld [vmem:[#allocation6 + $0x48] sm:$0xff]
    %v4021 = vld [vmem:[#allocation6 + $0x50] sm:$0xff]
    %v4022 = vld [vmem:[#allocation6 + $0x58] sm:$0xff]
    %v4023 = vld [vmem:[#allocation6 + $0x60] sm:$0xff]
    %v4024 = vld [vmem:[#allocation6 + $0x68] sm:$0xff]
    %v4025 = vld [vmem:[#allocation6 + $0x70] sm:$0xff]
    %v4026 = vld [vmem:[#allocation6 + $0x78] sm:$0xff]
    %v4027 = vld [vmem:[#allocation6 + $0x80] sm:$0xff]
    %v4028 = vld [vmem:[#allocation6 + $0x88] sm:$0xff]
    %v4029 = vld [vmem:[#allocation6 + $0x90] sm:$0xff]
    %v4030 = vld [vmem:[#allocation6 + $0x98] sm:$0xff]
    %v4031 = vld [vmem:[#allocation6 + $0xa0] sm:$0xff]
    %v4032 = vld [vmem:[#allocation6 + $0xa8] sm:$0xff]
    %v4033 = vld [vmem:[#allocation6 + $0xb0] sm:$0xff]
    %v4034 = vld [vmem:[#allocation6 + $0xb8] sm:$0xff]
    %v4035 = vld [vmem:[#allocation6 + $0xc0] sm:$0xff]
    %v4036 = vld [vmem:[#allocation6 + $0xc8] sm:$0xff]
    %v4037 = vld [vmem:[#allocation6 + $0xd0] sm:$0xff]
    %v4038 = vld [vmem:[#allocation6 + $0xd8] sm:$0xff]
    %v4039 = vld [vmem:[#allocation6 + $0xe0] sm:$0xff]
    %v4040 = vld [vmem:[#allocation6 + $0xe8] sm:$0xff]
    %v4041 = vld [vmem:[#allocation6 + $0xf0] sm:$0xff]
    %v4042 = vld [vmem:[#allocation6 + $0xf8] sm:$0xff]
    %v4043 = vld [vmem:[#allocation6 + $0x100] sm:$0xff]
    %v4044 = vld [vmem:[#allocation6 + $0x108] sm:$0xff]
    %v4045 = vld [vmem:[#allocation6 + $0x110] sm:$0xff]
    %v4046 = vld [vmem:[#allocation6 + $0x118] sm:$0xff]
    %v4047 = vld [vmem:[#allocation6 + $0x120] sm:$0xff]
    %v4048 = vld [vmem:[#allocation6 + $0x128] sm:$0xff]
    %v4049 = vld [vmem:[#allocation6 + $0x130] sm:$0xff]
    %v4050 = vld [vmem:[#allocation6 + $0x138] sm:$0xff]
    %v4051 = vld [vmem:[#allocation6 + $0x140] sm:$0xff]
    %v4052 = vld [vmem:[#allocation6 + $0x148] sm:$0xff]
    %v4053 = vld [vmem:[#allocation6 + $0x150] sm:$0xff]
    %v4054 = vld [vmem:[#allocation6 + $0x158] sm:$0xff]
    %v4055 = vld [vmem:[#allocation6 + $0x160] sm:$0xff]
    %v4056 = vld [vmem:[#allocation6 + $0x168] sm:$0xff]
    %v4057 = vld [vmem:[#allocation6 + $0x170] sm:$0xff]
    %v4058 = vld [vmem:[#allocation6 + $0x178] sm:$0xff]
    %v4059 = vld [vmem:[#allocation6 + $0x180] sm:$0xff]
    %v4060 = vld [vmem:[#allocation6 + $0x188] sm:$0xff]
    %v4061 = vld [vmem:[#allocation6 + $0x190] sm:$0xff]
    %v4062 = vld [vmem:[#allocation6 + $0x198] sm:$0xff]
    %v4063 = vld [vmem:[#allocation6 + $0x1a0] sm:$0xff]
    %v4064 = vld [vmem:[#allocation6 + $0x1a8] sm:$0xff]
    %v4065 = vld [vmem:[#allocation6 + $0x1b0] sm:$0xff]
    %v4066 = vld [vmem:[#allocation6 + $0x1b8] sm:$0xff]
    %v4067 = vld [vmem:[#allocation6 + $0x1c0] sm:$0xff]
    %v4068 = vld [vmem:[#allocation6 + $0x1c8] sm:$0xff]
    %v4069 = vld [vmem:[#allocation6 + $0x1d0] sm:$0xff]
    %v4070 = vld [vmem:[#allocation6 + $0x1d8] sm:$0xff]
    %v4071 = vld [vmem:[#allocation6 + $0x1e0] sm:$0xff]
    %v4072 = vld [vmem:[#allocation6 + $0x1e8] sm:$0xff]
    %v4073 = vld [vmem:[#allocation6 + $0x1f0] sm:$0xff]
    %v4074 = vld [vmem:[#allocation6 + $0x1f8] sm:$0xff]
    %v4139 = vunpack.c.l.b16 %v4011
    %v4140 = vunpack.c.h.b16 %v4011
    %v4141 = vunpack.c.l.b16 %v4012
    %v4142 = vunpack.c.h.b16 %v4012
    %v4143 = vunpack.c.l.b16 %v4013
    %v4144 = vunpack.c.h.b16 %v4013
    %v4145 = vunpack.c.l.b16 %v4014
    %v4146 = vunpack.c.h.b16 %v4014
    %v4147 = vunpack.c.l.b16 %v4015
    %v4148 = vunpack.c.h.b16 %v4015
    %v4149 = vunpack.c.l.b16 %v4016
    %v4150 = vunpack.c.h.b16 %v4016
    %v4151 = vunpack.c.l.b16 %v4017
    %v4152 = vunpack.c.h.b16 %v4017
    %v4153 = vunpack.c.l.b16 %v4018
    %v4154 = vunpack.c.h.b16 %v4018
    %v4155 = vunpack.c.l.b16 %v4019
    %v4156 = vunpack.c.h.b16 %v4019
    %v4157 = vunpack.c.l.b16 %v4020
    %v4158 = vunpack.c.h.b16 %v4020
    %v4159 = vunpack.c.l.b16 %v4021
    %v4160 = vunpack.c.h.b16 %v4021
    %v4161 = vunpack.c.l.b16 %v4022
    %v4162 = vunpack.c.h.b16 %v4022
    %v4163 = vunpack.c.l.b16 %v4023
    %v4164 = vunpack.c.h.b16 %v4023
    %v4165 = vunpack.c.l.b16 %v4024
    %v4166 = vunpack.c.h.b16 %v4024
    %v4167 = vunpack.c.l.b16 %v4025
    %v4168 = vunpack.c.h.b16 %v4025
    %v4169 = vunpack.c.l.b16 %v4026
    %v4170 = vunpack.c.h.b16 %v4026
    %v4171 = vunpack.c.l.b16 %v4027
    %v4172 = vunpack.c.h.b16 %v4027
    %v4173 = vunpack.c.l.b16 %v4028
    %v4174 = vunpack.c.h.b16 %v4028
    %v4175 = vunpack.c.l.b16 %v4029
    %v4176 = vunpack.c.h.b16 %v4029
    %v4177 = vunpack.c.l.b16 %v4030
    %v4178 = vunpack.c.h.b16 %v4030
    %v4179 = vunpack.c.l.b16 %v4031
    %v4180 = vunpack.c.h.b16 %v4031
    %v4181 = vunpack.c.l.b16 %v4032
    %v4182 = vunpack.c.h.b16 %v4032
    %v4183 = vunpack.c.l.b16 %v4033
    %v4184 = vunpack.c.h.b16 %v4033
    %v4185 = vunpack.c.l.b16 %v4034
    %v4186 = vunpack.c.h.b16 %v4034
    %v4187 = vunpack.c.l.b16 %v4035
    %v4188 = vunpack.c.h.b16 %v4035
    %v4189 = vunpack.c.l.b16 %v4036
    %v4190 = vunpack.c.h.b16 %v4036
    %v4191 = vunpack.c.l.b16 %v4037
    %v4192 = vunpack.c.h.b16 %v4037
    %v4193 = vunpack.c.l.b16 %v4038
    %v4194 = vunpack.c.h.b16 %v4038
    %v4195 = vunpack.c.l.b16 %v4039
    %v4196 = vunpack.c.h.b16 %v4039
    %v4197 = vunpack.c.l.b16 %v4040
    %v4198 = vunpack.c.h.b16 %v4040
    %v4199 = vunpack.c.l.b16 %v4041
    %v4200 = vunpack.c.h.b16 %v4041
    %v4201 = vunpack.c.l.b16 %v4042
    %v4202 = vunpack.c.h.b16 %v4042
    %v4203 = vunpack.c.l.b16 %v4043
    %v4204 = vunpack.c.h.b16 %v4043
    %v4205 = vunpack.c.l.b16 %v4044
    %v4206 = vunpack.c.h.b16 %v4044
    %v4207 = vunpack.c.l.b16 %v4045
    %v4208 = vunpack.c.h.b16 %v4045
    %v4209 = vunpack.c.l.b16 %v4046
    %v4210 = vunpack.c.h.b16 %v4046
    %v4211 = vunpack.c.l.b16 %v4047
    %v4212 = vunpack.c.h.b16 %v4047
    %v4213 = vunpack.c.l.b16 %v4048
    %v4214 = vunpack.c.h.b16 %v4048
    %v4215 = vunpack.c.l.b16 %v4049
    %v4216 = vunpack.c.h.b16 %v4049
    %v4217 = vunpack.c.l.b16 %v4050
    %v4218 = vunpack.c.h.b16 %v4050
    %v4219 = vunpack.c.l.b16 %v4051
    %v4220 = vunpack.c.h.b16 %v4051
    %v4221 = vunpack.c.l.b16 %v4052
    %v4222 = vunpack.c.h.b16 %v4052
    %v4223 = vunpack.c.l.b16 %v4053
    %v4224 = vunpack.c.h.b16 %v4053
    %v4225 = vunpack.c.l.b16 %v4054
    %v4226 = vunpack.c.h.b16 %v4054
    %v4227 = vunpack.c.l.b16 %v4055
    %v4228 = vunpack.c.h.b16 %v4055
    %v4229 = vunpack.c.l.b16 %v4056
    %v4230 = vunpack.c.h.b16 %v4056
    %v4231 = vunpack.c.l.b16 %v4057
    %v4232 = vunpack.c.h.b16 %v4057
    %v4233 = vunpack.c.l.b16 %v4058
    %v4234 = vunpack.c.h.b16 %v4058
    %v4235 = vunpack.c.l.b16 %v4059
    %v4236 = vunpack.c.h.b16 %v4059
    %v4237 = vunpack.c.l.b16 %v4060
    %v4238 = vunpack.c.h.b16 %v4060
    %v4239 = vunpack.c.l.b16 %v4061
    %v4240 = vunpack.c.h.b16 %v4061
    %v4241 = vunpack.c.l.b16 %v4062
    %v4242 = vunpack.c.h.b16 %v4062
    %v4243 = vunpack.c.l.b16 %v4063
    %v4244 = vunpack.c.h.b16 %v4063
    %v4245 = vunpack.c.l.b16 %v4064
    %v4246 = vunpack.c.h.b16 %v4064
    %v4247 = vunpack.c.l.b16 %v4065
    %v4248 = vunpack.c.h.b16 %v4065
    %v4249 = vunpack.c.l.b16 %v4066
    %v4250 = vunpack.c.h.b16 %v4066
    %v4251 = vunpack.c.l.b16 %v4067
    %v4252 = vunpack.c.h.b16 %v4067
    %v4253 = vunpack.c.l.b16 %v4068
    %v4254 = vunpack.c.h.b16 %v4068
    %v4255 = vunpack.c.l.b16 %v4069
    %v4256 = vunpack.c.h.b16 %v4069
    %v4257 = vunpack.c.l.b16 %v4070
    %v4258 = vunpack.c.h.b16 %v4070
    %v4259 = vunpack.c.l.b16 %v4071
    %v4260 = vunpack.c.h.b16 %v4071
    %v4261 = vunpack.c.l.b16 %v4072
    %v4262 = vunpack.c.h.b16 %v4072
    %v4263 = vunpack.c.l.b16 %v4073
    %v4264 = vunpack.c.h.b16 %v4073
    %v4265 = vunpack.c.l.b16 %v4074
    %v4266 = vunpack.c.h.b16 %v4074
    %v4267 = vpack.c.b16 %v4143, %v4139
    %v4268 = vpack.c.b16 %v4144, %v4140
    %v4269 = vpack.c.b16 %v4145, %v4141
    %v4270 = vpack.c.b16 %v4146, %v4142
    %v4271 = vpack.c.b16 %v4151, %v4147
    %v4272 = vpack.c.b16 %v4152, %v4148
    %v4273 = vpack.c.b16 %v4153, %v4149
    %v4274 = vpack.c.b16 %v4154, %v4150
    %v4275 = vpack.c.b16 %v4159, %v4155
    %v4276 = vpack.c.b16 %v4160, %v4156
    %v4277 = vpack.c.b16 %v4161, %v4157
    %v4278 = vpack.c.b16 %v4162, %v4158
    %v4279 = vpack.c.b16 %v4167, %v4163
    %v4280 = vpack.c.b16 %v4168, %v4164
    %v4281 = vpack.c.b16 %v4169, %v4165
    %v4282 = vpack.c.b16 %v4170, %v4166
    %v4283 = vpack.c.b16 %v4175, %v4171
    %v4284 = vpack.c.b16 %v4176, %v4172
    %v4285 = vpack.c.b16 %v4177, %v4173
    %v4286 = vpack.c.b16 %v4178, %v4174
    %v4287 = vpack.c.b16 %v4183, %v4179
    %v4288 = vpack.c.b16 %v4184, %v4180
    %v4289 = vpack.c.b16 %v4185, %v4181
    %v4290 = vpack.c.b16 %v4186, %v4182
    %v4291 = vpack.c.b16 %v4191, %v4187
    %v4292 = vpack.c.b16 %v4192, %v4188
    %v4293 = vpack.c.b16 %v4193, %v4189
    %v4294 = vpack.c.b16 %v4194, %v4190
    %v4295 = vpack.c.b16 %v4199, %v4195
    %v4296 = vpack.c.b16 %v4200, %v4196
    %v4297 = vpack.c.b16 %v4201, %v4197
    %v4298 = vpack.c.b16 %v4202, %v4198
    %v4299 = vpack.c.b16 %v4207, %v4203
    %v4300 = vpack.c.b16 %v4208, %v4204
    %v4301 = vpack.c.b16 %v4209, %v4205
    %v4302 = vpack.c.b16 %v4210, %v4206
    %v4303 = vpack.c.b16 %v4215, %v4211
    %v4304 = vpack.c.b16 %v4216, %v4212
    %v4305 = vpack.c.b16 %v4217, %v4213
    %v4306 = vpack.c.b16 %v4218, %v4214
    %v4307 = vpack.c.b16 %v4223, %v4219
    %v4308 = vpack.c.b16 %v4224, %v4220
    %v4309 = vpack.c.b16 %v4225, %v4221
    %v4310 = vpack.c.b16 %v4226, %v4222
    %v4311 = vpack.c.b16 %v4231, %v4227
    %v4312 = vpack.c.b16 %v4232, %v4228
    %v4313 = vpack.c.b16 %v4233, %v4229
    %v4314 = vpack.c.b16 %v4234, %v4230
    %v4315 = vpack.c.b16 %v4239, %v4235
    %v4316 = vpack.c.b16 %v4240, %v4236
    %v4317 = vpack.c.b16 %v4241, %v4237
    %v4318 = vpack.c.b16 %v4242, %v4238
    %v4319 = vpack.c.b16 %v4247, %v4243
    %v4320 = vpack.c.b16 %v4248, %v4244
    %v4321 = vpack.c.b16 %v4249, %v4245
    %v4322 = vpack.c.b16 %v4250, %v4246
    %v4323 = vpack.c.b16 %v4255, %v4251
    %v4324 = vpack.c.b16 %v4256, %v4252
    %v4325 = vpack.c.b16 %v4257, %v4253
    %v4326 = vpack.c.b16 %v4258, %v4254
    %v4327 = vpack.c.b16 %v4263, %v4259
    %v4328 = vpack.c.b16 %v4264, %v4260
    %v4329 = vpack.c.b16 %v4265, %v4261
    %v4330 = vpack.c.b16 %v4266, %v4262
    %4395 = vmatprep.subr.bf16.mxu0 %v4268
    %4396 = vmatpush1.bf16.msra.mxu0 %v4267
    %4397 = vmatprep.subr.bf16.mxu0 %v4272
    %4398 = vmatpush1.bf16.msra.mxu0 %v4271
    %4399 = vmatprep.subr.bf16.mxu0 %v4276
    %4400 = vmatpush1.bf16.msra.mxu0 %v4275
    %4401 = vmatprep.subr.bf16.mxu0 %v4280
    %4402 = vmatpush1.bf16.msra.mxu0 %v4279
    %4403 = vmatprep.subr.bf16.mxu0 %v4284
    %4404 = vmatpush1.bf16.msra.mxu0 %v4283
    %4405 = vmatprep.subr.bf16.mxu0 %v4288
    %4406 = vmatpush1.bf16.msra.mxu0 %v4287
    %4407 = vmatprep.subr.bf16.mxu0 %v4292
    %4408 = vmatpush1.bf16.msra.mxu0 %v4291
    %4409 = vmatprep.subr.bf16.mxu0 %v4296
    %4410 = vmatpush1.bf16.msra.mxu0 %v4295
    %4411 = vmatprep.subr.bf16.mxu0 %v4300
    %4412 = vmatpush1.bf16.msra.mxu0 %v4299
    %4413 = vmatprep.subr.bf16.mxu0 %v4304
    %4414 = vmatpush1.bf16.msra.mxu0 %v4303
    %4415 = vmatprep.subr.bf16.mxu0 %v4308
    %4416 = vmatpush1.bf16.msra.mxu0 %v4307
    %4417 = vmatprep.subr.bf16.mxu0 %v4312
    %4418 = vmatpush1.bf16.msra.mxu0 %v4311
    %4419 = vmatprep.subr.bf16.mxu0 %v4316
    %4420 = vmatpush1.bf16.msra.mxu0 %v4315
    %4421 = vmatprep.subr.bf16.mxu0 %v4320
    %4422 = vmatpush1.bf16.msra.mxu0 %v4319
    %4423 = vmatprep.subr.bf16.mxu0 %v4324
    %4424 = vmatpush1.bf16.msra.mxu0 %v4323
    %4425 = vmatprep.subr.bf16.mxu0 %v4328
    %4426 = vmatpush1.bf16.msra.mxu0 %v4327
    %4427 = vmatprep.mubr.bf16.mxu0 %v4010
    %4428 = vmatmul.mubr.bf16.gmra.mrb[0].mxu0 %v4009
    %v4429 = vpop.f32.mrb[0].mxu0
    %v4430 = vadd.f32 %v855, %v4429
    %v4431 = vpop.f32.mrb[0].mxu0
    %v4432 = vadd.f32 %v859, %v4431
    %v4433 = vpop.f32.mrb[0].mxu0
    %v4434 = vpop.f32.mrb[0].mxu0
    %4435 = vdwg.mxu0
    %4436 = vmatprep.subr.bf16.mxu0 %v4270
    %4437 = vmatpush1.bf16.msra.mxu0 %v4269
    %4438 = vmatprep.subr.bf16.mxu0 %v4274
    %4439 = vmatpush1.bf16.msra.mxu0 %v4273
    %4440 = vmatprep.subr.bf16.mxu0 %v4278
    %4441 = vmatpush1.bf16.msra.mxu0 %v4277
    %4442 = vmatprep.subr.bf16.mxu0 %v4282
    %4443 = vmatpush1.bf16.msra.mxu0 %v4281
    %4444 = vmatprep.subr.bf16.mxu0 %v4286
    %4445 = vmatpush1.bf16.msra.mxu0 %v4285
    %4446 = vmatprep.subr.bf16.mxu0 %v4290
    %4447 = vmatpush1.bf16.msra.mxu0 %v4289
    %4448 = vmatprep.subr.bf16.mxu0 %v4294
    %4449 = vmatpush1.bf16.msra.mxu0 %v4293
    %4450 = vmatprep.subr.bf16.mxu0 %v4298
    %4451 = vmatpush1.bf16.msra.mxu0 %v4297
    %4452 = vmatprep.subr.bf16.mxu0 %v4302
    %4453 = vmatpush1.bf16.msra.mxu0 %v4301
    %4454 = vmatprep.subr.bf16.mxu0 %v4306
    %4455 = vmatpush1.bf16.msra.mxu0 %v4305
    %4456 = vmatprep.subr.bf16.mxu0 %v4310
    %4457 = vmatpush1.bf16.msra.mxu0 %v4309
    %4458 = vmatprep.subr.bf16.mxu0 %v4314
    %4459 = vmatpush1.bf16.msra.mxu0 %v4313
    %4460 = vmatprep.subr.bf16.mxu0 %v4318
    %4461 = vmatpush1.bf16.msra.mxu0 %v4317
    %4462 = vmatprep.subr.bf16.mxu0 %v4322
    %4463 = vmatpush1.bf16.msra.mxu0 %v4321
    %4464 = vmatprep.subr.bf16.mxu0 %v4326
    %4465 = vmatpush1.bf16.msra.mxu0 %v4325
    %4466 = vmatprep.subr.bf16.mxu0 %v4330
    %4467 = vmatpush1.bf16.msra.mxu0 %v4329
    %4468 = vmatprep.mubr.bf16.mxu0 %v4010
    %4469 = vmatmul.mubr.bf16.gmra.mrb[0].mxu0 %v4009
    %v4470 = vpop.f32.mrb[0].mxu0
    %v4471 = vadd.f32 %v863, %v4470
    %v4472 = vpop.f32.mrb[0].mxu0
    %v4473 = vadd.f32 %v867, %v4472
    %v4474 = vpop.f32.mrb[0].mxu0
    %v4475 = vpop.f32.mrb[0].mxu0
    %4476 = vdwg.mxu0
    %v4477 = vxor.u32 %v4430, 2147483648
    %v4478 = vmul.f32 %v4477, 1.442695
    %v4479 = vpow.pop %v4478
    %v4480 = vadd.f32 %v4479, 1.0
    %v4481 = vrcp.pop %v4480
    %v4482 = vmul.f32 1.0, %v4481
    %v4483 = vxor.u32 %v4432, 2147483648
    %v4484 = vmul.f32 %v4483, 1.442695
    %v4485 = vpow.pop %v4484
    %v4486 = vadd.f32 %v4485, 1.0
    %v4487 = vrcp.pop %v4486
    %v4488 = vmul.f32 1.0, %v4487
    %v4489 = vtanh.pop %v4471
    %v4490 = vxor.u32 %v4473, 2147483648
    %v4491 = vmul.f32 %v4490, 1.442695
    %v4492 = vpow.pop %v4491
    %v4493 = vadd.f32 %v4492, 1.0
    %v4494 = vrcp.pop %v4493
    %v4495 = vmul.f32 1.0, %v4494
    %v4496 = vmul.f32 %v4488, %v3697
    %v4497 = vmul.f32 %v4482, %v4489
    %v4498 = vadd.f32 %v4496, %v4497
    %v4499 = vtanh.pop %v4498
    %v4500 = vmul.f32 %v4495, %v4499
    %s4501 = scalar_lea.vmem [#allocation3], 32
    %4502 = vst [vmem:[%s4501] sm:$0xff] %v4500
    %s4503 = scalar_lea.vmem [#allocation2], 160
    %v4504 = vld [vmem:[%s4503] sm:$0xff]
    %v4505 = vld [vmem:[%s4503 + $0x8] sm:$0xff]
    %v4506 = vld [vmem:[%s4503 + $0x10] sm:$0xff]
    %v4507 = vld [vmem:[%s4503 + $0x18] sm:$0xff]
    %v4508 = vld [vmem:[#allocation4] sm:$0xff]
    %v4509 = vld [vmem:[#allocation4 + $0x8] sm:$0xff]
    %v4510 = vld [vmem:[#allocation4 + $0x10] sm:$0xff]
    %v4511 = vld [vmem:[#allocation4 + $0x18] sm:$0xff]
    %v4512 = vld [vmem:[#allocation4 + $0x20] sm:$0xff]
    %v4513 = vld [vmem:[#allocation4 + $0x28] sm:$0xff]
    %v4514 = vld [vmem:[#allocation4 + $0x30] sm:$0xff]
    %v4515 = vld [vmem:[#allocation4 + $0x38] sm:$0xff]
    %v4516 = vld [vmem:[#allocation4 + $0x40] sm:$0xff]
    %v4517 = vld [vmem:[#allocation4 + $0x48] sm:$0xff]
    %v4518 = vld [vmem:[#allocation4 + $0x50] sm:$0xff]
    %v4519 = vld [vmem:[#allocation4 + $0x58] sm:$0xff]
    %v4520 = vld [vmem:[#allocation4 + $0x60] sm:$0xff]
    %v4521 = vld [vmem:[#allocation4 + $0x68] sm:$0xff]
    %v4522 = vld [vmem:[#allocation4 + $0x70] sm:$0xff]
    %v4523 = vld [vmem:[#allocation4 + $0x78] sm:$0xff]
    %v4524 = vld [vmem:[#allocation4 + $0x80] sm:$0xff]
    %v4525 = vld [vmem:[#allocation4 + $0x88] sm:$0xff]
    %v4526 = vld [vmem:[#allocation4 + $0x90] sm:$0xff]
    %v4527 = vld [vmem:[#allocation4 + $0x98] sm:$0xff]
    %v4528 = vld [vmem:[#allocation4 + $0xa0] sm:$0xff]
    %v4529 = vld [vmem:[#allocation4 + $0xa8] sm:$0xff]
    %v4530 = vld [vmem:[#allocation4 + $0xb0] sm:$0xff]
    %v4531 = vld [vmem:[#allocation4 + $0xb8] sm:$0xff]
    %v4532 = vld [vmem:[#allocation4 + $0xc0] sm:$0xff]
    %v4533 = vld [vmem:[#allocation4 + $0xc8] sm:$0xff]
    %v4534 = vld [vmem:[#allocation4 + $0xd0] sm:$0xff]
    %v4535 = vld [vmem:[#allocation4 + $0xd8] sm:$0xff]
    %v4536 = vld [vmem:[#allocation4 + $0xe0] sm:$0xff]
    %v4537 = vld [vmem:[#allocation4 + $0xe8] sm:$0xff]
    %v4538 = vld [vmem:[#allocation4 + $0xf0] sm:$0xff]
    %v4539 = vld [vmem:[#allocation4 + $0xf8] sm:$0xff]
    %v4572 = vunpack.c.l.b16 %v4508
    %v4573 = vunpack.c.h.b16 %v4508
    %v4574 = vunpack.c.l.b16 %v4509
    %v4575 = vunpack.c.h.b16 %v4509
    %v4576 = vunpack.c.l.b16 %v4510
    %v4577 = vunpack.c.h.b16 %v4510
    %v4578 = vunpack.c.l.b16 %v4511
    %v4579 = vunpack.c.h.b16 %v4511
    %v4580 = vunpack.c.l.b16 %v4512
    %v4581 = vunpack.c.h.b16 %v4512
    %v4582 = vunpack.c.l.b16 %v4513
    %v4583 = vunpack.c.h.b16 %v4513
    %v4584 = vunpack.c.l.b16 %v4514
    %v4585 = vunpack.c.h.b16 %v4514
    %v4586 = vunpack.c.l.b16 %v4515
    %v4587 = vunpack.c.h.b16 %v4515
    %v4588 = vunpack.c.l.b16 %v4516
    %v4589 = vunpack.c.h.b16 %v4516
    %v4590 = vunpack.c.l.b16 %v4517
    %v4591 = vunpack.c.h.b16 %v4517
    %v4592 = vunpack.c.l.b16 %v4518
    %v4593 = vunpack.c.h.b16 %v4518
    %v4594 = vunpack.c.l.b16 %v4519
    %v4595 = vunpack.c.h.b16 %v4519
    %v4596 = vunpack.c.l.b16 %v4520
    %v4597 = vunpack.c.h.b16 %v4520
    %v4598 = vunpack.c.l.b16 %v4521
    %v4599 = vunpack.c.h.b16 %v4521
    %v4600 = vunpack.c.l.b16 %v4522
    %v4601 = vunpack.c.h.b16 %v4522
    %v4602 = vunpack.c.l.b16 %v4523
    %v4603 = vunpack.c.h.b16 %v4523
    %v4604 = vunpack.c.l.b16 %v4524
    %v4605 = vunpack.c.h.b16 %v4524
    %v4606 = vunpack.c.l.b16 %v4525
    %v4607 = vunpack.c.h.b16 %v4525
    %v4608 = vunpack.c.l.b16 %v4526
    %v4609 = vunpack.c.h.b16 %v4526
    %v4610 = vunpack.c.l.b16 %v4527
    %v4611 = vunpack.c.h.b16 %v4527
    %v4612 = vunpack.c.l.b16 %v4528
    %v4613 = vunpack.c.h.b16 %v4528
    %v4614 = vunpack.c.l.b16 %v4529
    %v4615 = vunpack.c.h.b16 %v4529
    %v4616 = vunpack.c.l.b16 %v4530
    %v4617 = vunpack.c.h.b16 %v4530
    %v4618 = vunpack.c.l.b16 %v4531
    %v4619 = vunpack.c.h.b16 %v4531
    %v4620 = vunpack.c.l.b16 %v4532
    %v4621 = vunpack.c.h.b16 %v4532
    %v4622 = vunpack.c.l.b16 %v4533
    %v4623 = vunpack.c.h.b16 %v4533
    %v4624 = vunpack.c.l.b16 %v4534
    %v4625 = vunpack.c.h.b16 %v4534
    %v4626 = vunpack.c.l.b16 %v4535
    %v4627 = vunpack.c.h.b16 %v4535
    %v4628 = vunpack.c.l.b16 %v4536
    %v4629 = vunpack.c.h.b16 %v4536
    %v4630 = vunpack.c.l.b16 %v4537
    %v4631 = vunpack.c.h.b16 %v4537
    %v4632 = vunpack.c.l.b16 %v4538
    %v4633 = vunpack.c.h.b16 %v4538
    %v4634 = vunpack.c.l.b16 %v4539
    %v4635 = vunpack.c.h.b16 %v4539
    %v4636 = vpack.c.b16 %v4576, %v4572
    %v4637 = vpack.c.b16 %v4577, %v4573
    %v4638 = vpack.c.b16 %v4578, %v4574
    %v4639 = vpack.c.b16 %v4579, %v4575
    %v4640 = vpack.c.b16 %v4584, %v4580
    %v4641 = vpack.c.b16 %v4585, %v4581
    %v4642 = vpack.c.b16 %v4586, %v4582
    %v4643 = vpack.c.b16 %v4587, %v4583
    %v4644 = vpack.c.b16 %v4592, %v4588
    %v4645 = vpack.c.b16 %v4593, %v4589
    %v4646 = vpack.c.b16 %v4594, %v4590
    %v4647 = vpack.c.b16 %v4595, %v4591
    %v4648 = vpack.c.b16 %v4600, %v4596
    %v4649 = vpack.c.b16 %v4601, %v4597
    %v4650 = vpack.c.b16 %v4602, %v4598
    %v4651 = vpack.c.b16 %v4603, %v4599
    %v4652 = vpack.c.b16 %v4608, %v4604
    %v4653 = vpack.c.b16 %v4609, %v4605
    %v4654 = vpack.c.b16 %v4610, %v4606
    %v4655 = vpack.c.b16 %v4611, %v4607
    %v4656 = vpack.c.b16 %v4616, %v4612
    %v4657 = vpack.c.b16 %v4617, %v4613
    %v4658 = vpack.c.b16 %v4618, %v4614
    %v4659 = vpack.c.b16 %v4619, %v4615
    %v4660 = vpack.c.b16 %v4624, %v4620
    %v4661 = vpack.c.b16 %v4625, %v4621
    %v4662 = vpack.c.b16 %v4626, %v4622
    %v4663 = vpack.c.b16 %v4627, %v4623
    %v4664 = vpack.c.b16 %v4632, %v4628
    %v4665 = vpack.c.b16 %v4633, %v4629
    %v4666 = vpack.c.b16 %v4634, %v4630
    %v4667 = vpack.c.b16 %v4635, %v4631
    %4700 = vmatprep.subr.bf16.mxu0 %v4637
    %4701 = vmatpush1.bf16.msra.mxu0 %v4636
    %4702 = vmatprep.subr.bf16.mxu0 %v4641
    %4703 = vmatpush1.bf16.msra.mxu0 %v4640
    %4704 = vmatprep.subr.bf16.mxu0 %v4645
    %4705 = vmatpush1.bf16.msra.mxu0 %v4644
    %4706 = vmatprep.subr.bf16.mxu0 %v4649
    %4707 = vmatpush1.bf16.msra.mxu0 %v4648
    %4708 = vmatprep.subr.bf16.mxu0 %v4653
    %4709 = vmatpush1.bf16.msra.mxu0 %v4652
    %4710 = vmatprep.subr.bf16.mxu0 %v4657
    %4711 = vmatpush1.bf16.msra.mxu0 %v4656
    %4712 = vmatprep.subr.bf16.mxu0 %v4661
    %4713 = vmatpush1.bf16.msra.mxu0 %v4660
    %4714 = vmatprep.subr.bf16.mxu0 %v4665
    %4715 = vmatpush1.bf16.msra.mxu0 %v4664
    %4716 = vmatprep.subr.bf16.mxu0 0
    %4717 = vmatpush1.bf16.msra.mxu0 0
    %4718 = vmatprep.subr.bf16.mxu0 0
    %4719 = vmatpush1.bf16.msra.mxu0 0
    %4720 = vmatprep.subr.bf16.mxu0 0
    %4721 = vmatpush1.bf16.msra.mxu0 0
    %4722 = vmatprep.subr.bf16.mxu0 0
    %4723 = vmatpush1.bf16.msra.mxu0 0
    %4724 = vmatprep.subr.bf16.mxu0 0
    %4725 = vmatpush1.bf16.msra.mxu0 0
    %4726 = vmatprep.subr.bf16.mxu0 0
    %4727 = vmatpush1.bf16.msra.mxu0 0
    %4728 = vmatprep.subr.bf16.mxu0 0
    %4729 = vmatpush1.bf16.msra.mxu0 0
    %4730 = vmatprep.subr.bf16.mxu0 0
    %4731 = vmatpush1.bf16.msra.mxu0 0
    %4732 = vmatprep.mubr.bf16.mxu0 0
    %4733 = vmatmul.mubr.bf16.gmra.mrb[0].mxu0 %v4009
    %v4734 = vpop.f32.mrb[0].mxu0
    %v4735 = vadd.f32 0.0, %v4734
    %v4736 = vpop.f32.mrb[0].mxu0
    %v4737 = vadd.f32 0.0, %v4736
    %v4738 = vpop.f32.mrb[0].mxu0
    %v4739 = vpop.f32.mrb[0].mxu0
    %4740 = vdwg.mxu0
    %4741 = vmatprep.subr.bf16.mxu0 %v4639
    %4742 = vmatpush1.bf16.msra.mxu0 %v4638
    %4743 = vmatprep.subr.bf16.mxu0 %v4643
    %4744 = vmatpush1.bf16.msra.mxu0 %v4642
    %4745 = vmatprep.subr.bf16.mxu0 %v4647
    %4746 = vmatpush1.bf16.msra.mxu0 %v4646
    %4747 = vmatprep.subr.bf16.mxu0 %v4651
    %4748 = vmatpush1.bf16.msra.mxu0 %v4650
    %4749 = vmatprep.subr.bf16.mxu0 %v4655
    %4750 = vmatpush1.bf16.msra.mxu0 %v4654
    %4751 = vmatprep.subr.bf16.mxu0 %v4659
    %4752 = vmatpush1.bf16.msra.mxu0 %v4658
    %4753 = vmatprep.subr.bf16.mxu0 %v4663
    %4754 = vmatpush1.bf16.msra.mxu0 %v4662
    %4755 = vmatprep.subr.bf16.mxu0 %v4667
    %4756 = vmatpush1.bf16.msra.mxu0 %v4666
    %4757 = vmatprep.subr.bf16.mxu0 0
    %4758 = vmatpush1.bf16.msra.mxu0 0
    %4759 = vmatprep.subr.bf16.mxu0 0
    %4760 = vmatpush1.bf16.msra.mxu0 0
    %4761 = vmatprep.subr.bf16.mxu0 0
    %4762 = vmatpush1.bf16.msra.mxu0 0
    %4763 = vmatprep.subr.bf16.mxu0 0
    %4764 = vmatpush1.bf16.msra.mxu0 0
    %4765 = vmatprep.subr.bf16.mxu0 0
    %4766 = vmatpush1.bf16.msra.mxu0 0
    %4767 = vmatprep.subr.bf16.mxu0 0
    %4768 = vmatpush1.bf16.msra.mxu0 0
    %4769 = vmatprep.subr.bf16.mxu0 0
    %4770 = vmatpush1.bf16.msra.mxu0 0
    %4771 = vmatprep.subr.bf16.mxu0 0
    %4772 = vmatpush1.bf16.msra.mxu0 0
    %4773 = vmatprep.mubr.bf16.mxu0 0
    %4774 = vmatmul.mubr.bf16.gmra.mrb[0].mxu0 %v4009
    %v4775 = vpop.f32.mrb[0].mxu0
    %v4776 = vadd.f32 0.0, %v4775
    %v4777 = vpop.f32.mrb[0].mxu0
    %v4778 = vadd.f32 0.0, %v4777
    %v4779 = vpop.f32.mrb[0].mxu0
    %v4780 = vpop.f32.mrb[0].mxu0
    %4781 = vdwg.mxu0
    %v4782 = vadd.f32 %v4504, %v4735
    %v4783 = vadd.f32 %v4505, %v4737
    %v4784 = vadd.f32 %v4506, %v4776
    %v4785 = vadd.f32 %v4507, %v4778
    %v4786 = vxor.u32 %v4782, 2147483648
    %v4787 = vmul.f32 %v4786, 1.442695
    %v4788 = vpow.pop %v4787
    %v4789 = vadd.f32 %v4788, 1.0
    %v4790 = vrcp.pop %v4789
    %v4791 = vmul.f32 1.0, %v4790
    %v4792 = vxor.u32 %v4783, 2147483648
    %v4793 = vmul.f32 %v4792, 1.442695
    %v4794 = vpow.pop %v4793
    %v4795 = vadd.f32 %v4794, 1.0
    %v4796 = vrcp.pop %v4795
    %v4797 = vmul.f32 1.0, %v4796
    %v4798 = vtanh.pop %v4784
    %v4799 = vxor.u32 %v4785, 2147483648
    %v4800 = vmul.f32 %v4799, 1.442695
    %v4801 = vpow.pop %v4800
    %v4802 = vadd.f32 %v4801, 1.0
    %v4803 = vrcp.pop %v4802
    %v4804 = vmul.f32 1.0, %v4803
    %v4805 = vmul.f32 %v4797, %v4006
    %v4806 = vmul.f32 %v4791, %v4798
    %v4807 = vadd.f32 %v4805, %v4806
    %v4808 = vtanh.pop %v4807
    %v4809 = vmul.f32 %v4804, %v4808
    %v4810 = vpack.c.bf16 %v4809, %v4809
    %v4811 = vpack.c.bf16 %v4500, %v4500
    %v4812 = vld [vmem:[#allocation6] sm:$0xff]
    %v4813 = vld [vmem:[#allocation6 + $0x8] sm:$0xff]
    %v4814 = vld [vmem:[#allocation6 + $0x10] sm:$0xff]
    %v4815 = vld [vmem:[#allocation6 + $0x18] sm:$0xff]
    %v4816 = vld [vmem:[#allocation6 + $0x20] sm:$0xff]
    %v4817 = vld [vmem:[#allocation6 + $0x28] sm:$0xff]
    %v4818 = vld [vmem:[#allocation6 + $0x30] sm:$0xff]
    %v4819 = vld [vmem:[#allocation6 + $0x38] sm:$0xff]
    %v4820 = vld [vmem:[#allocation6 + $0x40] sm:$0xff]
    %v4821 = vld [vmem:[#allocation6 + $0x48] sm:$0xff]
    %v4822 = vld [vmem:[#allocation6 + $0x50] sm:$0xff]
    %v4823 = vld [vmem:[#allocation6 + $0x58] sm:$0xff]
    %v4824 = vld [vmem:[#allocation6 + $0x60] sm:$0xff]
    %v4825 = vld [vmem:[#allocation6 + $0x68] sm:$0xff]
    %v4826 = vld [vmem:[#allocation6 + $0x70] sm:$0xff]
    %v4827 = vld [vmem:[#allocation6 + $0x78] sm:$0xff]
    %v4828 = vld [vmem:[#allocation6 + $0x80] sm:$0xff]
    %v4829 = vld [vmem:[#allocation6 + $0x88] sm:$0xff]
    %v4830 = vld [vmem:[#allocation6 + $0x90] sm:$0xff]
    %v4831 = vld [vmem:[#allocation6 + $0x98] sm:$0xff]
    %v4832 = vld [vmem:[#allocation6 + $0xa0] sm:$0xff]
    %v4833 = vld [vmem:[#allocation6 + $0xa8] sm:$0xff]
    %v4834 = vld [vmem:[#allocation6 + $0xb0] sm:$0xff]
    %v4835 = vld [vmem:[#allocation6 + $0xb8] sm:$0xff]
    %v4836 = vld [vmem:[#allocation6 + $0xc0] sm:$0xff]
    %v4837 = vld [vmem:[#allocation6 + $0xc8] sm:$0xff]
    %v4838 = vld [vmem:[#allocation6 + $0xd0] sm:$0xff]
    %v4839 = vld [vmem:[#allocation6 + $0xd8] sm:$0xff]
    %v4840 = vld [vmem:[#allocation6 + $0xe0] sm:$0xff]
    %v4841 = vld [vmem:[#allocation6 + $0xe8] sm:$0xff]
    %v4842 = vld [vmem:[#allocation6 + $0xf0] sm:$0xff]
    %v4843 = vld [vmem:[#allocation6 + $0xf8] sm:$0xff]
    %v4844 = vld [vmem:[#allocation6 + $0x100] sm:$0xff]
    %v4845 = vld [vmem:[#allocation6 + $0x108] sm:$0xff]
    %v4846 = vld [vmem:[#allocation6 + $0x110] sm:$0xff]
    %v4847 = vld [vmem:[#allocation6 + $0x118] sm:$0xff]
    %v4848 = vld [vmem:[#allocation6 + $0x120] sm:$0xff]
    %v4849 = vld [vmem:[#allocation6 + $0x128] sm:$0xff]
    %v4850 = vld [vmem:[#allocation6 + $0x130] sm:$0xff]
    %v4851 = vld [vmem:[#allocation6 + $0x138] sm:$0xff]
    %v4852 = vld [vmem:[#allocation6 + $0x140] sm:$0xff]
    %v4853 = vld [vmem:[#allocation6 + $0x148] sm:$0xff]
    %v4854 = vld [vmem:[#allocation6 + $0x150] sm:$0xff]
    %v4855 = vld [vmem:[#allocation6 + $0x158] sm:$0xff]
    %v4856 = vld [vmem:[#allocation6 + $0x160] sm:$0xff]
    %v4857 = vld [vmem:[#allocation6 + $0x168] sm:$0xff]
    %v4858 = vld [vmem:[#allocation6 + $0x170] sm:$0xff]
    %v4859 = vld [vmem:[#allocation6 + $0x178] sm:$0xff]
    %v4860 = vld [vmem:[#allocation6 + $0x180] sm:$0xff]
    %v4861 = vld [vmem:[#allocation6 + $0x188] sm:$0xff]
    %v4862 = vld [vmem:[#allocation6 + $0x190] sm:$0xff]
    %v4863 = vld [vmem:[#allocation6 + $0x198] sm:$0xff]
    %v4864 = vld [vmem:[#allocation6 + $0x1a0] sm:$0xff]
    %v4865 = vld [vmem:[#allocation6 + $0x1a8] sm:$0xff]
    %v4866 = vld [vmem:[#allocation6 + $0x1b0] sm:$0xff]
    %v4867 = vld [vmem:[#allocation6 + $0x1b8] sm:$0xff]
    %v4868 = vld [vmem:[#allocation6 + $0x1c0] sm:$0xff]
    %v4869 = vld [vmem:[#allocation6 + $0x1c8] sm:$0xff]
    %v4870 = vld [vmem:[#allocation6 + $0x1d0] sm:$0xff]
    %v4871 = vld [vmem:[#allocation6 + $0x1d8] sm:$0xff]
    %v4872 = vld [vmem:[#allocation6 + $0x1e0] sm:$0xff]
    %v4873 = vld [vmem:[#allocation6 + $0x1e8] sm:$0xff]
    %v4874 = vld [vmem:[#allocation6 + $0x1f0] sm:$0xff]
    %v4875 = vld [vmem:[#allocation6 + $0x1f8] sm:$0xff]
    %v4940 = vunpack.c.l.b16 %v4812
    %v4941 = vunpack.c.h.b16 %v4812
    %v4942 = vunpack.c.l.b16 %v4813
    %v4943 = vunpack.c.h.b16 %v4813
    %v4944 = vunpack.c.l.b16 %v4814
    %v4945 = vunpack.c.h.b16 %v4814
    %v4946 = vunpack.c.l.b16 %v4815
    %v4947 = vunpack.c.h.b16 %v4815
    %v4948 = vunpack.c.l.b16 %v4816
    %v4949 = vunpack.c.h.b16 %v4816
    %v4950 = vunpack.c.l.b16 %v4817
    %v4951 = vunpack.c.h.b16 %v4817
    %v4952 = vunpack.c.l.b16 %v4818
    %v4953 = vunpack.c.h.b16 %v4818
    %v4954 = vunpack.c.l.b16 %v4819
    %v4955 = vunpack.c.h.b16 %v4819
    %v4956 = vunpack.c.l.b16 %v4820
    %v4957 = vunpack.c.h.b16 %v4820
    %v4958 = vunpack.c.l.b16 %v4821
    %v4959 = vunpack.c.h.b16 %v4821
    %v4960 = vunpack.c.l.b16 %v4822
    %v4961 = vunpack.c.h.b16 %v4822
    %v4962 = vunpack.c.l.b16 %v4823
    %v4963 = vunpack.c.h.b16 %v4823
    %v4964 = vunpack.c.l.b16 %v4824
    %v4965 = vunpack.c.h.b16 %v4824
    %v4966 = vunpack.c.l.b16 %v4825
    %v4967 = vunpack.c.h.b16 %v4825
    %v4968 = vunpack.c.l.b16 %v4826
    %v4969 = vunpack.c.h.b16 %v4826
    %v4970 = vunpack.c.l.b16 %v4827
    %v4971 = vunpack.c.h.b16 %v4827
    %v4972 = vunpack.c.l.b16 %v4828
    %v4973 = vunpack.c.h.b16 %v4828
    %v4974 = vunpack.c.l.b16 %v4829
    %v4975 = vunpack.c.h.b16 %v4829
    %v4976 = vunpack.c.l.b16 %v4830
    %v4977 = vunpack.c.h.b16 %v4830
    %v4978 = vunpack.c.l.b16 %v4831
    %v4979 = vunpack.c.h.b16 %v4831
    %v4980 = vunpack.c.l.b16 %v4832
    %v4981 = vunpack.c.h.b16 %v4832
    %v4982 = vunpack.c.l.b16 %v4833
    %v4983 = vunpack.c.h.b16 %v4833
    %v4984 = vunpack.c.l.b16 %v4834
    %v4985 = vunpack.c.h.b16 %v4834
    %v4986 = vunpack.c.l.b16 %v4835
    %v4987 = vunpack.c.h.b16 %v4835
    %v4988 = vunpack.c.l.b16 %v4836
    %v4989 = vunpack.c.h.b16 %v4836
    %v4990 = vunpack.c.l.b16 %v4837
    %v4991 = vunpack.c.h.b16 %v4837
    %v4992 = vunpack.c.l.b16 %v4838
    %v4993 = vunpack.c.h.b16 %v4838
    %v4994 = vunpack.c.l.b16 %v4839
    %v4995 = vunpack.c.h.b16 %v4839
    %v4996 = vunpack.c.l.b16 %v4840
    %v4997 = vunpack.c.h.b16 %v4840
    %v4998 = vunpack.c.l.b16 %v4841
    %v4999 = vunpack.c.h.b16 %v4841
    %v5000 = vunpack.c.l.b16 %v4842
    %v5001 = vunpack.c.h.b16 %v4842
    %v5002 = vunpack.c.l.b16 %v4843
    %v5003 = vunpack.c.h.b16 %v4843
    %v5004 = vunpack.c.l.b16 %v4844
    %v5005 = vunpack.c.h.b16 %v4844
    %v5006 = vunpack.c.l.b16 %v4845
    %v5007 = vunpack.c.h.b16 %v4845
    %v5008 = vunpack.c.l.b16 %v4846
    %v5009 = vunpack.c.h.b16 %v4846
    %v5010 = vunpack.c.l.b16 %v4847
    %v5011 = vunpack.c.h.b16 %v4847
    %v5012 = vunpack.c.l.b16 %v4848
    %v5013 = vunpack.c.h.b16 %v4848
    %v5014 = vunpack.c.l.b16 %v4849
    %v5015 = vunpack.c.h.b16 %v4849
    %v5016 = vunpack.c.l.b16 %v4850
    %v5017 = vunpack.c.h.b16 %v4850
    %v5018 = vunpack.c.l.b16 %v4851
    %v5019 = vunpack.c.h.b16 %v4851
    %v5020 = vunpack.c.l.b16 %v4852
    %v5021 = vunpack.c.h.b16 %v4852
    %v5022 = vunpack.c.l.b16 %v4853
    %v5023 = vunpack.c.h.b16 %v4853
    %v5024 = vunpack.c.l.b16 %v4854
    %v5025 = vunpack.c.h.b16 %v4854
    %v5026 = vunpack.c.l.b16 %v4855
    %v5027 = vunpack.c.h.b16 %v4855
    %v5028 = vunpack.c.l.b16 %v4856
    %v5029 = vunpack.c.h.b16 %v4856
    %v5030 = vunpack.c.l.b16 %v4857
    %v5031 = vunpack.c.h.b16 %v4857
    %v5032 = vunpack.c.l.b16 %v4858
    %v5033 = vunpack.c.h.b16 %v4858
    %v5034 = vunpack.c.l.b16 %v4859
    %v5035 = vunpack.c.h.b16 %v4859
    %v5036 = vunpack.c.l.b16 %v4860
    %v5037 = vunpack.c.h.b16 %v4860
    %v5038 = vunpack.c.l.b16 %v4861
    %v5039 = vunpack.c.h.b16 %v4861
    %v5040 = vunpack.c.l.b16 %v4862
    %v5041 = vunpack.c.h.b16 %v4862
    %v5042 = vunpack.c.l.b16 %v4863
    %v5043 = vunpack.c.h.b16 %v4863
    %v5044 = vunpack.c.l.b16 %v4864
    %v5045 = vunpack.c.h.b16 %v4864
    %v5046 = vunpack.c.l.b16 %v4865
    %v5047 = vunpack.c.h.b16 %v4865
    %v5048 = vunpack.c.l.b16 %v4866
    %v5049 = vunpack.c.h.b16 %v4866
    %v5050 = vunpack.c.l.b16 %v4867
    %v5051 = vunpack.c.h.b16 %v4867
    %v5052 = vunpack.c.l.b16 %v4868
    %v5053 = vunpack.c.h.b16 %v4868
    %v5054 = vunpack.c.l.b16 %v4869
    %v5055 = vunpack.c.h.b16 %v4869
    %v5056 = vunpack.c.l.b16 %v4870
    %v5057 = vunpack.c.h.b16 %v4870
    %v5058 = vunpack.c.l.b16 %v4871
    %v5059 = vunpack.c.h.b16 %v4871
    %v5060 = vunpack.c.l.b16 %v4872
    %v5061 = vunpack.c.h.b16 %v4872
    %v5062 = vunpack.c.l.b16 %v4873
    %v5063 = vunpack.c.h.b16 %v4873
    %v5064 = vunpack.c.l.b16 %v4874
    %v5065 = vunpack.c.h.b16 %v4874
    %v5066 = vunpack.c.l.b16 %v4875
    %v5067 = vunpack.c.h.b16 %v4875
    %v5068 = vpack.c.b16 %v4944, %v4940
    %v5069 = vpack.c.b16 %v4945, %v4941
    %v5070 = vpack.c.b16 %v4946, %v4942
    %v5071 = vpack.c.b16 %v4947, %v4943
    %v5072 = vpack.c.b16 %v4952, %v4948
    %v5073 = vpack.c.b16 %v4953, %v4949
    %v5074 = vpack.c.b16 %v4954, %v4950
    %v5075 = vpack.c.b16 %v4955, %v4951
    %v5076 = vpack.c.b16 %v4960, %v4956
    %v5077 = vpack.c.b16 %v4961, %v4957
    %v5078 = vpack.c.b16 %v4962, %v4958
    %v5079 = vpack.c.b16 %v4963, %v4959
    %v5080 = vpack.c.b16 %v4968, %v4964
    %v5081 = vpack.c.b16 %v4969, %v4965
    %v5082 = vpack.c.b16 %v4970, %v4966
    %v5083 = vpack.c.b16 %v4971, %v4967
    %v5084 = vpack.c.b16 %v4976, %v4972
    %v5085 = vpack.c.b16 %v4977, %v4973
    %v5086 = vpack.c.b16 %v4978, %v4974
    %v5087 = vpack.c.b16 %v4979, %v4975
    %v5088 = vpack.c.b16 %v4984, %v4980
    %v5089 = vpack.c.b16 %v4985, %v4981
    %v5090 = vpack.c.b16 %v4986, %v4982
    %v5091 = vpack.c.b16 %v4987, %v4983
    %v5092 = vpack.c.b16 %v4992, %v4988
    %v5093 = vpack.c.b16 %v4993, %v4989
    %v5094 = vpack.c.b16 %v4994, %v4990
    %v5095 = vpack.c.b16 %v4995, %v4991
    %v5096 = vpack.c.b16 %v5000, %v4996
    %v5097 = vpack.c.b16 %v5001, %v4997
    %v5098 = vpack.c.b16 %v5002, %v4998
    %v5099 = vpack.c.b16 %v5003, %v4999
    %v5100 = vpack.c.b16 %v5008, %v5004
    %v5101 = vpack.c.b16 %v5009, %v5005
    %v5102 = vpack.c.b16 %v5010, %v5006
    %v5103 = vpack.c.b16 %v5011, %v5007
    %v5104 = vpack.c.b16 %v5016, %v5012
    %v5105 = vpack.c.b16 %v5017, %v5013
    %v5106 = vpack.c.b16 %v5018, %v5014
    %v5107 = vpack.c.b16 %v5019, %v5015
    %v5108 = vpack.c.b16 %v5024, %v5020
    %v5109 = vpack.c.b16 %v5025, %v5021
    %v5110 = vpack.c.b16 %v5026, %v5022
    %v5111 = vpack.c.b16 %v5027, %v5023
    %v5112 = vpack.c.b16 %v5032, %v5028
    %v5113 = vpack.c.b16 %v5033, %v5029
    %v5114 = vpack.c.b16 %v5034, %v5030
    %v5115 = vpack.c.b16 %v5035, %v5031
    %v5116 = vpack.c.b16 %v5040, %v5036
    %v5117 = vpack.c.b16 %v5041, %v5037
    %v5118 = vpack.c.b16 %v5042, %v5038
    %v5119 = vpack.c.b16 %v5043, %v5039
    %v5120 = vpack.c.b16 %v5048, %v5044
    %v5121 = vpack.c.b16 %v5049, %v5045
    %v5122 = vpack.c.b16 %v5050, %v5046
    %v5123 = vpack.c.b16 %v5051, %v5047
    %v5124 = vpack.c.b16 %v5056, %v5052
    %v5125 = vpack.c.b16 %v5057, %v5053
    %v5126 = vpack.c.b16 %v5058, %v5054
    %v5127 = vpack.c.b16 %v5059, %v5055
    %v5128 = vpack.c.b16 %v5064, %v5060
    %v5129 = vpack.c.b16 %v5065, %v5061
    %v5130 = vpack.c.b16 %v5066, %v5062
    %v5131 = vpack.c.b16 %v5067, %v5063
    %5196 = vmatprep.subr.bf16.mxu0 %v5069
    %5197 = vmatpush1.bf16.msra.mxu0 %v5068
    %5198 = vmatprep.subr.bf16.mxu0 %v5073
    %5199 = vmatpush1.bf16.msra.mxu0 %v5072
    %5200 = vmatprep.subr.bf16.mxu0 %v5077
    %5201 = vmatpush1.bf16.msra.mxu0 %v5076
    %5202 = vmatprep.subr.bf16.mxu0 %v5081
    %5203 = vmatpush1.bf16.msra.mxu0 %v5080
    %5204 = vmatprep.subr.bf16.mxu0 %v5085
    %5205 = vmatpush1.bf16.msra.mxu0 %v5084
    %5206 = vmatprep.subr.bf16.mxu0 %v5089
    %5207 = vmatpush1.bf16.msra.mxu0 %v5088
    %5208 = vmatprep.subr.bf16.mxu0 %v5093
    %5209 = vmatpush1.bf16.msra.mxu0 %v5092
    %5210 = vmatprep.subr.bf16.mxu0 %v5097
    %5211 = vmatpush1.bf16.msra.mxu0 %v5096
    %5212 = vmatprep.subr.bf16.mxu0 %v5101
    %5213 = vmatpush1.bf16.msra.mxu0 %v5100
    %5214 = vmatprep.subr.bf16.mxu0 %v5105
    %5215 = vmatpush1.bf16.msra.mxu0 %v5104
    %5216 = vmatprep.subr.bf16.mxu0 %v5109
    %5217 = vmatpush1.bf16.msra.mxu0 %v5108
    %5218 = vmatprep.subr.bf16.mxu0 %v5113
    %5219 = vmatpush1.bf16.msra.mxu0 %v5112
    %5220 = vmatprep.subr.bf16.mxu0 %v5117
    %5221 = vmatpush1.bf16.msra.mxu0 %v5116
    %5222 = vmatprep.subr.bf16.mxu0 %v5121
    %5223 = vmatpush1.bf16.msra.mxu0 %v5120
    %5224 = vmatprep.subr.bf16.mxu0 %v5125
    %5225 = vmatpush1.bf16.msra.mxu0 %v5124
    %5226 = vmatprep.subr.bf16.mxu0 %v5129
    %5227 = vmatpush1.bf16.msra.mxu0 %v5128
    %5228 = vmatprep.mubr.bf16.mxu0 %v4811
    %5229 = vmatmul.mubr.bf16.gmra.mrb[0].mxu0 %v4810
    %v5230 = vpop.f32.mrb[0].mxu0
    %v5231 = vadd.f32 %v855, %v5230
    %v5232 = vpop.f32.mrb[0].mxu0
    %v5233 = vadd.f32 %v859, %v5232
    %v5234 = vpop.f32.mrb[0].mxu0
    %v5235 = vpop.f32.mrb[0].mxu0
    %5236 = vdwg.mxu0
    %5237 = vmatprep.subr.bf16.mxu0 %v5071
    %5238 = vmatpush1.bf16.msra.mxu0 %v5070
    %5239 = vmatprep.subr.bf16.mxu0 %v5075
    %5240 = vmatpush1.bf16.msra.mxu0 %v5074
    %5241 = vmatprep.subr.bf16.mxu0 %v5079
    %5242 = vmatpush1.bf16.msra.mxu0 %v5078
    %5243 = vmatprep.subr.bf16.mxu0 %v5083
    %5244 = vmatpush1.bf16.msra.mxu0 %v5082
    %5245 = vmatprep.subr.bf16.mxu0 %v5087
    %5246 = vmatpush1.bf16.msra.mxu0 %v5086
    %5247 = vmatprep.subr.bf16.mxu0 %v5091
    %5248 = vmatpush1.bf16.msra.mxu0 %v5090
    %5249 = vmatprep.subr.bf16.mxu0 %v5095
    %5250 = vmatpush1.bf16.msra.mxu0 %v5094
    %5251 = vmatprep.subr.bf16.mxu0 %v5099
    %5252 = vmatpush1.bf16.msra.mxu0 %v5098
    %5253 = vmatprep.subr.bf16.mxu0 %v5103
    %5254 = vmatpush1.bf16.msra.mxu0 %v5102
    %5255 = vmatprep.subr.bf16.mxu0 %v5107
    %5256 = vmatpush1.bf16.msra.mxu0 %v5106
    %5257 = vmatprep.subr.bf16.mxu0 %v5111
    %5258 = vmatpush1.bf16.msra.mxu0 %v5110
    %5259 = vmatprep.subr.bf16.mxu0 %v5115
    %5260 = vmatpush1.bf16.msra.mxu0 %v5114
    %5261 = vmatprep.subr.bf16.mxu0 %v5119
    %5262 = vmatpush1.bf16.msra.mxu0 %v5118
    %5263 = vmatprep.subr.bf16.mxu0 %v5123
    %5264 = vmatpush1.bf16.msra.mxu0 %v5122
    %5265 = vmatprep.subr.bf16.mxu0 %v5127
    %5266 = vmatpush1.bf16.msra.mxu0 %v5126
    %5267 = vmatprep.subr.bf16.mxu0 %v5131
    %5268 = vmatpush1.bf16.msra.mxu0 %v5130
    %5269 = vmatprep.mubr.bf16.mxu0 %v4811
    %5270 = vmatmul.mubr.bf16.gmra.mrb[0].mxu0 %v4810
    %v5271 = vpop.f32.mrb[0].mxu0
    %v5272 = vadd.f32 %v863, %v5271
    %v5273 = vpop.f32.mrb[0].mxu0
    %v5274 = vadd.f32 %v867, %v5273
    %v5275 = vpop.f32.mrb[0].mxu0
    %v5276 = vpop.f32.mrb[0].mxu0
    %5277 = vdwg.mxu0
    %v5278 = vxor.u32 %v5231, 2147483648
    %v5279 = vmul.f32 %v5278, 1.442695
    %v5280 = vpow.pop %v5279
    %v5281 = vadd.f32 %v5280, 1.0
    %v5282 = vrcp.pop %v5281
    %v5283 = vmul.f32 1.0, %v5282
    %v5284 = vxor.u32 %v5233, 2147483648
    %v5285 = vmul.f32 %v5284, 1.442695
    %v5286 = vpow.pop %v5285
    %v5287 = vadd.f32 %v5286, 1.0
    %v5288 = vrcp.pop %v5287
    %v5289 = vmul.f32 1.0, %v5288
    %v5290 = vtanh.pop %v5272
    %v5291 = vxor.u32 %v5274, 2147483648
    %v5292 = vmul.f32 %v5291, 1.442695
    %v5293 = vpow.pop %v5292
    %v5294 = vadd.f32 %v5293, 1.0
    %v5295 = vrcp.pop %v5294
    %v5296 = vmul.f32 1.0, %v5295
    %v5297 = vmul.f32 %v5289, %v4498
    %v5298 = vmul.f32 %v5283, %v5290
    %v5299 = vadd.f32 %v5297, %v5298
    %v5300 = vtanh.pop %v5299
    %v5301 = vmul.f32 %v5296, %v5300
    %s5302 = scalar_lea.vmem [#allocation3], 40
    %5303 = vst [vmem:[%s5302] sm:$0xff] %v5301
    %s5304 = scalar_lea.vmem [#allocation2], 192
    %v5305 = vld [vmem:[%s5304] sm:$0xff]
    %v5306 = vld [vmem:[%s5304 + $0x8] sm:$0xff]
    %v5307 = vld [vmem:[%s5304 + $0x10] sm:$0xff]
    %v5308 = vld [vmem:[%s5304 + $0x18] sm:$0xff]
    %v5309 = vld [vmem:[#allocation4] sm:$0xff]
    %v5310 = vld [vmem:[#allocation4 + $0x8] sm:$0xff]
    %v5311 = vld [vmem:[#allocation4 + $0x10] sm:$0xff]
    %v5312 = vld [vmem:[#allocation4 + $0x18] sm:$0xff]
    %v5313 = vld [vmem:[#allocation4 + $0x20] sm:$0xff]
    %v5314 = vld [vmem:[#allocation4 + $0x28] sm:$0xff]
    %v5315 = vld [vmem:[#allocation4 + $0x30] sm:$0xff]
    %v5316 = vld [vmem:[#allocation4 + $0x38] sm:$0xff]
    %v5317 = vld [vmem:[#allocation4 + $0x40] sm:$0xff]
    %v5318 = vld [vmem:[#allocation4 + $0x48] sm:$0xff]
    %v5319 = vld [vmem:[#allocation4 + $0x50] sm:$0xff]
    %v5320 = vld [vmem:[#allocation4 + $0x58] sm:$0xff]
    %v5321 = vld [vmem:[#allocation4 + $0x60] sm:$0xff]
    %v5322 = vld [vmem:[#allocation4 + $0x68] sm:$0xff]
    %v5323 = vld [vmem:[#allocation4 + $0x70] sm:$0xff]
    %v5324 = vld [vmem:[#allocation4 + $0x78] sm:$0xff]
    %v5325 = vld [vmem:[#allocation4 + $0x80] sm:$0xff]
    %v5326 = vld [vmem:[#allocation4 + $0x88] sm:$0xff]
    %v5327 = vld [vmem:[#allocation4 + $0x90] sm:$0xff]
    %v5328 = vld [vmem:[#allocation4 + $0x98] sm:$0xff]
    %v5329 = vld [vmem:[#allocation4 + $0xa0] sm:$0xff]
    %v5330 = vld [vmem:[#allocation4 + $0xa8] sm:$0xff]
    %v5331 = vld [vmem:[#allocation4 + $0xb0] sm:$0xff]
    %v5332 = vld [vmem:[#allocation4 + $0xb8] sm:$0xff]
    %v5333 = vld [vmem:[#allocation4 + $0xc0] sm:$0xff]
    %v5334 = vld [vmem:[#allocation4 + $0xc8] sm:$0xff]
    %v5335 = vld [vmem:[#allocation4 + $0xd0] sm:$0xff]
    %v5336 = vld [vmem:[#allocation4 + $0xd8] sm:$0xff]
    %v5337 = vld [vmem:[#allocation4 + $0xe0] sm:$0xff]
    %v5338 = vld [vmem:[#allocation4 + $0xe8] sm:$0xff]
    %v5339 = vld [vmem:[#allocation4 + $0xf0] sm:$0xff]
    %v5340 = vld [vmem:[#allocation4 + $0xf8] sm:$0xff]
    %v5373 = vunpack.c.l.b16 %v5309
    %v5374 = vunpack.c.h.b16 %v5309
    %v5375 = vunpack.c.l.b16 %v5310
    %v5376 = vunpack.c.h.b16 %v5310
    %v5377 = vunpack.c.l.b16 %v5311
    %v5378 = vunpack.c.h.b16 %v5311
    %v5379 = vunpack.c.l.b16 %v5312
    %v5380 = vunpack.c.h.b16 %v5312
    %v5381 = vunpack.c.l.b16 %v5313
    %v5382 = vunpack.c.h.b16 %v5313
    %v5383 = vunpack.c.l.b16 %v5314
    %v5384 = vunpack.c.h.b16 %v5314
    %v5385 = vunpack.c.l.b16 %v5315
    %v5386 = vunpack.c.h.b16 %v5315
    %v5387 = vunpack.c.l.b16 %v5316
    %v5388 = vunpack.c.h.b16 %v5316
    %v5389 = vunpack.c.l.b16 %v5317
    %v5390 = vunpack.c.h.b16 %v5317
    %v5391 = vunpack.c.l.b16 %v5318
    %v5392 = vunpack.c.h.b16 %v5318
    %v5393 = vunpack.c.l.b16 %v5319
    %v5394 = vunpack.c.h.b16 %v5319
    %v5395 = vunpack.c.l.b16 %v5320
    %v5396 = vunpack.c.h.b16 %v5320
    %v5397 = vunpack.c.l.b16 %v5321
    %v5398 = vunpack.c.h.b16 %v5321
    %v5399 = vunpack.c.l.b16 %v5322
    %v5400 = vunpack.c.h.b16 %v5322
    %v5401 = vunpack.c.l.b16 %v5323
    %v5402 = vunpack.c.h.b16 %v5323
    %v5403 = vunpack.c.l.b16 %v5324
    %v5404 = vunpack.c.h.b16 %v5324
    %v5405 = vunpack.c.l.b16 %v5325
    %v5406 = vunpack.c.h.b16 %v5325
    %v5407 = vunpack.c.l.b16 %v5326
    %v5408 = vunpack.c.h.b16 %v5326
    %v5409 = vunpack.c.l.b16 %v5327
    %v5410 = vunpack.c.h.b16 %v5327
    %v5411 = vunpack.c.l.b16 %v5328
    %v5412 = vunpack.c.h.b16 %v5328
    %v5413 = vunpack.c.l.b16 %v5329
    %v5414 = vunpack.c.h.b16 %v5329
    %v5415 = vunpack.c.l.b16 %v5330
    %v5416 = vunpack.c.h.b16 %v5330
    %v5417 = vunpack.c.l.b16 %v5331
    %v5418 = vunpack.c.h.b16 %v5331
    %v5419 = vunpack.c.l.b16 %v5332
    %v5420 = vunpack.c.h.b16 %v5332
    %v5421 = vunpack.c.l.b16 %v5333
    %v5422 = vunpack.c.h.b16 %v5333
    %v5423 = vunpack.c.l.b16 %v5334
    %v5424 = vunpack.c.h.b16 %v5334
    %v5425 = vunpack.c.l.b16 %v5335
    %v5426 = vunpack.c.h.b16 %v5335
    %v5427 = vunpack.c.l.b16 %v5336
    %v5428 = vunpack.c.h.b16 %v5336
    %v5429 = vunpack.c.l.b16 %v5337
    %v5430 = vunpack.c.h.b16 %v5337
    %v5431 = vunpack.c.l.b16 %v5338
    %v5432 = vunpack.c.h.b16 %v5338
    %v5433 = vunpack.c.l.b16 %v5339
    %v5434 = vunpack.c.h.b16 %v5339
    %v5435 = vunpack.c.l.b16 %v5340
    %v5436 = vunpack.c.h.b16 %v5340
    %v5437 = vpack.c.b16 %v5377, %v5373
    %v5438 = vpack.c.b16 %v5378, %v5374
    %v5439 = vpack.c.b16 %v5379, %v5375
    %v5440 = vpack.c.b16 %v5380, %v5376
    %v5441 = vpack.c.b16 %v5385, %v5381
    %v5442 = vpack.c.b16 %v5386, %v5382
    %v5443 = vpack.c.b16 %v5387, %v5383
    %v5444 = vpack.c.b16 %v5388, %v5384
    %v5445 = vpack.c.b16 %v5393, %v5389
    %v5446 = vpack.c.b16 %v5394, %v5390
    %v5447 = vpack.c.b16 %v5395, %v5391
    %v5448 = vpack.c.b16 %v5396, %v5392
    %v5449 = vpack.c.b16 %v5401, %v5397
    %v5450 = vpack.c.b16 %v5402, %v5398
    %v5451 = vpack.c.b16 %v5403, %v5399
    %v5452 = vpack.c.b16 %v5404, %v5400
    %v5453 = vpack.c.b16 %v5409, %v5405
    %v5454 = vpack.c.b16 %v5410, %v5406
    %v5455 = vpack.c.b16 %v5411, %v5407
    %v5456 = vpack.c.b16 %v5412, %v5408
    %v5457 = vpack.c.b16 %v5417, %v5413
    %v5458 = vpack.c.b16 %v5418, %v5414
    %v5459 = vpack.c.b16 %v5419, %v5415
    %v5460 = vpack.c.b16 %v5420, %v5416
    %v5461 = vpack.c.b16 %v5425, %v5421
    %v5462 = vpack.c.b16 %v5426, %v5422
    %v5463 = vpack.c.b16 %v5427, %v5423
    %v5464 = vpack.c.b16 %v5428, %v5424
    %v5465 = vpack.c.b16 %v5433, %v5429
    %v5466 = vpack.c.b16 %v5434, %v5430
    %v5467 = vpack.c.b16 %v5435, %v5431
    %v5468 = vpack.c.b16 %v5436, %v5432
    %5501 = vmatprep.subr.bf16.mxu0 %v5438
    %5502 = vmatpush1.bf16.msra.mxu0 %v5437
    %5503 = vmatprep.subr.bf16.mxu0 %v5442
    %5504 = vmatpush1.bf16.msra.mxu0 %v5441
    %5505 = vmatprep.subr.bf16.mxu0 %v5446
    %5506 = vmatpush1.bf16.msra.mxu0 %v5445
    %5507 = vmatprep.subr.bf16.mxu0 %v5450
    %5508 = vmatpush1.bf16.msra.mxu0 %v5449
    %5509 = vmatprep.subr.bf16.mxu0 %v5454
    %5510 = vmatpush1.bf16.msra.mxu0 %v5453
    %5511 = vmatprep.subr.bf16.mxu0 %v5458
    %5512 = vmatpush1.bf16.msra.mxu0 %v5457
    %5513 = vmatprep.subr.bf16.mxu0 %v5462
    %5514 = vmatpush1.bf16.msra.mxu0 %v5461
    %5515 = vmatprep.subr.bf16.mxu0 %v5466
    %5516 = vmatpush1.bf16.msra.mxu0 %v5465
    %5517 = vmatprep.subr.bf16.mxu0 0
    %5518 = vmatpush1.bf16.msra.mxu0 0
    %5519 = vmatprep.subr.bf16.mxu0 0
    %5520 = vmatpush1.bf16.msra.mxu0 0
    %5521 = vmatprep.subr.bf16.mxu0 0
    %5522 = vmatpush1.bf16.msra.mxu0 0
    %5523 = vmatprep.subr.bf16.mxu0 0
    %5524 = vmatpush1.bf16.msra.mxu0 0
    %5525 = vmatprep.subr.bf16.mxu0 0
    %5526 = vmatpush1.bf16.msra.mxu0 0
    %5527 = vmatprep.subr.bf16.mxu0 0
    %5528 = vmatpush1.bf16.msra.mxu0 0
    %5529 = vmatprep.subr.bf16.mxu0 0
    %5530 = vmatpush1.bf16.msra.mxu0 0
    %5531 = vmatprep.subr.bf16.mxu0 0
    %5532 = vmatpush1.bf16.msra.mxu0 0
    %5533 = vmatprep.mubr.bf16.mxu0 0
    %5534 = vmatmul.mubr.bf16.gmra.mrb[0].mxu0 %v4810
    %v5535 = vpop.f32.mrb[0].mxu0
    %v5536 = vadd.f32 0.0, %v5535
    %v5537 = vpop.f32.mrb[0].mxu0
    %v5538 = vadd.f32 0.0, %v5537
    %v5539 = vpop.f32.mrb[0].mxu0
    %v5540 = vpop.f32.mrb[0].mxu0
    %5541 = vdwg.mxu0
    %5542 = vmatprep.subr.bf16.mxu0 %v5440
    %5543 = vmatpush1.bf16.msra.mxu0 %v5439
    %5544 = vmatprep.subr.bf16.mxu0 %v5444
    %5545 = vmatpush1.bf16.msra.mxu0 %v5443
    %5546 = vmatprep.subr.bf16.mxu0 %v5448
    %5547 = vmatpush1.bf16.msra.mxu0 %v5447
    %5548 = vmatprep.subr.bf16.mxu0 %v5452
    %5549 = vmatpush1.bf16.msra.mxu0 %v5451
    %5550 = vmatprep.subr.bf16.mxu0 %v5456
    %5551 = vmatpush1.bf16.msra.mxu0 %v5455
    %5552 = vmatprep.subr.bf16.mxu0 %v5460
    %5553 = vmatpush1.bf16.msra.mxu0 %v5459
    %5554 = vmatprep.subr.bf16.mxu0 %v5464
    %5555 = vmatpush1.bf16.msra.mxu0 %v5463
    %5556 = vmatprep.subr.bf16.mxu0 %v5468
    %5557 = vmatpush1.bf16.msra.mxu0 %v5467
    %5558 = vmatprep.subr.bf16.mxu0 0
    %5559 = vmatpush1.bf16.msra.mxu0 0
    %5560 = vmatprep.subr.bf16.mxu0 0
    %5561 = vmatpush1.bf16.msra.mxu0 0
    %5562 = vmatprep.subr.bf16.mxu0 0
    %5563 = vmatpush1.bf16.msra.mxu0 0
    %5564 = vmatprep.subr.bf16.mxu0 0
    %5565 = vmatpush1.bf16.msra.mxu0 0
    %5566 = vmatprep.subr.bf16.mxu0 0
    %5567 = vmatpush1.bf16.msra.mxu0 0
    %5568 = vmatprep.subr.bf16.mxu0 0
    %5569 = vmatpush1.bf16.msra.mxu0 0
    %5570 = vmatprep.subr.bf16.mxu0 0
    %5571 = vmatpush1.bf16.msra.mxu0 0
    %5572 = vmatprep.subr.bf16.mxu0 0
    %5573 = vmatpush1.bf16.msra.mxu0 0
    %5574 = vmatprep.mubr.bf16.mxu0 0
    %5575 = vmatmul.mubr.bf16.gmra.mrb[0].mxu0 %v4810
    %v5576 = vpop.f32.mrb[0].mxu0
    %v5577 = vadd.f32 0.0, %v5576
    %v5578 = vpop.f32.mrb[0].mxu0
    %v5579 = vadd.f32 0.0, %v5578
    %v5580 = vpop.f32.mrb[0].mxu0
    %v5581 = vpop.f32.mrb[0].mxu0
    %5582 = vdwg.mxu0
    %v5583 = vadd.f32 %v5305, %v5536
    %v5584 = vadd.f32 %v5306, %v5538
    %v5585 = vadd.f32 %v5307, %v5577
    %v5586 = vadd.f32 %v5308, %v5579
    %v5587 = vxor.u32 %v5583, 2147483648
    %v5588 = vmul.f32 %v5587, 1.442695
    %v5589 = vpow.pop %v5588
    %v5590 = vadd.f32 %v5589, 1.0
    %v5591 = vrcp.pop %v5590
    %v5592 = vmul.f32 1.0, %v5591
    %v5593 = vxor.u32 %v5584, 2147483648
    %v5594 = vmul.f32 %v5593, 1.442695
    %v5595 = vpow.pop %v5594
    %v5596 = vadd.f32 %v5595, 1.0
    %v5597 = vrcp.pop %v5596
    %v5598 = vmul.f32 1.0, %v5597
    %v5599 = vtanh.pop %v5585
    %v5600 = vxor.u32 %v5586, 2147483648
    %v5601 = vmul.f32 %v5600, 1.442695
    %v5602 = vpow.pop %v5601
    %v5603 = vadd.f32 %v5602, 1.0
    %v5604 = vrcp.pop %v5603
    %v5605 = vmul.f32 1.0, %v5604
    %v5606 = vmul.f32 %v5598, %v4807
    %v5607 = vmul.f32 %v5592, %v5599
    %v5608 = vadd.f32 %v5606, %v5607
    %v5609 = vtanh.pop %v5608
    %v5610 = vmul.f32 %v5605, %v5609
    %v5611 = vpack.c.bf16 %v5610, %v5610
    %v5612 = vpack.c.bf16 %v5301, %v5301
    %v5613 = vld [vmem:[#allocation6] sm:$0xff]
    %v5614 = vld [vmem:[#allocation6 + $0x8] sm:$0xff]
    %v5615 = vld [vmem:[#allocation6 + $0x10] sm:$0xff]
    %v5616 = vld [vmem:[#allocation6 + $0x18] sm:$0xff]
    %v5617 = vld [vmem:[#allocation6 + $0x20] sm:$0xff]
    %v5618 = vld [vmem:[#allocation6 + $0x28] sm:$0xff]
    %v5619 = vld [vmem:[#allocation6 + $0x30] sm:$0xff]
    %v5620 = vld [vmem:[#allocation6 + $0x38] sm:$0xff]
    %v5621 = vld [vmem:[#allocation6 + $0x40] sm:$0xff]
    %v5622 = vld [vmem:[#allocation6 + $0x48] sm:$0xff]
    %v5623 = vld [vmem:[#allocation6 + $0x50] sm:$0xff]
    %v5624 = vld [vmem:[#allocation6 + $0x58] sm:$0xff]
    %v5625 = vld [vmem:[#allocation6 + $0x60] sm:$0xff]
    %v5626 = vld [vmem:[#allocation6 + $0x68] sm:$0xff]
    %v5627 = vld [vmem:[#allocation6 + $0x70] sm:$0xff]
    %v5628 = vld [vmem:[#allocation6 + $0x78] sm:$0xff]
    %v5629 = vld [vmem:[#allocation6 + $0x80] sm:$0xff]
    %v5630 = vld [vmem:[#allocation6 + $0x88] sm:$0xff]
    %v5631 = vld [vmem:[#allocation6 + $0x90] sm:$0xff]
    %v5632 = vld [vmem:[#allocation6 + $0x98] sm:$0xff]
    %v5633 = vld [vmem:[#allocation6 + $0xa0] sm:$0xff]
    %v5634 = vld [vmem:[#allocation6 + $0xa8] sm:$0xff]
    %v5635 = vld [vmem:[#allocation6 + $0xb0] sm:$0xff]
    %v5636 = vld [vmem:[#allocation6 + $0xb8] sm:$0xff]
    %v5637 = vld [vmem:[#allocation6 + $0xc0] sm:$0xff]
    %v5638 = vld [vmem:[#allocation6 + $0xc8] sm:$0xff]
    %v5639 = vld [vmem:[#allocation6 + $0xd0] sm:$0xff]
    %v5640 = vld [vmem:[#allocation6 + $0xd8] sm:$0xff]
    %v5641 = vld [vmem:[#allocation6 + $0xe0] sm:$0xff]
    %v5642 = vld [vmem:[#allocation6 + $0xe8] sm:$0xff]
    %v5643 = vld [vmem:[#allocation6 + $0xf0] sm:$0xff]
    %v5644 = vld [vmem:[#allocation6 + $0xf8] sm:$0xff]
    %v5645 = vld [vmem:[#allocation6 + $0x100] sm:$0xff]
    %v5646 = vld [vmem:[#allocation6 + $0x108] sm:$0xff]
    %v5647 = vld [vmem:[#allocation6 + $0x110] sm:$0xff]
    %v5648 = vld [vmem:[#allocation6 + $0x118] sm:$0xff]
    %v5649 = vld [vmem:[#allocation6 + $0x120] sm:$0xff]
    %v5650 = vld [vmem:[#allocation6 + $0x128] sm:$0xff]
    %v5651 = vld [vmem:[#allocation6 + $0x130] sm:$0xff]
    %v5652 = vld [vmem:[#allocation6 + $0x138] sm:$0xff]
    %v5653 = vld [vmem:[#allocation6 + $0x140] sm:$0xff]
    %v5654 = vld [vmem:[#allocation6 + $0x148] sm:$0xff]
    %v5655 = vld [vmem:[#allocation6 + $0x150] sm:$0xff]
    %v5656 = vld [vmem:[#allocation6 + $0x158] sm:$0xff]
    %v5657 = vld [vmem:[#allocation6 + $0x160] sm:$0xff]
    %v5658 = vld [vmem:[#allocation6 + $0x168] sm:$0xff]
    %v5659 = vld [vmem:[#allocation6 + $0x170] sm:$0xff]
    %v5660 = vld [vmem:[#allocation6 + $0x178] sm:$0xff]
    %v5661 = vld [vmem:[#allocation6 + $0x180] sm:$0xff]
    %v5662 = vld [vmem:[#allocation6 + $0x188] sm:$0xff]
    %v5663 = vld [vmem:[#allocation6 + $0x190] sm:$0xff]
    %v5664 = vld [vmem:[#allocation6 + $0x198] sm:$0xff]
    %v5665 = vld [vmem:[#allocation6 + $0x1a0] sm:$0xff]
    %v5666 = vld [vmem:[#allocation6 + $0x1a8] sm:$0xff]
    %v5667 = vld [vmem:[#allocation6 + $0x1b0] sm:$0xff]
    %v5668 = vld [vmem:[#allocation6 + $0x1b8] sm:$0xff]
    %v5669 = vld [vmem:[#allocation6 + $0x1c0] sm:$0xff]
    %v5670 = vld [vmem:[#allocation6 + $0x1c8] sm:$0xff]
    %v5671 = vld [vmem:[#allocation6 + $0x1d0] sm:$0xff]
    %v5672 = vld [vmem:[#allocation6 + $0x1d8] sm:$0xff]
    %v5673 = vld [vmem:[#allocation6 + $0x1e0] sm:$0xff]
    %v5674 = vld [vmem:[#allocation6 + $0x1e8] sm:$0xff]
    %v5675 = vld [vmem:[#allocation6 + $0x1f0] sm:$0xff]
    %v5676 = vld [vmem:[#allocation6 + $0x1f8] sm:$0xff]
    %v5741 = vunpack.c.l.b16 %v5613
    %v5742 = vunpack.c.h.b16 %v5613
    %v5743 = vunpack.c.l.b16 %v5614
    %v5744 = vunpack.c.h.b16 %v5614
    %v5745 = vunpack.c.l.b16 %v5615
    %v5746 = vunpack.c.h.b16 %v5615
    %v5747 = vunpack.c.l.b16 %v5616
    %v5748 = vunpack.c.h.b16 %v5616
    %v5749 = vunpack.c.l.b16 %v5617
    %v5750 = vunpack.c.h.b16 %v5617
    %v5751 = vunpack.c.l.b16 %v5618
    %v5752 = vunpack.c.h.b16 %v5618
    %v5753 = vunpack.c.l.b16 %v5619
    %v5754 = vunpack.c.h.b16 %v5619
    %v5755 = vunpack.c.l.b16 %v5620
    %v5756 = vunpack.c.h.b16 %v5620
    %v5757 = vunpack.c.l.b16 %v5621
    %v5758 = vunpack.c.h.b16 %v5621
    %v5759 = vunpack.c.l.b16 %v5622
    %v5760 = vunpack.c.h.b16 %v5622
    %v5761 = vunpack.c.l.b16 %v5623
    %v5762 = vunpack.c.h.b16 %v5623
    %v5763 = vunpack.c.l.b16 %v5624
    %v5764 = vunpack.c.h.b16 %v5624
    %v5765 = vunpack.c.l.b16 %v5625
    %v5766 = vunpack.c.h.b16 %v5625
    %v5767 = vunpack.c.l.b16 %v5626
    %v5768 = vunpack.c.h.b16 %v5626
    %v5769 = vunpack.c.l.b16 %v5627
    %v5770 = vunpack.c.h.b16 %v5627
    %v5771 = vunpack.c.l.b16 %v5628
    %v5772 = vunpack.c.h.b16 %v5628
    %v5773 = vunpack.c.l.b16 %v5629
    %v5774 = vunpack.c.h.b16 %v5629
    %v5775 = vunpack.c.l.b16 %v5630
    %v5776 = vunpack.c.h.b16 %v5630
    %v5777 = vunpack.c.l.b16 %v5631
    %v5778 = vunpack.c.h.b16 %v5631
    %v5779 = vunpack.c.l.b16 %v5632
    %v5780 = vunpack.c.h.b16 %v5632
    %v5781 = vunpack.c.l.b16 %v5633
    %v5782 = vunpack.c.h.b16 %v5633
    %v5783 = vunpack.c.l.b16 %v5634
    %v5784 = vunpack.c.h.b16 %v5634
    %v5785 = vunpack.c.l.b16 %v5635
    %v5786 = vunpack.c.h.b16 %v5635
    %v5787 = vunpack.c.l.b16 %v5636
    %v5788 = vunpack.c.h.b16 %v5636
    %v5789 = vunpack.c.l.b16 %v5637
    %v5790 = vunpack.c.h.b16 %v5637
    %v5791 = vunpack.c.l.b16 %v5638
    %v5792 = vunpack.c.h.b16 %v5638
    %v5793 = vunpack.c.l.b16 %v5639
    %v5794 = vunpack.c.h.b16 %v5639
    %v5795 = vunpack.c.l.b16 %v5640
    %v5796 = vunpack.c.h.b16 %v5640
    %v5797 = vunpack.c.l.b16 %v5641
    %v5798 = vunpack.c.h.b16 %v5641
    %v5799 = vunpack.c.l.b16 %v5642
    %v5800 = vunpack.c.h.b16 %v5642
    %v5801 = vunpack.c.l.b16 %v5643
    %v5802 = vunpack.c.h.b16 %v5643
    %v5803 = vunpack.c.l.b16 %v5644
    %v5804 = vunpack.c.h.b16 %v5644
    %v5805 = vunpack.c.l.b16 %v5645
    %v5806 = vunpack.c.h.b16 %v5645
    %v5807 = vunpack.c.l.b16 %v5646
    %v5808 = vunpack.c.h.b16 %v5646
    %v5809 = vunpack.c.l.b16 %v5647
    %v5810 = vunpack.c.h.b16 %v5647
    %v5811 = vunpack.c.l.b16 %v5648
    %v5812 = vunpack.c.h.b16 %v5648
    %v5813 = vunpack.c.l.b16 %v5649
    %v5814 = vunpack.c.h.b16 %v5649
    %v5815 = vunpack.c.l.b16 %v5650
    %v5816 = vunpack.c.h.b16 %v5650
    %v5817 = vunpack.c.l.b16 %v5651
    %v5818 = vunpack.c.h.b16 %v5651
    %v5819 = vunpack.c.l.b16 %v5652
    %v5820 = vunpack.c.h.b16 %v5652
    %v5821 = vunpack.c.l.b16 %v5653
    %v5822 = vunpack.c.h.b16 %v5653
    %v5823 = vunpack.c.l.b16 %v5654
    %v5824 = vunpack.c.h.b16 %v5654
    %v5825 = vunpack.c.l.b16 %v5655
    %v5826 = vunpack.c.h.b16 %v5655
    %v5827 = vunpack.c.l.b16 %v5656
    %v5828 = vunpack.c.h.b16 %v5656
    %v5829 = vunpack.c.l.b16 %v5657
    %v5830 = vunpack.c.h.b16 %v5657
    %v5831 = vunpack.c.l.b16 %v5658
    %v5832 = vunpack.c.h.b16 %v5658
    %v5833 = vunpack.c.l.b16 %v5659
    %v5834 = vunpack.c.h.b16 %v5659
    %v5835 = vunpack.c.l.b16 %v5660
    %v5836 = vunpack.c.h.b16 %v5660
    %v5837 = vunpack.c.l.b16 %v5661
    %v5838 = vunpack.c.h.b16 %v5661
    %v5839 = vunpack.c.l.b16 %v5662
    %v5840 = vunpack.c.h.b16 %v5662
    %v5841 = vunpack.c.l.b16 %v5663
    %v5842 = vunpack.c.h.b16 %v5663
    %v5843 = vunpack.c.l.b16 %v5664
    %v5844 = vunpack.c.h.b16 %v5664
    %v5845 = vunpack.c.l.b16 %v5665
    %v5846 = vunpack.c.h.b16 %v5665
    %v5847 = vunpack.c.l.b16 %v5666
    %v5848 = vunpack.c.h.b16 %v5666
    %v5849 = vunpack.c.l.b16 %v5667
    %v5850 = vunpack.c.h.b16 %v5667
    %v5851 = vunpack.c.l.b16 %v5668
    %v5852 = vunpack.c.h.b16 %v5668
    %v5853 = vunpack.c.l.b16 %v5669
    %v5854 = vunpack.c.h.b16 %v5669
    %v5855 = vunpack.c.l.b16 %v5670
    %v5856 = vunpack.c.h.b16 %v5670
    %v5857 = vunpack.c.l.b16 %v5671
    %v5858 = vunpack.c.h.b16 %v5671
    %v5859 = vunpack.c.l.b16 %v5672
    %v5860 = vunpack.c.h.b16 %v5672
    %v5861 = vunpack.c.l.b16 %v5673
    %v5862 = vunpack.c.h.b16 %v5673
    %v5863 = vunpack.c.l.b16 %v5674
    %v5864 = vunpack.c.h.b16 %v5674
    %v5865 = vunpack.c.l.b16 %v5675
    %v5866 = vunpack.c.h.b16 %v5675
    %v5867 = vunpack.c.l.b16 %v5676
    %v5868 = vunpack.c.h.b16 %v5676
    %v5869 = vpack.c.b16 %v5745, %v5741
    %v5870 = vpack.c.b16 %v5746, %v5742
    %v5871 = vpack.c.b16 %v5747, %v5743
    %v5872 = vpack.c.b16 %v5748, %v5744
    %v5873 = vpack.c.b16 %v5753, %v5749
    %v5874 = vpack.c.b16 %v5754, %v5750
    %v5875 = vpack.c.b16 %v5755, %v5751
    %v5876 = vpack.c.b16 %v5756, %v5752
    %v5877 = vpack.c.b16 %v5761, %v5757
    %v5878 = vpack.c.b16 %v5762, %v5758
    %v5879 = vpack.c.b16 %v5763, %v5759
    %v5880 = vpack.c.b16 %v5764, %v5760
    %v5881 = vpack.c.b16 %v5769, %v5765
    %v5882 = vpack.c.b16 %v5770, %v5766
    %v5883 = vpack.c.b16 %v5771, %v5767
    %v5884 = vpack.c.b16 %v5772, %v5768
    %v5885 = vpack.c.b16 %v5777, %v5773
    %v5886 = vpack.c.b16 %v5778, %v5774
    %v5887 = vpack.c.b16 %v5779, %v5775
    %v5888 = vpack.c.b16 %v5780, %v5776
    %v5889 = vpack.c.b16 %v5785, %v5781
    %v5890 = vpack.c.b16 %v5786, %v5782
    %v5891 = vpack.c.b16 %v5787, %v5783
    %v5892 = vpack.c.b16 %v5788, %v5784
    %v5893 = vpack.c.b16 %v5793, %v5789
    %v5894 = vpack.c.b16 %v5794, %v5790
    %v5895 = vpack.c.b16 %v5795, %v5791
    %v5896 = vpack.c.b16 %v5796, %v5792
    %v5897 = vpack.c.b16 %v5801, %v5797
    %v5898 = vpack.c.b16 %v5802, %v5798
    %v5899 = vpack.c.b16 %v5803, %v5799
    %v5900 = vpack.c.b16 %v5804, %v5800
    %v5901 = vpack.c.b16 %v5809, %v5805
    %v5902 = vpack.c.b16 %v5810, %v5806
    %v5903 = vpack.c.b16 %v5811, %v5807
    %v5904 = vpack.c.b16 %v5812, %v5808
    %v5905 = vpack.c.b16 %v5817, %v5813
    %v5906 = vpack.c.b16 %v5818, %v5814
    %v5907 = vpack.c.b16 %v5819, %v5815
    %v5908 = vpack.c.b16 %v5820, %v5816
    %v5909 = vpack.c.b16 %v5825, %v5821
    %v5910 = vpack.c.b16 %v5826, %v5822
    %v5911 = vpack.c.b16 %v5827, %v5823
    %v5912 = vpack.c.b16 %v5828, %v5824
    %v5913 = vpack.c.b16 %v5833, %v5829
    %v5914 = vpack.c.b16 %v5834, %v5830
    %v5915 = vpack.c.b16 %v5835, %v5831
    %v5916 = vpack.c.b16 %v5836, %v5832
    %v5917 = vpack.c.b16 %v5841, %v5837
    %v5918 = vpack.c.b16 %v5842, %v5838
    %v5919 = vpack.c.b16 %v5843, %v5839
    %v5920 = vpack.c.b16 %v5844, %v5840
    %v5921 = vpack.c.b16 %v5849, %v5845
    %v5922 = vpack.c.b16 %v5850, %v5846
    %v5923 = vpack.c.b16 %v5851, %v5847
    %v5924 = vpack.c.b16 %v5852, %v5848
    %v5925 = vpack.c.b16 %v5857, %v5853
    %v5926 = vpack.c.b16 %v5858, %v5854
    %v5927 = vpack.c.b16 %v5859, %v5855
    %v5928 = vpack.c.b16 %v5860, %v5856
    %v5929 = vpack.c.b16 %v5865, %v5861
    %v5930 = vpack.c.b16 %v5866, %v5862
    %v5931 = vpack.c.b16 %v5867, %v5863
    %v5932 = vpack.c.b16 %v5868, %v5864
    %5997 = vmatprep.subr.bf16.mxu0 %v5870
    %5998 = vmatpush1.bf16.msra.mxu0 %v5869
    %5999 = vmatprep.subr.bf16.mxu0 %v5874
    %6000 = vmatpush1.bf16.msra.mxu0 %v5873
    %6001 = vmatprep.subr.bf16.mxu0 %v5878
    %6002 = vmatpush1.bf16.msra.mxu0 %v5877
    %6003 = vmatprep.subr.bf16.mxu0 %v5882
    %6004 = vmatpush1.bf16.msra.mxu0 %v5881
    %6005 = vmatprep.subr.bf16.mxu0 %v5886
    %6006 = vmatpush1.bf16.msra.mxu0 %v5885
    %6007 = vmatprep.subr.bf16.mxu0 %v5890
    %6008 = vmatpush1.bf16.msra.mxu0 %v5889
    %6009 = vmatprep.subr.bf16.mxu0 %v5894
    %6010 = vmatpush1.bf16.msra.mxu0 %v5893
    %6011 = vmatprep.subr.bf16.mxu0 %v5898
    %6012 = vmatpush1.bf16.msra.mxu0 %v5897
    %6013 = vmatprep.subr.bf16.mxu0 %v5902
    %6014 = vmatpush1.bf16.msra.mxu0 %v5901
    %6015 = vmatprep.subr.bf16.mxu0 %v5906
    %6016 = vmatpush1.bf16.msra.mxu0 %v5905
    %6017 = vmatprep.subr.bf16.mxu0 %v5910
    %6018 = vmatpush1.bf16.msra.mxu0 %v5909
    %6019 = vmatprep.subr.bf16.mxu0 %v5914
    %6020 = vmatpush1.bf16.msra.mxu0 %v5913
    %6021 = vmatprep.subr.bf16.mxu0 %v5918
    %6022 = vmatpush1.bf16.msra.mxu0 %v5917
    %6023 = vmatprep.subr.bf16.mxu0 %v5922
    %6024 = vmatpush1.bf16.msra.mxu0 %v5921
    %6025 = vmatprep.subr.bf16.mxu0 %v5926
    %6026 = vmatpush1.bf16.msra.mxu0 %v5925
    %6027 = vmatprep.subr.bf16.mxu0 %v5930
    %6028 = vmatpush1.bf16.msra.mxu0 %v5929
    %6029 = vmatprep.mubr.bf16.mxu0 %v5612
    %6030 = vmatmul.mubr.bf16.gmra.mrb[0].mxu0 %v5611
    %v6031 = vpop.f32.mrb[0].mxu0
    %v6032 = vadd.f32 %v855, %v6031
    %v6033 = vpop.f32.mrb[0].mxu0
    %v6034 = vadd.f32 %v859, %v6033
    %v6035 = vpop.f32.mrb[0].mxu0
    %v6036 = vpop.f32.mrb[0].mxu0
    %6037 = vdwg.mxu0
    %6038 = vmatprep.subr.bf16.mxu0 %v5872
    %6039 = vmatpush1.bf16.msra.mxu0 %v5871
    %6040 = vmatprep.subr.bf16.mxu0 %v5876
    %6041 = vmatpush1.bf16.msra.mxu0 %v5875
    %6042 = vmatprep.subr.bf16.mxu0 %v5880
    %6043 = vmatpush1.bf16.msra.mxu0 %v5879
    %6044 = vmatprep.subr.bf16.mxu0 %v5884
    %6045 = vmatpush1.bf16.msra.mxu0 %v5883
    %6046 = vmatprep.subr.bf16.mxu0 %v5888
    %6047 = vmatpush1.bf16.msra.mxu0 %v5887
    %6048 = vmatprep.subr.bf16.mxu0 %v5892
    %6049 = vmatpush1.bf16.msra.mxu0 %v5891
    %6050 = vmatprep.subr.bf16.mxu0 %v5896
    %6051 = vmatpush1.bf16.msra.mxu0 %v5895
    %6052 = vmatprep.subr.bf16.mxu0 %v5900
    %6053 = vmatpush1.bf16.msra.mxu0 %v5899
    %6054 = vmatprep.subr.bf16.mxu0 %v5904
    %6055 = vmatpush1.bf16.msra.mxu0 %v5903
    %6056 = vmatprep.subr.bf16.mxu0 %v5908
    %6057 = vmatpush1.bf16.msra.mxu0 %v5907
    %6058 = vmatprep.subr.bf16.mxu0 %v5912
    %6059 = vmatpush1.bf16.msra.mxu0 %v5911
    %6060 = vmatprep.subr.bf16.mxu0 %v5916
    %6061 = vmatpush1.bf16.msra.mxu0 %v5915
    %6062 = vmatprep.subr.bf16.mxu0 %v5920
    %6063 = vmatpush1.bf16.msra.mxu0 %v5919
    %6064 = vmatprep.subr.bf16.mxu0 %v5924
    %6065 = vmatpush1.bf16.msra.mxu0 %v5923
    %6066 = vmatprep.subr.bf16.mxu0 %v5928
    %6067 = vmatpush1.bf16.msra.mxu0 %v5927
    %6068 = vmatprep.subr.bf16.mxu0 %v5932
    %6069 = vmatpush1.bf16.msra.mxu0 %v5931
    %6070 = vmatprep.mubr.bf16.mxu0 %v5612
    %6071 = vmatmul.mubr.bf16.gmra.mrb[0].mxu0 %v5611
    %v6072 = vpop.f32.mrb[0].mxu0
    %v6073 = vadd.f32 %v863, %v6072
    %v6074 = vpop.f32.mrb[0].mxu0
    %v6075 = vadd.f32 %v867, %v6074
    %v6076 = vpop.f32.mrb[0].mxu0
    %v6077 = vpop.f32.mrb[0].mxu0
    %6078 = vdwg.mxu0
    %v6079 = vxor.u32 %v6032, 2147483648
    %v6080 = vmul.f32 %v6079, 1.442695
    %v6081 = vpow.pop %v6080
    %v6082 = vadd.f32 %v6081, 1.0
    %v6083 = vrcp.pop %v6082
    %v6084 = vmul.f32 1.0, %v6083
    %v6085 = vxor.u32 %v6034, 2147483648
    %v6086 = vmul.f32 %v6085, 1.442695
    %v6087 = vpow.pop %v6086
    %v6088 = vadd.f32 %v6087, 1.0
    %v6089 = vrcp.pop %v6088
    %v6090 = vmul.f32 1.0, %v6089
    %v6091 = vtanh.pop %v6073
    %v6092 = vxor.u32 %v6075, 2147483648
    %v6093 = vmul.f32 %v6092, 1.442695
    %v6094 = vpow.pop %v6093
    %v6095 = vadd.f32 %v6094, 1.0
    %v6096 = vrcp.pop %v6095
    %v6097 = vmul.f32 1.0, %v6096
    %v6098 = vmul.f32 %v6090, %v5299
    %v6099 = vmul.f32 %v6084, %v6091
    %v6100 = vadd.f32 %v6098, %v6099
    %v6101 = vtanh.pop %v6100
    %v6102 = vmul.f32 %v6097, %v6101
    %s6103 = scalar_lea.vmem [#allocation3], 48
    %6104 = vst [vmem:[%s6103] sm:$0xff] %v6102
    %s6105 = scalar_lea.vmem [#allocation2], 224
    %v6106 = vld [vmem:[%s6105] sm:$0xff]
    %v6107 = vld [vmem:[%s6105 + $0x8] sm:$0xff]
    %v6108 = vld [vmem:[%s6105 + $0x10] sm:$0xff]
    %v6109 = vld [vmem:[%s6105 + $0x18] sm:$0xff]
    %v6110 = vld [vmem:[#allocation4] sm:$0xff]
    %v6111 = vld [vmem:[#allocation4 + $0x8] sm:$0xff]
    %v6112 = vld [vmem:[#allocation4 + $0x10] sm:$0xff]
    %v6113 = vld [vmem:[#allocation4 + $0x18] sm:$0xff]
    %v6114 = vld [vmem:[#allocation4 + $0x20] sm:$0xff]
    %v6115 = vld [vmem:[#allocation4 + $0x28] sm:$0xff]
    %v6116 = vld [vmem:[#allocation4 + $0x30] sm:$0xff]
    %v6117 = vld [vmem:[#allocation4 + $0x38] sm:$0xff]
    %v6118 = vld [vmem:[#allocation4 + $0x40] sm:$0xff]
    %v6119 = vld [vmem:[#allocation4 + $0x48] sm:$0xff]
    %v6120 = vld [vmem:[#allocation4 + $0x50] sm:$0xff]
    %v6121 = vld [vmem:[#allocation4 + $0x58] sm:$0xff]
    %v6122 = vld [vmem:[#allocation4 + $0x60] sm:$0xff]
    %v6123 = vld [vmem:[#allocation4 + $0x68] sm:$0xff]
    %v6124 = vld [vmem:[#allocation4 + $0x70] sm:$0xff]
    %v6125 = vld [vmem:[#allocation4 + $0x78] sm:$0xff]
    %v6126 = vld [vmem:[#allocation4 + $0x80] sm:$0xff]
    %v6127 = vld [vmem:[#allocation4 + $0x88] sm:$0xff]
    %v6128 = vld [vmem:[#allocation4 + $0x90] sm:$0xff]
    %v6129 = vld [vmem:[#allocation4 + $0x98] sm:$0xff]
    %v6130 = vld [vmem:[#allocation4 + $0xa0] sm:$0xff]
    %v6131 = vld [vmem:[#allocation4 + $0xa8] sm:$0xff]
    %v6132 = vld [vmem:[#allocation4 + $0xb0] sm:$0xff]
    %v6133 = vld [vmem:[#allocation4 + $0xb8] sm:$0xff]
    %v6134 = vld [vmem:[#allocation4 + $0xc0] sm:$0xff]
    %v6135 = vld [vmem:[#allocation4 + $0xc8] sm:$0xff]
    %v6136 = vld [vmem:[#allocation4 + $0xd0] sm:$0xff]
    %v6137 = vld [vmem:[#allocation4 + $0xd8] sm:$0xff]
    %v6138 = vld [vmem:[#allocation4 + $0xe0] sm:$0xff]
    %v6139 = vld [vmem:[#allocation4 + $0xe8] sm:$0xff]
    %v6140 = vld [vmem:[#allocation4 + $0xf0] sm:$0xff]
    %v6141 = vld [vmem:[#allocation4 + $0xf8] sm:$0xff]
    %v6174 = vunpack.c.l.b16 %v6110
    %v6175 = vunpack.c.h.b16 %v6110
    %v6176 = vunpack.c.l.b16 %v6111
    %v6177 = vunpack.c.h.b16 %v6111
    %v6178 = vunpack.c.l.b16 %v6112
    %v6179 = vunpack.c.h.b16 %v6112
    %v6180 = vunpack.c.l.b16 %v6113
    %v6181 = vunpack.c.h.b16 %v6113
    %v6182 = vunpack.c.l.b16 %v6114
    %v6183 = vunpack.c.h.b16 %v6114
    %v6184 = vunpack.c.l.b16 %v6115
    %v6185 = vunpack.c.h.b16 %v6115
    %v6186 = vunpack.c.l.b16 %v6116
    %v6187 = vunpack.c.h.b16 %v6116
    %v6188 = vunpack.c.l.b16 %v6117
    %v6189 = vunpack.c.h.b16 %v6117
    %v6190 = vunpack.c.l.b16 %v6118
    %v6191 = vunpack.c.h.b16 %v6118
    %v6192 = vunpack.c.l.b16 %v6119
    %v6193 = vunpack.c.h.b16 %v6119
    %v6194 = vunpack.c.l.b16 %v6120
    %v6195 = vunpack.c.h.b16 %v6120
    %v6196 = vunpack.c.l.b16 %v6121
    %v6197 = vunpack.c.h.b16 %v6121
    %v6198 = vunpack.c.l.b16 %v6122
    %v6199 = vunpack.c.h.b16 %v6122
    %v6200 = vunpack.c.l.b16 %v6123
    %v6201 = vunpack.c.h.b16 %v6123
    %v6202 = vunpack.c.l.b16 %v6124
    %v6203 = vunpack.c.h.b16 %v6124
    %v6204 = vunpack.c.l.b16 %v6125
    %v6205 = vunpack.c.h.b16 %v6125
    %v6206 = vunpack.c.l.b16 %v6126
    %v6207 = vunpack.c.h.b16 %v6126
    %v6208 = vunpack.c.l.b16 %v6127
    %v6209 = vunpack.c.h.b16 %v6127
    %v6210 = vunpack.c.l.b16 %v6128
    %v6211 = vunpack.c.h.b16 %v6128
    %v6212 = vunpack.c.l.b16 %v6129
    %v6213 = vunpack.c.h.b16 %v6129
    %v6214 = vunpack.c.l.b16 %v6130
    %v6215 = vunpack.c.h.b16 %v6130
    %v6216 = vunpack.c.l.b16 %v6131
    %v6217 = vunpack.c.h.b16 %v6131
    %v6218 = vunpack.c.l.b16 %v6132
    %v6219 = vunpack.c.h.b16 %v6132
    %v6220 = vunpack.c.l.b16 %v6133
    %v6221 = vunpack.c.h.b16 %v6133
    %v6222 = vunpack.c.l.b16 %v6134
    %v6223 = vunpack.c.h.b16 %v6134
    %v6224 = vunpack.c.l.b16 %v6135
    %v6225 = vunpack.c.h.b16 %v6135
    %v6226 = vunpack.c.l.b16 %v6136
    %v6227 = vunpack.c.h.b16 %v6136
    %v6228 = vunpack.c.l.b16 %v6137
    %v6229 = vunpack.c.h.b16 %v6137
    %v6230 = vunpack.c.l.b16 %v6138
    %v6231 = vunpack.c.h.b16 %v6138
    %v6232 = vunpack.c.l.b16 %v6139
    %v6233 = vunpack.c.h.b16 %v6139
    %v6234 = vunpack.c.l.b16 %v6140
    %v6235 = vunpack.c.h.b16 %v6140
    %v6236 = vunpack.c.l.b16 %v6141
    %v6237 = vunpack.c.h.b16 %v6141
    %v6238 = vpack.c.b16 %v6178, %v6174
    %v6239 = vpack.c.b16 %v6179, %v6175
    %v6240 = vpack.c.b16 %v6180, %v6176
    %v6241 = vpack.c.b16 %v6181, %v6177
    %v6242 = vpack.c.b16 %v6186, %v6182
    %v6243 = vpack.c.b16 %v6187, %v6183
    %v6244 = vpack.c.b16 %v6188, %v6184
    %v6245 = vpack.c.b16 %v6189, %v6185
    %v6246 = vpack.c.b16 %v6194, %v6190
    %v6247 = vpack.c.b16 %v6195, %v6191
    %v6248 = vpack.c.b16 %v6196, %v6192
    %v6249 = vpack.c.b16 %v6197, %v6193
    %v6250 = vpack.c.b16 %v6202, %v6198
    %v6251 = vpack.c.b16 %v6203, %v6199
    %v6252 = vpack.c.b16 %v6204, %v6200
    %v6253 = vpack.c.b16 %v6205, %v6201
    %v6254 = vpack.c.b16 %v6210, %v6206
    %v6255 = vpack.c.b16 %v6211, %v6207
    %v6256 = vpack.c.b16 %v6212, %v6208
    %v6257 = vpack.c.b16 %v6213, %v6209
    %v6258 = vpack.c.b16 %v6218, %v6214
    %v6259 = vpack.c.b16 %v6219, %v6215
    %v6260 = vpack.c.b16 %v6220, %v6216
    %v6261 = vpack.c.b16 %v6221, %v6217
    %v6262 = vpack.c.b16 %v6226, %v6222
    %v6263 = vpack.c.b16 %v6227, %v6223
    %v6264 = vpack.c.b16 %v6228, %v6224
    %v6265 = vpack.c.b16 %v6229, %v6225
    %v6266 = vpack.c.b16 %v6234, %v6230
    %v6267 = vpack.c.b16 %v6235, %v6231
    %v6268 = vpack.c.b16 %v6236, %v6232
    %v6269 = vpack.c.b16 %v6237, %v6233
    %6302 = vmatprep.subr.bf16.mxu0 %v6239
    %6303 = vmatpush1.bf16.msra.mxu0 %v6238
    %6304 = vmatprep.subr.bf16.mxu0 %v6243
    %6305 = vmatpush1.bf16.msra.mxu0 %v6242
    %6306 = vmatprep.subr.bf16.mxu0 %v6247
    %6307 = vmatpush1.bf16.msra.mxu0 %v6246
    %6308 = vmatprep.subr.bf16.mxu0 %v6251
    %6309 = vmatpush1.bf16.msra.mxu0 %v6250
    %6310 = vmatprep.subr.bf16.mxu0 %v6255
    %6311 = vmatpush1.bf16.msra.mxu0 %v6254
    %6312 = vmatprep.subr.bf16.mxu0 %v6259
    %6313 = vmatpush1.bf16.msra.mxu0 %v6258
    %6314 = vmatprep.subr.bf16.mxu0 %v6263
    %6315 = vmatpush1.bf16.msra.mxu0 %v6262
    %6316 = vmatprep.subr.bf16.mxu0 %v6267
    %6317 = vmatpush1.bf16.msra.mxu0 %v6266
    %6318 = vmatprep.subr.bf16.mxu0 0
    %6319 = vmatpush1.bf16.msra.mxu0 0
    %6320 = vmatprep.subr.bf16.mxu0 0
    %6321 = vmatpush1.bf16.msra.mxu0 0
    %6322 = vmatprep.subr.bf16.mxu0 0
    %6323 = vmatpush1.bf16.msra.mxu0 0
    %6324 = vmatprep.subr.bf16.mxu0 0
    %6325 = vmatpush1.bf16.msra.mxu0 0
    %6326 = vmatprep.subr.bf16.mxu0 0
    %6327 = vmatpush1.bf16.msra.mxu0 0
    %6328 = vmatprep.subr.bf16.mxu0 0
    %6329 = vmatpush1.bf16.msra.mxu0 0
    %6330 = vmatprep.subr.bf16.mxu0 0
    %6331 = vmatpush1.bf16.msra.mxu0 0
    %6332 = vmatprep.subr.bf16.mxu0 0
    %6333 = vmatpush1.bf16.msra.mxu0 0
    %6334 = vmatprep.mubr.bf16.mxu0 0
    %6335 = vmatmul.mubr.bf16.gmra.mrb[0].mxu0 %v5611
    %v6336 = vpop.f32.mrb[0].mxu0
    %v6337 = vadd.f32 0.0, %v6336
    %v6338 = vpop.f32.mrb[0].mxu0
    %v6339 = vadd.f32 0.0, %v6338
    %v6340 = vpop.f32.mrb[0].mxu0
    %v6341 = vpop.f32.mrb[0].mxu0
    %6342 = vdwg.mxu0
    %6343 = vmatprep.subr.bf16.mxu0 %v6241
    %6344 = vmatpush1.bf16.msra.mxu0 %v6240
    %6345 = vmatprep.subr.bf16.mxu0 %v6245
    %6346 = vmatpush1.bf16.msra.mxu0 %v6244
    %6347 = vmatprep.subr.bf16.mxu0 %v6249
    %6348 = vmatpush1.bf16.msra.mxu0 %v6248
    %6349 = vmatprep.subr.bf16.mxu0 %v6253
    %6350 = vmatpush1.bf16.msra.mxu0 %v6252
    %6351 = vmatprep.subr.bf16.mxu0 %v6257
    %6352 = vmatpush1.bf16.msra.mxu0 %v6256
    %6353 = vmatprep.subr.bf16.mxu0 %v6261
    %6354 = vmatpush1.bf16.msra.mxu0 %v6260
    %6355 = vmatprep.subr.bf16.mxu0 %v6265
    %6356 = vmatpush1.bf16.msra.mxu0 %v6264
    %6357 = vmatprep.subr.bf16.mxu0 %v6269
    %6358 = vmatpush1.bf16.msra.mxu0 %v6268
    %6359 = vmatprep.subr.bf16.mxu0 0
    %6360 = vmatpush1.bf16.msra.mxu0 0
    %6361 = vmatprep.subr.bf16.mxu0 0
    %6362 = vmatpush1.bf16.msra.mxu0 0
    %6363 = vmatprep.subr.bf16.mxu0 0
    %6364 = vmatpush1.bf16.msra.mxu0 0
    %6365 = vmatprep.subr.bf16.mxu0 0
    %6366 = vmatpush1.bf16.msra.mxu0 0
    %6367 = vmatprep.subr.bf16.mxu0 0
    %6368 = vmatpush1.bf16.msra.mxu0 0
    %6369 = vmatprep.subr.bf16.mxu0 0
    %6370 = vmatpush1.bf16.msra.mxu0 0
    %6371 = vmatprep.subr.bf16.mxu0 0
    %6372 = vmatpush1.bf16.msra.mxu0 0
    %6373 = vmatprep.subr.bf16.mxu0 0
    %6374 = vmatpush1.bf16.msra.mxu0 0
    %6375 = vmatprep.mubr.bf16.mxu0 0
    %6376 = vmatmul.mubr.bf16.gmra.mrb[0].mxu0 %v5611
    %v6377 = vpop.f32.mrb[0].mxu0
    %v6378 = vadd.f32 0.0, %v6377
    %v6379 = vpop.f32.mrb[0].mxu0
    %v6380 = vadd.f32 0.0, %v6379
    %v6381 = vpop.f32.mrb[0].mxu0
    %v6382 = vpop.f32.mrb[0].mxu0
    %6383 = vdwg.mxu0
    %v6384 = vadd.f32 %v6106, %v6337
    %v6385 = vadd.f32 %v6107, %v6339
    %v6386 = vadd.f32 %v6108, %v6378
    %v6387 = vadd.f32 %v6109, %v6380
    %v6388 = vxor.u32 %v6384, 2147483648
    %v6389 = vmul.f32 %v6388, 1.442695
    %v6390 = vpow.pop %v6389
    %v6391 = vadd.f32 %v6390, 1.0
    %v6392 = vrcp.pop %v6391
    %v6393 = vmul.f32 1.0, %v6392
    %v6394 = vxor.u32 %v6385, 2147483648
    %v6395 = vmul.f32 %v6394, 1.442695
    %v6396 = vpow.pop %v6395
    %v6397 = vadd.f32 %v6396, 1.0
    %v6398 = vrcp.pop %v6397
    %v6399 = vmul.f32 1.0, %v6398
    %v6400 = vtanh.pop %v6386
    %v6401 = vxor.u32 %v6387, 2147483648
    %v6402 = vmul.f32 %v6401, 1.442695
    %v6403 = vpow.pop %v6402
    %v6404 = vadd.f32 %v6403, 1.0
    %v6405 = vrcp.pop %v6404
    %v6406 = vmul.f32 1.0, %v6405
    %v6407 = vmul.f32 %v6399, %v5608
    %v6408 = vmul.f32 %v6393, %v6400
    %v6409 = vadd.f32 %v6407, %v6408
    %v6410 = vtanh.pop %v6409
    %v6411 = vmul.f32 %v6406, %v6410
    %v6412 = vpack.c.bf16 %v6411, %v6411
    %v6413 = vpack.c.bf16 %v6102, %v6102
    %v6414 = vld [vmem:[#allocation6] sm:$0xff]
    %v6415 = vld [vmem:[#allocation6 + $0x8] sm:$0xff]
    %v6416 = vld [vmem:[#allocation6 + $0x10] sm:$0xff]
    %v6417 = vld [vmem:[#allocation6 + $0x18] sm:$0xff]
    %v6418 = vld [vmem:[#allocation6 + $0x20] sm:$0xff]
    %v6419 = vld [vmem:[#allocation6 + $0x28] sm:$0xff]
    %v6420 = vld [vmem:[#allocation6 + $0x30] sm:$0xff]
    %v6421 = vld [vmem:[#allocation6 + $0x38] sm:$0xff]
    %v6422 = vld [vmem:[#allocation6 + $0x40] sm:$0xff]
    %v6423 = vld [vmem:[#allocation6 + $0x48] sm:$0xff]
    %v6424 = vld [vmem:[#allocation6 + $0x50] sm:$0xff]
    %v6425 = vld [vmem:[#allocation6 + $0x58] sm:$0xff]
    %v6426 = vld [vmem:[#allocation6 + $0x60] sm:$0xff]
    %v6427 = vld [vmem:[#allocation6 + $0x68] sm:$0xff]
    %v6428 = vld [vmem:[#allocation6 + $0x70] sm:$0xff]
    %v6429 = vld [vmem:[#allocation6 + $0x78] sm:$0xff]
    %v6430 = vld [vmem:[#allocation6 + $0x80] sm:$0xff]
    %v6431 = vld [vmem:[#allocation6 + $0x88] sm:$0xff]
    %v6432 = vld [vmem:[#allocation6 + $0x90] sm:$0xff]
    %v6433 = vld [vmem:[#allocation6 + $0x98] sm:$0xff]
    %v6434 = vld [vmem:[#allocation6 + $0xa0] sm:$0xff]
    %v6435 = vld [vmem:[#allocation6 + $0xa8] sm:$0xff]
    %v6436 = vld [vmem:[#allocation6 + $0xb0] sm:$0xff]
    %v6437 = vld [vmem:[#allocation6 + $0xb8] sm:$0xff]
    %v6438 = vld [vmem:[#allocation6 + $0xc0] sm:$0xff]
    %v6439 = vld [vmem:[#allocation6 + $0xc8] sm:$0xff]
    %v6440 = vld [vmem:[#allocation6 + $0xd0] sm:$0xff]
    %v6441 = vld [vmem:[#allocation6 + $0xd8] sm:$0xff]
    %v6442 = vld [vmem:[#allocation6 + $0xe0] sm:$0xff]
    %v6443 = vld [vmem:[#allocation6 + $0xe8] sm:$0xff]
    %v6444 = vld [vmem:[#allocation6 + $0xf0] sm:$0xff]
    %v6445 = vld [vmem:[#allocation6 + $0xf8] sm:$0xff]
    %v6446 = vld [vmem:[#allocation6 + $0x100] sm:$0xff]
    %v6447 = vld [vmem:[#allocation6 + $0x108] sm:$0xff]
    %v6448 = vld [vmem:[#allocation6 + $0x110] sm:$0xff]
    %v6449 = vld [vmem:[#allocation6 + $0x118] sm:$0xff]
    %v6450 = vld [vmem:[#allocation6 + $0x120] sm:$0xff]
    %v6451 = vld [vmem:[#allocation6 + $0x128] sm:$0xff]
    %v6452 = vld [vmem:[#allocation6 + $0x130] sm:$0xff]
    %v6453 = vld [vmem:[#allocation6 + $0x138] sm:$0xff]
    %v6454 = vld [vmem:[#allocation6 + $0x140] sm:$0xff]
    %v6455 = vld [vmem:[#allocation6 + $0x148] sm:$0xff]
    %v6456 = vld [vmem:[#allocation6 + $0x150] sm:$0xff]
    %v6457 = vld [vmem:[#allocation6 + $0x158] sm:$0xff]
    %v6458 = vld [vmem:[#allocation6 + $0x160] sm:$0xff]
    %v6459 = vld [vmem:[#allocation6 + $0x168] sm:$0xff]
    %v6460 = vld [vmem:[#allocation6 + $0x170] sm:$0xff]
    %v6461 = vld [vmem:[#allocation6 + $0x178] sm:$0xff]
    %v6462 = vld [vmem:[#allocation6 + $0x180] sm:$0xff]
    %v6463 = vld [vmem:[#allocation6 + $0x188] sm:$0xff]
    %v6464 = vld [vmem:[#allocation6 + $0x190] sm:$0xff]
    %v6465 = vld [vmem:[#allocation6 + $0x198] sm:$0xff]
    %v6466 = vld [vmem:[#allocation6 + $0x1a0] sm:$0xff]
    %v6467 = vld [vmem:[#allocation6 + $0x1a8] sm:$0xff]
    %v6468 = vld [vmem:[#allocation6 + $0x1b0] sm:$0xff]
    %v6469 = vld [vmem:[#allocation6 + $0x1b8] sm:$0xff]
    %v6470 = vld [vmem:[#allocation6 + $0x1c0] sm:$0xff]
    %v6471 = vld [vmem:[#allocation6 + $0x1c8] sm:$0xff]
    %v6472 = vld [vmem:[#allocation6 + $0x1d0] sm:$0xff]
    %v6473 = vld [vmem:[#allocation6 + $0x1d8] sm:$0xff]
    %v6474 = vld [vmem:[#allocation6 + $0x1e0] sm:$0xff]
    %v6475 = vld [vmem:[#allocation6 + $0x1e8] sm:$0xff]
    %v6476 = vld [vmem:[#allocation6 + $0x1f0] sm:$0xff]
    %v6477 = vld [vmem:[#allocation6 + $0x1f8] sm:$0xff]
    %v6542 = vunpack.c.l.b16 %v6414
    %v6543 = vunpack.c.h.b16 %v6414
    %v6544 = vunpack.c.l.b16 %v6415
    %v6545 = vunpack.c.h.b16 %v6415
    %v6546 = vunpack.c.l.b16 %v6416
    %v6547 = vunpack.c.h.b16 %v6416
    %v6548 = vunpack.c.l.b16 %v6417
    %v6549 = vunpack.c.h.b16 %v6417
    %v6550 = vunpack.c.l.b16 %v6418
    %v6551 = vunpack.c.h.b16 %v6418
    %v6552 = vunpack.c.l.b16 %v6419
    %v6553 = vunpack.c.h.b16 %v6419
    %v6554 = vunpack.c.l.b16 %v6420
    %v6555 = vunpack.c.h.b16 %v6420
    %v6556 = vunpack.c.l.b16 %v6421
    %v6557 = vunpack.c.h.b16 %v6421
    %v6558 = vunpack.c.l.b16 %v6422
    %v6559 = vunpack.c.h.b16 %v6422
    %v6560 = vunpack.c.l.b16 %v6423
    %v6561 = vunpack.c.h.b16 %v6423
    %v6562 = vunpack.c.l.b16 %v6424
    %v6563 = vunpack.c.h.b16 %v6424
    %v6564 = vunpack.c.l.b16 %v6425
    %v6565 = vunpack.c.h.b16 %v6425
    %v6566 = vunpack.c.l.b16 %v6426
    %v6567 = vunpack.c.h.b16 %v6426
    %v6568 = vunpack.c.l.b16 %v6427
    %v6569 = vunpack.c.h.b16 %v6427
    %v6570 = vunpack.c.l.b16 %v6428
    %v6571 = vunpack.c.h.b16 %v6428
    %v6572 = vunpack.c.l.b16 %v6429
    %v6573 = vunpack.c.h.b16 %v6429
    %v6574 = vunpack.c.l.b16 %v6430
    %v6575 = vunpack.c.h.b16 %v6430
    %v6576 = vunpack.c.l.b16 %v6431
    %v6577 = vunpack.c.h.b16 %v6431
    %v6578 = vunpack.c.l.b16 %v6432
    %v6579 = vunpack.c.h.b16 %v6432
    %v6580 = vunpack.c.l.b16 %v6433
    %v6581 = vunpack.c.h.b16 %v6433
    %v6582 = vunpack.c.l.b16 %v6434
    %v6583 = vunpack.c.h.b16 %v6434
    %v6584 = vunpack.c.l.b16 %v6435
    %v6585 = vunpack.c.h.b16 %v6435
    %v6586 = vunpack.c.l.b16 %v6436
    %v6587 = vunpack.c.h.b16 %v6436
    %v6588 = vunpack.c.l.b16 %v6437
    %v6589 = vunpack.c.h.b16 %v6437
    %v6590 = vunpack.c.l.b16 %v6438
    %v6591 = vunpack.c.h.b16 %v6438
    %v6592 = vunpack.c.l.b16 %v6439
    %v6593 = vunpack.c.h.b16 %v6439
    %v6594 = vunpack.c.l.b16 %v6440
    %v6595 = vunpack.c.h.b16 %v6440
    %v6596 = vunpack.c.l.b16 %v6441
    %v6597 = vunpack.c.h.b16 %v6441
    %v6598 = vunpack.c.l.b16 %v6442
    %v6599 = vunpack.c.h.b16 %v6442
    %v6600 = vunpack.c.l.b16 %v6443
    %v6601 = vunpack.c.h.b16 %v6443
    %v6602 = vunpack.c.l.b16 %v6444
    %v6603 = vunpack.c.h.b16 %v6444
    %v6604 = vunpack.c.l.b16 %v6445
    %v6605 = vunpack.c.h.b16 %v6445
    %v6606 = vunpack.c.l.b16 %v6446
    %v6607 = vunpack.c.h.b16 %v6446
    %v6608 = vunpack.c.l.b16 %v6447
    %v6609 = vunpack.c.h.b16 %v6447
    %v6610 = vunpack.c.l.b16 %v6448
    %v6611 = vunpack.c.h.b16 %v6448
    %v6612 = vunpack.c.l.b16 %v6449
    %v6613 = vunpack.c.h.b16 %v6449
    %v6614 = vunpack.c.l.b16 %v6450
    %v6615 = vunpack.c.h.b16 %v6450
    %v6616 = vunpack.c.l.b16 %v6451
    %v6617 = vunpack.c.h.b16 %v6451
    %v6618 = vunpack.c.l.b16 %v6452
    %v6619 = vunpack.c.h.b16 %v6452
    %v6620 = vunpack.c.l.b16 %v6453
    %v6621 = vunpack.c.h.b16 %v6453
    %v6622 = vunpack.c.l.b16 %v6454
    %v6623 = vunpack.c.h.b16 %v6454
    %v6624 = vunpack.c.l.b16 %v6455
    %v6625 = vunpack.c.h.b16 %v6455
    %v6626 = vunpack.c.l.b16 %v6456
    %v6627 = vunpack.c.h.b16 %v6456
    %v6628 = vunpack.c.l.b16 %v6457
    %v6629 = vunpack.c.h.b16 %v6457
    %v6630 = vunpack.c.l.b16 %v6458
    %v6631 = vunpack.c.h.b16 %v6458
    %v6632 = vunpack.c.l.b16 %v6459
    %v6633 = vunpack.c.h.b16 %v6459
    %v6634 = vunpack.c.l.b16 %v6460
    %v6635 = vunpack.c.h.b16 %v6460
    %v6636 = vunpack.c.l.b16 %v6461
    %v6637 = vunpack.c.h.b16 %v6461
    %v6638 = vunpack.c.l.b16 %v6462
    %v6639 = vunpack.c.h.b16 %v6462
    %v6640 = vunpack.c.l.b16 %v6463
    %v6641 = vunpack.c.h.b16 %v6463
    %v6642 = vunpack.c.l.b16 %v6464
    %v6643 = vunpack.c.h.b16 %v6464
    %v6644 = vunpack.c.l.b16 %v6465
    %v6645 = vunpack.c.h.b16 %v6465
    %v6646 = vunpack.c.l.b16 %v6466
    %v6647 = vunpack.c.h.b16 %v6466
    %v6648 = vunpack.c.l.b16 %v6467
    %v6649 = vunpack.c.h.b16 %v6467
    %v6650 = vunpack.c.l.b16 %v6468
    %v6651 = vunpack.c.h.b16 %v6468
    %v6652 = vunpack.c.l.b16 %v6469
    %v6653 = vunpack.c.h.b16 %v6469
    %v6654 = vunpack.c.l.b16 %v6470
    %v6655 = vunpack.c.h.b16 %v6470
    %v6656 = vunpack.c.l.b16 %v6471
    %v6657 = vunpack.c.h.b16 %v6471
    %v6658 = vunpack.c.l.b16 %v6472
    %v6659 = vunpack.c.h.b16 %v6472
    %v6660 = vunpack.c.l.b16 %v6473
    %v6661 = vunpack.c.h.b16 %v6473
    %v6662 = vunpack.c.l.b16 %v6474
    %v6663 = vunpack.c.h.b16 %v6474
    %v6664 = vunpack.c.l.b16 %v6475
    %v6665 = vunpack.c.h.b16 %v6475
    %v6666 = vunpack.c.l.b16 %v6476
    %v6667 = vunpack.c.h.b16 %v6476
    %v6668 = vunpack.c.l.b16 %v6477
    %v6669 = vunpack.c.h.b16 %v6477
    %v6670 = vpack.c.b16 %v6546, %v6542
    %v6671 = vpack.c.b16 %v6547, %v6543
    %v6672 = vpack.c.b16 %v6548, %v6544
    %v6673 = vpack.c.b16 %v6549, %v6545
    %v6674 = vpack.c.b16 %v6554, %v6550
    %v6675 = vpack.c.b16 %v6555, %v6551
    %v6676 = vpack.c.b16 %v6556, %v6552
    %v6677 = vpack.c.b16 %v6557, %v6553
    %v6678 = vpack.c.b16 %v6562, %v6558
    %v6679 = vpack.c.b16 %v6563, %v6559
    %v6680 = vpack.c.b16 %v6564, %v6560
    %v6681 = vpack.c.b16 %v6565, %v6561
    %v6682 = vpack.c.b16 %v6570, %v6566
    %v6683 = vpack.c.b16 %v6571, %v6567
    %v6684 = vpack.c.b16 %v6572, %v6568
    %v6685 = vpack.c.b16 %v6573, %v6569
    %v6686 = vpack.c.b16 %v6578, %v6574
    %v6687 = vpack.c.b16 %v6579, %v6575
    %v6688 = vpack.c.b16 %v6580, %v6576
    %v6689 = vpack.c.b16 %v6581, %v6577
    %v6690 = vpack.c.b16 %v6586, %v6582
    %v6691 = vpack.c.b16 %v6587, %v6583
    %v6692 = vpack.c.b16 %v6588, %v6584
    %v6693 = vpack.c.b16 %v6589, %v6585
    %v6694 = vpack.c.b16 %v6594, %v6590
    %v6695 = vpack.c.b16 %v6595, %v6591
    %v6696 = vpack.c.b16 %v6596, %v6592
    %v6697 = vpack.c.b16 %v6597, %v6593
    %v6698 = vpack.c.b16 %v6602, %v6598
    %v6699 = vpack.c.b16 %v6603, %v6599
    %v6700 = vpack.c.b16 %v6604, %v6600
    %v6701 = vpack.c.b16 %v6605, %v6601
    %v6702 = vpack.c.b16 %v6610, %v6606
    %v6703 = vpack.c.b16 %v6611, %v6607
    %v6704 = vpack.c.b16 %v6612, %v6608
    %v6705 = vpack.c.b16 %v6613, %v6609
    %v6706 = vpack.c.b16 %v6618, %v6614
    %v6707 = vpack.c.b16 %v6619, %v6615
    %v6708 = vpack.c.b16 %v6620, %v6616
    %v6709 = vpack.c.b16 %v6621, %v6617
    %v6710 = vpack.c.b16 %v6626, %v6622
    %v6711 = vpack.c.b16 %v6627, %v6623
    %v6712 = vpack.c.b16 %v6628, %v6624
    %v6713 = vpack.c.b16 %v6629, %v6625
    %v6714 = vpack.c.b16 %v6634, %v6630
    %v6715 = vpack.c.b16 %v6635, %v6631
    %v6716 = vpack.c.b16 %v6636, %v6632
    %v6717 = vpack.c.b16 %v6637, %v6633
    %v6718 = vpack.c.b16 %v6642, %v6638
    %v6719 = vpack.c.b16 %v6643, %v6639
    %v6720 = vpack.c.b16 %v6644, %v6640
    %v6721 = vpack.c.b16 %v6645, %v6641
    %v6722 = vpack.c.b16 %v6650, %v6646
    %v6723 = vpack.c.b16 %v6651, %v6647
    %v6724 = vpack.c.b16 %v6652, %v6648
    %v6725 = vpack.c.b16 %v6653, %v6649
    %v6726 = vpack.c.b16 %v6658, %v6654
    %v6727 = vpack.c.b16 %v6659, %v6655
    %v6728 = vpack.c.b16 %v6660, %v6656
    %v6729 = vpack.c.b16 %v6661, %v6657
    %v6730 = vpack.c.b16 %v6666, %v6662
    %v6731 = vpack.c.b16 %v6667, %v6663
    %v6732 = vpack.c.b16 %v6668, %v6664
    %v6733 = vpack.c.b16 %v6669, %v6665
    %6798 = vmatprep.subr.bf16.mxu0 %v6671
    %6799 = vmatpush1.bf16.msra.mxu0 %v6670
    %6800 = vmatprep.subr.bf16.mxu0 %v6675
    %6801 = vmatpush1.bf16.msra.mxu0 %v6674
    %6802 = vmatprep.subr.bf16.mxu0 %v6679
    %6803 = vmatpush1.bf16.msra.mxu0 %v6678
    %6804 = vmatprep.subr.bf16.mxu0 %v6683
    %6805 = vmatpush1.bf16.msra.mxu0 %v6682
    %6806 = vmatprep.subr.bf16.mxu0 %v6687
    %6807 = vmatpush1.bf16.msra.mxu0 %v6686
    %6808 = vmatprep.subr.bf16.mxu0 %v6691
    %6809 = vmatpush1.bf16.msra.mxu0 %v6690
    %6810 = vmatprep.subr.bf16.mxu0 %v6695
    %6811 = vmatpush1.bf16.msra.mxu0 %v6694
    %6812 = vmatprep.subr.bf16.mxu0 %v6699
    %6813 = vmatpush1.bf16.msra.mxu0 %v6698
    %6814 = vmatprep.subr.bf16.mxu0 %v6703
    %6815 = vmatpush1.bf16.msra.mxu0 %v6702
    %6816 = vmatprep.subr.bf16.mxu0 %v6707
    %6817 = vmatpush1.bf16.msra.mxu0 %v6706
    %6818 = vmatprep.subr.bf16.mxu0 %v6711
    %6819 = vmatpush1.bf16.msra.mxu0 %v6710
    %6820 = vmatprep.subr.bf16.mxu0 %v6715
    %6821 = vmatpush1.bf16.msra.mxu0 %v6714
    %6822 = vmatprep.subr.bf16.mxu0 %v6719
    %6823 = vmatpush1.bf16.msra.mxu0 %v6718
    %6824 = vmatprep.subr.bf16.mxu0 %v6723
    %6825 = vmatpush1.bf16.msra.mxu0 %v6722
    %6826 = vmatprep.subr.bf16.mxu0 %v6727
    %6827 = vmatpush1.bf16.msra.mxu0 %v6726
    %6828 = vmatprep.subr.bf16.mxu0 %v6731
    %6829 = vmatpush1.bf16.msra.mxu0 %v6730
    %6830 = vmatprep.mubr.bf16.mxu0 %v6413
    %6831 = vmatmul.mubr.bf16.gmra.mrb[0].mxu0 %v6412
    %v6832 = vpop.f32.mrb[0].mxu0
    %v6833 = vadd.f32 %v855, %v6832
    %v6834 = vpop.f32.mrb[0].mxu0
    %v6835 = vadd.f32 %v859, %v6834
    %v6836 = vpop.f32.mrb[0].mxu0
    %v6837 = vpop.f32.mrb[0].mxu0
    %6838 = vdwg.mxu0
    %6839 = vmatprep.subr.bf16.mxu0 %v6673
    %6840 = vmatpush1.bf16.msra.mxu0 %v6672
    %6841 = vmatprep.subr.bf16.mxu0 %v6677
    %6842 = vmatpush1.bf16.msra.mxu0 %v6676
    %6843 = vmatprep.subr.bf16.mxu0 %v6681
    %6844 = vmatpush1.bf16.msra.mxu0 %v6680
    %6845 = vmatprep.subr.bf16.mxu0 %v6685
    %6846 = vmatpush1.bf16.msra.mxu0 %v6684
    %6847 = vmatprep.subr.bf16.mxu0 %v6689
    %6848 = vmatpush1.bf16.msra.mxu0 %v6688
    %6849 = vmatprep.subr.bf16.mxu0 %v6693
    %6850 = vmatpush1.bf16.msra.mxu0 %v6692
    %6851 = vmatprep.subr.bf16.mxu0 %v6697
    %6852 = vmatpush1.bf16.msra.mxu0 %v6696
    %6853 = vmatprep.subr.bf16.mxu0 %v6701
    %6854 = vmatpush1.bf16.msra.mxu0 %v6700
    %6855 = vmatprep.subr.bf16.mxu0 %v6705
    %6856 = vmatpush1.bf16.msra.mxu0 %v6704
    %6857 = vmatprep.subr.bf16.mxu0 %v6709
    %6858 = vmatpush1.bf16.msra.mxu0 %v6708
    %6859 = vmatprep.subr.bf16.mxu0 %v6713
    %6860 = vmatpush1.bf16.msra.mxu0 %v6712
    %6861 = vmatprep.subr.bf16.mxu0 %v6717
    %6862 = vmatpush1.bf16.msra.mxu0 %v6716
    %6863 = vmatprep.subr.bf16.mxu0 %v6721
    %6864 = vmatpush1.bf16.msra.mxu0 %v6720
    %6865 = vmatprep.subr.bf16.mxu0 %v6725
    %6866 = vmatpush1.bf16.msra.mxu0 %v6724
    %6867 = vmatprep.subr.bf16.mxu0 %v6729
    %6868 = vmatpush1.bf16.msra.mxu0 %v6728
    %6869 = vmatprep.subr.bf16.mxu0 %v6733
    %6870 = vmatpush1.bf16.msra.mxu0 %v6732
    %6871 = vmatprep.mubr.bf16.mxu0 %v6413
    %6872 = vmatmul.mubr.bf16.gmra.mrb[0].mxu0 %v6412
    %v6873 = vpop.f32.mrb[0].mxu0
    %v6874 = vadd.f32 %v863, %v6873
    %v6875 = vpop.f32.mrb[0].mxu0
    %v6876 = vadd.f32 %v867, %v6875
    %v6877 = vpop.f32.mrb[0].mxu0
    %v6878 = vpop.f32.mrb[0].mxu0
    %6879 = vdwg.mxu0
    %v6880 = vxor.u32 %v6833, 2147483648
    %v6881 = vmul.f32 %v6880, 1.442695
    %v6882 = vpow.pop %v6881
    %v6883 = vadd.f32 %v6882, 1.0
    %v6884 = vrcp.pop %v6883
    %v6885 = vmul.f32 1.0, %v6884
    %v6886 = vxor.u32 %v6835, 2147483648
    %v6887 = vmul.f32 %v6886, 1.442695
    %v6888 = vpow.pop %v6887
    %v6889 = vadd.f32 %v6888, 1.0
    %v6890 = vrcp.pop %v6889
    %v6891 = vmul.f32 1.0, %v6890
    %v6892 = vtanh.pop %v6874
    %v6893 = vxor.u32 %v6876, 2147483648
    %v6894 = vmul.f32 %v6893, 1.442695
    %v6895 = vpow.pop %v6894
    %v6896 = vadd.f32 %v6895, 1.0
    %v6897 = vrcp.pop %v6896
    %v6898 = vmul.f32 1.0, %v6897
    %v6899 = vmul.f32 %v6891, %v6100
    %v6900 = vmul.f32 %v6885, %v6892
    %v6901 = vadd.f32 %v6899, %v6900
    %v6902 = vtanh.pop %v6901
    %v6903 = vmul.f32 %v6898, %v6902
    %s6904 = scalar_lea.vmem [#allocation3], 56
    %6905 = vst [vmem:[%s6904] sm:$0xff] %v6903
    %v6906 = vld [vmem:[#allocation3] sm:$0xff]
    %v6907 = vld [vmem:[#allocation3 + $0x8] sm:$0xff]
    %v6908 = vld [vmem:[#allocation3 + $0x10] sm:$0xff]
    %v6909 = vld [vmem:[#allocation3 + $0x18] sm:$0xff]
    %v6910 = vld [vmem:[#allocation3 + $0x20] sm:$0xff]
    %v6911 = vld [vmem:[#allocation3 + $0x28] sm:$0xff]
    %v6912 = vld [vmem:[#allocation3 + $0x30] sm:$0xff]
    %v6913 = vld [vmem:[#allocation3 + $0x38] sm:$0xff]
    %v6914 = vpack.c.bf16 %v6907, %v6906
    %v6915 = vpack.c.bf16 %v6909, %v6908
    %v6916 = vpack.c.bf16 %v6911, %v6910
    %v6917 = vpack.c.bf16 %v6913, %v6912
    %v6918 = vld [vmem:[%s8] sm:$0xf]
    %v6919 = vld [vmem:[%s8 + $0x4] sm:$0xf]
    %v6920 = vld [vmem:[%s8 + $0x8] sm:$0xf]
    %v6921 = vld [vmem:[%s8 + $0xc] sm:$0xf]
    %v6922 = vld [vmem:[%s8 + $0x10] sm:$0xf]
    %v6923 = vld [vmem:[%s8 + $0x14] sm:$0xf]
    %v6924 = vld [vmem:[%s8 + $0x18] sm:$0xf]
    %v6925 = vld [vmem:[%s8 + $0x1c] sm:$0xf]
    %v6926 = vld [vmem:[%s8 + $0x20] sm:$0xf]
    %v6927 = vld [vmem:[%s8 + $0x24] sm:$0xf]
    %v6928 = vld [vmem:[%s8 + $0x28] sm:$0xf]
    %v6929 = vld [vmem:[%s8 + $0x2c] sm:$0xf]
    %v6930 = vld [vmem:[%s8 + $0x30] sm:$0xf]
    %v6931 = vld [vmem:[%s8 + $0x34] sm:$0xf]
    %v6932 = vld [vmem:[%s8 + $0x38] sm:$0xf]
    %v6933 = vld [vmem:[%s8 + $0x3c] sm:$0xf]
    %v6934 = vld [vmem:[%s9] sm:$0x1]
    %v6936 = vlaneseq
    %v6937 = vshrl.u32 %v6936, 7
    %v6938 = vsub.s32 0, %v6937
    %v6939 = vrot.slane %v6934, %v6938
    %v6957 = vunpack.c.l.b16 %v6918
    %v6958 = vunpack.c.l.b16 %v6919
    %v6959 = vunpack.c.l.b16 %v6920
    %v6960 = vunpack.c.l.b16 %v6921
    %v6961 = vunpack.c.l.b16 %v6922
    %v6962 = vunpack.c.l.b16 %v6923
    %v6963 = vunpack.c.l.b16 %v6924
    %v6964 = vunpack.c.l.b16 %v6925
    %v6965 = vunpack.c.l.b16 %v6926
    %v6966 = vunpack.c.l.b16 %v6927
    %v6967 = vunpack.c.l.b16 %v6928
    %v6968 = vunpack.c.l.b16 %v6929
    %v6969 = vunpack.c.l.b16 %v6930
    %v6970 = vunpack.c.l.b16 %v6931
    %v6971 = vunpack.c.l.b16 %v6932
    %v6972 = vunpack.c.l.b16 %v6933
    %v6973 = vpack.c.b16 %v6958, %v6957
    %v6974 = vpack.c.b16 %v6960, %v6959
    %v6975 = vpack.c.b16 %v6962, %v6961
    %v6976 = vpack.c.b16 %v6964, %v6963
    %v6977 = vpack.c.b16 %v6966, %v6965
    %v6978 = vpack.c.b16 %v6968, %v6967
    %v6979 = vpack.c.b16 %v6970, %v6969
    %v6980 = vpack.c.b16 %v6972, %v6971
    %6989 = vmatprep.subr.bf16.mxu0 0
    %6990 = vmatpush1.bf16.msra.mxu0 %v6973
    %6991 = vmatprep.subr.bf16.mxu0 0
    %6992 = vmatpush1.bf16.msra.mxu0 %v6974
    %6993 = vmatprep.subr.bf16.mxu0 0
    %6994 = vmatpush1.bf16.msra.mxu0 %v6975
    %6995 = vmatprep.subr.bf16.mxu0 0
    %6996 = vmatpush1.bf16.msra.mxu0 %v6976
    %6997 = vmatprep.subr.bf16.mxu0 0
    %6998 = vmatpush1.bf16.msra.mxu0 %v6977
    %6999 = vmatprep.subr.bf16.mxu0 0
    %7000 = vmatpush1.bf16.msra.mxu0 %v6978
    %7001 = vmatprep.subr.bf16.mxu0 0
    %7002 = vmatpush1.bf16.msra.mxu0 %v6979
    %7003 = vmatprep.subr.bf16.mxu0 0
    %7004 = vmatpush1.bf16.msra.mxu0 %v6980
    %7005 = vmatprep.subr.bf16.mxu0 0
    %7006 = vmatpush1.bf16.msra.mxu0 0
    %7007 = vmatprep.subr.bf16.mxu0 0
    %7008 = vmatpush1.bf16.msra.mxu0 0
    %7009 = vmatprep.subr.bf16.mxu0 0
    %7010 = vmatpush1.bf16.msra.mxu0 0
    %7011 = vmatprep.subr.bf16.mxu0 0
    %7012 = vmatpush1.bf16.msra.mxu0 0
    %7013 = vmatprep.subr.bf16.mxu0 0
    %7014 = vmatpush1.bf16.msra.mxu0 0
    %7015 = vmatprep.subr.bf16.mxu0 0
    %7016 = vmatpush1.bf16.msra.mxu0 0
    %7017 = vmatprep.subr.bf16.mxu0 0
    %7018 = vmatpush1.bf16.msra.mxu0 0
    %7019 = vmatprep.subr.bf16.mxu0 0
    %7020 = vmatpush1.bf16.msra.mxu0 0
    %7021 = vmatprep.mubr.bf16.mxu0 0
    %7022 = vmatmul.mubr.bf16.gmra.mrb[0].mxu0 %v6914
    %v7023 = vpop.f32.mrb[0].mxu0
    %v7024 = vadd.f32 %v6939, %v7023
    %v7025 = vpop.f32.mrb[0].mxu0
    %v7026 = vpop.f32.mrb[0].mxu0
    %v7027 = vadd.f32 %v6939, %v7026
    %v7028 = vpop.f32.mrb[0].mxu0
    %7029 = vmatprep.mubr.bf16.mxu0 0
    %7030 = vmatmul.mubr.bf16.gmra.mrb[0].mxu0 %v6915
    %v7031 = vpop.f32.mrb[0].mxu0
    %v7032 = vadd.f32 %v6939, %v7031
    %v7033 = vpop.f32.mrb[0].mxu0
    %v7034 = vpop.f32.mrb[0].mxu0
    %v7035 = vadd.f32 %v6939, %v7034
    %v7036 = vpop.f32.mrb[0].mxu0
    %7037 = vmatprep.mubr.bf16.mxu0 0
    %7038 = vmatmul.mubr.bf16.gmra.mrb[0].mxu0 %v6916
    %v7039 = vpop.f32.mrb[0].mxu0
    %v7040 = vadd.f32 %v6939, %v7039
    %v7041 = vpop.f32.mrb[0].mxu0
    %v7042 = vpop.f32.mrb[0].mxu0
    %v7043 = vadd.f32 %v6939, %v7042
    %v7044 = vpop.f32.mrb[0].mxu0
    %7045 = vmatprep.mubr.bf16.mxu0 0
    %7046 = vmatmul.mubr.bf16.gmra.mrb[0].mxu0 %v6917
    %v7047 = vpop.f32.mrb[0].mxu0
    %v7048 = vadd.f32 %v6939, %v7047
    %v7049 = vpop.f32.mrb[0].mxu0
    %v7050 = vpop.f32.mrb[0].mxu0
    %v7051 = vadd.f32 %v6939, %v7050
    %v7052 = vpop.f32.mrb[0].mxu0
    %7053 = vdwg.mxu0
    %7054 = vst [vmem:[%s10] sm:$0xff] %v7024
    %7055 = vst [vmem:[%s10 + $0x8] sm:$0xff] %v7027
    %7056 = vst [vmem:[%s10 + $0x10] sm:$0xff] %v7032
    %7057 = vst [vmem:[%s10 + $0x18] sm:$0xff] %v7035
    %7058 = vst [vmem:[%s10 + $0x20] sm:$0xff] %v7040
    %7059 = vst [vmem:[%s10 + $0x28] sm:$0xff] %v7043
    %7060 = vst [vmem:[%s10 + $0x30] sm:$0xff] %v7048
    %7061 = vst [vmem:[%s10 + $0x38] sm:$0xff] %v7051
    %7062 = vst [vmem:[%s11] sm:$0xff] %v6411
    %7063 = vst [vmem:[%s12] sm:$0xff] %v6409
    %s7064 = scalar_lea.vmem %s11, 8
    %7065 = vst [vmem:[%s7064] sm:$0xff] %v6903
    %s7066 = scalar_lea.vmem %s12, 8
    %7067 = vst [vmem:[%s7066] sm:$0xff] %v6901
    // Predicated region
    $region50: #{lstm_peptides_forward.1} parent=1 // pred_check
      _
    $region51: #{lstm_peptides_forward.1} parent=1 // pred_check_branch
      %7069 = sbr.rel (0) target = $region53
    $region52: #{lstm_peptides_forward.1} parent=1 // pred_region
      _
    $region53: #{lstm_peptides_forward.1} parent=1 // pred_fallthru
      _
    // Predicated region
    $region54: #{lstm_peptides_forward.1} parent=1 // pred_check
      _
    $region55: #{lstm_peptides_forward.1} parent=1 // pred_check_branch
      %7071 = sbr.rel (0) target = $region57
    $region56: #{lstm_peptides_forward.1} parent=1 // pred_region
      _
    $region57: #{lstm_peptides_forward.1} parent=1 // pred_fallthru
      _
    // Predicated region
    $region58: #{lstm_peptides_forward.1} parent=1 // pred_check
      _
    $region59: #{lstm_peptides_forward.1} parent=1 // pred_check_branch
      %7073 = sbr.rel (0) target = $region61
    $region60: #{lstm_peptides_forward.1} parent=1 // pred_region
      _
    $region61: #{lstm_peptides_forward.1} parent=1 // pred_fallthru
      _
    // Predicated region
    $region62: #{lstm_peptides_forward.1} parent=1 // pred_check
      _
    $region63: #{lstm_peptides_forward.1} parent=1 // pred_check_branch
      %7075 = sbr.rel (0) target = $region65
    $region64: #{lstm_peptides_forward.1} parent=1 // pred_region
      _
    $region65: #{lstm_peptides_forward.1} parent=1 // pred_fallthru
      _
    // Predicated region
    $region66: #{lstm_peptides_forward.1} parent=1 // pred_check
      _
    $region67: #{lstm_peptides_forward.1} parent=1 // pred_check_branch
      %7077 = sbr.rel (0) target = $region69
    $region68: #{lstm_peptides_forward.1} parent=1 // pred_region
      _
    $region69: #{lstm_peptides_forward.1} parent=1 // pred_fallthru
      _
    // Predicated region
    $region70: #{lstm_peptides_forward.1} parent=1 // pred_check
      _
    $region71: #{lstm_peptides_forward.1} parent=1 // pred_check_branch
      %7079 = sbr.rel (0) target = $region73
    $region72: #{lstm_peptides_forward.1} parent=1 // pred_region
      _
    $region73: #{lstm_peptides_forward.1} parent=1 // pred_fallthru
      _
    %7080 = vsyncpa [#allocation5], 1
    %7081 = vsyncpa [#allocation7], 1

</llo_original>
